<compile_context>
chip_gen: v6e
topology: v6e:2x2x1
jax: 0.10.0
libtpu: 0.0.40
codegen_flags: <defaults>
</compile_context>

<pallas_src>
import functools

import jax
import jax.numpy as jnp
from jax import lax
from jax.experimental import pallas as pl
from jax.experimental.pallas import tpu as pltpu


_LAYERS = ("c_down1", "c_down2", "c_up1", "c_up2",
           "d_down1", "d_down2", "d_up1", "d_up2")


# ----------------------------------------------------------------------------
# Fused DAM kernel: one grid step = `bpack` images, everything in VMEM/vregs.
# ----------------------------------------------------------------------------
def _dam_kernel(w_ref, x_ref, osum_ref, odc_ref, od_ref, oc_ref,
                *, H, W, bpack, couts):
    """w_ref : (8, Cmax, Kmax) packed per-layer weight matrices (bias = last col).
       x_ref : (num, bpack*H*W) input, images concatenated along the lane axis."""
    HW = H * W
    L = bpack * HW                      # lane extent of every activation
    PAD = W + 1                         # zero pad so all 9 taps are in-bounds

    def _mod(a, m):
        if m & (m - 1) == 0:
            return jnp.bitwise_and(a, m - 1)
        return lax.rem(a, m)

    # --- per-image boundary masks (built once, shared by all 8 layers) -----
    idx = lax.broadcasted_iota(jnp.int32, (1, L), 1)
    col = _mod(idx, W)                  # x position within a row
    pos = _mod(idx, HW)                 # flat position within one image

    taps = [(dy, dx) for dy in (-1, 0, 1) for dx in (-1, 0, 1)]
    masks = {}
    for dy, dx in taps:
        conds = []
        if dy < 0:
            conds.append(pos >= W)               # row y-1 exists
        elif dy > 0:
            conds.append(pos < (H - 1) * W)      # row y+1 exists
        if dx < 0:
            conds.append(col >= 1)               # col x-1 exists
        elif dx > 0:
            conds.append(col < W - 1)            # col x+1 exists
        m = None
        for cnd in conds:
            m = cnd if m is None else jnp.logical_and(m, cnd)
        masks[(dy, dx)] = m

    ones_row = jnp.ones((1, L), jnp.float32)

    def tap_stack(a):
        """(Cin, L) -> (9*Cin + 1, L): 9 shifted/masked taps + bias ones row."""
        cin = a.shape[0]
        zpad = jnp.zeros((cin, PAD), jnp.float32)
        a_pad = jnp.concatenate([zpad, a, zpad], axis=1)     # (cin, L + 2*PAD)
        rows = []
        for dy, dx in taps:
            if dy == 0 and dx == 0:
                r = a
            else:
                off = PAD + dy * W + dx
                r = lax.slice_in_dim(a_pad, off, off + L, axis=1)
            m = masks[(dy, dx)]
            rows.append(jnp.where(m, r, 0.0) if m is not None else r)
        rows.append(ones_row)
        return jnp.concatenate(rows, axis=0)

    def conv_from_stack(st, lidx, act):
        """One MXU matmul: (Cout, 9*Cin+1) x (9*Cin+1, L) -> (Cout, L)."""
        cout = couts[lidx]
        k = st.shape[0]
        wmat = w_ref[lidx][:cout, :k]                        # hoisted VMEM load
        y = jnp.dot(wmat, st, preferred_element_type=jnp.float32,
                    precision=lax.Precision.HIGHEST)
        if act == "relu":
            return jnp.maximum(y, 0.0)
        return jax.nn.sigmoid(y)                             # "sigmoid"

    def conv3x3(a, lidx, act):
        return conv_from_stack(tap_stack(a), lidx, act)

    x = x_ref[...]                                           # (num, L)
    x_st = tap_stack(x)                                      # shared by branches

    # Colorbranch: c = sig(conv(relu(conv(x)))); uc = relu(conv(relu(conv(c))))
    h = conv_from_stack(x_st, 0, "relu")
    c = conv3x3(h, 1, "sigmoid")
    h = conv3x3(c, 2, "relu")
    uc = conv3x3(h, 3, "relu")

    # Detailbranch: d = sig(conv(relu(conv(x)))); ud = relu(conv(relu(conv(d))))
    h = conv_from_stack(x_st, 4, "relu")
    d = conv3x3(h, 5, "sigmoid")
    h = conv3x3(d, 6, "relu")
    ud = conv3x3(h, 7, "relu")

    # Fused epilogue: (u1 + u2) = uc + ud + 2x ; d*c ; d ; c  (full-block stores)
    osum_ref[...] = uc + ud + 2.0 * x
    od_ref[...] = d
    oc_ref[...] = c
    odc_ref[...] = d * c                                     # (1,L)*(3,L)->(3,L)


# ----------------------------------------------------------------------------
# Weight packing: per layer a (Cout, 9*Cin + 1) matrix (column order = tap
# major, input-channel minor, bias last), all layers zero-padded into one
# (8, Cmax, Kmax) f32 tensor that lives in VMEM inside the kernel.
# ----------------------------------------------------------------------------
def _pack_weights(params):
    mats = []
    for name in _LAYERS:
        w, b = params[name]                   # w: (3,3,Cin,Cout) HWIO, b: (Cout,)
        _, _, cin, cout = w.shape
        wm = jnp.transpose(w, (3, 0, 1, 2)).reshape(cout, 9 * cin)
        wm = jnp.concatenate([wm, b[:, None]], axis=1)       # (cout, 9*cin+1)
        mats.append(wm)
    cmax = max(m.shape[0] for m in mats)
    kmax = max(m.shape[1] for m in mats)
    packed = jnp.zeros((len(mats), cmax, kmax), jnp.float32)
    for i, m in enumerate(mats):
        packed = packed.at[i, :m.shape[0], :m.shape[1]].set(m)
    return packed


# ----------------------------------------------------------------------------
# DAM forward (NCHW in / NCHW out, matching the PyTorch module)
# ----------------------------------------------------------------------------
def dam_forward(params, x_nchw, *, bpack=1):
    B, num, H, W = x_nchw.shape
    HW = H * W
    assert B % bpack == 0, "bpack must divide the batch size"
    G = B // bpack
    L = bpack * HW

    half = params["d_down1"][0].shape[-1]
    couts = (num, 3, num, num, half, 1, half, num)
    packed_w = _pack_weights(params)
    Lw, Cmax, Kmax = packed_w.shape

    # NCHW -> (G, num, bpack*HW): images of one group concatenated on lanes.
    x = (x_nchw.reshape(G, bpack, num, HW)
               .transpose(0, 2, 1, 3)
               .reshape(G, num, L))

    kern = functools.partial(_dam_kernel, H=H, W=W, bpack=bpack, couts=couts)

    def blk(c):
        return pl.BlockSpec((None, c, L), lambda g: (g, 0, 0))

    w_spec = pl.BlockSpec((Lw, Cmax, Kmax), lambda g: (0, 0, 0))

    osum, odc, od, oc = pl.pallas_call(
        kern,
        out_shape=(jax.ShapeDtypeStruct((G, num, L), jnp.float32),
                   jax.ShapeDtypeStruct((G, 3, L), jnp.float32),
                   jax.ShapeDtypeStruct((G, 1, L), jnp.float32),
                   jax.ShapeDtypeStruct((G, 3, L), jnp.float32)),
        grid=(G,),
        in_specs=[w_spec, blk(num)],
        out_specs=(blk(num), blk(3), blk(1), blk(3)),
        compiler_params=pltpu.CompilerParams(
            dimension_semantics=("parallel",),
            vmem_limit_bytes=32 * 1024 * 1024),
    )(packed_w, x)

    def unpack(t):
        c = t.shape[1]
        return (t.reshape(G, c, bpack, HW)
                 .transpose(0, 2, 1, 3)
                 .reshape(B, c, H, W))

    return unpack(osum), unpack(odc), unpack(od), unpack(oc)


# ----------------------------------------------------------------------------
# Parameters (deterministic synthetic init, mirrors DAM(num).__init__ shapes)
# ----------------------------------------------------------------------------
def init_dam_params(key, num, rate=0.5):
    half = int(num * rate)
    shapes = {
        # Colorbranch
        "c_down1": (num, num), "c_down2": (num, 3),
        "c_up1": (3, num), "c_up2": (num, num),
        # Detailbranch
        "d_down1": (num, half), "d_down2": (half, 1),
        "d_up1": (1, half), "d_up2": (half, num),
    }
    params = {}
    for name, (cin, cout) in shapes.items():
        key, kw, kb = jax.random.split(key, 3)
        w = 0.1 * jax.random.normal(kw, (3, 3, cin, cout), jnp.float32)
        b = 0.05 * jax.random.normal(kb, (cout,), jnp.float32)
        params[name] = (w, b)
    return params


# ----------------------------------------------------------------------------
# Pure-JAX reference (for correctness check)
# ----------------------------------------------------------------------------
def _ref_conv(x, w, b, act):
    y = lax.conv_general_dilated(
        x, w, (1, 1), "SAME",
        dimension_numbers=("NHWC", "HWIO", "NHWC"),
        precision=lax.Precision.HIGHEST) + b
    if act == "relu":
        return jnp.maximum(y, 0.0)
    if act == "sigmoid":
        return jax.nn.sigmoid(y)
    return y


def dam_forward_ref(params, x_nchw):
    x = jnp.transpose(x_nchw, (0, 2, 3, 1))
    h = _ref_conv(x, *params["c_down1"], act="relu")
    c = _ref_conv(h, *params["c_down2"], act="sigmoid")
    h = _ref_conv(c, *params["c_up1"], act="relu")
    u1 = _ref_conv(h, *params["c_up2"], act="relu") + x
    h = _ref_conv(x, *params["d_down1"], act="relu")
    d = _ref_conv(h, *params["d_down2"], act="sigmoid")
    h = _ref_conv(d, *params["d_up1"], act="relu")
    u2 = _ref_conv(h, *params["d_up2"], act="relu") + x
    to_nchw = lambda t: jnp.transpose(t, (0, 3, 1, 2))
    return to_nchw(u1 + u2), to_nchw(d * c), to_nchw(d), to_nchw(c)


if __name__ == "__main__":
    num, B, H, W = 4, 2, 16, 16
    key = jax.random.PRNGKey(0)
    key, kx = jax.random.split(key)
    x = jax.random.normal(kx, (B, num, H, W), jnp.float32)

    params = init_dam_params(key, num)

    fwd = jax.jit(functools.partial(dam_forward, bpack=2))
    outs = jax.block_until_ready(fwd(params, x))

    refs = dam_forward_ref(params, x)
    for o, r in zip(outs, refs):
        assert o.shape == r.shape, (o.shape, r.shape)
        err = float(jnp.max(jnp.abs(o - r)))
        assert jnp.allclose(o, r, atol=1e-4, rtol=1e-4), err

    print("KERNEL_OK")
</pallas_src>

<mosaic_0001>
module attributes {stable_mosaic.version = 11 : i64} {
  func.func @_dam_kernel(%arg0: i32, %arg1: memref<8x4x37xf32, #tpu.memory_space<vmem>>, %arg2: memref<1x4x512xf32, #tpu.memory_space<vmem>>, %arg3: memref<1x4x512xf32, #tpu.memory_space<vmem>>, %arg4: memref<1x3x512xf32, #tpu.memory_space<vmem>>, %arg5: memref<1x1x512xf32, #tpu.memory_space<vmem>>, %arg6: memref<1x3x512xf32, #tpu.memory_space<vmem>>) attributes {dimension_semantics = [#tpu.dimension_semantics<parallel>], iteration_bounds = array<i64: 1>, scalar_prefetch = 0 : i64, scratch_operands = 0 : i64, tpu.core_type = #tpu.core_type<tc>, window_params = [{pipeline_mode = #tpu.pipeline_mode<synchronous>, transform_indices = @transform_0, window_bounds = array<i64: 8, 4, 37>}, {transform_indices = @transform_1, window_bounds = array<i64: 1, 4, 512>}, {transform_indices = @transform_2, window_bounds = array<i64: 1, 4, 512>}, {transform_indices = @transform_3, window_bounds = array<i64: 1, 3, 512>}, {transform_indices = @transform_4, window_bounds = array<i64: 1, 1, 512>}, {transform_indices = @transform_5, window_bounds = array<i64: 1, 3, 512>}]} {
    %0 = tpu.iota {dimensions = array<i32: 1>} : vector<1x512xi32>
    %c15_i32 = arith.constant 15 : i32
    %1 = vector.broadcast %c15_i32 : i32 to vector<1x512xi32>
    %2 = arith.andi %0, %1 : vector<1x512xi32>
    %c255_i32 = arith.constant 255 : i32
    %3 = vector.broadcast %c255_i32 : i32 to vector<1x512xi32>
    %4 = arith.andi %0, %3 : vector<1x512xi32>
    %c16_i32 = arith.constant 16 : i32
    %5 = vector.broadcast %c16_i32 : i32 to vector<1x512xi32>
    %6 = arith.cmpi sge, %4, %5 : vector<1x512xi32>
    %c1_i32 = arith.constant 1 : i32
    %7 = vector.broadcast %c1_i32 : i32 to vector<1x512xi32>
    %8 = arith.cmpi sge, %2, %7 : vector<1x512xi32>
    %9 = arith.andi %6, %8 : vector<1x512xi1>
    %c16_i32_0 = arith.constant 16 : i32
    %10 = vector.broadcast %c16_i32_0 : i32 to vector<1x512xi32>
    %11 = arith.cmpi sge, %4, %10 : vector<1x512xi32>
    %c16_i32_1 = arith.constant 16 : i32
    %12 = vector.broadcast %c16_i32_1 : i32 to vector<1x512xi32>
    %13 = arith.cmpi sge, %4, %12 : vector<1x512xi32>
    %c15_i32_2 = arith.constant 15 : i32
    %14 = vector.broadcast %c15_i32_2 : i32 to vector<1x512xi32>
    %15 = arith.cmpi slt, %2, %14 : vector<1x512xi32>
    %16 = arith.andi %13, %15 : vector<1x512xi1>
    %c1_i32_3 = arith.constant 1 : i32
    %17 = vector.broadcast %c1_i32_3 : i32 to vector<1x512xi32>
    %18 = arith.cmpi sge, %2, %17 : vector<1x512xi32>
    %c15_i32_4 = arith.constant 15 : i32
    %19 = vector.broadcast %c15_i32_4 : i32 to vector<1x512xi32>
    %20 = arith.cmpi slt, %2, %19 : vector<1x512xi32>
    %c240_i32 = arith.constant 240 : i32
    %21 = vector.broadcast %c240_i32 : i32 to vector<1x512xi32>
    %22 = arith.cmpi slt, %4, %21 : vector<1x512xi32>
    %c1_i32_5 = arith.constant 1 : i32
    %23 = vector.broadcast %c1_i32_5 : i32 to vector<1x512xi32>
    %24 = arith.cmpi sge, %2, %23 : vector<1x512xi32>
    %25 = arith.andi %22, %24 : vector<1x512xi1>
    %c240_i32_6 = arith.constant 240 : i32
    %26 = vector.broadcast %c240_i32_6 : i32 to vector<1x512xi32>
    %27 = arith.cmpi slt, %4, %26 : vector<1x512xi32>
    %c240_i32_7 = arith.constant 240 : i32
    %28 = vector.broadcast %c240_i32_7 : i32 to vector<1x512xi32>
    %29 = arith.cmpi slt, %4, %28 : vector<1x512xi32>
    %c15_i32_8 = arith.constant 15 : i32
    %30 = vector.broadcast %c15_i32_8 : i32 to vector<1x512xi32>
    %31 = arith.cmpi slt, %2, %30 : vector<1x512xi32>
    %32 = arith.andi %29, %31 : vector<1x512xi1>
    %cst = arith.constant 1.000000e+00 : f32
    %33 = vector.broadcast %cst : f32 to vector<1x512xf32>
    %c0 = arith.constant 0 : index
    %c0_9 = arith.constant 0 : index
    %c0_10 = arith.constant 0 : index
    %34 = vector.load %arg2[%c0, %c0_9, %c0_10] : memref<1x4x512xf32, #tpu.memory_space<vmem>>, vector<1x4x512xf32>
    %35 = vector.shape_cast %34 : vector<1x4x512xf32> to vector<4x512xf32>
    %cst_11 = arith.constant 0.000000e+00 : f32
    %36 = vector.broadcast %cst_11 : f32 to vector<4x17xf32>
    %37 = tpu.concatenate %36, %35, %36 in 1 : vector<4x17xf32>, vector<4x512xf32>, vector<4x17xf32> -> vector<4x546xf32>
    %38 = vector.extract_strided_slice %37 {offsets = [0, 0], sizes = [4, 512], strides = [1, 1]} : vector<4x546xf32> to vector<4x512xf32>
    %cst_12 = arith.constant 0.000000e+00 : f32
    %39 = vector.shape_cast %9 : vector<1x512xi1> to vector<1x512xi1>
    %40 = vector.broadcast %39 : vector<1x512xi1> to vector<4x512xi1>
    %41 = vector.broadcast %cst_12 : f32 to vector<4x512xf32>
    %42 = arith.select %40, %38, %41 : vector<4x512xi1>, vector<4x512xf32>
    %43 = vector.extract_strided_slice %37 {offsets = [0, 1], sizes = [4, 512], strides = [1, 1]} : vector<4x546xf32> to vector<4x512xf32>
    %cst_13 = arith.constant 0.000000e+00 : f32
    %44 = vector.shape_cast %11 : vector<1x512xi1> to vector<1x512xi1>
    %45 = vector.broadcast %44 : vector<1x512xi1> to vector<4x512xi1>
    %46 = vector.broadcast %cst_13 : f32 to vector<4x512xf32>
    %47 = arith.select %45, %43, %46 : vector<4x512xi1>, vector<4x512xf32>
    %48 = vector.extract_strided_slice %37 {offsets = [0, 2], sizes = [4, 512], strides = [1, 1]} : vector<4x546xf32> to vector<4x512xf32>
    %cst_14 = arith.constant 0.000000e+00 : f32
    %49 = vector.shape_cast %16 : vector<1x512xi1> to vector<1x512xi1>
    %50 = vector.broadcast %49 : vector<1x512xi1> to vector<4x512xi1>
    %51 = vector.broadcast %cst_14 : f32 to vector<4x512xf32>
    %52 = arith.select %50, %48, %51 : vector<4x512xi1>, vector<4x512xf32>
    %53 = vector.extract_strided_slice %37 {offsets = [0, 16], sizes = [4, 512], strides = [1, 1]} : vector<4x546xf32> to vector<4x512xf32>
    %cst_15 = arith.constant 0.000000e+00 : f32
    %54 = vector.shape_cast %18 : vector<1x512xi1> to vector<1x512xi1>
    %55 = vector.broadcast %54 : vector<1x512xi1> to vector<4x512xi1>
    %56 = vector.broadcast %cst_15 : f32 to vector<4x512xf32>
    %57 = arith.select %55, %53, %56 : vector<4x512xi1>, vector<4x512xf32>
    %58 = vector.extract_strided_slice %37 {offsets = [0, 18], sizes = [4, 512], strides = [1, 1]} : vector<4x546xf32> to vector<4x512xf32>
    %cst_16 = arith.constant 0.000000e+00 : f32
    %59 = vector.shape_cast %20 : vector<1x512xi1> to vector<1x512xi1>
    %60 = vector.broadcast %59 : vector<1x512xi1> to vector<4x512xi1>
    %61 = vector.broadcast %cst_16 : f32 to vector<4x512xf32>
    %62 = arith.select %60, %58, %61 : vector<4x512xi1>, vector<4x512xf32>
    %63 = vector.extract_strided_slice %37 {offsets = [0, 32], sizes = [4, 512], strides = [1, 1]} : vector<4x546xf32> to vector<4x512xf32>
    %cst_17 = arith.constant 0.000000e+00 : f32
    %64 = vector.shape_cast %25 : vector<1x512xi1> to vector<1x512xi1>
    %65 = vector.broadcast %64 : vector<1x512xi1> to vector<4x512xi1>
    %66 = vector.broadcast %cst_17 : f32 to vector<4x512xf32>
    %67 = arith.select %65, %63, %66 : vector<4x512xi1>, vector<4x512xf32>
    %68 = vector.extract_strided_slice %37 {offsets = [0, 33], sizes = [4, 512], strides = [1, 1]} : vector<4x546xf32> to vector<4x512xf32>
    %cst_18 = arith.constant 0.000000e+00 : f32
    %69 = vector.shape_cast %27 : vector<1x512xi1> to vector<1x512xi1>
    %70 = vector.broadcast %69 : vector<1x512xi1> to vector<4x512xi1>
    %71 = vector.broadcast %cst_18 : f32 to vector<4x512xf32>
    %72 = arith.select %70, %68, %71 : vector<4x512xi1>, vector<4x512xf32>
    %73 = vector.extract_strided_slice %37 {offsets = [0, 34], sizes = [4, 512], strides = [1, 1]} : vector<4x546xf32> to vector<4x512xf32>
    %cst_19 = arith.constant 0.000000e+00 : f32
    %74 = vector.shape_cast %32 : vector<1x512xi1> to vector<1x512xi1>
    %75 = vector.broadcast %74 : vector<1x512xi1> to vector<4x512xi1>
    %76 = vector.broadcast %cst_19 : f32 to vector<4x512xf32>
    %77 = arith.select %75, %73, %76 : vector<4x512xi1>, vector<4x512xf32>
    %78 = tpu.concatenate %42, %47, %52, %57, %35, %62, %67, %72, %77, %33 in 0 : vector<4x512xf32>, vector<4x512xf32>, vector<4x512xf32>, vector<4x512xf32>, vector<4x512xf32>, vector<4x512xf32>, vector<4x512xf32>, vector<4x512xf32>, vector<4x512xf32>, vector<1x512xf32> -> vector<37x512xf32>
    %c0_20 = arith.constant 0 : index
    %c0_21 = arith.constant 0 : index
    %c0_22 = arith.constant 0 : index
    %79 = vector.load %arg1[%c0_20, %c0_21, %c0_22] : memref<8x4x37xf32, #tpu.memory_space<vmem>>, vector<1x4x37xf32>
    %80 = vector.shape_cast %79 : vector<1x4x37xf32> to vector<4x37xf32>
    %cst_23 = arith.constant dense<0.000000e+00> : vector<4x512xf32>
    %81 = tpu.matmul %80, %78, %cst_23 {dimension_numbers = #tpu.dot_dimension_numbers<[1], [0], [0], [1], [0, 0, 1, 1], [], []>, precision = #tpu.contract_precision<fp32>} : vector<4x37xf32>, vector<37x512xf32>, vector<4x512xf32> -> vector<4x512xf32>
    %cst_24 = arith.constant 0.000000e+00 : f32
    %82 = vector.broadcast %cst_24 : f32 to vector<4x512xf32>
    %83 = arith.maximumf %81, %82 : vector<4x512xf32>
    %cst_25 = arith.constant 0.000000e+00 : f32
    %84 = vector.broadcast %cst_25 : f32 to vector<4x17xf32>
    %85 = tpu.concatenate %84, %83, %84 in 1 : vector<4x17xf32>, vector<4x512xf32>, vector<4x17xf32> -> vector<4x546xf32>
    %86 = vector.extract_strided_slice %85 {offsets = [0, 0], sizes = [4, 512], strides = [1, 1]} : vector<4x546xf32> to vector<4x512xf32>
    %cst_26 = arith.constant 0.000000e+00 : f32
    %87 = vector.shape_cast %9 : vector<1x512xi1> to vector<1x512xi1>
    %88 = vector.broadcast %87 : vector<1x512xi1> to vector<4x512xi1>
    %89 = vector.broadcast %cst_26 : f32 to vector<4x512xf32>
    %90 = arith.select %88, %86, %89 : vector<4x512xi1>, vector<4x512xf32>
    %91 = vector.extract_strided_slice %85 {offsets = [0, 1], sizes = [4, 512], strides = [1, 1]} : vector<4x546xf32> to vector<4x512xf32>
    %cst_27 = arith.constant 0.000000e+00 : f32
    %92 = vector.shape_cast %11 : vector<1x512xi1> to vector<1x512xi1>
    %93 = vector.broadcast %92 : vector<1x512xi1> to vector<4x512xi1>
    %94 = vector.broadcast %cst_27 : f32 to vector<4x512xf32>
    %95 = arith.select %93, %91, %94 : vector<4x512xi1>, vector<4x512xf32>
    %96 = vector.extract_strided_slice %85 {offsets = [0, 2], sizes = [4, 512], strides = [1, 1]} : vector<4x546xf32> to vector<4x512xf32>
    %cst_28 = arith.constant 0.000000e+00 : f32
    %97 = vector.shape_cast %16 : vector<1x512xi1> to vector<1x512xi1>
    %98 = vector.broadcast %97 : vector<1x512xi1> to vector<4x512xi1>
    %99 = vector.broadcast %cst_28 : f32 to vector<4x512xf32>
    %100 = arith.select %98, %96, %99 : vector<4x512xi1>, vector<4x512xf32>
    %101 = vector.extract_strided_slice %85 {offsets = [0, 16], sizes = [4, 512], strides = [1, 1]} : vector<4x546xf32> to vector<4x512xf32>
    %cst_29 = arith.constant 0.000000e+00 : f32
    %102 = vector.shape_cast %18 : vector<1x512xi1> to vector<1x512xi1>
    %103 = vector.broadcast %102 : vector<1x512xi1> to vector<4x512xi1>
    %104 = vector.broadcast %cst_29 : f32 to vector<4x512xf32>
    %105 = arith.select %103, %101, %104 : vector<4x512xi1>, vector<4x512xf32>
    %106 = vector.extract_strided_slice %85 {offsets = [0, 18], sizes = [4, 512], strides = [1, 1]} : vector<4x546xf32> to vector<4x512xf32>
    %cst_30 = arith.constant 0.000000e+00 : f32
    %107 = vector.shape_cast %20 : vector<1x512xi1> to vector<1x512xi1>
    %108 = vector.broadcast %107 : vector<1x512xi1> to vector<4x512xi1>
    %109 = vector.broadcast %cst_30 : f32 to vector<4x512xf32>
    %110 = arith.select %108, %106, %109 : vector<4x512xi1>, vector<4x512xf32>
    %111 = vector.extract_strided_slice %85 {offsets = [0, 32], sizes = [4, 512], strides = [1, 1]} : vector<4x546xf32> to vector<4x512xf32>
    %cst_31 = arith.constant 0.000000e+00 : f32
    %112 = vector.shape_cast %25 : vector<1x512xi1> to vector<1x512xi1>
    %113 = vector.broadcast %112 : vector<1x512xi1> to vector<4x512xi1>
    %114 = vector.broadcast %cst_31 : f32 to vector<4x512xf32>
    %115 = arith.select %113, %111, %114 : vector<4x512xi1>, vector<4x512xf32>
    %116 = vector.extract_strided_slice %85 {offsets = [0, 33], sizes = [4, 512], strides = [1, 1]} : vector<4x546xf32> to vector<4x512xf32>
    %cst_32 = arith.constant 0.000000e+00 : f32
    %117 = vector.shape_cast %27 : vector<1x512xi1> to vector<1x512xi1>
    %118 = vector.broadcast %117 : vector<1x512xi1> to vector<4x512xi1>
    %119 = vector.broadcast %cst_32 : f32 to vector<4x512xf32>
    %120 = arith.select %118, %116, %119 : vector<4x512xi1>, vector<4x512xf32>
    %121 = vector.extract_strided_slice %85 {offsets = [0, 34], sizes = [4, 512], strides = [1, 1]} : vector<4x546xf32> to vector<4x512xf32>
    %cst_33 = arith.constant 0.000000e+00 : f32
    %122 = vector.shape_cast %32 : vector<1x512xi1> to vector<1x512xi1>
    %123 = vector.broadcast %122 : vector<1x512xi1> to vector<4x512xi1>
    %124 = vector.broadcast %cst_33 : f32 to vector<4x512xf32>
    %125 = arith.select %123, %121, %124 : vector<4x512xi1>, vector<4x512xf32>
    %126 = tpu.concatenate %90, %95, %100, %105, %83, %110, %115, %120, %125, %33 in 0 : vector<4x512xf32>, vector<4x512xf32>, vector<4x512xf32>, vector<4x512xf32>, vector<4x512xf32>, vector<4x512xf32>, vector<4x512xf32>, vector<4x512xf32>, vector<4x512xf32>, vector<1x512xf32> -> vector<37x512xf32>
    %c1 = arith.constant 1 : index
    %c0_34 = arith.constant 0 : index
    %c0_35 = arith.constant 0 : index
    %127 = vector.load %arg1[%c1, %c0_34, %c0_35] : memref<8x4x37xf32, #tpu.memory_space<vmem>>, vector<1x4x37xf32>
    %128 = vector.shape_cast %127 : vector<1x4x37xf32> to vector<4x37xf32>
    %129 = vector.extract_strided_slice %128 {offsets = [0, 0], sizes = [3, 37], strides = [1, 1]} : vector<4x37xf32> to vector<3x37xf32>
    %cst_36 = arith.constant dense<0.000000e+00> : vector<3x512xf32>
    %130 = tpu.matmul %129, %126, %cst_36 {dimension_numbers = #tpu.dot_dimension_numbers<[1], [0], [0], [1], [0, 0, 1, 1], [], []>, precision = #tpu.contract_precision<fp32>} : vector<3x37xf32>, vector<37x512xf32>, vector<3x512xf32> -> vector<3x512xf32>
    %131 = arith.negf %130 : vector<3x512xf32>
    %132 = math.exp %131 : vector<3x512xf32>
    %cst_37 = arith.constant 1.000000e+00 : f32
    %133 = vector.broadcast %cst_37 : f32 to vector<3x512xf32>
    %134 = arith.addf %133, %132 : vector<3x512xf32>
    %135 = arith.divf %133, %134 : vector<3x512xf32>
    %cst_38 = arith.constant 0.000000e+00 : f32
    %136 = vector.broadcast %cst_38 : f32 to vector<3x17xf32>
    %137 = tpu.concatenate %136, %135, %136 in 1 : vector<3x17xf32>, vector<3x512xf32>, vector<3x17xf32> -> vector<3x546xf32>
    %138 = vector.extract_strided_slice %137 {offsets = [0, 0], sizes = [3, 512], strides = [1, 1]} : vector<3x546xf32> to vector<3x512xf32>
    %cst_39 = arith.constant 0.000000e+00 : f32
    %139 = vector.shape_cast %9 : vector<1x512xi1> to vector<1x512xi1>
    %140 = vector.broadcast %139 : vector<1x512xi1> to vector<3x512xi1>
    %141 = vector.broadcast %cst_39 : f32 to vector<3x512xf32>
    %142 = arith.select %140, %138, %141 : vector<3x512xi1>, vector<3x512xf32>
    %143 = vector.extract_strided_slice %137 {offsets = [0, 1], sizes = [3, 512], strides = [1, 1]} : vector<3x546xf32> to vector<3x512xf32>
    %cst_40 = arith.constant 0.000000e+00 : f32
    %144 = vector.shape_cast %11 : vector<1x512xi1> to vector<1x512xi1>
    %145 = vector.broadcast %144 : vector<1x512xi1> to vector<3x512xi1>
    %146 = vector.broadcast %cst_40 : f32 to vector<3x512xf32>
    %147 = arith.select %145, %143, %146 : vector<3x512xi1>, vector<3x512xf32>
    %148 = vector.extract_strided_slice %137 {offsets = [0, 2], sizes = [3, 512], strides = [1, 1]} : vector<3x546xf32> to vector<3x512xf32>
    %cst_41 = arith.constant 0.000000e+00 : f32
    %149 = vector.shape_cast %16 : vector<1x512xi1> to vector<1x512xi1>
    %150 = vector.broadcast %149 : vector<1x512xi1> to vector<3x512xi1>
    %151 = vector.broadcast %cst_41 : f32 to vector<3x512xf32>
    %152 = arith.select %150, %148, %151 : vector<3x512xi1>, vector<3x512xf32>
    %153 = vector.extract_strided_slice %137 {offsets = [0, 16], sizes = [3, 512], strides = [1, 1]} : vector<3x546xf32> to vector<3x512xf32>
    %cst_42 = arith.constant 0.000000e+00 : f32
    %154 = vector.shape_cast %18 : vector<1x512xi1> to vector<1x512xi1>
    %155 = vector.broadcast %154 : vector<1x512xi1> to vector<3x512xi1>
    %156 = vector.broadcast %cst_42 : f32 to vector<3x512xf32>
    %157 = arith.select %155, %153, %156 : vector<3x512xi1>, vector<3x512xf32>
    %158 = vector.extract_strided_slice %137 {offsets = [0, 18], sizes = [3, 512], strides = [1, 1]} : vector<3x546xf32> to vector<3x512xf32>
    %cst_43 = arith.constant 0.000000e+00 : f32
    %159 = vector.shape_cast %20 : vector<1x512xi1> to vector<1x512xi1>
    %160 = vector.broadcast %159 : vector<1x512xi1> to vector<3x512xi1>
    %161 = vector.broadcast %cst_43 : f32 to vector<3x512xf32>
    %162 = arith.select %160, %158, %161 : vector<3x512xi1>, vector<3x512xf32>
    %163 = vector.extract_strided_slice %137 {offsets = [0, 32], sizes = [3, 512], strides = [1, 1]} : vector<3x546xf32> to vector<3x512xf32>
    %cst_44 = arith.constant 0.000000e+00 : f32
    %164 = vector.shape_cast %25 : vector<1x512xi1> to vector<1x512xi1>
    %165 = vector.broadcast %164 : vector<1x512xi1> to vector<3x512xi1>
    %166 = vector.broadcast %cst_44 : f32 to vector<3x512xf32>
    %167 = arith.select %165, %163, %166 : vector<3x512xi1>, vector<3x512xf32>
    %168 = vector.extract_strided_slice %137 {offsets = [0, 33], sizes = [3, 512], strides = [1, 1]} : vector<3x546xf32> to vector<3x512xf32>
    %cst_45 = arith.constant 0.000000e+00 : f32
    %169 = vector.shape_cast %27 : vector<1x512xi1> to vector<1x512xi1>
    %170 = vector.broadcast %169 : vector<1x512xi1> to vector<3x512xi1>
    %171 = vector.broadcast %cst_45 : f32 to vector<3x512xf32>
    %172 = arith.select %170, %168, %171 : vector<3x512xi1>, vector<3x512xf32>
    %173 = vector.extract_strided_slice %137 {offsets = [0, 34], sizes = [3, 512], strides = [1, 1]} : vector<3x546xf32> to vector<3x512xf32>
    %cst_46 = arith.constant 0.000000e+00 : f32
    %174 = vector.shape_cast %32 : vector<1x512xi1> to vector<1x512xi1>
    %175 = vector.broadcast %174 : vector<1x512xi1> to vector<3x512xi1>
    %176 = vector.broadcast %cst_46 : f32 to vector<3x512xf32>
    %177 = arith.select %175, %173, %176 : vector<3x512xi1>, vector<3x512xf32>
    %178 = tpu.concatenate %142, %147, %152, %157, %135, %162, %167, %172, %177, %33 in 0 : vector<3x512xf32>, vector<3x512xf32>, vector<3x512xf32>, vector<3x512xf32>, vector<3x512xf32>, vector<3x512xf32>, vector<3x512xf32>, vector<3x512xf32>, vector<3x512xf32>, vector<1x512xf32> -> vector<28x512xf32>
    %c2 = arith.constant 2 : index
    %c0_47 = arith.constant 0 : index
    %c0_48 = arith.constant 0 : index
    %179 = vector.load %arg1[%c2, %c0_47, %c0_48] : memref<8x4x37xf32, #tpu.memory_space<vmem>>, vector<1x4x37xf32>
    %180 = vector.shape_cast %179 : vector<1x4x37xf32> to vector<4x37xf32>
    %181 = vector.extract_strided_slice %180 {offsets = [0, 0], sizes = [4, 28], strides = [1, 1]} : vector<4x37xf32> to vector<4x28xf32>
    %cst_49 = arith.constant dense<0.000000e+00> : vector<4x512xf32>
    %182 = tpu.matmul %181, %178, %cst_49 {dimension_numbers = #tpu.dot_dimension_numbers<[1], [0], [0], [1], [0, 0, 1, 1], [], []>, precision = #tpu.contract_precision<fp32>} : vector<4x28xf32>, vector<28x512xf32>, vector<4x512xf32> -> vector<4x512xf32>
    %cst_50 = arith.constant 0.000000e+00 : f32
    %183 = vector.broadcast %cst_50 : f32 to vector<4x512xf32>
    %184 = arith.maximumf %182, %183 : vector<4x512xf32>
    %cst_51 = arith.constant 0.000000e+00 : f32
    %185 = vector.broadcast %cst_51 : f32 to vector<4x17xf32>
    %186 = tpu.concatenate %185, %184, %185 in 1 : vector<4x17xf32>, vector<4x512xf32>, vector<4x17xf32> -> vector<4x546xf32>
    %187 = vector.extract_strided_slice %186 {offsets = [0, 0], sizes = [4, 512], strides = [1, 1]} : vector<4x546xf32> to vector<4x512xf32>
    %cst_52 = arith.constant 0.000000e+00 : f32
    %188 = vector.shape_cast %9 : vector<1x512xi1> to vector<1x512xi1>
    %189 = vector.broadcast %188 : vector<1x512xi1> to vector<4x512xi1>
    %190 = vector.broadcast %cst_52 : f32 to vector<4x512xf32>
    %191 = arith.select %189, %187, %190 : vector<4x512xi1>, vector<4x512xf32>
    %192 = vector.extract_strided_slice %186 {offsets = [0, 1], sizes = [4, 512], strides = [1, 1]} : vector<4x546xf32> to vector<4x512xf32>
    %cst_53 = arith.constant 0.000000e+00 : f32
    %193 = vector.shape_cast %11 : vector<1x512xi1> to vector<1x512xi1>
    %194 = vector.broadcast %193 : vector<1x512xi1> to vector<4x512xi1>
    %195 = vector.broadcast %cst_53 : f32 to vector<4x512xf32>
    %196 = arith.select %194, %192, %195 : vector<4x512xi1>, vector<4x512xf32>
    %197 = vector.extract_strided_slice %186 {offsets = [0, 2], sizes = [4, 512], strides = [1, 1]} : vector<4x546xf32> to vector<4x512xf32>
    %cst_54 = arith.constant 0.000000e+00 : f32
    %198 = vector.shape_cast %16 : vector<1x512xi1> to vector<1x512xi1>
    %199 = vector.broadcast %198 : vector<1x512xi1> to vector<4x512xi1>
    %200 = vector.broadcast %cst_54 : f32 to vector<4x512xf32>
    %201 = arith.select %199, %197, %200 : vector<4x512xi1>, vector<4x512xf32>
    %202 = vector.extract_strided_slice %186 {offsets = [0, 16], sizes = [4, 512], strides = [1, 1]} : vector<4x546xf32> to vector<4x512xf32>
    %cst_55 = arith.constant 0.000000e+00 : f32
    %203 = vector.shape_cast %18 : vector<1x512xi1> to vector<1x512xi1>
    %204 = vector.broadcast %203 : vector<1x512xi1> to vector<4x512xi1>
    %205 = vector.broadcast %cst_55 : f32 to vector<4x512xf32>
    %206 = arith.select %204, %202, %205 : vector<4x512xi1>, vector<4x512xf32>
    %207 = vector.extract_strided_slice %186 {offsets = [0, 18], sizes = [4, 512], strides = [1, 1]} : vector<4x546xf32> to vector<4x512xf32>
    %cst_56 = arith.constant 0.000000e+00 : f32
    %208 = vector.shape_cast %20 : vector<1x512xi1> to vector<1x512xi1>
    %209 = vector.broadcast %208 : vector<1x512xi1> to vector<4x512xi1>
    %210 = vector.broadcast %cst_56 : f32 to vector<4x512xf32>
    %211 = arith.select %209, %207, %210 : vector<4x512xi1>, vector<4x512xf32>
    %212 = vector.extract_strided_slice %186 {offsets = [0, 32], sizes = [4, 512], strides = [1, 1]} : vector<4x546xf32> to vector<4x512xf32>
    %cst_57 = arith.constant 0.000000e+00 : f32
    %213 = vector.shape_cast %25 : vector<1x512xi1> to vector<1x512xi1>
    %214 = vector.broadcast %213 : vector<1x512xi1> to vector<4x512xi1>
    %215 = vector.broadcast %cst_57 : f32 to vector<4x512xf32>
    %216 = arith.select %214, %212, %215 : vector<4x512xi1>, vector<4x512xf32>
    %217 = vector.extract_strided_slice %186 {offsets = [0, 33], sizes = [4, 512], strides = [1, 1]} : vector<4x546xf32> to vector<4x512xf32>
    %cst_58 = arith.constant 0.000000e+00 : f32
    %218 = vector.shape_cast %27 : vector<1x512xi1> to vector<1x512xi1>
    %219 = vector.broadcast %218 : vector<1x512xi1> to vector<4x512xi1>
    %220 = vector.broadcast %cst_58 : f32 to vector<4x512xf32>
    %221 = arith.select %219, %217, %220 : vector<4x512xi1>, vector<4x512xf32>
    %222 = vector.extract_strided_slice %186 {offsets = [0, 34], sizes = [4, 512], strides = [1, 1]} : vector<4x546xf32> to vector<4x512xf32>
    %cst_59 = arith.constant 0.000000e+00 : f32
    %223 = vector.shape_cast %32 : vector<1x512xi1> to vector<1x512xi1>
    %224 = vector.broadcast %223 : vector<1x512xi1> to vector<4x512xi1>
    %225 = vector.broadcast %cst_59 : f32 to vector<4x512xf32>
    %226 = arith.select %224, %222, %225 : vector<4x512xi1>, vector<4x512xf32>
    %227 = tpu.concatenate %191, %196, %201, %206, %184, %211, %216, %221, %226, %33 in 0 : vector<4x512xf32>, vector<4x512xf32>, vector<4x512xf32>, vector<4x512xf32>, vector<4x512xf32>, vector<4x512xf32>, vector<4x512xf32>, vector<4x512xf32>, vector<4x512xf32>, vector<1x512xf32> -> vector<37x512xf32>
    %c3 = arith.constant 3 : index
    %c0_60 = arith.constant 0 : index
    %c0_61 = arith.constant 0 : index
    %228 = vector.load %arg1[%c3, %c0_60, %c0_61] : memref<8x4x37xf32, #tpu.memory_space<vmem>>, vector<1x4x37xf32>
    %229 = vector.shape_cast %228 : vector<1x4x37xf32> to vector<4x37xf32>
    %cst_62 = arith.constant dense<0.000000e+00> : vector<4x512xf32>
    %230 = tpu.matmul %229, %227, %cst_62 {dimension_numbers = #tpu.dot_dimension_numbers<[1], [0], [0], [1], [0, 0, 1, 1], [], []>, precision = #tpu.contract_precision<fp32>} : vector<4x37xf32>, vector<37x512xf32>, vector<4x512xf32> -> vector<4x512xf32>
    %cst_63 = arith.constant 0.000000e+00 : f32
    %231 = vector.broadcast %cst_63 : f32 to vector<4x512xf32>
    %232 = arith.maximumf %230, %231 : vector<4x512xf32>
    %c4 = arith.constant 4 : index
    %c0_64 = arith.constant 0 : index
    %c0_65 = arith.constant 0 : index
    %233 = vector.load %arg1[%c4, %c0_64, %c0_65] : memref<8x4x37xf32, #tpu.memory_space<vmem>>, vector<1x4x37xf32>
    %234 = vector.shape_cast %233 : vector<1x4x37xf32> to vector<4x37xf32>
    %235 = vector.extract_strided_slice %234 {offsets = [0, 0], sizes = [2, 37], strides = [1, 1]} : vector<4x37xf32> to vector<2x37xf32>
    %cst_66 = arith.constant dense<0.000000e+00> : vector<2x512xf32>
    %236 = tpu.matmul %235, %78, %cst_66 {dimension_numbers = #tpu.dot_dimension_numbers<[1], [0], [0], [1], [0, 0, 1, 1], [], []>, precision = #tpu.contract_precision<fp32>} : vector<2x37xf32>, vector<37x512xf32>, vector<2x512xf32> -> vector<2x512xf32>
    %cst_67 = arith.constant 0.000000e+00 : f32
    %237 = vector.broadcast %cst_67 : f32 to vector<2x512xf32>
    %238 = arith.maximumf %236, %237 : vector<2x512xf32>
    %cst_68 = arith.constant 0.000000e+00 : f32
    %239 = vector.broadcast %cst_68 : f32 to vector<2x17xf32>
    %240 = tpu.concatenate %239, %238, %239 in 1 : vector<2x17xf32>, vector<2x512xf32>, vector<2x17xf32> -> vector<2x546xf32>
    %241 = vector.extract_strided_slice %240 {offsets = [0, 0], sizes = [2, 512], strides = [1, 1]} : vector<2x546xf32> to vector<2x512xf32>
    %cst_69 = arith.constant 0.000000e+00 : f32
    %242 = vector.shape_cast %9 : vector<1x512xi1> to vector<1x512xi1>
    %243 = vector.broadcast %242 : vector<1x512xi1> to vector<2x512xi1>
    %244 = vector.broadcast %cst_69 : f32 to vector<2x512xf32>
    %245 = arith.select %243, %241, %244 : vector<2x512xi1>, vector<2x512xf32>
    %246 = vector.extract_strided_slice %240 {offsets = [0, 1], sizes = [2, 512], strides = [1, 1]} : vector<2x546xf32> to vector<2x512xf32>
    %cst_70 = arith.constant 0.000000e+00 : f32
    %247 = vector.shape_cast %11 : vector<1x512xi1> to vector<1x512xi1>
    %248 = vector.broadcast %247 : vector<1x512xi1> to vector<2x512xi1>
    %249 = vector.broadcast %cst_70 : f32 to vector<2x512xf32>
    %250 = arith.select %248, %246, %249 : vector<2x512xi1>, vector<2x512xf32>
    %251 = vector.extract_strided_slice %240 {offsets = [0, 2], sizes = [2, 512], strides = [1, 1]} : vector<2x546xf32> to vector<2x512xf32>
    %cst_71 = arith.constant 0.000000e+00 : f32
    %252 = vector.shape_cast %16 : vector<1x512xi1> to vector<1x512xi1>
    %253 = vector.broadcast %252 : vector<1x512xi1> to vector<2x512xi1>
    %254 = vector.broadcast %cst_71 : f32 to vector<2x512xf32>
    %255 = arith.select %253, %251, %254 : vector<2x512xi1>, vector<2x512xf32>
    %256 = vector.extract_strided_slice %240 {offsets = [0, 16], sizes = [2, 512], strides = [1, 1]} : vector<2x546xf32> to vector<2x512xf32>
    %cst_72 = arith.constant 0.000000e+00 : f32
    %257 = vector.shape_cast %18 : vector<1x512xi1> to vector<1x512xi1>
    %258 = vector.broadcast %257 : vector<1x512xi1> to vector<2x512xi1>
    %259 = vector.broadcast %cst_72 : f32 to vector<2x512xf32>
    %260 = arith.select %258, %256, %259 : vector<2x512xi1>, vector<2x512xf32>
    %261 = vector.extract_strided_slice %240 {offsets = [0, 18], sizes = [2, 512], strides = [1, 1]} : vector<2x546xf32> to vector<2x512xf32>
    %cst_73 = arith.constant 0.000000e+00 : f32
    %262 = vector.shape_cast %20 : vector<1x512xi1> to vector<1x512xi1>
    %263 = vector.broadcast %262 : vector<1x512xi1> to vector<2x512xi1>
    %264 = vector.broadcast %cst_73 : f32 to vector<2x512xf32>
    %265 = arith.select %263, %261, %264 : vector<2x512xi1>, vector<2x512xf32>
    %266 = vector.extract_strided_slice %240 {offsets = [0, 32], sizes = [2, 512], strides = [1, 1]} : vector<2x546xf32> to vector<2x512xf32>
    %cst_74 = arith.constant 0.000000e+00 : f32
    %267 = vector.shape_cast %25 : vector<1x512xi1> to vector<1x512xi1>
    %268 = vector.broadcast %267 : vector<1x512xi1> to vector<2x512xi1>
    %269 = vector.broadcast %cst_74 : f32 to vector<2x512xf32>
    %270 = arith.select %268, %266, %269 : vector<2x512xi1>, vector<2x512xf32>
    %271 = vector.extract_strided_slice %240 {offsets = [0, 33], sizes = [2, 512], strides = [1, 1]} : vector<2x546xf32> to vector<2x512xf32>
    %cst_75 = arith.constant 0.000000e+00 : f32
    %272 = vector.shape_cast %27 : vector<1x512xi1> to vector<1x512xi1>
    %273 = vector.broadcast %272 : vector<1x512xi1> to vector<2x512xi1>
    %274 = vector.broadcast %cst_75 : f32 to vector<2x512xf32>
    %275 = arith.select %273, %271, %274 : vector<2x512xi1>, vector<2x512xf32>
    %276 = vector.extract_strided_slice %240 {offsets = [0, 34], sizes = [2, 512], strides = [1, 1]} : vector<2x546xf32> to vector<2x512xf32>
    %cst_76 = arith.constant 0.000000e+00 : f32
    %277 = vector.shape_cast %32 : vector<1x512xi1> to vector<1x512xi1>
    %278 = vector.broadcast %277 : vector<1x512xi1> to vector<2x512xi1>
    %279 = vector.broadcast %cst_76 : f32 to vector<2x512xf32>
    %280 = arith.select %278, %276, %279 : vector<2x512xi1>, vector<2x512xf32>
    %281 = tpu.concatenate %245, %250, %255, %260, %238, %265, %270, %275, %280, %33 in 0 : vector<2x512xf32>, vector<2x512xf32>, vector<2x512xf32>, vector<2x512xf32>, vector<2x512xf32>, vector<2x512xf32>, vector<2x512xf32>, vector<2x512xf32>, vector<2x512xf32>, vector<1x512xf32> -> vector<19x512xf32>
    %c5 = arith.constant 5 : index
    %c0_77 = arith.constant 0 : index
    %c0_78 = arith.constant 0 : index
    %282 = vector.load %arg1[%c5, %c0_77, %c0_78] : memref<8x4x37xf32, #tpu.memory_space<vmem>>, vector<1x4x37xf32>
    %283 = vector.shape_cast %282 : vector<1x4x37xf32> to vector<4x37xf32>
    %284 = vector.extract_strided_slice %283 {offsets = [0, 0], sizes = [1, 19], strides = [1, 1]} : vector<4x37xf32> to vector<1x19xf32>
    %cst_79 = arith.constant dense<0.000000e+00> : vector<1x512xf32>
    %285 = tpu.matmul %284, %281, %cst_79 {dimension_numbers = #tpu.dot_dimension_numbers<[1], [0], [0], [1], [0, 0, 1, 1], [], []>, precision = #tpu.contract_precision<fp32>} : vector<1x19xf32>, vector<19x512xf32>, vector<1x512xf32> -> vector<1x512xf32>
    %286 = arith.negf %285 : vector<1x512xf32>
    %287 = math.exp %286 : vector<1x512xf32>
    %cst_80 = arith.constant 1.000000e+00 : f32
    %288 = vector.broadcast %cst_80 : f32 to vector<1x512xf32>
    %289 = arith.addf %288, %287 : vector<1x512xf32>
    %290 = arith.divf %288, %289 : vector<1x512xf32>
    %cst_81 = arith.constant 0.000000e+00 : f32
    %291 = vector.broadcast %cst_81 : f32 to vector<1x17xf32>
    %292 = tpu.concatenate %291, %290, %291 in 1 : vector<1x17xf32>, vector<1x512xf32>, vector<1x17xf32> -> vector<1x546xf32>
    %293 = vector.extract_strided_slice %292 {offsets = [0, 0], sizes = [1, 512], strides = [1, 1]} : vector<1x546xf32> to vector<1x512xf32>
    %cst_82 = arith.constant 0.000000e+00 : f32
    %294 = vector.broadcast %cst_82 : f32 to vector<1x512xf32>
    %295 = arith.select %9, %293, %294 : vector<1x512xi1>, vector<1x512xf32>
    %296 = vector.extract_strided_slice %292 {offsets = [0, 1], sizes = [1, 512], strides = [1, 1]} : vector<1x546xf32> to vector<1x512xf32>
    %cst_83 = arith.constant 0.000000e+00 : f32
    %297 = vector.broadcast %cst_83 : f32 to vector<1x512xf32>
    %298 = arith.select %11, %296, %297 : vector<1x512xi1>, vector<1x512xf32>
    %299 = vector.extract_strided_slice %292 {offsets = [0, 2], sizes = [1, 512], strides = [1, 1]} : vector<1x546xf32> to vector<1x512xf32>
    %cst_84 = arith.constant 0.000000e+00 : f32
    %300 = vector.broadcast %cst_84 : f32 to vector<1x512xf32>
    %301 = arith.select %16, %299, %300 : vector<1x512xi1>, vector<1x512xf32>
    %302 = vector.extract_strided_slice %292 {offsets = [0, 16], sizes = [1, 512], strides = [1, 1]} : vector<1x546xf32> to vector<1x512xf32>
    %cst_85 = arith.constant 0.000000e+00 : f32
    %303 = vector.broadcast %cst_85 : f32 to vector<1x512xf32>
    %304 = arith.select %18, %302, %303 : vector<1x512xi1>, vector<1x512xf32>
    %305 = vector.extract_strided_slice %292 {offsets = [0, 18], sizes = [1, 512], strides = [1, 1]} : vector<1x546xf32> to vector<1x512xf32>
    %cst_86 = arith.constant 0.000000e+00 : f32
    %306 = vector.broadcast %cst_86 : f32 to vector<1x512xf32>
    %307 = arith.select %20, %305, %306 : vector<1x512xi1>, vector<1x512xf32>
    %308 = vector.extract_strided_slice %292 {offsets = [0, 32], sizes = [1, 512], strides = [1, 1]} : vector<1x546xf32> to vector<1x512xf32>
    %cst_87 = arith.constant 0.000000e+00 : f32
    %309 = vector.broadcast %cst_87 : f32 to vector<1x512xf32>
    %310 = arith.select %25, %308, %309 : vector<1x512xi1>, vector<1x512xf32>
    %311 = vector.extract_strided_slice %292 {offsets = [0, 33], sizes = [1, 512], strides = [1, 1]} : vector<1x546xf32> to vector<1x512xf32>
    %cst_88 = arith.constant 0.000000e+00 : f32
    %312 = vector.broadcast %cst_88 : f32 to vector<1x512xf32>
    %313 = arith.select %27, %311, %312 : vector<1x512xi1>, vector<1x512xf32>
    %314 = vector.extract_strided_slice %292 {offsets = [0, 34], sizes = [1, 512], strides = [1, 1]} : vector<1x546xf32> to vector<1x512xf32>
    %cst_89 = arith.constant 0.000000e+00 : f32
    %315 = vector.broadcast %cst_89 : f32 to vector<1x512xf32>
    %316 = arith.select %32, %314, %315 : vector<1x512xi1>, vector<1x512xf32>
    %317 = tpu.concatenate %295, %298, %301, %304, %290, %307, %310, %313, %316, %33 in 0 : vector<1x512xf32>, vector<1x512xf32>, vector<1x512xf32>, vector<1x512xf32>, vector<1x512xf32>, vector<1x512xf32>, vector<1x512xf32>, vector<1x512xf32>, vector<1x512xf32>, vector<1x512xf32> -> vector<10x512xf32>
    %c6 = arith.constant 6 : index
    %c0_90 = arith.constant 0 : index
    %c0_91 = arith.constant 0 : index
    %318 = vector.load %arg1[%c6, %c0_90, %c0_91] : memref<8x4x37xf32, #tpu.memory_space<vmem>>, vector<1x4x37xf32>
    %319 = vector.shape_cast %318 : vector<1x4x37xf32> to vector<4x37xf32>
    %320 = vector.extract_strided_slice %319 {offsets = [0, 0], sizes = [2, 10], strides = [1, 1]} : vector<4x37xf32> to vector<2x10xf32>
    %cst_92 = arith.constant dense<0.000000e+00> : vector<2x512xf32>
    %321 = tpu.matmul %320, %317, %cst_92 {dimension_numbers = #tpu.dot_dimension_numbers<[1], [0], [0], [1], [0, 0, 1, 1], [], []>, precision = #tpu.contract_precision<fp32>} : vector<2x10xf32>, vector<10x512xf32>, vector<2x512xf32> -> vector<2x512xf32>
    %cst_93 = arith.constant 0.000000e+00 : f32
    %322 = vector.broadcast %cst_93 : f32 to vector<2x512xf32>
    %323 = arith.maximumf %321, %322 : vector<2x512xf32>
    %cst_94 = arith.constant 0.000000e+00 : f32
    %324 = vector.broadcast %cst_94 : f32 to vector<2x17xf32>
    %325 = tpu.concatenate %324, %323, %324 in 1 : vector<2x17xf32>, vector<2x512xf32>, vector<2x17xf32> -> vector<2x546xf32>
    %326 = vector.extract_strided_slice %325 {offsets = [0, 0], sizes = [2, 512], strides = [1, 1]} : vector<2x546xf32> to vector<2x512xf32>
    %cst_95 = arith.constant 0.000000e+00 : f32
    %327 = vector.shape_cast %9 : vector<1x512xi1> to vector<1x512xi1>
    %328 = vector.broadcast %327 : vector<1x512xi1> to vector<2x512xi1>
    %329 = vector.broadcast %cst_95 : f32 to vector<2x512xf32>
    %330 = arith.select %328, %326, %329 : vector<2x512xi1>, vector<2x512xf32>
    %331 = vector.extract_strided_slice %325 {offsets = [0, 1], sizes = [2, 512], strides = [1, 1]} : vector<2x546xf32> to vector<2x512xf32>
    %cst_96 = arith.constant 0.000000e+00 : f32
    %332 = vector.shape_cast %11 : vector<1x512xi1> to vector<1x512xi1>
    %333 = vector.broadcast %332 : vector<1x512xi1> to vector<2x512xi1>
    %334 = vector.broadcast %cst_96 : f32 to vector<2x512xf32>
    %335 = arith.select %333, %331, %334 : vector<2x512xi1>, vector<2x512xf32>
    %336 = vector.extract_strided_slice %325 {offsets = [0, 2], sizes = [2, 512], strides = [1, 1]} : vector<2x546xf32> to vector<2x512xf32>
    %cst_97 = arith.constant 0.000000e+00 : f32
    %337 = vector.shape_cast %16 : vector<1x512xi1> to vector<1x512xi1>
    %338 = vector.broadcast %337 : vector<1x512xi1> to vector<2x512xi1>
    %339 = vector.broadcast %cst_97 : f32 to vector<2x512xf32>
    %340 = arith.select %338, %336, %339 : vector<2x512xi1>, vector<2x512xf32>
    %341 = vector.extract_strided_slice %325 {offsets = [0, 16], sizes = [2, 512], strides = [1, 1]} : vector<2x546xf32> to vector<2x512xf32>
    %cst_98 = arith.constant 0.000000e+00 : f32
    %342 = vector.shape_cast %18 : vector<1x512xi1> to vector<1x512xi1>
    %343 = vector.broadcast %342 : vector<1x512xi1> to vector<2x512xi1>
    %344 = vector.broadcast %cst_98 : f32 to vector<2x512xf32>
    %345 = arith.select %343, %341, %344 : vector<2x512xi1>, vector<2x512xf32>
    %346 = vector.extract_strided_slice %325 {offsets = [0, 18], sizes = [2, 512], strides = [1, 1]} : vector<2x546xf32> to vector<2x512xf32>
    %cst_99 = arith.constant 0.000000e+00 : f32
    %347 = vector.shape_cast %20 : vector<1x512xi1> to vector<1x512xi1>
    %348 = vector.broadcast %347 : vector<1x512xi1> to vector<2x512xi1>
    %349 = vector.broadcast %cst_99 : f32 to vector<2x512xf32>
    %350 = arith.select %348, %346, %349 : vector<2x512xi1>, vector<2x512xf32>
    %351 = vector.extract_strided_slice %325 {offsets = [0, 32], sizes = [2, 512], strides = [1, 1]} : vector<2x546xf32> to vector<2x512xf32>
    %cst_100 = arith.constant 0.000000e+00 : f32
    %352 = vector.shape_cast %25 : vector<1x512xi1> to vector<1x512xi1>
    %353 = vector.broadcast %352 : vector<1x512xi1> to vector<2x512xi1>
    %354 = vector.broadcast %cst_100 : f32 to vector<2x512xf32>
    %355 = arith.select %353, %351, %354 : vector<2x512xi1>, vector<2x512xf32>
    %356 = vector.extract_strided_slice %325 {offsets = [0, 33], sizes = [2, 512], strides = [1, 1]} : vector<2x546xf32> to vector<2x512xf32>
    %cst_101 = arith.constant 0.000000e+00 : f32
    %357 = vector.shape_cast %27 : vector<1x512xi1> to vector<1x512xi1>
    %358 = vector.broadcast %357 : vector<1x512xi1> to vector<2x512xi1>
    %359 = vector.broadcast %cst_101 : f32 to vector<2x512xf32>
    %360 = arith.select %358, %356, %359 : vector<2x512xi1>, vector<2x512xf32>
    %361 = vector.extract_strided_slice %325 {offsets = [0, 34], sizes = [2, 512], strides = [1, 1]} : vector<2x546xf32> to vector<2x512xf32>
    %cst_102 = arith.constant 0.000000e+00 : f32
    %362 = vector.shape_cast %32 : vector<1x512xi1> to vector<1x512xi1>
    %363 = vector.broadcast %362 : vector<1x512xi1> to vector<2x512xi1>
    %364 = vector.broadcast %cst_102 : f32 to vector<2x512xf32>
    %365 = arith.select %363, %361, %364 : vector<2x512xi1>, vector<2x512xf32>
    %366 = tpu.concatenate %330, %335, %340, %345, %323, %350, %355, %360, %365, %33 in 0 : vector<2x512xf32>, vector<2x512xf32>, vector<2x512xf32>, vector<2x512xf32>, vector<2x512xf32>, vector<2x512xf32>, vector<2x512xf32>, vector<2x512xf32>, vector<2x512xf32>, vector<1x512xf32> -> vector<19x512xf32>
    %c7 = arith.constant 7 : index
    %c0_103 = arith.constant 0 : index
    %c0_104 = arith.constant 0 : index
    %367 = vector.load %arg1[%c7, %c0_103, %c0_104] : memref<8x4x37xf32, #tpu.memory_space<vmem>>, vector<1x4x37xf32>
    %368 = vector.shape_cast %367 : vector<1x4x37xf32> to vector<4x37xf32>
    %369 = vector.extract_strided_slice %368 {offsets = [0, 0], sizes = [4, 19], strides = [1, 1]} : vector<4x37xf32> to vector<4x19xf32>
    %cst_105 = arith.constant dense<0.000000e+00> : vector<4x512xf32>
    %370 = tpu.matmul %369, %366, %cst_105 {dimension_numbers = #tpu.dot_dimension_numbers<[1], [0], [0], [1], [0, 0, 1, 1], [], []>, precision = #tpu.contract_precision<fp32>} : vector<4x19xf32>, vector<19x512xf32>, vector<4x512xf32> -> vector<4x512xf32>
    %cst_106 = arith.constant 0.000000e+00 : f32
    %371 = vector.broadcast %cst_106 : f32 to vector<4x512xf32>
    %372 = arith.maximumf %370, %371 : vector<4x512xf32>
    %373 = arith.addf %232, %372 : vector<4x512xf32>
    %cst_107 = arith.constant 2.000000e+00 : f32
    %374 = vector.broadcast %cst_107 : f32 to vector<4x512xf32>
    %375 = arith.mulf %374, %35 : vector<4x512xf32>
    %376 = arith.addf %373, %375 : vector<4x512xf32>
    %c0_108 = arith.constant 0 : index
    %c0_109 = arith.constant 0 : index
    %c0_110 = arith.constant 0 : index
    %377 = vector.load %arg3[%c0_108, %c0_109, %c0_110] : memref<1x4x512xf32, #tpu.memory_space<vmem>>, vector<1x4x512xf32>
    %378 = vector.shape_cast %377 : vector<1x4x512xf32> to vector<4x512xf32>
    %379 = vector.shape_cast %376 : vector<4x512xf32> to vector<1x4x512xf32>
    tpu.vector_store %arg3[%c0_108, %c0_109, %c0_110], %379 {strides = array<i32>} : memref<1x4x512xf32, #tpu.memory_space<vmem>>, vector<1x4x512xf32>,
    %c0_111 = arith.constant 0 : index
    %c0_112 = arith.constant 0 : index
    %c0_113 = arith.constant 0 : index
    %380 = vector.load %arg5[%c0_111, %c0_112, %c0_113] : memref<1x1x512xf32, #tpu.memory_space<vmem>>, vector<1x1x512xf32>
    %381 = vector.shape_cast %380 : vector<1x1x512xf32> to vector<1x512xf32>
    %382 = vector.shape_cast %290 : vector<1x512xf32> to vector<1x1x512xf32>
    tpu.vector_store %arg5[%c0_111, %c0_112, %c0_113], %382 {strides = array<i32>} : memref<1x1x512xf32, #tpu.memory_space<vmem>>, vector<1x1x512xf32>,
    %c0_114 = arith.constant 0 : index
    %c0_115 = arith.constant 0 : index
    %c0_116 = arith.constant 0 : index
    %383 = vector.load %arg6[%c0_114, %c0_115, %c0_116] : memref<1x3x512xf32, #tpu.memory_space<vmem>>, vector<1x3x512xf32>
    %384 = vector.shape_cast %383 : vector<1x3x512xf32> to vector<3x512xf32>
    %385 = vector.shape_cast %135 : vector<3x512xf32> to vector<1x3x512xf32>
    tpu.vector_store %arg6[%c0_114, %c0_115, %c0_116], %385 {strides = array<i32>} : memref<1x3x512xf32, #tpu.memory_space<vmem>>, vector<1x3x512xf32>,
    %386 = vector.broadcast %290 : vector<1x512xf32> to vector<3x512xf32>
    %387 = arith.mulf %386, %135 : vector<3x512xf32>
    %c0_117 = arith.constant 0 : index
    %c0_118 = arith.constant 0 : index
    %c0_119 = arith.constant 0 : index
    %388 = vector.load %arg4[%c0_117, %c0_118, %c0_119] : memref<1x3x512xf32, #tpu.memory_space<vmem>>, vector<1x3x512xf32>
    %389 = vector.shape_cast %388 : vector<1x3x512xf32> to vector<3x512xf32>
    %390 = vector.shape_cast %387 : vector<3x512xf32> to vector<1x3x512xf32>
    tpu.vector_store %arg4[%c0_117, %c0_118, %c0_119], %390 {strides = array<i32>} : memref<1x3x512xf32, #tpu.memory_space<vmem>>, vector<1x3x512xf32>,
    return
  }
  func.func @transform_0(%arg0: i32) -> (i32, i32, i32) {
    %c0_i32 = arith.constant 0 : i32
    %c0_i32_0 = arith.constant 0 : i32
    %c0_i32_1 = arith.constant 0 : i32
    %c0_i32_2 = arith.constant 0 : i32
    return %c0_i32, %c0_i32_0, %c0_i32_1 : i32, i32, i32
  }
  func.func @transform_1(%arg0: i32) -> (i32, i32, i32) {
    %c0_i32 = arith.constant 0 : i32
    %c0_i32_0 = arith.constant 0 : i32
    %c0_i32_1 = arith.constant 0 : i32
    return %arg0, %c0_i32, %c0_i32_0 : i32, i32, i32
  }
  func.func @transform_2(%arg0: i32) -> (i32, i32, i32) {
    %c0_i32 = arith.constant 0 : i32
    %c0_i32_0 = arith.constant 0 : i32
    %c0_i32_1 = arith.constant 0 : i32
    return %arg0, %c0_i32, %c0_i32_0 : i32, i32, i32
  }
  func.func @transform_3(%arg0: i32) -> (i32, i32, i32) {
    %c0_i32 = arith.constant 0 : i32
    %c0_i32_0 = arith.constant 0 : i32
    %c0_i32_1 = arith.constant 0 : i32
    return %arg0, %c0_i32, %c0_i32_0 : i32, i32, i32
  }
  func.func @transform_4(%arg0: i32) -> (i32, i32, i32) {
    %c0_i32 = arith.constant 0 : i32
    %c0_i32_0 = arith.constant 0 : i32
    %c0_i32_1 = arith.constant 0 : i32
    return %arg0, %c0_i32, %c0_i32_0 : i32, i32, i32
  }
  func.func @transform_5(%arg0: i32) -> (i32, i32, i32) {
    %c0_i32 = arith.constant 0 : i32
    %c0_i32_0 = arith.constant 0 : i32
    %c0_i32_1 = arith.constant 0 : i32
    return %arg0, %c0_i32, %c0_i32_0 : i32, i32, i32
  }
}

</mosaic_0001>

<llo_original>
// kernel: dam_forward.1
$region0: #{dam_forward.1}
  #allocation0 [shape = 'u32[]', space=smem, size = 0x4, offset = 0x4, fixed_abs, tag = 'smem constant byte address 0x4 - core index']
  #allocation1 [shape = 'u32[144,128]{1,0:T(1,128)}', space=vmem, size = 0x12000, scoped, tag = 'internal scratch']
  %s0 = inlined_call_operand.vmem [shape: f32[8,4,37], index: 0, kind: input, shape index: {}]
  %s1 = inlined_call_operand.vmem [shape: f32[1,4,512], index: 1, kind: input, shape index: {}]
  %s2 = inlined_call_operand.vmem [shape: f32[1,4,512], index: 2, kind: output, shape index: {0}]
  %s3 = inlined_call_operand.vmem [shape: f32[1,3,512], index: 3, kind: output, shape index: {1}]
  %s4 = inlined_call_operand.vmem [shape: f32[1,1,512], index: 4, kind: output, shape index: {2}]
  %s5 = inlined_call_operand.vmem [shape: f32[1,3,512], index: 5, kind: output, shape index: {3}]
  %6 = xla_tuple %s2, %s3, %s4, %s5
  %s7 = sld [smem:[#allocation0]]
  $region42: #{dam_forward.1} parent=0
    _
  %s9 = ssub.s32 1, %s7
  %s10 = scalar_select 0, %s9, %s7
  // Predicated region
  $region2: #{dam_forward.1} parent=0 // pred_check
    _
  $region3: #{dam_forward.1} parent=0 // pred_check_branch
    %12 = sbr.rel (0) target = $region5
  $region4: #{dam_forward.1} parent=0 // pred_region
    _
  $region5: #{dam_forward.1} parent=0 // pred_fallthru
    _
  // Predicated region
  $region6: #{dam_forward.1} parent=0 // pred_check
    _
  $region7: #{dam_forward.1} parent=0 // pred_check_branch
    %14 = sbr.rel (0) target = $region9
  $region8: #{dam_forward.1} parent=0 // pred_region
    _
  $region9: #{dam_forward.1} parent=0 // pred_fallthru
    _
  %v15 = vlaneseq
  %v16 = vand.u32 %v15, 127
  %v17 = vadd.s32 %v16, 128
  %v18 = vadd.s32 %v16, 256
  %v19 = vadd.s32 %v16, 384
  %v20 = vand.u32 %v16, 15
  %v21 = vand.u32 %v17, 15
  %v22 = vand.u32 %v18, 15
  %v23 = vand.u32 %v19, 15
  %v24 = vand.u32 %v16, 255
  %v25 = vand.u32 %v17, 255
  %v26 = vand.u32 %v18, 255
  %v27 = vand.u32 %v19, 255
  %vm28 = vcmp.ge.s32.totalorder %v24, 16
  %vm29 = vcmp.ge.s32.totalorder %v25, 16
  %vm30 = vcmp.ge.s32.totalorder %v26, 16
  %vm31 = vcmp.ge.s32.totalorder %v27, 16
  %vm32 = vcmp.ge.s32.totalorder %v20, 1
  %vm33 = vcmp.ge.s32.totalorder %v21, 1
  %vm34 = vcmp.ge.s32.totalorder %v22, 1
  %vm35 = vcmp.ge.s32.totalorder %v23, 1
  %vm36 = vmand %vm28, %vm32
  %vm37 = vmand %vm29, %vm33
  %vm38 = vmand %vm30, %vm34
  %vm39 = vmand %vm31, %vm35
  %vm40 = vcmp.lt.s32.totalorder %v20, 15
  %vm41 = vcmp.lt.s32.totalorder %v21, 15
  %vm42 = vcmp.lt.s32.totalorder %v22, 15
  %vm43 = vcmp.lt.s32.totalorder %v23, 15
  %vm44 = vmand %vm28, %vm40
  %vm45 = vmand %vm29, %vm41
  %vm46 = vmand %vm30, %vm42
  %vm47 = vmand %vm31, %vm43
  %vm48 = vcmp.lt.s32.totalorder %v24, 240
  %vm49 = vcmp.lt.s32.totalorder %v25, 240
  %vm50 = vcmp.lt.s32.totalorder %v26, 240
  %vm51 = vcmp.lt.s32.totalorder %v27, 240
  %vm52 = vmand %vm48, %vm32
  %vm53 = vmand %vm49, %vm33
  %vm54 = vmand %vm50, %vm34
  %vm55 = vmand %vm51, %vm35
  %vm56 = vmand %vm48, %vm40
  %vm57 = vmand %vm49, %vm41
  %vm58 = vmand %vm50, %vm42
  %vm59 = vmand %vm51, %vm43
  %v60 = vld [vmem:[%s1] sm:$0xff]
  %v61 = vld [vmem:[%s1 + $0x8] sm:$0xff]
  %v64 = vcombine.high %v60, %v60
  %v65 = vcombine.high %v61, %v61
  %66 = vrot.lane.b32.xlu0 %v60, 17
  %v67 = vpop.permute.xlu0 %66
  %68 = vrot.lane.b32.xlu0 %v64, 17
  %v69 = vpop.permute.xlu0 %68
  %70 = vrot.lane.b32.xlu0 %v61, 17
  %v71 = vpop.permute.xlu0 %70
  %72 = vrot.lane.b32.xlu0 %v65, 17
  %v73 = vpop.permute.xlu0 %72
  %vm74 = vcmask 138240
  %v75 = vsel %vm74, %v67, %v69
  %v76 = vsel %vm74, %v69, %v71
  %v77 = vsel %vm74, %v71, %v73
  %v83 = vsel %vm74, 0.0, %v67
  %v84 = vsel %vm74, %v73, 0.0
  %v85 = vsel %vm36, 1, 0
  %v86 = vsel %vm37, 1, 0
  %v87 = vsel %vm38, 1, 0
  %v88 = vsel %vm39, 1, 0
  %vm89 = vcmp.eq.s32.totalorder %v85, 1
  %vm90 = vcmp.eq.s32.totalorder %v86, 1
  %vm91 = vcmp.eq.s32.totalorder %v87, 1
  %vm92 = vcmp.eq.s32.totalorder %v88, 1
  %v93 = vsel %vm89, %v83, 0.0
  %v94 = vsel %vm90, %v75, 0.0
  %v95 = vsel %vm91, %v76, 0.0
  %v96 = vsel %vm92, %v77, 0.0
  %v97 = vsel %vm28, 1, 0
  %v98 = vsel %vm29, 1, 0
  %v99 = vsel %vm30, 1, 0
  %v100 = vsel %vm31, 1, 0
  %vm101 = vcmp.eq.s32.totalorder %v97, 1
  %vm102 = vcmp.eq.s32.totalorder %v98, 1
  %vm103 = vcmp.eq.s32.totalorder %v99, 1
  %vm104 = vcmp.eq.s32.totalorder %v100, 1
  %107 = vrot.lane.b32.xlu0 %v83, 127
  %v108 = vpop.permute.xlu0 %107
  %109 = vrot.lane.b32.xlu0 %v75, 127
  %v110 = vpop.permute.xlu0 %109
  %111 = vrot.lane.b32.xlu0 %v76, 127
  %v112 = vpop.permute.xlu0 %111
  %113 = vrot.lane.b32.xlu0 %v77, 127
  %v114 = vpop.permute.xlu0 %113
  %115 = vrot.lane.b32.xlu0 %v84, 127
  %v116 = vpop.permute.xlu0 %115
  %vm117 = vcmask 1039360
  %v118 = vsel %vm117, %v108, %v110
  %v119 = vsel %vm117, %v110, %v112
  %v120 = vsel %vm117, %v112, %v114
  %v121 = vsel %vm117, %v114, %v116
  %v126 = vsel %vm101, %v118, 0.0
  %v127 = vsel %vm102, %v119, 0.0
  %v128 = vsel %vm103, %v120, 0.0
  %v129 = vsel %vm104, %v121, 0.0
  %v130 = vsel %vm44, 1, 0
  %v131 = vsel %vm45, 1, 0
  %v132 = vsel %vm46, 1, 0
  %v133 = vsel %vm47, 1, 0
  %vm134 = vcmp.eq.s32.totalorder %v130, 1
  %vm135 = vcmp.eq.s32.totalorder %v131, 1
  %vm136 = vcmp.eq.s32.totalorder %v132, 1
  %vm137 = vcmp.eq.s32.totalorder %v133, 1
  %138 = vrot.lane.b32.xlu0 %v83, 126
  %v139 = vpop.permute.xlu0 %138
  %140 = vrot.lane.b32.xlu0 %v75, 126
  %v141 = vpop.permute.xlu0 %140
  %142 = vrot.lane.b32.xlu0 %v76, 126
  %v143 = vpop.permute.xlu0 %142
  %144 = vrot.lane.b32.xlu0 %v77, 126
  %v145 = vpop.permute.xlu0 %144
  %146 = vrot.lane.b32.xlu0 %v84, 126
  %v147 = vpop.permute.xlu0 %146
  %vm148 = vcmask 1031168
  %v149 = vsel %vm148, %v139, %v141
  %v150 = vsel %vm148, %v141, %v143
  %v151 = vsel %vm148, %v143, %v145
  %v152 = vsel %vm148, %v145, %v147
  %v157 = vsel %vm134, %v149, 0.0
  %v158 = vsel %vm135, %v150, 0.0
  %v159 = vsel %vm136, %v151, 0.0
  %v160 = vsel %vm137, %v152, 0.0
  %v161 = vsel %vm32, 1, 0
  %v162 = vsel %vm33, 1, 0
  %v163 = vsel %vm34, 1, 0
  %v164 = vsel %vm35, 1, 0
  %vm165 = vcmp.eq.s32.totalorder %v161, 1
  %vm166 = vcmp.eq.s32.totalorder %v162, 1
  %vm167 = vcmp.eq.s32.totalorder %v163, 1
  %vm168 = vcmp.eq.s32.totalorder %v164, 1
  %169 = vrot.lane.b32.xlu0 %v83, 112
  %v170 = vpop.permute.xlu0 %169
  %171 = vrot.lane.b32.xlu0 %v75, 112
  %v172 = vpop.permute.xlu0 %171
  %173 = vrot.lane.b32.xlu0 %v76, 112
  %v174 = vpop.permute.xlu0 %173
  %175 = vrot.lane.b32.xlu0 %v77, 112
  %v176 = vpop.permute.xlu0 %175
  %177 = vrot.lane.b32.xlu0 %v84, 112
  %v178 = vpop.permute.xlu0 %177
  %vm179 = vcmask 916480
  %v180 = vsel %vm179, %v170, %v172
  %v181 = vsel %vm179, %v172, %v174
  %v182 = vsel %vm179, %v174, %v176
  %v183 = vsel %vm179, %v176, %v178
  %v188 = vsel %vm165, %v180, 0.0
  %v189 = vsel %vm166, %v181, 0.0
  %v190 = vsel %vm167, %v182, 0.0
  %v191 = vsel %vm168, %v183, 0.0
  %v192 = vsel %vm40, 1, 0
  %v193 = vsel %vm41, 1, 0
  %v194 = vsel %vm42, 1, 0
  %v195 = vsel %vm43, 1, 0
  %vm196 = vcmp.eq.s32.totalorder %v192, 1
  %vm197 = vcmp.eq.s32.totalorder %v193, 1
  %vm198 = vcmp.eq.s32.totalorder %v194, 1
  %vm199 = vcmp.eq.s32.totalorder %v195, 1
  %200 = vrot.lane.b32.xlu0 %v83, 110
  %v201 = vpop.permute.xlu0 %200
  %202 = vrot.lane.b32.xlu0 %v75, 110
  %v203 = vpop.permute.xlu0 %202
  %204 = vrot.lane.b32.xlu0 %v76, 110
  %v205 = vpop.permute.xlu0 %204
  %206 = vrot.lane.b32.xlu0 %v77, 110
  %v207 = vpop.permute.xlu0 %206
  %208 = vrot.lane.b32.xlu0 %v84, 110
  %v209 = vpop.permute.xlu0 %208
  %vm210 = vcmask 900096
  %v211 = vsel %vm210, %v201, %v203
  %v212 = vsel %vm210, %v203, %v205
  %v213 = vsel %vm210, %v205, %v207
  %v214 = vsel %vm210, %v207, %v209
  %v219 = vsel %vm196, %v211, 0.0
  %v220 = vsel %vm197, %v212, 0.0
  %v221 = vsel %vm198, %v213, 0.0
  %v222 = vsel %vm199, %v214, 0.0
  %v223 = vsel %vm52, 1, 0
  %v224 = vsel %vm53, 1, 0
  %v225 = vsel %vm54, 1, 0
  %v226 = vsel %vm55, 1, 0
  %vm227 = vcmp.eq.s32.totalorder %v223, 1
  %vm228 = vcmp.eq.s32.totalorder %v224, 1
  %vm229 = vcmp.eq.s32.totalorder %v225, 1
  %vm230 = vcmp.eq.s32.totalorder %v226, 1
  %231 = vrot.lane.b32.xlu0 %v83, 96
  %v232 = vpop.permute.xlu0 %231
  %233 = vrot.lane.b32.xlu0 %v75, 96
  %v234 = vpop.permute.xlu0 %233
  %235 = vrot.lane.b32.xlu0 %v76, 96
  %v236 = vpop.permute.xlu0 %235
  %237 = vrot.lane.b32.xlu0 %v77, 96
  %v238 = vpop.permute.xlu0 %237
  %239 = vrot.lane.b32.xlu0 %v84, 96
  %v240 = vpop.permute.xlu0 %239
  %vm241 = vcmask 785408
  %v242 = vsel %vm241, %v232, %v234
  %v243 = vsel %vm241, %v234, %v236
  %v244 = vsel %vm241, %v236, %v238
  %v245 = vsel %vm241, %v238, %v240
  %v250 = vsel %vm227, %v242, 0.0
  %v251 = vsel %vm228, %v243, 0.0
  %v252 = vsel %vm229, %v244, 0.0
  %v253 = vsel %vm230, %v245, 0.0
  %v254 = vsel %vm48, 1, 0
  %v255 = vsel %vm49, 1, 0
  %v256 = vsel %vm50, 1, 0
  %v257 = vsel %vm51, 1, 0
  %vm258 = vcmp.eq.s32.totalorder %v254, 1
  %vm259 = vcmp.eq.s32.totalorder %v255, 1
  %vm260 = vcmp.eq.s32.totalorder %v256, 1
  %vm261 = vcmp.eq.s32.totalorder %v257, 1
  %262 = vrot.lane.b32.xlu0 %v83, 95
  %v263 = vpop.permute.xlu0 %262
  %264 = vrot.lane.b32.xlu0 %v75, 95
  %v265 = vpop.permute.xlu0 %264
  %266 = vrot.lane.b32.xlu0 %v76, 95
  %v267 = vpop.permute.xlu0 %266
  %268 = vrot.lane.b32.xlu0 %v77, 95
  %v269 = vpop.permute.xlu0 %268
  %270 = vrot.lane.b32.xlu0 %v84, 95
  %v271 = vpop.permute.xlu0 %270
  %vm272 = vcmask 777216
  %v273 = vsel %vm272, %v263, %v265
  %v274 = vsel %vm272, %v265, %v267
  %v275 = vsel %vm272, %v267, %v269
  %v276 = vsel %vm272, %v269, %v271
  %v281 = vsel %vm258, %v273, 0.0
  %v282 = vsel %vm259, %v274, 0.0
  %v283 = vsel %vm260, %v275, 0.0
  %v284 = vsel %vm261, %v276, 0.0
  %v285 = vsel %vm56, 1, 0
  %v286 = vsel %vm57, 1, 0
  %v287 = vsel %vm58, 1, 0
  %v288 = vsel %vm59, 1, 0
  %vm289 = vcmp.eq.s32.totalorder %v285, 1
  %vm290 = vcmp.eq.s32.totalorder %v286, 1
  %vm291 = vcmp.eq.s32.totalorder %v287, 1
  %vm292 = vcmp.eq.s32.totalorder %v288, 1
  %293 = vrot.lane.b32.xlu0 %v83, 94
  %v294 = vpop.permute.xlu0 %293
  %295 = vrot.lane.b32.xlu0 %v75, 94
  %v296 = vpop.permute.xlu0 %295
  %297 = vrot.lane.b32.xlu0 %v76, 94
  %v298 = vpop.permute.xlu0 %297
  %299 = vrot.lane.b32.xlu0 %v77, 94
  %v300 = vpop.permute.xlu0 %299
  %301 = vrot.lane.b32.xlu0 %v84, 94
  %v302 = vpop.permute.xlu0 %301
  %vm303 = vcmask 769024
  %v304 = vsel %vm303, %v294, %v296
  %v305 = vsel %vm303, %v296, %v298
  %v306 = vsel %vm303, %v298, %v300
  %v307 = vsel %vm303, %v300, %v302
  %v312 = vsel %vm289, %v304, 0.0
  %v313 = vsel %vm290, %v305, 0.0
  %v314 = vsel %vm291, %v306, 0.0
  %v315 = vsel %vm292, %v307, 0.0
  %v320 = vrot.slane %v126, 4
  %v321 = vrot.slane %v127, 4
  %v322 = vrot.slane %v128, 4
  %v323 = vrot.slane %v129, 4
  %v332 = vrot.slane %v188, 4
  %v333 = vrot.slane %v189, 4
  %v334 = vrot.slane %v190, 4
  %v335 = vrot.slane %v191, 4
  %v346 = vrot.slane %v219, 4
  %v347 = vrot.slane %v220, 4
  %v348 = vrot.slane %v221, 4
  %v349 = vrot.slane %v222, 4
  %v358 = vrot.slane %v281, 4
  %v359 = vrot.slane %v282, 4
  %v360 = vrot.slane %v283, 4
  %v361 = vrot.slane %v284, 4
  %vm366 = vcmask 1043456
  %v367 = vsel %vm366, %v93, %v320
  %v368 = vsel %vm366, %v94, %v321
  %v369 = vsel %vm366, %v95, %v322
  %v370 = vsel %vm366, %v96, %v323
  %v371 = vsel %vm366, %v157, %v332
  %v372 = vsel %vm366, %v158, %v333
  %v373 = vsel %vm366, %v159, %v334
  %v374 = vsel %vm366, %v160, %v335
  %v375 = vsel %vm366, %v60, %v346
  %v376 = vsel %vm366, %v64, %v347
  %v377 = vsel %vm366, %v61, %v348
  %v378 = vsel %vm366, %v65, %v349
  %v379 = vsel %vm366, %v250, %v358
  %v380 = vsel %vm366, %v251, %v359
  %v381 = vsel %vm366, %v252, %v360
  %v382 = vsel %vm366, %v253, %v361
  %v383 = vsel %vm366, %v312, 1.0
  %v384 = vsel %vm366, %v313, 1.0
  %v385 = vsel %vm366, %v314, 1.0
  %v386 = vsel %vm366, %v315, 1.0
  %v387 = vld [vmem:[%s0] sm:$0xf]
  %vm388 = vcmask 302080
  %v390 = vsel %vm388, %v387, 0
  %vm392 = vcmask 1044480
  %v394 = vsel %vm392, %v383, 0
  %v397 = vsel %vm392, %v384, 0
  %v400 = vsel %vm392, %v385, 0
  %v403 = vsel %vm392, %v386, 0
  %405 = vmatprep.subr.mxu0 0.0
  %406 = vmatpush1.msra.mxu0 0.0
  %407 = vmatprep.subr.mxu0 0.0
  %408 = vmatpush1.msra.mxu0 0.0
  %409 = vmatprep.subr.mxu0 0.0
  %410 = vmatpush1.msra.mxu0 0.0
  %411 = vmatprep.subr.mxu0 0.0
  %412 = vmatpush1.msra.mxu0 0.0
  %413 = vmatprep.subr.mxu0 0.0
  %414 = vmatpush1.msra.mxu0 0.0
  %415 = vmatprep.subr.mxu0 0.0
  %416 = vmatpush1.msra.mxu0 0.0
  %417 = vmatprep.subr.mxu0 0.0
  %418 = vmatpush1.msra.mxu0 0.0
  %419 = vmatprep.subr.mxu0 0.0
  %420 = vmatpush1.msra.mxu0 0.0
  %421 = vmatprep.subr.mxu0 0.0
  %422 = vmatpush1.msra.mxu0 0.0
  %423 = vmatprep.subr.mxu0 0.0
  %424 = vmatpush1.msra.mxu0 0.0
  %425 = vmatprep.subr.mxu0 0.0
  %426 = vmatpush1.msra.mxu0 0.0
  %v427 = vand.u32 %v397, 4294901760
  %428 = vmatprep.subr.mxu0 %v427
  %v429 = vand.u32 %v394, 4294901760
  %430 = vmatpush1.msra.mxu0 %v429
  %v431 = vand.u32 %v380, 4294901760
  %432 = vmatprep.subr.mxu0 %v431
  %v433 = vand.u32 %v379, 4294901760
  %434 = vmatpush1.msra.mxu0 %v433
  %v435 = vand.u32 %v376, 4294901760
  %436 = vmatprep.subr.mxu0 %v435
  %v437 = vand.u32 %v375, 4294901760
  %438 = vmatpush1.msra.mxu0 %v437
  %v439 = vand.u32 %v372, 4294901760
  %440 = vmatprep.subr.mxu0 %v439
  %v441 = vand.u32 %v371, 4294901760
  %442 = vmatpush1.msra.mxu0 %v441
  %v443 = vand.u32 %v368, 4294901760
  %444 = vmatprep.subr.mxu0 %v443
  %v445 = vand.u32 %v367, 4294901760
  %446 = vmatpush1.msra.mxu0 %v445
  %447 = vmatprep.subr.mxu0 0.0
  %448 = vmatpush2.msra.mxu0 0.0
  %449 = vmatprep.subr.mxu0 0.0
  %450 = vmatpush2.msra.mxu0 0.0
  %451 = vmatprep.subr.mxu0 0.0
  %452 = vmatpush2.msra.mxu0 0.0
  %453 = vmatprep.subr.mxu0 0.0
  %454 = vmatpush2.msra.mxu0 0.0
  %455 = vmatprep.subr.mxu0 0.0
  %456 = vmatpush2.msra.mxu0 0.0
  %457 = vmatprep.subr.mxu0 0.0
  %458 = vmatpush2.msra.mxu0 0.0
  %459 = vmatprep.subr.mxu0 0.0
  %460 = vmatpush2.msra.mxu0 0.0
  %461 = vmatprep.subr.mxu0 0.0
  %462 = vmatpush2.msra.mxu0 0.0
  %463 = vmatprep.subr.mxu0 0.0
  %464 = vmatpush2.msra.mxu0 0.0
  %465 = vmatprep.subr.mxu0 0.0
  %466 = vmatpush2.msra.mxu0 0.0
  %467 = vmatprep.subr.mxu0 0.0
  %468 = vmatpush2.msra.mxu0 0.0
  %469 = vmatprep.subr.mxu0 0.0
  %470 = vmatpush2.msra.mxu0 0.0
  %471 = vmatprep.subr.mxu0 0.0
  %472 = vmatpush2.msra.mxu0 0.0
  %473 = vmatprep.subr.mxu0 0.0
  %474 = vmatpush2.msra.mxu0 0.0
  %475 = vmatprep.subr.mxu0 0.0
  %476 = vmatpush2.msra.mxu0 0.0
  %477 = vmatprep.subr.mxu0 0.0
  %478 = vmatpush2.msra.mxu0 0.0
  %479 = vmatprep.mubr.f32.mxu0 0.0
  %v480 = vand.u32 %v390, 4294901760
  %v481 = vsub.f32 %v390, %v480
  %v482 = vand.u32 %v481, 4294901760
  %v483 = vsub.f32 %v481, %v482
  %v484 = vand.u32 %v483, 4294901760
  %485 = vmatmul.mubr.f32.gmra.mxu0 %v484
  %v486 = vpop.f32.mrf.mxu0
  %v487 = vadd.f32 0.0, %v486
  %v488 = vpop.f32.mrf.mxu0
  %v489 = vadd.f32 0.0, %v488
  %490 = vdwg.mxu0
  %491 = vmatprep.subr.mxu0 0.0
  %492 = vmatpush1.msra.mxu0 0.0
  %493 = vmatprep.subr.mxu0 0.0
  %494 = vmatpush1.msra.mxu0 0.0
  %495 = vmatprep.subr.mxu0 0.0
  %496 = vmatpush1.msra.mxu0 0.0
  %497 = vmatprep.subr.mxu0 0.0
  %498 = vmatpush1.msra.mxu0 0.0
  %499 = vmatprep.subr.mxu0 0.0
  %500 = vmatpush1.msra.mxu0 0.0
  %501 = vmatprep.subr.mxu0 0.0
  %502 = vmatpush1.msra.mxu0 0.0
  %503 = vmatprep.subr.mxu0 0.0
  %504 = vmatpush1.msra.mxu0 0.0
  %505 = vmatprep.subr.mxu0 0.0
  %506 = vmatpush1.msra.mxu0 0.0
  %507 = vmatprep.subr.mxu0 0.0
  %508 = vmatpush1.msra.mxu0 0.0
  %509 = vmatprep.subr.mxu0 0.0
  %510 = vmatpush1.msra.mxu0 0.0
  %511 = vmatprep.subr.mxu0 0.0
  %512 = vmatpush1.msra.mxu0 0.0
  %v513 = vand.u32 %v397, 4294901760
  %v514 = vsub.f32 %v397, %v513
  %v515 = vand.u32 %v514, 4294901760
  %v516 = vsub.f32 %v514, %v515
  %v517 = vand.u32 %v516, 4294901760
  %518 = vmatprep.subr.mxu0 %v517
  %v519 = vand.u32 %v394, 4294901760
  %v520 = vsub.f32 %v394, %v519
  %v521 = vand.u32 %v520, 4294901760
  %v522 = vsub.f32 %v520, %v521
  %v523 = vand.u32 %v522, 4294901760
  %524 = vmatpush1.msra.mxu0 %v523
  %v525 = vand.u32 %v380, 4294901760
  %v526 = vsub.f32 %v380, %v525
  %v527 = vand.u32 %v526, 4294901760
  %v528 = vsub.f32 %v526, %v527
  %v529 = vand.u32 %v528, 4294901760
  %530 = vmatprep.subr.mxu0 %v529
  %v531 = vand.u32 %v379, 4294901760
  %v532 = vsub.f32 %v379, %v531
  %v533 = vand.u32 %v532, 4294901760
  %v534 = vsub.f32 %v532, %v533
  %v535 = vand.u32 %v534, 4294901760
  %536 = vmatpush1.msra.mxu0 %v535
  %v537 = vand.u32 %v376, 4294901760
  %v538 = vsub.f32 %v376, %v537
  %v539 = vand.u32 %v538, 4294901760
  %v540 = vsub.f32 %v538, %v539
  %v541 = vand.u32 %v540, 4294901760
  %542 = vmatprep.subr.mxu0 %v541
  %v543 = vand.u32 %v375, 4294901760
  %v544 = vsub.f32 %v375, %v543
  %v545 = vand.u32 %v544, 4294901760
  %v546 = vsub.f32 %v544, %v545
  %v547 = vand.u32 %v546, 4294901760
  %548 = vmatpush1.msra.mxu0 %v547
  %v549 = vand.u32 %v372, 4294901760
  %v550 = vsub.f32 %v372, %v549
  %v551 = vand.u32 %v550, 4294901760
  %v552 = vsub.f32 %v550, %v551
  %v553 = vand.u32 %v552, 4294901760
  %554 = vmatprep.subr.mxu0 %v553
  %v555 = vand.u32 %v371, 4294901760
  %v556 = vsub.f32 %v371, %v555
  %v557 = vand.u32 %v556, 4294901760
  %v558 = vsub.f32 %v556, %v557
  %v559 = vand.u32 %v558, 4294901760
  %560 = vmatpush1.msra.mxu0 %v559
  %v561 = vand.u32 %v368, 4294901760
  %v562 = vsub.f32 %v368, %v561
  %v563 = vand.u32 %v562, 4294901760
  %v564 = vsub.f32 %v562, %v563
  %v565 = vand.u32 %v564, 4294901760
  %566 = vmatprep.subr.mxu0 %v565
  %v567 = vand.u32 %v367, 4294901760
  %v568 = vsub.f32 %v367, %v567
  %v569 = vand.u32 %v568, 4294901760
  %v570 = vsub.f32 %v568, %v569
  %v571 = vand.u32 %v570, 4294901760
  %572 = vmatpush1.msra.mxu0 %v571
  %573 = vmatprep.subr.mxu0 0.0
  %574 = vmatpush2.msra.mxu0 0.0
  %575 = vmatprep.subr.mxu0 0.0
  %576 = vmatpush2.msra.mxu0 0.0
  %577 = vmatprep.subr.mxu0 0.0
  %578 = vmatpush2.msra.mxu0 0.0
  %579 = vmatprep.subr.mxu0 0.0
  %580 = vmatpush2.msra.mxu0 0.0
  %581 = vmatprep.subr.mxu0 0.0
  %582 = vmatpush2.msra.mxu0 0.0
  %583 = vmatprep.subr.mxu0 0.0
  %584 = vmatpush2.msra.mxu0 0.0
  %585 = vmatprep.subr.mxu0 0.0
  %586 = vmatpush2.msra.mxu0 0.0
  %587 = vmatprep.subr.mxu0 0.0
  %588 = vmatpush2.msra.mxu0 0.0
  %589 = vmatprep.subr.mxu0 0.0
  %590 = vmatpush2.msra.mxu0 0.0
  %591 = vmatprep.subr.mxu0 0.0
  %592 = vmatpush2.msra.mxu0 0.0
  %593 = vmatprep.subr.mxu0 0.0
  %594 = vmatpush2.msra.mxu0 0.0
  %595 = vmatprep.subr.mxu0 0.0
  %596 = vmatpush2.msra.mxu0 0.0
  %597 = vmatprep.subr.mxu0 0.0
  %598 = vmatpush2.msra.mxu0 0.0
  %599 = vmatprep.subr.mxu0 0.0
  %600 = vmatpush2.msra.mxu0 0.0
  %601 = vmatprep.subr.mxu0 0.0
  %602 = vmatpush2.msra.mxu0 0.0
  %603 = vmatprep.subr.mxu0 0.0
  %604 = vmatpush2.msra.mxu0 0.0
  %605 = vmatprep.mubr.f32.mxu0 0.0
  %v606 = vand.u32 %v390, 4294901760
  %607 = vmatmul.mubr.f32.gmra.mxu0 %v606
  %v608 = vpop.f32.mrf.mxu0
  %v609 = vadd.f32 %v487, %v608
  %v610 = vpop.f32.mrf.mxu0
  %v611 = vadd.f32 %v489, %v610
  %612 = vdwg.mxu0
  %613 = vmatprep.subr.mxu0 0.0
  %614 = vmatpush1.msra.mxu0 0.0
  %615 = vmatprep.subr.mxu0 0.0
  %616 = vmatpush1.msra.mxu0 0.0
  %617 = vmatprep.subr.mxu0 0.0
  %618 = vmatpush1.msra.mxu0 0.0
  %619 = vmatprep.subr.mxu0 0.0
  %620 = vmatpush1.msra.mxu0 0.0
  %621 = vmatprep.subr.mxu0 0.0
  %622 = vmatpush1.msra.mxu0 0.0
  %623 = vmatprep.subr.mxu0 0.0
  %624 = vmatpush1.msra.mxu0 0.0
  %625 = vmatprep.subr.mxu0 0.0
  %626 = vmatpush1.msra.mxu0 0.0
  %627 = vmatprep.subr.mxu0 0.0
  %628 = vmatpush1.msra.mxu0 0.0
  %629 = vmatprep.subr.mxu0 0.0
  %630 = vmatpush1.msra.mxu0 0.0
  %631 = vmatprep.subr.mxu0 0.0
  %632 = vmatpush1.msra.mxu0 0.0
  %633 = vmatprep.subr.mxu0 0.0
  %634 = vmatpush1.msra.mxu0 0.0
  %v635 = vand.u32 %v397, 4294901760
  %v636 = vsub.f32 %v397, %v635
  %637 = vmatprep.subr.mxu0 %v636
  %v638 = vand.u32 %v394, 4294901760
  %v639 = vsub.f32 %v394, %v638
  %640 = vmatpush1.msra.mxu0 %v639
  %v641 = vand.u32 %v380, 4294901760
  %v642 = vsub.f32 %v380, %v641
  %643 = vmatprep.subr.mxu0 %v642
  %v644 = vand.u32 %v379, 4294901760
  %v645 = vsub.f32 %v379, %v644
  %646 = vmatpush1.msra.mxu0 %v645
  %v647 = vand.u32 %v376, 4294901760
  %v648 = vsub.f32 %v376, %v647
  %649 = vmatprep.subr.mxu0 %v648
  %v650 = vand.u32 %v375, 4294901760
  %v651 = vsub.f32 %v375, %v650
  %652 = vmatpush1.msra.mxu0 %v651
  %v653 = vand.u32 %v372, 4294901760
  %v654 = vsub.f32 %v372, %v653
  %655 = vmatprep.subr.mxu0 %v654
  %v656 = vand.u32 %v371, 4294901760
  %v657 = vsub.f32 %v371, %v656
  %658 = vmatpush1.msra.mxu0 %v657
  %v659 = vand.u32 %v368, 4294901760
  %v660 = vsub.f32 %v368, %v659
  %661 = vmatprep.subr.mxu0 %v660
  %v662 = vand.u32 %v367, 4294901760
  %v663 = vsub.f32 %v367, %v662
  %664 = vmatpush1.msra.mxu0 %v663
  %665 = vmatprep.subr.mxu0 0.0
  %666 = vmatpush2.msra.mxu0 0.0
  %667 = vmatprep.subr.mxu0 0.0
  %668 = vmatpush2.msra.mxu0 0.0
  %669 = vmatprep.subr.mxu0 0.0
  %670 = vmatpush2.msra.mxu0 0.0
  %671 = vmatprep.subr.mxu0 0.0
  %672 = vmatpush2.msra.mxu0 0.0
  %673 = vmatprep.subr.mxu0 0.0
  %674 = vmatpush2.msra.mxu0 0.0
  %675 = vmatprep.subr.mxu0 0.0
  %676 = vmatpush2.msra.mxu0 0.0
  %677 = vmatprep.subr.mxu0 0.0
  %678 = vmatpush2.msra.mxu0 0.0
  %679 = vmatprep.subr.mxu0 0.0
  %680 = vmatpush2.msra.mxu0 0.0
  %681 = vmatprep.subr.mxu0 0.0
  %682 = vmatpush2.msra.mxu0 0.0
  %683 = vmatprep.subr.mxu0 0.0
  %684 = vmatpush2.msra.mxu0 0.0
  %685 = vmatprep.subr.mxu0 0.0
  %686 = vmatpush2.msra.mxu0 0.0
  %687 = vmatprep.subr.mxu0 0.0
  %688 = vmatpush2.msra.mxu0 0.0
  %689 = vmatprep.subr.mxu0 0.0
  %690 = vmatpush2.msra.mxu0 0.0
  %691 = vmatprep.subr.mxu0 0.0
  %692 = vmatpush2.msra.mxu0 0.0
  %693 = vmatprep.subr.mxu0 0.0
  %694 = vmatpush2.msra.mxu0 0.0
  %695 = vmatprep.subr.mxu0 0.0
  %696 = vmatpush2.msra.mxu0 0.0
  %697 = vmatprep.mubr.f32.mxu0 0.0
  %v698 = vand.u32 %v390, 4294901760
  %v699 = vsub.f32 %v390, %v698
  %700 = vmatmul.mubr.f32.gmra.mxu0 %v699
  %v701 = vpop.f32.mrf.mxu0
  %v702 = vadd.f32 %v609, %v701
  %v703 = vpop.f32.mrf.mxu0
  %v704 = vadd.f32 %v611, %v703
  %705 = vdwg.mxu0
  %706 = vmatprep.subr.mxu0 0.0
  %707 = vmatpush1.msra.mxu0 0.0
  %708 = vmatprep.subr.mxu0 0.0
  %709 = vmatpush1.msra.mxu0 0.0
  %710 = vmatprep.subr.mxu0 0.0
  %711 = vmatpush1.msra.mxu0 0.0
  %712 = vmatprep.subr.mxu0 0.0
  %713 = vmatpush1.msra.mxu0 0.0
  %714 = vmatprep.subr.mxu0 0.0
  %715 = vmatpush1.msra.mxu0 0.0
  %716 = vmatprep.subr.mxu0 0.0
  %717 = vmatpush1.msra.mxu0 0.0
  %718 = vmatprep.subr.mxu0 0.0
  %719 = vmatpush1.msra.mxu0 0.0
  %720 = vmatprep.subr.mxu0 0.0
  %721 = vmatpush1.msra.mxu0 0.0
  %722 = vmatprep.subr.mxu0 0.0
  %723 = vmatpush1.msra.mxu0 0.0
  %724 = vmatprep.subr.mxu0 0.0
  %725 = vmatpush1.msra.mxu0 0.0
  %726 = vmatprep.subr.mxu0 0.0
  %727 = vmatpush1.msra.mxu0 0.0
  %v728 = vand.u32 %v397, 4294901760
  %729 = vmatprep.subr.mxu0 %v728
  %v730 = vand.u32 %v394, 4294901760
  %731 = vmatpush1.msra.mxu0 %v730
  %v732 = vand.u32 %v380, 4294901760
  %733 = vmatprep.subr.mxu0 %v732
  %v734 = vand.u32 %v379, 4294901760
  %735 = vmatpush1.msra.mxu0 %v734
  %v736 = vand.u32 %v376, 4294901760
  %737 = vmatprep.subr.mxu0 %v736
  %v738 = vand.u32 %v375, 4294901760
  %739 = vmatpush1.msra.mxu0 %v738
  %v740 = vand.u32 %v372, 4294901760
  %741 = vmatprep.subr.mxu0 %v740
  %v742 = vand.u32 %v371, 4294901760
  %743 = vmatpush1.msra.mxu0 %v742
  %v744 = vand.u32 %v368, 4294901760
  %745 = vmatprep.subr.mxu0 %v744
  %v746 = vand.u32 %v367, 4294901760
  %747 = vmatpush1.msra.mxu0 %v746
  %748 = vmatprep.subr.mxu0 0.0
  %749 = vmatpush2.msra.mxu0 0.0
  %750 = vmatprep.subr.mxu0 0.0
  %751 = vmatpush2.msra.mxu0 0.0
  %752 = vmatprep.subr.mxu0 0.0
  %753 = vmatpush2.msra.mxu0 0.0
  %754 = vmatprep.subr.mxu0 0.0
  %755 = vmatpush2.msra.mxu0 0.0
  %756 = vmatprep.subr.mxu0 0.0
  %757 = vmatpush2.msra.mxu0 0.0
  %758 = vmatprep.subr.mxu0 0.0
  %759 = vmatpush2.msra.mxu0 0.0
  %760 = vmatprep.subr.mxu0 0.0
  %761 = vmatpush2.msra.mxu0 0.0
  %762 = vmatprep.subr.mxu0 0.0
  %763 = vmatpush2.msra.mxu0 0.0
  %764 = vmatprep.subr.mxu0 0.0
  %765 = vmatpush2.msra.mxu0 0.0
  %766 = vmatprep.subr.mxu0 0.0
  %767 = vmatpush2.msra.mxu0 0.0
  %768 = vmatprep.subr.mxu0 0.0
  %769 = vmatpush2.msra.mxu0 0.0
  %770 = vmatprep.subr.mxu0 0.0
  %771 = vmatpush2.msra.mxu0 0.0
  %772 = vmatprep.subr.mxu0 0.0
  %773 = vmatpush2.msra.mxu0 0.0
  %774 = vmatprep.subr.mxu0 0.0
  %775 = vmatpush2.msra.mxu0 0.0
  %776 = vmatprep.subr.mxu0 0.0
  %777 = vmatpush2.msra.mxu0 0.0
  %778 = vmatprep.subr.mxu0 0.0
  %779 = vmatpush2.msra.mxu0 0.0
  %780 = vmatprep.mubr.f32.mxu0 0.0
  %v781 = vand.u32 %v390, 4294901760
  %v782 = vsub.f32 %v390, %v781
  %v783 = vand.u32 %v782, 4294901760
  %784 = vmatmul.mubr.f32.gmra.mxu0 %v783
  %v785 = vpop.f32.mrf.mxu0
  %v786 = vadd.f32 %v702, %v785
  %v787 = vpop.f32.mrf.mxu0
  %v788 = vadd.f32 %v704, %v787
  %789 = vdwg.mxu0
  %790 = vmatprep.subr.mxu0 0.0
  %791 = vmatpush1.msra.mxu0 0.0
  %792 = vmatprep.subr.mxu0 0.0
  %793 = vmatpush1.msra.mxu0 0.0
  %794 = vmatprep.subr.mxu0 0.0
  %795 = vmatpush1.msra.mxu0 0.0
  %796 = vmatprep.subr.mxu0 0.0
  %797 = vmatpush1.msra.mxu0 0.0
  %798 = vmatprep.subr.mxu0 0.0
  %799 = vmatpush1.msra.mxu0 0.0
  %800 = vmatprep.subr.mxu0 0.0
  %801 = vmatpush1.msra.mxu0 0.0
  %802 = vmatprep.subr.mxu0 0.0
  %803 = vmatpush1.msra.mxu0 0.0
  %804 = vmatprep.subr.mxu0 0.0
  %805 = vmatpush1.msra.mxu0 0.0
  %806 = vmatprep.subr.mxu0 0.0
  %807 = vmatpush1.msra.mxu0 0.0
  %808 = vmatprep.subr.mxu0 0.0
  %809 = vmatpush1.msra.mxu0 0.0
  %810 = vmatprep.subr.mxu0 0.0
  %811 = vmatpush1.msra.mxu0 0.0
  %v812 = vand.u32 %v397, 4294901760
  %v813 = vsub.f32 %v397, %v812
  %v814 = vand.u32 %v813, 4294901760
  %815 = vmatprep.subr.mxu0 %v814
  %v816 = vand.u32 %v394, 4294901760
  %v817 = vsub.f32 %v394, %v816
  %v818 = vand.u32 %v817, 4294901760
  %819 = vmatpush1.msra.mxu0 %v818
  %v820 = vand.u32 %v380, 4294901760
  %v821 = vsub.f32 %v380, %v820
  %v822 = vand.u32 %v821, 4294901760
  %823 = vmatprep.subr.mxu0 %v822
  %v824 = vand.u32 %v379, 4294901760
  %v825 = vsub.f32 %v379, %v824
  %v826 = vand.u32 %v825, 4294901760
  %827 = vmatpush1.msra.mxu0 %v826
  %v828 = vand.u32 %v376, 4294901760
  %v829 = vsub.f32 %v376, %v828
  %v830 = vand.u32 %v829, 4294901760
  %831 = vmatprep.subr.mxu0 %v830
  %v832 = vand.u32 %v375, 4294901760
  %v833 = vsub.f32 %v375, %v832
  %v834 = vand.u32 %v833, 4294901760
  %835 = vmatpush1.msra.mxu0 %v834
  %v836 = vand.u32 %v372, 4294901760
  %v837 = vsub.f32 %v372, %v836
  %v838 = vand.u32 %v837, 4294901760
  %839 = vmatprep.subr.mxu0 %v838
  %v840 = vand.u32 %v371, 4294901760
  %v841 = vsub.f32 %v371, %v840
  %v842 = vand.u32 %v841, 4294901760
  %843 = vmatpush1.msra.mxu0 %v842
  %v844 = vand.u32 %v368, 4294901760
  %v845 = vsub.f32 %v368, %v844
  %v846 = vand.u32 %v845, 4294901760
  %847 = vmatprep.subr.mxu0 %v846
  %v848 = vand.u32 %v367, 4294901760
  %v849 = vsub.f32 %v367, %v848
  %v850 = vand.u32 %v849, 4294901760
  %851 = vmatpush1.msra.mxu0 %v850
  %852 = vmatprep.subr.mxu0 0.0
  %853 = vmatpush2.msra.mxu0 0.0
  %854 = vmatprep.subr.mxu0 0.0
  %855 = vmatpush2.msra.mxu0 0.0
  %856 = vmatprep.subr.mxu0 0.0
  %857 = vmatpush2.msra.mxu0 0.0
  %858 = vmatprep.subr.mxu0 0.0
  %859 = vmatpush2.msra.mxu0 0.0
  %860 = vmatprep.subr.mxu0 0.0
  %861 = vmatpush2.msra.mxu0 0.0
  %862 = vmatprep.subr.mxu0 0.0
  %863 = vmatpush2.msra.mxu0 0.0
  %864 = vmatprep.subr.mxu0 0.0
  %865 = vmatpush2.msra.mxu0 0.0
  %866 = vmatprep.subr.mxu0 0.0
  %867 = vmatpush2.msra.mxu0 0.0
  %868 = vmatprep.subr.mxu0 0.0
  %869 = vmatpush2.msra.mxu0 0.0
  %870 = vmatprep.subr.mxu0 0.0
  %871 = vmatpush2.msra.mxu0 0.0
  %872 = vmatprep.subr.mxu0 0.0
  %873 = vmatpush2.msra.mxu0 0.0
  %874 = vmatprep.subr.mxu0 0.0
  %875 = vmatpush2.msra.mxu0 0.0
  %876 = vmatprep.subr.mxu0 0.0
  %877 = vmatpush2.msra.mxu0 0.0
  %878 = vmatprep.subr.mxu0 0.0
  %879 = vmatpush2.msra.mxu0 0.0
  %880 = vmatprep.subr.mxu0 0.0
  %881 = vmatpush2.msra.mxu0 0.0
  %882 = vmatprep.subr.mxu0 0.0
  %883 = vmatpush2.msra.mxu0 0.0
  %884 = vmatprep.mubr.f32.mxu0 0.0
  %v885 = vand.u32 %v390, 4294901760
  %886 = vmatmul.mubr.f32.gmra.mxu0 %v885
  %v887 = vpop.f32.mrf.mxu0
  %v888 = vadd.f32 %v786, %v887
  %v889 = vpop.f32.mrf.mxu0
  %v890 = vadd.f32 %v788, %v889
  %891 = vdwg.mxu0
  %892 = vmatprep.subr.mxu0 0.0
  %893 = vmatpush1.msra.mxu0 0.0
  %894 = vmatprep.subr.mxu0 0.0
  %895 = vmatpush1.msra.mxu0 0.0
  %896 = vmatprep.subr.mxu0 0.0
  %897 = vmatpush1.msra.mxu0 0.0
  %898 = vmatprep.subr.mxu0 0.0
  %899 = vmatpush1.msra.mxu0 0.0
  %900 = vmatprep.subr.mxu0 0.0
  %901 = vmatpush1.msra.mxu0 0.0
  %902 = vmatprep.subr.mxu0 0.0
  %903 = vmatpush1.msra.mxu0 0.0
  %904 = vmatprep.subr.mxu0 0.0
  %905 = vmatpush1.msra.mxu0 0.0
  %906 = vmatprep.subr.mxu0 0.0
  %907 = vmatpush1.msra.mxu0 0.0
  %908 = vmatprep.subr.mxu0 0.0
  %909 = vmatpush1.msra.mxu0 0.0
  %910 = vmatprep.subr.mxu0 0.0
  %911 = vmatpush1.msra.mxu0 0.0
  %912 = vmatprep.subr.mxu0 0.0
  %913 = vmatpush1.msra.mxu0 0.0
  %v914 = vand.u32 %v397, 4294901760
  %915 = vmatprep.subr.mxu0 %v914
  %v916 = vand.u32 %v394, 4294901760
  %917 = vmatpush1.msra.mxu0 %v916
  %v918 = vand.u32 %v380, 4294901760
  %919 = vmatprep.subr.mxu0 %v918
  %v920 = vand.u32 %v379, 4294901760
  %921 = vmatpush1.msra.mxu0 %v920
  %v922 = vand.u32 %v376, 4294901760
  %923 = vmatprep.subr.mxu0 %v922
  %v924 = vand.u32 %v375, 4294901760
  %925 = vmatpush1.msra.mxu0 %v924
  %v926 = vand.u32 %v372, 4294901760
  %927 = vmatprep.subr.mxu0 %v926
  %v928 = vand.u32 %v371, 4294901760
  %929 = vmatpush1.msra.mxu0 %v928
  %v930 = vand.u32 %v368, 4294901760
  %931 = vmatprep.subr.mxu0 %v930
  %v932 = vand.u32 %v367, 4294901760
  %933 = vmatpush1.msra.mxu0 %v932
  %934 = vmatprep.subr.mxu0 0.0
  %935 = vmatpush2.msra.mxu0 0.0
  %936 = vmatprep.subr.mxu0 0.0
  %937 = vmatpush2.msra.mxu0 0.0
  %938 = vmatprep.subr.mxu0 0.0
  %939 = vmatpush2.msra.mxu0 0.0
  %940 = vmatprep.subr.mxu0 0.0
  %941 = vmatpush2.msra.mxu0 0.0
  %942 = vmatprep.subr.mxu0 0.0
  %943 = vmatpush2.msra.mxu0 0.0
  %944 = vmatprep.subr.mxu0 0.0
  %945 = vmatpush2.msra.mxu0 0.0
  %946 = vmatprep.subr.mxu0 0.0
  %947 = vmatpush2.msra.mxu0 0.0
  %948 = vmatprep.subr.mxu0 0.0
  %949 = vmatpush2.msra.mxu0 0.0
  %950 = vmatprep.subr.mxu0 0.0
  %951 = vmatpush2.msra.mxu0 0.0
  %952 = vmatprep.subr.mxu0 0.0
  %953 = vmatpush2.msra.mxu0 0.0
  %954 = vmatprep.subr.mxu0 0.0
  %955 = vmatpush2.msra.mxu0 0.0
  %956 = vmatprep.subr.mxu0 0.0
  %957 = vmatpush2.msra.mxu0 0.0
  %958 = vmatprep.subr.mxu0 0.0
  %959 = vmatpush2.msra.mxu0 0.0
  %960 = vmatprep.subr.mxu0 0.0
  %961 = vmatpush2.msra.mxu0 0.0
  %962 = vmatprep.subr.mxu0 0.0
  %963 = vmatpush2.msra.mxu0 0.0
  %964 = vmatprep.subr.mxu0 0.0
  %965 = vmatpush2.msra.mxu0 0.0
  %966 = vmatprep.mubr.f32.mxu0 0.0
  %v967 = vand.u32 %v390, 4294901760
  %968 = vmatmul.mubr.f32.gmra.mxu0 %v967
  %v969 = vpop.f32.mrf.mxu0
  %v970 = vadd.f32 %v888, %v969
  %v971 = vpop.f32.mrf.mxu0
  %v972 = vadd.f32 %v890, %v971
  %973 = vdwg.mxu0
  %974 = vmatprep.subr.mxu0 0.0
  %975 = vmatpush1.msra.mxu0 0.0
  %976 = vmatprep.subr.mxu0 0.0
  %977 = vmatpush1.msra.mxu0 0.0
  %978 = vmatprep.subr.mxu0 0.0
  %979 = vmatpush1.msra.mxu0 0.0
  %980 = vmatprep.subr.mxu0 0.0
  %981 = vmatpush1.msra.mxu0 0.0
  %982 = vmatprep.subr.mxu0 0.0
  %983 = vmatpush1.msra.mxu0 0.0
  %984 = vmatprep.subr.mxu0 0.0
  %985 = vmatpush1.msra.mxu0 0.0
  %986 = vmatprep.subr.mxu0 0.0
  %987 = vmatpush1.msra.mxu0 0.0
  %988 = vmatprep.subr.mxu0 0.0
  %989 = vmatpush1.msra.mxu0 0.0
  %990 = vmatprep.subr.mxu0 0.0
  %991 = vmatpush1.msra.mxu0 0.0
  %992 = vmatprep.subr.mxu0 0.0
  %993 = vmatpush1.msra.mxu0 0.0
  %994 = vmatprep.subr.mxu0 0.0
  %995 = vmatpush1.msra.mxu0 0.0
  %v996 = vand.u32 %v403, 4294901760
  %997 = vmatprep.subr.mxu0 %v996
  %v998 = vand.u32 %v400, 4294901760
  %999 = vmatpush1.msra.mxu0 %v998
  %v1000 = vand.u32 %v382, 4294901760
  %1001 = vmatprep.subr.mxu0 %v1000
  %v1002 = vand.u32 %v381, 4294901760
  %1003 = vmatpush1.msra.mxu0 %v1002
  %v1004 = vand.u32 %v378, 4294901760
  %1005 = vmatprep.subr.mxu0 %v1004
  %v1006 = vand.u32 %v377, 4294901760
  %1007 = vmatpush1.msra.mxu0 %v1006
  %v1008 = vand.u32 %v374, 4294901760
  %1009 = vmatprep.subr.mxu0 %v1008
  %v1010 = vand.u32 %v373, 4294901760
  %1011 = vmatpush1.msra.mxu0 %v1010
  %v1012 = vand.u32 %v370, 4294901760
  %1013 = vmatprep.subr.mxu0 %v1012
  %v1014 = vand.u32 %v369, 4294901760
  %1015 = vmatpush1.msra.mxu0 %v1014
  %1016 = vmatprep.subr.mxu0 0.0
  %1017 = vmatpush2.msra.mxu0 0.0
  %1018 = vmatprep.subr.mxu0 0.0
  %1019 = vmatpush2.msra.mxu0 0.0
  %1020 = vmatprep.subr.mxu0 0.0
  %1021 = vmatpush2.msra.mxu0 0.0
  %1022 = vmatprep.subr.mxu0 0.0
  %1023 = vmatpush2.msra.mxu0 0.0
  %1024 = vmatprep.subr.mxu0 0.0
  %1025 = vmatpush2.msra.mxu0 0.0
  %1026 = vmatprep.subr.mxu0 0.0
  %1027 = vmatpush2.msra.mxu0 0.0
  %1028 = vmatprep.subr.mxu0 0.0
  %1029 = vmatpush2.msra.mxu0 0.0
  %1030 = vmatprep.subr.mxu0 0.0
  %1031 = vmatpush2.msra.mxu0 0.0
  %1032 = vmatprep.subr.mxu0 0.0
  %1033 = vmatpush2.msra.mxu0 0.0
  %1034 = vmatprep.subr.mxu0 0.0
  %1035 = vmatpush2.msra.mxu0 0.0
  %1036 = vmatprep.subr.mxu0 0.0
  %1037 = vmatpush2.msra.mxu0 0.0
  %1038 = vmatprep.subr.mxu0 0.0
  %1039 = vmatpush2.msra.mxu0 0.0
  %1040 = vmatprep.subr.mxu0 0.0
  %1041 = vmatpush2.msra.mxu0 0.0
  %1042 = vmatprep.subr.mxu0 0.0
  %1043 = vmatpush2.msra.mxu0 0.0
  %1044 = vmatprep.subr.mxu0 0.0
  %1045 = vmatpush2.msra.mxu0 0.0
  %1046 = vmatprep.subr.mxu0 0.0
  %1047 = vmatpush2.msra.mxu0 0.0
  %1048 = vmatprep.mubr.f32.mxu0 0.0
  %v1049 = vand.u32 %v390, 4294901760
  %v1050 = vsub.f32 %v390, %v1049
  %v1051 = vand.u32 %v1050, 4294901760
  %v1052 = vsub.f32 %v1050, %v1051
  %v1053 = vand.u32 %v1052, 4294901760
  %1054 = vmatmul.mubr.f32.gmra.mxu0 %v1053
  %v1055 = vpop.f32.mrf.mxu0
  %v1056 = vadd.f32 0.0, %v1055
  %v1057 = vpop.f32.mrf.mxu0
  %v1058 = vadd.f32 0.0, %v1057
  %1059 = vdwg.mxu0
  %1060 = vmatprep.subr.mxu0 0.0
  %1061 = vmatpush1.msra.mxu0 0.0
  %1062 = vmatprep.subr.mxu0 0.0
  %1063 = vmatpush1.msra.mxu0 0.0
  %1064 = vmatprep.subr.mxu0 0.0
  %1065 = vmatpush1.msra.mxu0 0.0
  %1066 = vmatprep.subr.mxu0 0.0
  %1067 = vmatpush1.msra.mxu0 0.0
  %1068 = vmatprep.subr.mxu0 0.0
  %1069 = vmatpush1.msra.mxu0 0.0
  %1070 = vmatprep.subr.mxu0 0.0
  %1071 = vmatpush1.msra.mxu0 0.0
  %1072 = vmatprep.subr.mxu0 0.0
  %1073 = vmatpush1.msra.mxu0 0.0
  %1074 = vmatprep.subr.mxu0 0.0
  %1075 = vmatpush1.msra.mxu0 0.0
  %1076 = vmatprep.subr.mxu0 0.0
  %1077 = vmatpush1.msra.mxu0 0.0
  %1078 = vmatprep.subr.mxu0 0.0
  %1079 = vmatpush1.msra.mxu0 0.0
  %1080 = vmatprep.subr.mxu0 0.0
  %1081 = vmatpush1.msra.mxu0 0.0
  %v1082 = vand.u32 %v403, 4294901760
  %v1083 = vsub.f32 %v403, %v1082
  %v1084 = vand.u32 %v1083, 4294901760
  %v1085 = vsub.f32 %v1083, %v1084
  %v1086 = vand.u32 %v1085, 4294901760
  %1087 = vmatprep.subr.mxu0 %v1086
  %v1088 = vand.u32 %v400, 4294901760
  %v1089 = vsub.f32 %v400, %v1088
  %v1090 = vand.u32 %v1089, 4294901760
  %v1091 = vsub.f32 %v1089, %v1090
  %v1092 = vand.u32 %v1091, 4294901760
  %1093 = vmatpush1.msra.mxu0 %v1092
  %v1094 = vand.u32 %v382, 4294901760
  %v1095 = vsub.f32 %v382, %v1094
  %v1096 = vand.u32 %v1095, 4294901760
  %v1097 = vsub.f32 %v1095, %v1096
  %v1098 = vand.u32 %v1097, 4294901760
  %1099 = vmatprep.subr.mxu0 %v1098
  %v1100 = vand.u32 %v381, 4294901760
  %v1101 = vsub.f32 %v381, %v1100
  %v1102 = vand.u32 %v1101, 4294901760
  %v1103 = vsub.f32 %v1101, %v1102
  %v1104 = vand.u32 %v1103, 4294901760
  %1105 = vmatpush1.msra.mxu0 %v1104
  %v1106 = vand.u32 %v378, 4294901760
  %v1107 = vsub.f32 %v378, %v1106
  %v1108 = vand.u32 %v1107, 4294901760
  %v1109 = vsub.f32 %v1107, %v1108
  %v1110 = vand.u32 %v1109, 4294901760
  %1111 = vmatprep.subr.mxu0 %v1110
  %v1112 = vand.u32 %v377, 4294901760
  %v1113 = vsub.f32 %v377, %v1112
  %v1114 = vand.u32 %v1113, 4294901760
  %v1115 = vsub.f32 %v1113, %v1114
  %v1116 = vand.u32 %v1115, 4294901760
  %1117 = vmatpush1.msra.mxu0 %v1116
  %v1118 = vand.u32 %v374, 4294901760
  %v1119 = vsub.f32 %v374, %v1118
  %v1120 = vand.u32 %v1119, 4294901760
  %v1121 = vsub.f32 %v1119, %v1120
  %v1122 = vand.u32 %v1121, 4294901760
  %1123 = vmatprep.subr.mxu0 %v1122
  %v1124 = vand.u32 %v373, 4294901760
  %v1125 = vsub.f32 %v373, %v1124
  %v1126 = vand.u32 %v1125, 4294901760
  %v1127 = vsub.f32 %v1125, %v1126
  %v1128 = vand.u32 %v1127, 4294901760
  %1129 = vmatpush1.msra.mxu0 %v1128
  %v1130 = vand.u32 %v370, 4294901760
  %v1131 = vsub.f32 %v370, %v1130
  %v1132 = vand.u32 %v1131, 4294901760
  %v1133 = vsub.f32 %v1131, %v1132
  %v1134 = vand.u32 %v1133, 4294901760
  %1135 = vmatprep.subr.mxu0 %v1134
  %v1136 = vand.u32 %v369, 4294901760
  %v1137 = vsub.f32 %v369, %v1136
  %v1138 = vand.u32 %v1137, 4294901760
  %v1139 = vsub.f32 %v1137, %v1138
  %v1140 = vand.u32 %v1139, 4294901760
  %1141 = vmatpush1.msra.mxu0 %v1140
  %1142 = vmatprep.subr.mxu0 0.0
  %1143 = vmatpush2.msra.mxu0 0.0
  %1144 = vmatprep.subr.mxu0 0.0
  %1145 = vmatpush2.msra.mxu0 0.0
  %1146 = vmatprep.subr.mxu0 0.0
  %1147 = vmatpush2.msra.mxu0 0.0
  %1148 = vmatprep.subr.mxu0 0.0
  %1149 = vmatpush2.msra.mxu0 0.0
  %1150 = vmatprep.subr.mxu0 0.0
  %1151 = vmatpush2.msra.mxu0 0.0
  %1152 = vmatprep.subr.mxu0 0.0
  %1153 = vmatpush2.msra.mxu0 0.0
  %1154 = vmatprep.subr.mxu0 0.0
  %1155 = vmatpush2.msra.mxu0 0.0
  %1156 = vmatprep.subr.mxu0 0.0
  %1157 = vmatpush2.msra.mxu0 0.0
  %1158 = vmatprep.subr.mxu0 0.0
  %1159 = vmatpush2.msra.mxu0 0.0
  %1160 = vmatprep.subr.mxu0 0.0
  %1161 = vmatpush2.msra.mxu0 0.0
  %1162 = vmatprep.subr.mxu0 0.0
  %1163 = vmatpush2.msra.mxu0 0.0
  %1164 = vmatprep.subr.mxu0 0.0
  %1165 = vmatpush2.msra.mxu0 0.0
  %1166 = vmatprep.subr.mxu0 0.0
  %1167 = vmatpush2.msra.mxu0 0.0
  %1168 = vmatprep.subr.mxu0 0.0
  %1169 = vmatpush2.msra.mxu0 0.0
  %1170 = vmatprep.subr.mxu0 0.0
  %1171 = vmatpush2.msra.mxu0 0.0
  %1172 = vmatprep.subr.mxu0 0.0
  %1173 = vmatpush2.msra.mxu0 0.0
  %1174 = vmatprep.mubr.f32.mxu0 0.0
  %v1175 = vand.u32 %v390, 4294901760
  %1176 = vmatmul.mubr.f32.gmra.mxu0 %v1175
  %v1177 = vpop.f32.mrf.mxu0
  %v1178 = vadd.f32 %v1056, %v1177
  %v1179 = vpop.f32.mrf.mxu0
  %v1180 = vadd.f32 %v1058, %v1179
  %1181 = vdwg.mxu0
  %1182 = vmatprep.subr.mxu0 0.0
  %1183 = vmatpush1.msra.mxu0 0.0
  %1184 = vmatprep.subr.mxu0 0.0
  %1185 = vmatpush1.msra.mxu0 0.0
  %1186 = vmatprep.subr.mxu0 0.0
  %1187 = vmatpush1.msra.mxu0 0.0
  %1188 = vmatprep.subr.mxu0 0.0
  %1189 = vmatpush1.msra.mxu0 0.0
  %1190 = vmatprep.subr.mxu0 0.0
  %1191 = vmatpush1.msra.mxu0 0.0
  %1192 = vmatprep.subr.mxu0 0.0
  %1193 = vmatpush1.msra.mxu0 0.0
  %1194 = vmatprep.subr.mxu0 0.0
  %1195 = vmatpush1.msra.mxu0 0.0
  %1196 = vmatprep.subr.mxu0 0.0
  %1197 = vmatpush1.msra.mxu0 0.0
  %1198 = vmatprep.subr.mxu0 0.0
  %1199 = vmatpush1.msra.mxu0 0.0
  %1200 = vmatprep.subr.mxu0 0.0
  %1201 = vmatpush1.msra.mxu0 0.0
  %1202 = vmatprep.subr.mxu0 0.0
  %1203 = vmatpush1.msra.mxu0 0.0
  %v1204 = vand.u32 %v403, 4294901760
  %v1205 = vsub.f32 %v403, %v1204
  %1206 = vmatprep.subr.mxu0 %v1205
  %v1207 = vand.u32 %v400, 4294901760
  %v1208 = vsub.f32 %v400, %v1207
  %1209 = vmatpush1.msra.mxu0 %v1208
  %v1210 = vand.u32 %v382, 4294901760
  %v1211 = vsub.f32 %v382, %v1210
  %1212 = vmatprep.subr.mxu0 %v1211
  %v1213 = vand.u32 %v381, 4294901760
  %v1214 = vsub.f32 %v381, %v1213
  %1215 = vmatpush1.msra.mxu0 %v1214
  %v1216 = vand.u32 %v378, 4294901760
  %v1217 = vsub.f32 %v378, %v1216
  %1218 = vmatprep.subr.mxu0 %v1217
  %v1219 = vand.u32 %v377, 4294901760
  %v1220 = vsub.f32 %v377, %v1219
  %1221 = vmatpush1.msra.mxu0 %v1220
  %v1222 = vand.u32 %v374, 4294901760
  %v1223 = vsub.f32 %v374, %v1222
  %1224 = vmatprep.subr.mxu0 %v1223
  %v1225 = vand.u32 %v373, 4294901760
  %v1226 = vsub.f32 %v373, %v1225
  %1227 = vmatpush1.msra.mxu0 %v1226
  %v1228 = vand.u32 %v370, 4294901760
  %v1229 = vsub.f32 %v370, %v1228
  %1230 = vmatprep.subr.mxu0 %v1229
  %v1231 = vand.u32 %v369, 4294901760
  %v1232 = vsub.f32 %v369, %v1231
  %1233 = vmatpush1.msra.mxu0 %v1232
  %1234 = vmatprep.subr.mxu0 0.0
  %1235 = vmatpush2.msra.mxu0 0.0
  %1236 = vmatprep.subr.mxu0 0.0
  %1237 = vmatpush2.msra.mxu0 0.0
  %1238 = vmatprep.subr.mxu0 0.0
  %1239 = vmatpush2.msra.mxu0 0.0
  %1240 = vmatprep.subr.mxu0 0.0
  %1241 = vmatpush2.msra.mxu0 0.0
  %1242 = vmatprep.subr.mxu0 0.0
  %1243 = vmatpush2.msra.mxu0 0.0
  %1244 = vmatprep.subr.mxu0 0.0
  %1245 = vmatpush2.msra.mxu0 0.0
  %1246 = vmatprep.subr.mxu0 0.0
  %1247 = vmatpush2.msra.mxu0 0.0
  %1248 = vmatprep.subr.mxu0 0.0
  %1249 = vmatpush2.msra.mxu0 0.0
  %1250 = vmatprep.subr.mxu0 0.0
  %1251 = vmatpush2.msra.mxu0 0.0
  %1252 = vmatprep.subr.mxu0 0.0
  %1253 = vmatpush2.msra.mxu0 0.0
  %1254 = vmatprep.subr.mxu0 0.0
  %1255 = vmatpush2.msra.mxu0 0.0
  %1256 = vmatprep.subr.mxu0 0.0
  %1257 = vmatpush2.msra.mxu0 0.0
  %1258 = vmatprep.subr.mxu0 0.0
  %1259 = vmatpush2.msra.mxu0 0.0
  %1260 = vmatprep.subr.mxu0 0.0
  %1261 = vmatpush2.msra.mxu0 0.0
  %1262 = vmatprep.subr.mxu0 0.0
  %1263 = vmatpush2.msra.mxu0 0.0
  %1264 = vmatprep.subr.mxu0 0.0
  %1265 = vmatpush2.msra.mxu0 0.0
  %1266 = vmatprep.mubr.f32.mxu0 0.0
  %v1267 = vand.u32 %v390, 4294901760
  %v1268 = vsub.f32 %v390, %v1267
  %1269 = vmatmul.mubr.f32.gmra.mxu0 %v1268
  %v1270 = vpop.f32.mrf.mxu0
  %v1271 = vadd.f32 %v1178, %v1270
  %v1272 = vpop.f32.mrf.mxu0
  %v1273 = vadd.f32 %v1180, %v1272
  %1274 = vdwg.mxu0
  %1275 = vmatprep.subr.mxu0 0.0
  %1276 = vmatpush1.msra.mxu0 0.0
  %1277 = vmatprep.subr.mxu0 0.0
  %1278 = vmatpush1.msra.mxu0 0.0
  %1279 = vmatprep.subr.mxu0 0.0
  %1280 = vmatpush1.msra.mxu0 0.0
  %1281 = vmatprep.subr.mxu0 0.0
  %1282 = vmatpush1.msra.mxu0 0.0
  %1283 = vmatprep.subr.mxu0 0.0
  %1284 = vmatpush1.msra.mxu0 0.0
  %1285 = vmatprep.subr.mxu0 0.0
  %1286 = vmatpush1.msra.mxu0 0.0
  %1287 = vmatprep.subr.mxu0 0.0
  %1288 = vmatpush1.msra.mxu0 0.0
  %1289 = vmatprep.subr.mxu0 0.0
  %1290 = vmatpush1.msra.mxu0 0.0
  %1291 = vmatprep.subr.mxu0 0.0
  %1292 = vmatpush1.msra.mxu0 0.0
  %1293 = vmatprep.subr.mxu0 0.0
  %1294 = vmatpush1.msra.mxu0 0.0
  %1295 = vmatprep.subr.mxu0 0.0
  %1296 = vmatpush1.msra.mxu0 0.0
  %v1297 = vand.u32 %v403, 4294901760
  %1298 = vmatprep.subr.mxu0 %v1297
  %v1299 = vand.u32 %v400, 4294901760
  %1300 = vmatpush1.msra.mxu0 %v1299
  %v1301 = vand.u32 %v382, 4294901760
  %1302 = vmatprep.subr.mxu0 %v1301
  %v1303 = vand.u32 %v381, 4294901760
  %1304 = vmatpush1.msra.mxu0 %v1303
  %v1305 = vand.u32 %v378, 4294901760
  %1306 = vmatprep.subr.mxu0 %v1305
  %v1307 = vand.u32 %v377, 4294901760
  %1308 = vmatpush1.msra.mxu0 %v1307
  %v1309 = vand.u32 %v374, 4294901760
  %1310 = vmatprep.subr.mxu0 %v1309
  %v1311 = vand.u32 %v373, 4294901760
  %1312 = vmatpush1.msra.mxu0 %v1311
  %v1313 = vand.u32 %v370, 4294901760
  %1314 = vmatprep.subr.mxu0 %v1313
  %v1315 = vand.u32 %v369, 4294901760
  %1316 = vmatpush1.msra.mxu0 %v1315
  %1317 = vmatprep.subr.mxu0 0.0
  %1318 = vmatpush2.msra.mxu0 0.0
  %1319 = vmatprep.subr.mxu0 0.0
  %1320 = vmatpush2.msra.mxu0 0.0
  %1321 = vmatprep.subr.mxu0 0.0
  %1322 = vmatpush2.msra.mxu0 0.0
  %1323 = vmatprep.subr.mxu0 0.0
  %1324 = vmatpush2.msra.mxu0 0.0
  %1325 = vmatprep.subr.mxu0 0.0
  %1326 = vmatpush2.msra.mxu0 0.0
  %1327 = vmatprep.subr.mxu0 0.0
  %1328 = vmatpush2.msra.mxu0 0.0
  %1329 = vmatprep.subr.mxu0 0.0
  %1330 = vmatpush2.msra.mxu0 0.0
  %1331 = vmatprep.subr.mxu0 0.0
  %1332 = vmatpush2.msra.mxu0 0.0
  %1333 = vmatprep.subr.mxu0 0.0
  %1334 = vmatpush2.msra.mxu0 0.0
  %1335 = vmatprep.subr.mxu0 0.0
  %1336 = vmatpush2.msra.mxu0 0.0
  %1337 = vmatprep.subr.mxu0 0.0
  %1338 = vmatpush2.msra.mxu0 0.0
  %1339 = vmatprep.subr.mxu0 0.0
  %1340 = vmatpush2.msra.mxu0 0.0
  %1341 = vmatprep.subr.mxu0 0.0
  %1342 = vmatpush2.msra.mxu0 0.0
  %1343 = vmatprep.subr.mxu0 0.0
  %1344 = vmatpush2.msra.mxu0 0.0
  %1345 = vmatprep.subr.mxu0 0.0
  %1346 = vmatpush2.msra.mxu0 0.0
  %1347 = vmatprep.subr.mxu0 0.0
  %1348 = vmatpush2.msra.mxu0 0.0
  %1349 = vmatprep.mubr.f32.mxu0 0.0
  %v1350 = vand.u32 %v390, 4294901760
  %v1351 = vsub.f32 %v390, %v1350
  %v1352 = vand.u32 %v1351, 4294901760
  %1353 = vmatmul.mubr.f32.gmra.mxu0 %v1352
  %v1354 = vpop.f32.mrf.mxu0
  %v1355 = vadd.f32 %v1271, %v1354
  %v1356 = vpop.f32.mrf.mxu0
  %v1357 = vadd.f32 %v1273, %v1356
  %1358 = vdwg.mxu0
  %1359 = vmatprep.subr.mxu0 0.0
  %1360 = vmatpush1.msra.mxu0 0.0
  %1361 = vmatprep.subr.mxu0 0.0
  %1362 = vmatpush1.msra.mxu0 0.0
  %1363 = vmatprep.subr.mxu0 0.0
  %1364 = vmatpush1.msra.mxu0 0.0
  %1365 = vmatprep.subr.mxu0 0.0
  %1366 = vmatpush1.msra.mxu0 0.0
  %1367 = vmatprep.subr.mxu0 0.0
  %1368 = vmatpush1.msra.mxu0 0.0
  %1369 = vmatprep.subr.mxu0 0.0
  %1370 = vmatpush1.msra.mxu0 0.0
  %1371 = vmatprep.subr.mxu0 0.0
  %1372 = vmatpush1.msra.mxu0 0.0
  %1373 = vmatprep.subr.mxu0 0.0
  %1374 = vmatpush1.msra.mxu0 0.0
  %1375 = vmatprep.subr.mxu0 0.0
  %1376 = vmatpush1.msra.mxu0 0.0
  %1377 = vmatprep.subr.mxu0 0.0
  %1378 = vmatpush1.msra.mxu0 0.0
  %1379 = vmatprep.subr.mxu0 0.0
  %1380 = vmatpush1.msra.mxu0 0.0
  %v1381 = vand.u32 %v403, 4294901760
  %v1382 = vsub.f32 %v403, %v1381
  %v1383 = vand.u32 %v1382, 4294901760
  %1384 = vmatprep.subr.mxu0 %v1383
  %v1385 = vand.u32 %v400, 4294901760
  %v1386 = vsub.f32 %v400, %v1385
  %v1387 = vand.u32 %v1386, 4294901760
  %1388 = vmatpush1.msra.mxu0 %v1387
  %v1389 = vand.u32 %v382, 4294901760
  %v1390 = vsub.f32 %v382, %v1389
  %v1391 = vand.u32 %v1390, 4294901760
  %1392 = vmatprep.subr.mxu0 %v1391
  %v1393 = vand.u32 %v381, 4294901760
  %v1394 = vsub.f32 %v381, %v1393
  %v1395 = vand.u32 %v1394, 4294901760
  %1396 = vmatpush1.msra.mxu0 %v1395
  %v1397 = vand.u32 %v378, 4294901760
  %v1398 = vsub.f32 %v378, %v1397
  %v1399 = vand.u32 %v1398, 4294901760
  %1400 = vmatprep.subr.mxu0 %v1399
  %v1401 = vand.u32 %v377, 4294901760
  %v1402 = vsub.f32 %v377, %v1401
  %v1403 = vand.u32 %v1402, 4294901760
  %1404 = vmatpush1.msra.mxu0 %v1403
  %v1405 = vand.u32 %v374, 4294901760
  %v1406 = vsub.f32 %v374, %v1405
  %v1407 = vand.u32 %v1406, 4294901760
  %1408 = vmatprep.subr.mxu0 %v1407
  %v1409 = vand.u32 %v373, 4294901760
  %v1410 = vsub.f32 %v373, %v1409
  %v1411 = vand.u32 %v1410, 4294901760
  %1412 = vmatpush1.msra.mxu0 %v1411
  %v1413 = vand.u32 %v370, 4294901760
  %v1414 = vsub.f32 %v370, %v1413
  %v1415 = vand.u32 %v1414, 4294901760
  %1416 = vmatprep.subr.mxu0 %v1415
  %v1417 = vand.u32 %v369, 4294901760
  %v1418 = vsub.f32 %v369, %v1417
  %v1419 = vand.u32 %v1418, 4294901760
  %1420 = vmatpush1.msra.mxu0 %v1419
  %1421 = vmatprep.subr.mxu0 0.0
  %1422 = vmatpush2.msra.mxu0 0.0
  %1423 = vmatprep.subr.mxu0 0.0
  %1424 = vmatpush2.msra.mxu0 0.0
  %1425 = vmatprep.subr.mxu0 0.0
  %1426 = vmatpush2.msra.mxu0 0.0
  %1427 = vmatprep.subr.mxu0 0.0
  %1428 = vmatpush2.msra.mxu0 0.0
  %1429 = vmatprep.subr.mxu0 0.0
  %1430 = vmatpush2.msra.mxu0 0.0
  %1431 = vmatprep.subr.mxu0 0.0
  %1432 = vmatpush2.msra.mxu0 0.0
  %1433 = vmatprep.subr.mxu0 0.0
  %1434 = vmatpush2.msra.mxu0 0.0
  %1435 = vmatprep.subr.mxu0 0.0
  %1436 = vmatpush2.msra.mxu0 0.0
  %1437 = vmatprep.subr.mxu0 0.0
  %1438 = vmatpush2.msra.mxu0 0.0
  %1439 = vmatprep.subr.mxu0 0.0
  %1440 = vmatpush2.msra.mxu0 0.0
  %1441 = vmatprep.subr.mxu0 0.0
  %1442 = vmatpush2.msra.mxu0 0.0
  %1443 = vmatprep.subr.mxu0 0.0
  %1444 = vmatpush2.msra.mxu0 0.0
  %1445 = vmatprep.subr.mxu0 0.0
  %1446 = vmatpush2.msra.mxu0 0.0
  %1447 = vmatprep.subr.mxu0 0.0
  %1448 = vmatpush2.msra.mxu0 0.0
  %1449 = vmatprep.subr.mxu0 0.0
  %1450 = vmatpush2.msra.mxu0 0.0
  %1451 = vmatprep.subr.mxu0 0.0
  %1452 = vmatpush2.msra.mxu0 0.0
  %1453 = vmatprep.mubr.f32.mxu0 0.0
  %v1454 = vand.u32 %v390, 4294901760
  %1455 = vmatmul.mubr.f32.gmra.mxu0 %v1454
  %v1456 = vpop.f32.mrf.mxu0
  %v1457 = vadd.f32 %v1355, %v1456
  %v1458 = vpop.f32.mrf.mxu0
  %v1459 = vadd.f32 %v1357, %v1458
  %1460 = vdwg.mxu0
  %1461 = vmatprep.subr.mxu0 0.0
  %1462 = vmatpush1.msra.mxu0 0.0
  %1463 = vmatprep.subr.mxu0 0.0
  %1464 = vmatpush1.msra.mxu0 0.0
  %1465 = vmatprep.subr.mxu0 0.0
  %1466 = vmatpush1.msra.mxu0 0.0
  %1467 = vmatprep.subr.mxu0 0.0
  %1468 = vmatpush1.msra.mxu0 0.0
  %1469 = vmatprep.subr.mxu0 0.0
  %1470 = vmatpush1.msra.mxu0 0.0
  %1471 = vmatprep.subr.mxu0 0.0
  %1472 = vmatpush1.msra.mxu0 0.0
  %1473 = vmatprep.subr.mxu0 0.0
  %1474 = vmatpush1.msra.mxu0 0.0
  %1475 = vmatprep.subr.mxu0 0.0
  %1476 = vmatpush1.msra.mxu0 0.0
  %1477 = vmatprep.subr.mxu0 0.0
  %1478 = vmatpush1.msra.mxu0 0.0
  %1479 = vmatprep.subr.mxu0 0.0
  %1480 = vmatpush1.msra.mxu0 0.0
  %1481 = vmatprep.subr.mxu0 0.0
  %1482 = vmatpush1.msra.mxu0 0.0
  %v1483 = vand.u32 %v403, 4294901760
  %1484 = vmatprep.subr.mxu0 %v1483
  %v1485 = vand.u32 %v400, 4294901760
  %1486 = vmatpush1.msra.mxu0 %v1485
  %v1487 = vand.u32 %v382, 4294901760
  %1488 = vmatprep.subr.mxu0 %v1487
  %v1489 = vand.u32 %v381, 4294901760
  %1490 = vmatpush1.msra.mxu0 %v1489
  %v1491 = vand.u32 %v378, 4294901760
  %1492 = vmatprep.subr.mxu0 %v1491
  %v1493 = vand.u32 %v377, 4294901760
  %1494 = vmatpush1.msra.mxu0 %v1493
  %v1495 = vand.u32 %v374, 4294901760
  %1496 = vmatprep.subr.mxu0 %v1495
  %v1497 = vand.u32 %v373, 4294901760
  %1498 = vmatpush1.msra.mxu0 %v1497
  %v1499 = vand.u32 %v370, 4294901760
  %1500 = vmatprep.subr.mxu0 %v1499
  %v1501 = vand.u32 %v369, 4294901760
  %1502 = vmatpush1.msra.mxu0 %v1501
  %1503 = vmatprep.subr.mxu0 0.0
  %1504 = vmatpush2.msra.mxu0 0.0
  %1505 = vmatprep.subr.mxu0 0.0
  %1506 = vmatpush2.msra.mxu0 0.0
  %1507 = vmatprep.subr.mxu0 0.0
  %1508 = vmatpush2.msra.mxu0 0.0
  %1509 = vmatprep.subr.mxu0 0.0
  %1510 = vmatpush2.msra.mxu0 0.0
  %1511 = vmatprep.subr.mxu0 0.0
  %1512 = vmatpush2.msra.mxu0 0.0
  %1513 = vmatprep.subr.mxu0 0.0
  %1514 = vmatpush2.msra.mxu0 0.0
  %1515 = vmatprep.subr.mxu0 0.0
  %1516 = vmatpush2.msra.mxu0 0.0
  %1517 = vmatprep.subr.mxu0 0.0
  %1518 = vmatpush2.msra.mxu0 0.0
  %1519 = vmatprep.subr.mxu0 0.0
  %1520 = vmatpush2.msra.mxu0 0.0
  %1521 = vmatprep.subr.mxu0 0.0
  %1522 = vmatpush2.msra.mxu0 0.0
  %1523 = vmatprep.subr.mxu0 0.0
  %1524 = vmatpush2.msra.mxu0 0.0
  %1525 = vmatprep.subr.mxu0 0.0
  %1526 = vmatpush2.msra.mxu0 0.0
  %1527 = vmatprep.subr.mxu0 0.0
  %1528 = vmatpush2.msra.mxu0 0.0
  %1529 = vmatprep.subr.mxu0 0.0
  %1530 = vmatpush2.msra.mxu0 0.0
  %1531 = vmatprep.subr.mxu0 0.0
  %1532 = vmatpush2.msra.mxu0 0.0
  %1533 = vmatprep.subr.mxu0 0.0
  %1534 = vmatpush2.msra.mxu0 0.0
  %1535 = vmatprep.mubr.f32.mxu0 0.0
  %v1536 = vand.u32 %v390, 4294901760
  %1537 = vmatmul.mubr.f32.gmra.mxu0 %v1536
  %v1538 = vpop.f32.mrf.mxu0
  %v1539 = vadd.f32 %v1457, %v1538
  %v1540 = vpop.f32.mrf.mxu0
  %v1541 = vadd.f32 %v1459, %v1540
  %1542 = vdwg.mxu0
  %v1543 = vmax.f32 %v970, 0.0
  %v1544 = vmax.f32 %v972, 0.0
  %v1545 = vmax.f32 %v1539, 0.0
  %v1546 = vmax.f32 %v1541, 0.0
  %1551 = vrot.lane.b32.xlu0 %v1543, 17
  %v1552 = vpop.permute.xlu0 %1551
  %1553 = vrot.lane.b32.xlu0 %v1544, 17
  %v1554 = vpop.permute.xlu0 %1553
  %1555 = vrot.lane.b32.xlu0 %v1545, 17
  %v1556 = vpop.permute.xlu0 %1555
  %1557 = vrot.lane.b32.xlu0 %v1546, 17
  %v1558 = vpop.permute.xlu0 %1557
  %v1559 = vsel %vm74, %v1552, %v1554
  %v1560 = vsel %vm74, %v1554, %v1556
  %v1561 = vsel %vm74, %v1556, %v1558
  %v1567 = vsel %vm74, 0.0, %v1552
  %v1568 = vsel %vm74, %v1558, 0.0
  %v1569 = vsel %vm89, %v1567, 0.0
  %v1570 = vsel %vm90, %v1559, 0.0
  %v1571 = vsel %vm91, %v1560, 0.0
  %v1572 = vsel %vm92, %v1561, 0.0
  %1575 = vrot.lane.b32.xlu0 %v1567, 127
  %v1576 = vpop.permute.xlu0 %1575
  %1577 = vrot.lane.b32.xlu0 %v1559, 127
  %v1578 = vpop.permute.xlu0 %1577
  %1579 = vrot.lane.b32.xlu0 %v1560, 127
  %v1580 = vpop.permute.xlu0 %1579
  %1581 = vrot.lane.b32.xlu0 %v1561, 127
  %v1582 = vpop.permute.xlu0 %1581
  %1583 = vrot.lane.b32.xlu0 %v1568, 127
  %v1584 = vpop.permute.xlu0 %1583
  %v1585 = vsel %vm117, %v1576, %v1578
  %v1586 = vsel %vm117, %v1578, %v1580
  %v1587 = vsel %vm117, %v1580, %v1582
  %v1588 = vsel %vm117, %v1582, %v1584
  %v1593 = vsel %vm101, %v1585, 0.0
  %v1594 = vsel %vm102, %v1586, 0.0
  %v1595 = vsel %vm103, %v1587, 0.0
  %v1596 = vsel %vm104, %v1588, 0.0
  %1597 = vrot.lane.b32.xlu0 %v1567, 126
  %v1598 = vpop.permute.xlu0 %1597
  %1599 = vrot.lane.b32.xlu0 %v1559, 126
  %v1600 = vpop.permute.xlu0 %1599
  %1601 = vrot.lane.b32.xlu0 %v1560, 126
  %v1602 = vpop.permute.xlu0 %1601
  %1603 = vrot.lane.b32.xlu0 %v1561, 126
  %v1604 = vpop.permute.xlu0 %1603
  %1605 = vrot.lane.b32.xlu0 %v1568, 126
  %v1606 = vpop.permute.xlu0 %1605
  %v1607 = vsel %vm148, %v1598, %v1600
  %v1608 = vsel %vm148, %v1600, %v1602
  %v1609 = vsel %vm148, %v1602, %v1604
  %v1610 = vsel %vm148, %v1604, %v1606
  %v1615 = vsel %vm134, %v1607, 0.0
  %v1616 = vsel %vm135, %v1608, 0.0
  %v1617 = vsel %vm136, %v1609, 0.0
  %v1618 = vsel %vm137, %v1610, 0.0
  %1619 = vrot.lane.b32.xlu0 %v1567, 112
  %v1620 = vpop.permute.xlu0 %1619
  %1621 = vrot.lane.b32.xlu0 %v1559, 112
  %v1622 = vpop.permute.xlu0 %1621
  %1623 = vrot.lane.b32.xlu0 %v1560, 112
  %v1624 = vpop.permute.xlu0 %1623
  %1625 = vrot.lane.b32.xlu0 %v1561, 112
  %v1626 = vpop.permute.xlu0 %1625
  %1627 = vrot.lane.b32.xlu0 %v1568, 112
  %v1628 = vpop.permute.xlu0 %1627
  %v1629 = vsel %vm179, %v1620, %v1622
  %v1630 = vsel %vm179, %v1622, %v1624
  %v1631 = vsel %vm179, %v1624, %v1626
  %v1632 = vsel %vm179, %v1626, %v1628
  %v1637 = vsel %vm165, %v1629, 0.0
  %v1638 = vsel %vm166, %v1630, 0.0
  %v1639 = vsel %vm167, %v1631, 0.0
  %v1640 = vsel %vm168, %v1632, 0.0
  %1641 = vrot.lane.b32.xlu0 %v1567, 110
  %v1642 = vpop.permute.xlu0 %1641
  %1643 = vrot.lane.b32.xlu0 %v1559, 110
  %v1644 = vpop.permute.xlu0 %1643
  %1645 = vrot.lane.b32.xlu0 %v1560, 110
  %v1646 = vpop.permute.xlu0 %1645
  %1647 = vrot.lane.b32.xlu0 %v1561, 110
  %v1648 = vpop.permute.xlu0 %1647
  %1649 = vrot.lane.b32.xlu0 %v1568, 110
  %v1650 = vpop.permute.xlu0 %1649
  %v1651 = vsel %vm210, %v1642, %v1644
  %v1652 = vsel %vm210, %v1644, %v1646
  %v1653 = vsel %vm210, %v1646, %v1648
  %v1654 = vsel %vm210, %v1648, %v1650
  %v1659 = vsel %vm196, %v1651, 0.0
  %v1660 = vsel %vm197, %v1652, 0.0
  %v1661 = vsel %vm198, %v1653, 0.0
  %v1662 = vsel %vm199, %v1654, 0.0
  %1663 = vrot.lane.b32.xlu0 %v1567, 96
  %v1664 = vpop.permute.xlu0 %1663
  %1665 = vrot.lane.b32.xlu0 %v1559, 96
  %v1666 = vpop.permute.xlu0 %1665
  %1667 = vrot.lane.b32.xlu0 %v1560, 96
  %v1668 = vpop.permute.xlu0 %1667
  %1669 = vrot.lane.b32.xlu0 %v1561, 96
  %v1670 = vpop.permute.xlu0 %1669
  %1671 = vrot.lane.b32.xlu0 %v1568, 96
  %v1672 = vpop.permute.xlu0 %1671
  %v1673 = vsel %vm241, %v1664, %v1666
  %v1674 = vsel %vm241, %v1666, %v1668
  %v1675 = vsel %vm241, %v1668, %v1670
  %v1676 = vsel %vm241, %v1670, %v1672
  %v1681 = vsel %vm227, %v1673, 0.0
  %v1682 = vsel %vm228, %v1674, 0.0
  %v1683 = vsel %vm229, %v1675, 0.0
  %v1684 = vsel %vm230, %v1676, 0.0
  %1685 = vrot.lane.b32.xlu0 %v1567, 95
  %v1686 = vpop.permute.xlu0 %1685
  %1687 = vrot.lane.b32.xlu0 %v1559, 95
  %v1688 = vpop.permute.xlu0 %1687
  %1689 = vrot.lane.b32.xlu0 %v1560, 95
  %v1690 = vpop.permute.xlu0 %1689
  %1691 = vrot.lane.b32.xlu0 %v1561, 95
  %v1692 = vpop.permute.xlu0 %1691
  %1693 = vrot.lane.b32.xlu0 %v1568, 95
  %v1694 = vpop.permute.xlu0 %1693
  %v1695 = vsel %vm272, %v1686, %v1688
  %v1696 = vsel %vm272, %v1688, %v1690
  %v1697 = vsel %vm272, %v1690, %v1692
  %v1698 = vsel %vm272, %v1692, %v1694
  %v1703 = vsel %vm258, %v1695, 0.0
  %v1704 = vsel %vm259, %v1696, 0.0
  %v1705 = vsel %vm260, %v1697, 0.0
  %v1706 = vsel %vm261, %v1698, 0.0
  %1707 = vrot.lane.b32.xlu0 %v1567, 94
  %v1708 = vpop.permute.xlu0 %1707
  %1709 = vrot.lane.b32.xlu0 %v1559, 94
  %v1710 = vpop.permute.xlu0 %1709
  %1711 = vrot.lane.b32.xlu0 %v1560, 94
  %v1712 = vpop.permute.xlu0 %1711
  %1713 = vrot.lane.b32.xlu0 %v1561, 94
  %v1714 = vpop.permute.xlu0 %1713
  %1715 = vrot.lane.b32.xlu0 %v1568, 94
  %v1716 = vpop.permute.xlu0 %1715
  %v1717 = vsel %vm303, %v1708, %v1710
  %v1718 = vsel %vm303, %v1710, %v1712
  %v1719 = vsel %vm303, %v1712, %v1714
  %v1720 = vsel %vm303, %v1714, %v1716
  %v1725 = vsel %vm289, %v1717, 0.0
  %v1726 = vsel %vm290, %v1718, 0.0
  %v1727 = vsel %vm291, %v1719, 0.0
  %v1728 = vsel %vm292, %v1720, 0.0
  %v1733 = vrot.slane %v1593, 4
  %v1734 = vrot.slane %v1594, 4
  %v1735 = vrot.slane %v1595, 4
  %v1736 = vrot.slane %v1596, 4
  %v1745 = vrot.slane %v1637, 4
  %v1746 = vrot.slane %v1638, 4
  %v1747 = vrot.slane %v1639, 4
  %v1748 = vrot.slane %v1640, 4
  %v1757 = vrot.slane %v1659, 4
  %v1758 = vrot.slane %v1660, 4
  %v1759 = vrot.slane %v1661, 4
  %v1760 = vrot.slane %v1662, 4
  %v1769 = vrot.slane %v1703, 4
  %v1770 = vrot.slane %v1704, 4
  %v1771 = vrot.slane %v1705, 4
  %v1772 = vrot.slane %v1706, 4
  %v1777 = vsel %vm366, %v1569, %v1733
  %v1778 = vsel %vm366, %v1570, %v1734
  %v1779 = vsel %vm366, %v1571, %v1735
  %v1780 = vsel %vm366, %v1572, %v1736
  %v1781 = vsel %vm366, %v1615, %v1745
  %v1782 = vsel %vm366, %v1616, %v1746
  %v1783 = vsel %vm366, %v1617, %v1747
  %v1784 = vsel %vm366, %v1618, %v1748
  %v1785 = vsel %vm366, %v1543, %v1757
  %v1786 = vsel %vm366, %v1544, %v1758
  %v1787 = vsel %vm366, %v1545, %v1759
  %v1788 = vsel %vm366, %v1546, %v1760
  %v1789 = vsel %vm366, %v1681, %v1769
  %v1790 = vsel %vm366, %v1682, %v1770
  %v1791 = vsel %vm366, %v1683, %v1771
  %v1792 = vsel %vm366, %v1684, %v1772
  %v1793 = vsel %vm366, %v1725, 1.0
  %v1794 = vsel %vm366, %v1726, 1.0
  %v1795 = vsel %vm366, %v1727, 1.0
  %v1796 = vsel %vm366, %v1728, 1.0
  %s1797 = scalar_lea.vmem %s0, 4
  %v1798 = vld [vmem:[%s1797] sm:$0xf]
  %v1800 = vsel %vm388, %v1798, 0
  %v1803 = vsel %vm392, %v1793, 0
  %v1806 = vsel %vm392, %v1794, 0
  %v1809 = vsel %vm392, %v1795, 0
  %v1812 = vsel %vm392, %v1796, 0
  %1814 = vmatprep.subr.mxu0 0.0
  %1815 = vmatpush1.msra.mxu0 0.0
  %1816 = vmatprep.subr.mxu0 0.0
  %1817 = vmatpush1.msra.mxu0 0.0
  %1818 = vmatprep.subr.mxu0 0.0
  %1819 = vmatpush1.msra.mxu0 0.0
  %1820 = vmatprep.subr.mxu0 0.0
  %1821 = vmatpush1.msra.mxu0 0.0
  %1822 = vmatprep.subr.mxu0 0.0
  %1823 = vmatpush1.msra.mxu0 0.0
  %1824 = vmatprep.subr.mxu0 0.0
  %1825 = vmatpush1.msra.mxu0 0.0
  %1826 = vmatprep.subr.mxu0 0.0
  %1827 = vmatpush1.msra.mxu0 0.0
  %1828 = vmatprep.subr.mxu0 0.0
  %1829 = vmatpush1.msra.mxu0 0.0
  %1830 = vmatprep.subr.mxu0 0.0
  %1831 = vmatpush1.msra.mxu0 0.0
  %1832 = vmatprep.subr.mxu0 0.0
  %1833 = vmatpush1.msra.mxu0 0.0
  %1834 = vmatprep.subr.mxu0 0.0
  %1835 = vmatpush1.msra.mxu0 0.0
  %v1836 = vand.u32 %v1806, 4294901760
  %1837 = vmatprep.subr.mxu0 %v1836
  %v1838 = vand.u32 %v1803, 4294901760
  %1839 = vmatpush1.msra.mxu0 %v1838
  %v1840 = vand.u32 %v1790, 4294901760
  %1841 = vmatprep.subr.mxu0 %v1840
  %v1842 = vand.u32 %v1789, 4294901760
  %1843 = vmatpush1.msra.mxu0 %v1842
  %v1844 = vand.u32 %v1786, 4294901760
  %1845 = vmatprep.subr.mxu0 %v1844
  %v1846 = vand.u32 %v1785, 4294901760
  %1847 = vmatpush1.msra.mxu0 %v1846
  %v1848 = vand.u32 %v1782, 4294901760
  %1849 = vmatprep.subr.mxu0 %v1848
  %v1850 = vand.u32 %v1781, 4294901760
  %1851 = vmatpush1.msra.mxu0 %v1850
  %v1852 = vand.u32 %v1778, 4294901760
  %1853 = vmatprep.subr.mxu0 %v1852
  %v1854 = vand.u32 %v1777, 4294901760
  %1855 = vmatpush1.msra.mxu0 %v1854
  %1856 = vmatprep.subr.mxu0 0.0
  %1857 = vmatpush2.msra.mxu0 0.0
  %1858 = vmatprep.subr.mxu0 0.0
  %1859 = vmatpush2.msra.mxu0 0.0
  %1860 = vmatprep.subr.mxu0 0.0
  %1861 = vmatpush2.msra.mxu0 0.0
  %1862 = vmatprep.subr.mxu0 0.0
  %1863 = vmatpush2.msra.mxu0 0.0
  %1864 = vmatprep.subr.mxu0 0.0
  %1865 = vmatpush2.msra.mxu0 0.0
  %1866 = vmatprep.subr.mxu0 0.0
  %1867 = vmatpush2.msra.mxu0 0.0
  %1868 = vmatprep.subr.mxu0 0.0
  %1869 = vmatpush2.msra.mxu0 0.0
  %1870 = vmatprep.subr.mxu0 0.0
  %1871 = vmatpush2.msra.mxu0 0.0
  %1872 = vmatprep.subr.mxu0 0.0
  %1873 = vmatpush2.msra.mxu0 0.0
  %1874 = vmatprep.subr.mxu0 0.0
  %1875 = vmatpush2.msra.mxu0 0.0
  %1876 = vmatprep.subr.mxu0 0.0
  %1877 = vmatpush2.msra.mxu0 0.0
  %1878 = vmatprep.subr.mxu0 0.0
  %1879 = vmatpush2.msra.mxu0 0.0
  %1880 = vmatprep.subr.mxu0 0.0
  %1881 = vmatpush2.msra.mxu0 0.0
  %1882 = vmatprep.subr.mxu0 0.0
  %1883 = vmatpush2.msra.mxu0 0.0
  %1884 = vmatprep.subr.mxu0 0.0
  %1885 = vmatpush2.msra.mxu0 0.0
  %1886 = vmatprep.subr.mxu0 0.0
  %1887 = vmatpush2.msra.mxu0 0.0
  %1888 = vmatprep.mubr.f32.mxu0 0.0
  %v1889 = vand.u32 %v1800, 4294901760
  %v1890 = vsub.f32 %v1800, %v1889
  %v1891 = vand.u32 %v1890, 4294901760
  %v1892 = vsub.f32 %v1890, %v1891
  %v1893 = vand.u32 %v1892, 4294901760
  %1894 = vmatmul.mubr.f32.gmra.mxu0 %v1893
  %v1895 = vpop.f32.mrf.mxu0
  %v1896 = vadd.f32 0.0, %v1895
  %v1897 = vpop.f32.mrf.mxu0
  %v1898 = vadd.f32 0.0, %v1897
  %1899 = vdwg.mxu0
  %1900 = vmatprep.subr.mxu0 0.0
  %1901 = vmatpush1.msra.mxu0 0.0
  %1902 = vmatprep.subr.mxu0 0.0
  %1903 = vmatpush1.msra.mxu0 0.0
  %1904 = vmatprep.subr.mxu0 0.0
  %1905 = vmatpush1.msra.mxu0 0.0
  %1906 = vmatprep.subr.mxu0 0.0
  %1907 = vmatpush1.msra.mxu0 0.0
  %1908 = vmatprep.subr.mxu0 0.0
  %1909 = vmatpush1.msra.mxu0 0.0
  %1910 = vmatprep.subr.mxu0 0.0
  %1911 = vmatpush1.msra.mxu0 0.0
  %1912 = vmatprep.subr.mxu0 0.0
  %1913 = vmatpush1.msra.mxu0 0.0
  %1914 = vmatprep.subr.mxu0 0.0
  %1915 = vmatpush1.msra.mxu0 0.0
  %1916 = vmatprep.subr.mxu0 0.0
  %1917 = vmatpush1.msra.mxu0 0.0
  %1918 = vmatprep.subr.mxu0 0.0
  %1919 = vmatpush1.msra.mxu0 0.0
  %1920 = vmatprep.subr.mxu0 0.0
  %1921 = vmatpush1.msra.mxu0 0.0
  %v1922 = vand.u32 %v1806, 4294901760
  %v1923 = vsub.f32 %v1806, %v1922
  %v1924 = vand.u32 %v1923, 4294901760
  %v1925 = vsub.f32 %v1923, %v1924
  %v1926 = vand.u32 %v1925, 4294901760
  %1927 = vmatprep.subr.mxu0 %v1926
  %v1928 = vand.u32 %v1803, 4294901760
  %v1929 = vsub.f32 %v1803, %v1928
  %v1930 = vand.u32 %v1929, 4294901760
  %v1931 = vsub.f32 %v1929, %v1930
  %v1932 = vand.u32 %v1931, 4294901760
  %1933 = vmatpush1.msra.mxu0 %v1932
  %v1934 = vand.u32 %v1790, 4294901760
  %v1935 = vsub.f32 %v1790, %v1934
  %v1936 = vand.u32 %v1935, 4294901760
  %v1937 = vsub.f32 %v1935, %v1936
  %v1938 = vand.u32 %v1937, 4294901760
  %1939 = vmatprep.subr.mxu0 %v1938
  %v1940 = vand.u32 %v1789, 4294901760
  %v1941 = vsub.f32 %v1789, %v1940
  %v1942 = vand.u32 %v1941, 4294901760
  %v1943 = vsub.f32 %v1941, %v1942
  %v1944 = vand.u32 %v1943, 4294901760
  %1945 = vmatpush1.msra.mxu0 %v1944
  %v1946 = vand.u32 %v1786, 4294901760
  %v1947 = vsub.f32 %v1786, %v1946
  %v1948 = vand.u32 %v1947, 4294901760
  %v1949 = vsub.f32 %v1947, %v1948
  %v1950 = vand.u32 %v1949, 4294901760
  %1951 = vmatprep.subr.mxu0 %v1950
  %v1952 = vand.u32 %v1785, 4294901760
  %v1953 = vsub.f32 %v1785, %v1952
  %v1954 = vand.u32 %v1953, 4294901760
  %v1955 = vsub.f32 %v1953, %v1954
  %v1956 = vand.u32 %v1955, 4294901760
  %1957 = vmatpush1.msra.mxu0 %v1956
  %v1958 = vand.u32 %v1782, 4294901760
  %v1959 = vsub.f32 %v1782, %v1958
  %v1960 = vand.u32 %v1959, 4294901760
  %v1961 = vsub.f32 %v1959, %v1960
  %v1962 = vand.u32 %v1961, 4294901760
  %1963 = vmatprep.subr.mxu0 %v1962
  %v1964 = vand.u32 %v1781, 4294901760
  %v1965 = vsub.f32 %v1781, %v1964
  %v1966 = vand.u32 %v1965, 4294901760
  %v1967 = vsub.f32 %v1965, %v1966
  %v1968 = vand.u32 %v1967, 4294901760
  %1969 = vmatpush1.msra.mxu0 %v1968
  %v1970 = vand.u32 %v1778, 4294901760
  %v1971 = vsub.f32 %v1778, %v1970
  %v1972 = vand.u32 %v1971, 4294901760
  %v1973 = vsub.f32 %v1971, %v1972
  %v1974 = vand.u32 %v1973, 4294901760
  %1975 = vmatprep.subr.mxu0 %v1974
  %v1976 = vand.u32 %v1777, 4294901760
  %v1977 = vsub.f32 %v1777, %v1976
  %v1978 = vand.u32 %v1977, 4294901760
  %v1979 = vsub.f32 %v1977, %v1978
  %v1980 = vand.u32 %v1979, 4294901760
  %1981 = vmatpush1.msra.mxu0 %v1980
  %1982 = vmatprep.subr.mxu0 0.0
  %1983 = vmatpush2.msra.mxu0 0.0
  %1984 = vmatprep.subr.mxu0 0.0
  %1985 = vmatpush2.msra.mxu0 0.0
  %1986 = vmatprep.subr.mxu0 0.0
  %1987 = vmatpush2.msra.mxu0 0.0
  %1988 = vmatprep.subr.mxu0 0.0
  %1989 = vmatpush2.msra.mxu0 0.0
  %1990 = vmatprep.subr.mxu0 0.0
  %1991 = vmatpush2.msra.mxu0 0.0
  %1992 = vmatprep.subr.mxu0 0.0
  %1993 = vmatpush2.msra.mxu0 0.0
  %1994 = vmatprep.subr.mxu0 0.0
  %1995 = vmatpush2.msra.mxu0 0.0
  %1996 = vmatprep.subr.mxu0 0.0
  %1997 = vmatpush2.msra.mxu0 0.0
  %1998 = vmatprep.subr.mxu0 0.0
  %1999 = vmatpush2.msra.mxu0 0.0
  %2000 = vmatprep.subr.mxu0 0.0
  %2001 = vmatpush2.msra.mxu0 0.0
  %2002 = vmatprep.subr.mxu0 0.0
  %2003 = vmatpush2.msra.mxu0 0.0
  %2004 = vmatprep.subr.mxu0 0.0
  %2005 = vmatpush2.msra.mxu0 0.0
  %2006 = vmatprep.subr.mxu0 0.0
  %2007 = vmatpush2.msra.mxu0 0.0
  %2008 = vmatprep.subr.mxu0 0.0
  %2009 = vmatpush2.msra.mxu0 0.0
  %2010 = vmatprep.subr.mxu0 0.0
  %2011 = vmatpush2.msra.mxu0 0.0
  %2012 = vmatprep.subr.mxu0 0.0
  %2013 = vmatpush2.msra.mxu0 0.0
  %2014 = vmatprep.mubr.f32.mxu0 0.0
  %v2015 = vand.u32 %v1800, 4294901760
  %2016 = vmatmul.mubr.f32.gmra.mxu0 %v2015
  %v2017 = vpop.f32.mrf.mxu0
  %v2018 = vadd.f32 %v1896, %v2017
  %v2019 = vpop.f32.mrf.mxu0
  %v2020 = vadd.f32 %v1898, %v2019
  %2021 = vdwg.mxu0
  %2022 = vmatprep.subr.mxu0 0.0
  %2023 = vmatpush1.msra.mxu0 0.0
  %2024 = vmatprep.subr.mxu0 0.0
  %2025 = vmatpush1.msra.mxu0 0.0
  %2026 = vmatprep.subr.mxu0 0.0
  %2027 = vmatpush1.msra.mxu0 0.0
  %2028 = vmatprep.subr.mxu0 0.0
  %2029 = vmatpush1.msra.mxu0 0.0
  %2030 = vmatprep.subr.mxu0 0.0
  %2031 = vmatpush1.msra.mxu0 0.0
  %2032 = vmatprep.subr.mxu0 0.0
  %2033 = vmatpush1.msra.mxu0 0.0
  %2034 = vmatprep.subr.mxu0 0.0
  %2035 = vmatpush1.msra.mxu0 0.0
  %2036 = vmatprep.subr.mxu0 0.0
  %2037 = vmatpush1.msra.mxu0 0.0
  %2038 = vmatprep.subr.mxu0 0.0
  %2039 = vmatpush1.msra.mxu0 0.0
  %2040 = vmatprep.subr.mxu0 0.0
  %2041 = vmatpush1.msra.mxu0 0.0
  %2042 = vmatprep.subr.mxu0 0.0
  %2043 = vmatpush1.msra.mxu0 0.0
  %v2044 = vand.u32 %v1806, 4294901760
  %v2045 = vsub.f32 %v1806, %v2044
  %2046 = vmatprep.subr.mxu0 %v2045
  %v2047 = vand.u32 %v1803, 4294901760
  %v2048 = vsub.f32 %v1803, %v2047
  %2049 = vmatpush1.msra.mxu0 %v2048
  %v2050 = vand.u32 %v1790, 4294901760
  %v2051 = vsub.f32 %v1790, %v2050
  %2052 = vmatprep.subr.mxu0 %v2051
  %v2053 = vand.u32 %v1789, 4294901760
  %v2054 = vsub.f32 %v1789, %v2053
  %2055 = vmatpush1.msra.mxu0 %v2054
  %v2056 = vand.u32 %v1786, 4294901760
  %v2057 = vsub.f32 %v1786, %v2056
  %2058 = vmatprep.subr.mxu0 %v2057
  %v2059 = vand.u32 %v1785, 4294901760
  %v2060 = vsub.f32 %v1785, %v2059
  %2061 = vmatpush1.msra.mxu0 %v2060
  %v2062 = vand.u32 %v1782, 4294901760
  %v2063 = vsub.f32 %v1782, %v2062
  %2064 = vmatprep.subr.mxu0 %v2063
  %v2065 = vand.u32 %v1781, 4294901760
  %v2066 = vsub.f32 %v1781, %v2065
  %2067 = vmatpush1.msra.mxu0 %v2066
  %v2068 = vand.u32 %v1778, 4294901760
  %v2069 = vsub.f32 %v1778, %v2068
  %2070 = vmatprep.subr.mxu0 %v2069
  %v2071 = vand.u32 %v1777, 4294901760
  %v2072 = vsub.f32 %v1777, %v2071
  %2073 = vmatpush1.msra.mxu0 %v2072
  %2074 = vmatprep.subr.mxu0 0.0
  %2075 = vmatpush2.msra.mxu0 0.0
  %2076 = vmatprep.subr.mxu0 0.0
  %2077 = vmatpush2.msra.mxu0 0.0
  %2078 = vmatprep.subr.mxu0 0.0
  %2079 = vmatpush2.msra.mxu0 0.0
  %2080 = vmatprep.subr.mxu0 0.0
  %2081 = vmatpush2.msra.mxu0 0.0
  %2082 = vmatprep.subr.mxu0 0.0
  %2083 = vmatpush2.msra.mxu0 0.0
  %2084 = vmatprep.subr.mxu0 0.0
  %2085 = vmatpush2.msra.mxu0 0.0
  %2086 = vmatprep.subr.mxu0 0.0
  %2087 = vmatpush2.msra.mxu0 0.0
  %2088 = vmatprep.subr.mxu0 0.0
  %2089 = vmatpush2.msra.mxu0 0.0
  %2090 = vmatprep.subr.mxu0 0.0
  %2091 = vmatpush2.msra.mxu0 0.0
  %2092 = vmatprep.subr.mxu0 0.0
  %2093 = vmatpush2.msra.mxu0 0.0
  %2094 = vmatprep.subr.mxu0 0.0
  %2095 = vmatpush2.msra.mxu0 0.0
  %2096 = vmatprep.subr.mxu0 0.0
  %2097 = vmatpush2.msra.mxu0 0.0
  %2098 = vmatprep.subr.mxu0 0.0
  %2099 = vmatpush2.msra.mxu0 0.0
  %2100 = vmatprep.subr.mxu0 0.0
  %2101 = vmatpush2.msra.mxu0 0.0
  %2102 = vmatprep.subr.mxu0 0.0
  %2103 = vmatpush2.msra.mxu0 0.0
  %2104 = vmatprep.subr.mxu0 0.0
  %2105 = vmatpush2.msra.mxu0 0.0
  %2106 = vmatprep.mubr.f32.mxu0 0.0
  %v2107 = vand.u32 %v1800, 4294901760
  %v2108 = vsub.f32 %v1800, %v2107
  %2109 = vmatmul.mubr.f32.gmra.mxu0 %v2108
  %v2110 = vpop.f32.mrf.mxu0
  %v2111 = vadd.f32 %v2018, %v2110
  %v2112 = vpop.f32.mrf.mxu0
  %v2113 = vadd.f32 %v2020, %v2112
  %2114 = vdwg.mxu0
  %2115 = vmatprep.subr.mxu0 0.0
  %2116 = vmatpush1.msra.mxu0 0.0
  %2117 = vmatprep.subr.mxu0 0.0
  %2118 = vmatpush1.msra.mxu0 0.0
  %2119 = vmatprep.subr.mxu0 0.0
  %2120 = vmatpush1.msra.mxu0 0.0
  %2121 = vmatprep.subr.mxu0 0.0
  %2122 = vmatpush1.msra.mxu0 0.0
  %2123 = vmatprep.subr.mxu0 0.0
  %2124 = vmatpush1.msra.mxu0 0.0
  %2125 = vmatprep.subr.mxu0 0.0
  %2126 = vmatpush1.msra.mxu0 0.0
  %2127 = vmatprep.subr.mxu0 0.0
  %2128 = vmatpush1.msra.mxu0 0.0
  %2129 = vmatprep.subr.mxu0 0.0
  %2130 = vmatpush1.msra.mxu0 0.0
  %2131 = vmatprep.subr.mxu0 0.0
  %2132 = vmatpush1.msra.mxu0 0.0
  %2133 = vmatprep.subr.mxu0 0.0
  %2134 = vmatpush1.msra.mxu0 0.0
  %2135 = vmatprep.subr.mxu0 0.0
  %2136 = vmatpush1.msra.mxu0 0.0
  %v2137 = vand.u32 %v1806, 4294901760
  %2138 = vmatprep.subr.mxu0 %v2137
  %v2139 = vand.u32 %v1803, 4294901760
  %2140 = vmatpush1.msra.mxu0 %v2139
  %v2141 = vand.u32 %v1790, 4294901760
  %2142 = vmatprep.subr.mxu0 %v2141
  %v2143 = vand.u32 %v1789, 4294901760
  %2144 = vmatpush1.msra.mxu0 %v2143
  %v2145 = vand.u32 %v1786, 4294901760
  %2146 = vmatprep.subr.mxu0 %v2145
  %v2147 = vand.u32 %v1785, 4294901760
  %2148 = vmatpush1.msra.mxu0 %v2147
  %v2149 = vand.u32 %v1782, 4294901760
  %2150 = vmatprep.subr.mxu0 %v2149
  %v2151 = vand.u32 %v1781, 4294901760
  %2152 = vmatpush1.msra.mxu0 %v2151
  %v2153 = vand.u32 %v1778, 4294901760
  %2154 = vmatprep.subr.mxu0 %v2153
  %v2155 = vand.u32 %v1777, 4294901760
  %2156 = vmatpush1.msra.mxu0 %v2155
  %2157 = vmatprep.subr.mxu0 0.0
  %2158 = vmatpush2.msra.mxu0 0.0
  %2159 = vmatprep.subr.mxu0 0.0
  %2160 = vmatpush2.msra.mxu0 0.0
  %2161 = vmatprep.subr.mxu0 0.0
  %2162 = vmatpush2.msra.mxu0 0.0
  %2163 = vmatprep.subr.mxu0 0.0
  %2164 = vmatpush2.msra.mxu0 0.0
  %2165 = vmatprep.subr.mxu0 0.0
  %2166 = vmatpush2.msra.mxu0 0.0
  %2167 = vmatprep.subr.mxu0 0.0
  %2168 = vmatpush2.msra.mxu0 0.0
  %2169 = vmatprep.subr.mxu0 0.0
  %2170 = vmatpush2.msra.mxu0 0.0
  %2171 = vmatprep.subr.mxu0 0.0
  %2172 = vmatpush2.msra.mxu0 0.0
  %2173 = vmatprep.subr.mxu0 0.0
  %2174 = vmatpush2.msra.mxu0 0.0
  %2175 = vmatprep.subr.mxu0 0.0
  %2176 = vmatpush2.msra.mxu0 0.0
  %2177 = vmatprep.subr.mxu0 0.0
  %2178 = vmatpush2.msra.mxu0 0.0
  %2179 = vmatprep.subr.mxu0 0.0
  %2180 = vmatpush2.msra.mxu0 0.0
  %2181 = vmatprep.subr.mxu0 0.0
  %2182 = vmatpush2.msra.mxu0 0.0
  %2183 = vmatprep.subr.mxu0 0.0
  %2184 = vmatpush2.msra.mxu0 0.0
  %2185 = vmatprep.subr.mxu0 0.0
  %2186 = vmatpush2.msra.mxu0 0.0
  %2187 = vmatprep.subr.mxu0 0.0
  %2188 = vmatpush2.msra.mxu0 0.0
  %2189 = vmatprep.mubr.f32.mxu0 0.0
  %v2190 = vand.u32 %v1800, 4294901760
  %v2191 = vsub.f32 %v1800, %v2190
  %v2192 = vand.u32 %v2191, 4294901760
  %2193 = vmatmul.mubr.f32.gmra.mxu0 %v2192
  %v2194 = vpop.f32.mrf.mxu0
  %v2195 = vadd.f32 %v2111, %v2194
  %v2196 = vpop.f32.mrf.mxu0
  %v2197 = vadd.f32 %v2113, %v2196
  %2198 = vdwg.mxu0
  %2199 = vmatprep.subr.mxu0 0.0
  %2200 = vmatpush1.msra.mxu0 0.0
  %2201 = vmatprep.subr.mxu0 0.0
  %2202 = vmatpush1.msra.mxu0 0.0
  %2203 = vmatprep.subr.mxu0 0.0
  %2204 = vmatpush1.msra.mxu0 0.0
  %2205 = vmatprep.subr.mxu0 0.0
  %2206 = vmatpush1.msra.mxu0 0.0
  %2207 = vmatprep.subr.mxu0 0.0
  %2208 = vmatpush1.msra.mxu0 0.0
  %2209 = vmatprep.subr.mxu0 0.0
  %2210 = vmatpush1.msra.mxu0 0.0
  %2211 = vmatprep.subr.mxu0 0.0
  %2212 = vmatpush1.msra.mxu0 0.0
  %2213 = vmatprep.subr.mxu0 0.0
  %2214 = vmatpush1.msra.mxu0 0.0
  %2215 = vmatprep.subr.mxu0 0.0
  %2216 = vmatpush1.msra.mxu0 0.0
  %2217 = vmatprep.subr.mxu0 0.0
  %2218 = vmatpush1.msra.mxu0 0.0
  %2219 = vmatprep.subr.mxu0 0.0
  %2220 = vmatpush1.msra.mxu0 0.0
  %v2221 = vand.u32 %v1806, 4294901760
  %v2222 = vsub.f32 %v1806, %v2221
  %v2223 = vand.u32 %v2222, 4294901760
  %2224 = vmatprep.subr.mxu0 %v2223
  %v2225 = vand.u32 %v1803, 4294901760
  %v2226 = vsub.f32 %v1803, %v2225
  %v2227 = vand.u32 %v2226, 4294901760
  %2228 = vmatpush1.msra.mxu0 %v2227
  %v2229 = vand.u32 %v1790, 4294901760
  %v2230 = vsub.f32 %v1790, %v2229
  %v2231 = vand.u32 %v2230, 4294901760
  %2232 = vmatprep.subr.mxu0 %v2231
  %v2233 = vand.u32 %v1789, 4294901760
  %v2234 = vsub.f32 %v1789, %v2233
  %v2235 = vand.u32 %v2234, 4294901760
  %2236 = vmatpush1.msra.mxu0 %v2235
  %v2237 = vand.u32 %v1786, 4294901760
  %v2238 = vsub.f32 %v1786, %v2237
  %v2239 = vand.u32 %v2238, 4294901760
  %2240 = vmatprep.subr.mxu0 %v2239
  %v2241 = vand.u32 %v1785, 4294901760
  %v2242 = vsub.f32 %v1785, %v2241
  %v2243 = vand.u32 %v2242, 4294901760
  %2244 = vmatpush1.msra.mxu0 %v2243
  %v2245 = vand.u32 %v1782, 4294901760
  %v2246 = vsub.f32 %v1782, %v2245
  %v2247 = vand.u32 %v2246, 4294901760
  %2248 = vmatprep.subr.mxu0 %v2247
  %v2249 = vand.u32 %v1781, 4294901760
  %v2250 = vsub.f32 %v1781, %v2249
  %v2251 = vand.u32 %v2250, 4294901760
  %2252 = vmatpush1.msra.mxu0 %v2251
  %v2253 = vand.u32 %v1778, 4294901760
  %v2254 = vsub.f32 %v1778, %v2253
  %v2255 = vand.u32 %v2254, 4294901760
  %2256 = vmatprep.subr.mxu0 %v2255
  %v2257 = vand.u32 %v1777, 4294901760
  %v2258 = vsub.f32 %v1777, %v2257
  %v2259 = vand.u32 %v2258, 4294901760
  %2260 = vmatpush1.msra.mxu0 %v2259
  %2261 = vmatprep.subr.mxu0 0.0
  %2262 = vmatpush2.msra.mxu0 0.0
  %2263 = vmatprep.subr.mxu0 0.0
  %2264 = vmatpush2.msra.mxu0 0.0
  %2265 = vmatprep.subr.mxu0 0.0
  %2266 = vmatpush2.msra.mxu0 0.0
  %2267 = vmatprep.subr.mxu0 0.0
  %2268 = vmatpush2.msra.mxu0 0.0
  %2269 = vmatprep.subr.mxu0 0.0
  %2270 = vmatpush2.msra.mxu0 0.0
  %2271 = vmatprep.subr.mxu0 0.0
  %2272 = vmatpush2.msra.mxu0 0.0
  %2273 = vmatprep.subr.mxu0 0.0
  %2274 = vmatpush2.msra.mxu0 0.0
  %2275 = vmatprep.subr.mxu0 0.0
  %2276 = vmatpush2.msra.mxu0 0.0
  %2277 = vmatprep.subr.mxu0 0.0
  %2278 = vmatpush2.msra.mxu0 0.0
  %2279 = vmatprep.subr.mxu0 0.0
  %2280 = vmatpush2.msra.mxu0 0.0
  %2281 = vmatprep.subr.mxu0 0.0
  %2282 = vmatpush2.msra.mxu0 0.0
  %2283 = vmatprep.subr.mxu0 0.0
  %2284 = vmatpush2.msra.mxu0 0.0
  %2285 = vmatprep.subr.mxu0 0.0
  %2286 = vmatpush2.msra.mxu0 0.0
  %2287 = vmatprep.subr.mxu0 0.0
  %2288 = vmatpush2.msra.mxu0 0.0
  %2289 = vmatprep.subr.mxu0 0.0
  %2290 = vmatpush2.msra.mxu0 0.0
  %2291 = vmatprep.subr.mxu0 0.0
  %2292 = vmatpush2.msra.mxu0 0.0
  %2293 = vmatprep.mubr.f32.mxu0 0.0
  %v2294 = vand.u32 %v1800, 4294901760
  %2295 = vmatmul.mubr.f32.gmra.mxu0 %v2294
  %v2296 = vpop.f32.mrf.mxu0
  %v2297 = vadd.f32 %v2195, %v2296
  %v2298 = vpop.f32.mrf.mxu0
  %v2299 = vadd.f32 %v2197, %v2298
  %2300 = vdwg.mxu0
  %2301 = vmatprep.subr.mxu0 0.0
  %2302 = vmatpush1.msra.mxu0 0.0
  %2303 = vmatprep.subr.mxu0 0.0
  %2304 = vmatpush1.msra.mxu0 0.0
  %2305 = vmatprep.subr.mxu0 0.0
  %2306 = vmatpush1.msra.mxu0 0.0
  %2307 = vmatprep.subr.mxu0 0.0
  %2308 = vmatpush1.msra.mxu0 0.0
  %2309 = vmatprep.subr.mxu0 0.0
  %2310 = vmatpush1.msra.mxu0 0.0
  %2311 = vmatprep.subr.mxu0 0.0
  %2312 = vmatpush1.msra.mxu0 0.0
  %2313 = vmatprep.subr.mxu0 0.0
  %2314 = vmatpush1.msra.mxu0 0.0
  %2315 = vmatprep.subr.mxu0 0.0
  %2316 = vmatpush1.msra.mxu0 0.0
  %2317 = vmatprep.subr.mxu0 0.0
  %2318 = vmatpush1.msra.mxu0 0.0
  %2319 = vmatprep.subr.mxu0 0.0
  %2320 = vmatpush1.msra.mxu0 0.0
  %2321 = vmatprep.subr.mxu0 0.0
  %2322 = vmatpush1.msra.mxu0 0.0
  %v2323 = vand.u32 %v1806, 4294901760
  %2324 = vmatprep.subr.mxu0 %v2323
  %v2325 = vand.u32 %v1803, 4294901760
  %2326 = vmatpush1.msra.mxu0 %v2325
  %v2327 = vand.u32 %v1790, 4294901760
  %2328 = vmatprep.subr.mxu0 %v2327
  %v2329 = vand.u32 %v1789, 4294901760
  %2330 = vmatpush1.msra.mxu0 %v2329
  %v2331 = vand.u32 %v1786, 4294901760
  %2332 = vmatprep.subr.mxu0 %v2331
  %v2333 = vand.u32 %v1785, 4294901760
  %2334 = vmatpush1.msra.mxu0 %v2333
  %v2335 = vand.u32 %v1782, 4294901760
  %2336 = vmatprep.subr.mxu0 %v2335
  %v2337 = vand.u32 %v1781, 4294901760
  %2338 = vmatpush1.msra.mxu0 %v2337
  %v2339 = vand.u32 %v1778, 4294901760
  %2340 = vmatprep.subr.mxu0 %v2339
  %v2341 = vand.u32 %v1777, 4294901760
  %2342 = vmatpush1.msra.mxu0 %v2341
  %2343 = vmatprep.subr.mxu0 0.0
  %2344 = vmatpush2.msra.mxu0 0.0
  %2345 = vmatprep.subr.mxu0 0.0
  %2346 = vmatpush2.msra.mxu0 0.0
  %2347 = vmatprep.subr.mxu0 0.0
  %2348 = vmatpush2.msra.mxu0 0.0
  %2349 = vmatprep.subr.mxu0 0.0
  %2350 = vmatpush2.msra.mxu0 0.0
  %2351 = vmatprep.subr.mxu0 0.0
  %2352 = vmatpush2.msra.mxu0 0.0
  %2353 = vmatprep.subr.mxu0 0.0
  %2354 = vmatpush2.msra.mxu0 0.0
  %2355 = vmatprep.subr.mxu0 0.0
  %2356 = vmatpush2.msra.mxu0 0.0
  %2357 = vmatprep.subr.mxu0 0.0
  %2358 = vmatpush2.msra.mxu0 0.0
  %2359 = vmatprep.subr.mxu0 0.0
  %2360 = vmatpush2.msra.mxu0 0.0
  %2361 = vmatprep.subr.mxu0 0.0
  %2362 = vmatpush2.msra.mxu0 0.0
  %2363 = vmatprep.subr.mxu0 0.0
  %2364 = vmatpush2.msra.mxu0 0.0
  %2365 = vmatprep.subr.mxu0 0.0
  %2366 = vmatpush2.msra.mxu0 0.0
  %2367 = vmatprep.subr.mxu0 0.0
  %2368 = vmatpush2.msra.mxu0 0.0
  %2369 = vmatprep.subr.mxu0 0.0
  %2370 = vmatpush2.msra.mxu0 0.0
  %2371 = vmatprep.subr.mxu0 0.0
  %2372 = vmatpush2.msra.mxu0 0.0
  %2373 = vmatprep.subr.mxu0 0.0
  %2374 = vmatpush2.msra.mxu0 0.0
  %2375 = vmatprep.mubr.f32.mxu0 0.0
  %v2376 = vand.u32 %v1800, 4294901760
  %2377 = vmatmul.mubr.f32.gmra.mxu0 %v2376
  %v2378 = vpop.f32.mrf.mxu0
  %v2379 = vadd.f32 %v2297, %v2378
  %v2380 = vpop.f32.mrf.mxu0
  %v2381 = vadd.f32 %v2299, %v2380
  %2382 = vdwg.mxu0
  %2383 = vmatprep.subr.mxu0 0.0
  %2384 = vmatpush1.msra.mxu0 0.0
  %2385 = vmatprep.subr.mxu0 0.0
  %2386 = vmatpush1.msra.mxu0 0.0
  %2387 = vmatprep.subr.mxu0 0.0
  %2388 = vmatpush1.msra.mxu0 0.0
  %2389 = vmatprep.subr.mxu0 0.0
  %2390 = vmatpush1.msra.mxu0 0.0
  %2391 = vmatprep.subr.mxu0 0.0
  %2392 = vmatpush1.msra.mxu0 0.0
  %2393 = vmatprep.subr.mxu0 0.0
  %2394 = vmatpush1.msra.mxu0 0.0
  %2395 = vmatprep.subr.mxu0 0.0
  %2396 = vmatpush1.msra.mxu0 0.0
  %2397 = vmatprep.subr.mxu0 0.0
  %2398 = vmatpush1.msra.mxu0 0.0
  %2399 = vmatprep.subr.mxu0 0.0
  %2400 = vmatpush1.msra.mxu0 0.0
  %2401 = vmatprep.subr.mxu0 0.0
  %2402 = vmatpush1.msra.mxu0 0.0
  %2403 = vmatprep.subr.mxu0 0.0
  %2404 = vmatpush1.msra.mxu0 0.0
  %v2405 = vand.u32 %v1812, 4294901760
  %2406 = vmatprep.subr.mxu0 %v2405
  %v2407 = vand.u32 %v1809, 4294901760
  %2408 = vmatpush1.msra.mxu0 %v2407
  %v2409 = vand.u32 %v1792, 4294901760
  %2410 = vmatprep.subr.mxu0 %v2409
  %v2411 = vand.u32 %v1791, 4294901760
  %2412 = vmatpush1.msra.mxu0 %v2411
  %v2413 = vand.u32 %v1788, 4294901760
  %2414 = vmatprep.subr.mxu0 %v2413
  %v2415 = vand.u32 %v1787, 4294901760
  %2416 = vmatpush1.msra.mxu0 %v2415
  %v2417 = vand.u32 %v1784, 4294901760
  %2418 = vmatprep.subr.mxu0 %v2417
  %v2419 = vand.u32 %v1783, 4294901760
  %2420 = vmatpush1.msra.mxu0 %v2419
  %v2421 = vand.u32 %v1780, 4294901760
  %2422 = vmatprep.subr.mxu0 %v2421
  %v2423 = vand.u32 %v1779, 4294901760
  %2424 = vmatpush1.msra.mxu0 %v2423
  %2425 = vmatprep.subr.mxu0 0.0
  %2426 = vmatpush2.msra.mxu0 0.0
  %2427 = vmatprep.subr.mxu0 0.0
  %2428 = vmatpush2.msra.mxu0 0.0
  %2429 = vmatprep.subr.mxu0 0.0
  %2430 = vmatpush2.msra.mxu0 0.0
  %2431 = vmatprep.subr.mxu0 0.0
  %2432 = vmatpush2.msra.mxu0 0.0
  %2433 = vmatprep.subr.mxu0 0.0
  %2434 = vmatpush2.msra.mxu0 0.0
  %2435 = vmatprep.subr.mxu0 0.0
  %2436 = vmatpush2.msra.mxu0 0.0
  %2437 = vmatprep.subr.mxu0 0.0
  %2438 = vmatpush2.msra.mxu0 0.0
  %2439 = vmatprep.subr.mxu0 0.0
  %2440 = vmatpush2.msra.mxu0 0.0
  %2441 = vmatprep.subr.mxu0 0.0
  %2442 = vmatpush2.msra.mxu0 0.0
  %2443 = vmatprep.subr.mxu0 0.0
  %2444 = vmatpush2.msra.mxu0 0.0
  %2445 = vmatprep.subr.mxu0 0.0
  %2446 = vmatpush2.msra.mxu0 0.0
  %2447 = vmatprep.subr.mxu0 0.0
  %2448 = vmatpush2.msra.mxu0 0.0
  %2449 = vmatprep.subr.mxu0 0.0
  %2450 = vmatpush2.msra.mxu0 0.0
  %2451 = vmatprep.subr.mxu0 0.0
  %2452 = vmatpush2.msra.mxu0 0.0
  %2453 = vmatprep.subr.mxu0 0.0
  %2454 = vmatpush2.msra.mxu0 0.0
  %2455 = vmatprep.subr.mxu0 0.0
  %2456 = vmatpush2.msra.mxu0 0.0
  %2457 = vmatprep.mubr.f32.mxu0 0.0
  %v2458 = vand.u32 %v1800, 4294901760
  %v2459 = vsub.f32 %v1800, %v2458
  %v2460 = vand.u32 %v2459, 4294901760
  %v2461 = vsub.f32 %v2459, %v2460
  %v2462 = vand.u32 %v2461, 4294901760
  %2463 = vmatmul.mubr.f32.gmra.mxu0 %v2462
  %v2464 = vpop.f32.mrf.mxu0
  %v2465 = vadd.f32 0.0, %v2464
  %v2466 = vpop.f32.mrf.mxu0
  %v2467 = vadd.f32 0.0, %v2466
  %2468 = vdwg.mxu0
  %2469 = vmatprep.subr.mxu0 0.0
  %2470 = vmatpush1.msra.mxu0 0.0
  %2471 = vmatprep.subr.mxu0 0.0
  %2472 = vmatpush1.msra.mxu0 0.0
  %2473 = vmatprep.subr.mxu0 0.0
  %2474 = vmatpush1.msra.mxu0 0.0
  %2475 = vmatprep.subr.mxu0 0.0
  %2476 = vmatpush1.msra.mxu0 0.0
  %2477 = vmatprep.subr.mxu0 0.0
  %2478 = vmatpush1.msra.mxu0 0.0
  %2479 = vmatprep.subr.mxu0 0.0
  %2480 = vmatpush1.msra.mxu0 0.0
  %2481 = vmatprep.subr.mxu0 0.0
  %2482 = vmatpush1.msra.mxu0 0.0
  %2483 = vmatprep.subr.mxu0 0.0
  %2484 = vmatpush1.msra.mxu0 0.0
  %2485 = vmatprep.subr.mxu0 0.0
  %2486 = vmatpush1.msra.mxu0 0.0
  %2487 = vmatprep.subr.mxu0 0.0
  %2488 = vmatpush1.msra.mxu0 0.0
  %2489 = vmatprep.subr.mxu0 0.0
  %2490 = vmatpush1.msra.mxu0 0.0
  %v2491 = vand.u32 %v1812, 4294901760
  %v2492 = vsub.f32 %v1812, %v2491
  %v2493 = vand.u32 %v2492, 4294901760
  %v2494 = vsub.f32 %v2492, %v2493
  %v2495 = vand.u32 %v2494, 4294901760
  %2496 = vmatprep.subr.mxu0 %v2495
  %v2497 = vand.u32 %v1809, 4294901760
  %v2498 = vsub.f32 %v1809, %v2497
  %v2499 = vand.u32 %v2498, 4294901760
  %v2500 = vsub.f32 %v2498, %v2499
  %v2501 = vand.u32 %v2500, 4294901760
  %2502 = vmatpush1.msra.mxu0 %v2501
  %v2503 = vand.u32 %v1792, 4294901760
  %v2504 = vsub.f32 %v1792, %v2503
  %v2505 = vand.u32 %v2504, 4294901760
  %v2506 = vsub.f32 %v2504, %v2505
  %v2507 = vand.u32 %v2506, 4294901760
  %2508 = vmatprep.subr.mxu0 %v2507
  %v2509 = vand.u32 %v1791, 4294901760
  %v2510 = vsub.f32 %v1791, %v2509
  %v2511 = vand.u32 %v2510, 4294901760
  %v2512 = vsub.f32 %v2510, %v2511
  %v2513 = vand.u32 %v2512, 4294901760
  %2514 = vmatpush1.msra.mxu0 %v2513
  %v2515 = vand.u32 %v1788, 4294901760
  %v2516 = vsub.f32 %v1788, %v2515
  %v2517 = vand.u32 %v2516, 4294901760
  %v2518 = vsub.f32 %v2516, %v2517
  %v2519 = vand.u32 %v2518, 4294901760
  %2520 = vmatprep.subr.mxu0 %v2519
  %v2521 = vand.u32 %v1787, 4294901760
  %v2522 = vsub.f32 %v1787, %v2521
  %v2523 = vand.u32 %v2522, 4294901760
  %v2524 = vsub.f32 %v2522, %v2523
  %v2525 = vand.u32 %v2524, 4294901760
  %2526 = vmatpush1.msra.mxu0 %v2525
  %v2527 = vand.u32 %v1784, 4294901760
  %v2528 = vsub.f32 %v1784, %v2527
  %v2529 = vand.u32 %v2528, 4294901760
  %v2530 = vsub.f32 %v2528, %v2529
  %v2531 = vand.u32 %v2530, 4294901760
  %2532 = vmatprep.subr.mxu0 %v2531
  %v2533 = vand.u32 %v1783, 4294901760
  %v2534 = vsub.f32 %v1783, %v2533
  %v2535 = vand.u32 %v2534, 4294901760
  %v2536 = vsub.f32 %v2534, %v2535
  %v2537 = vand.u32 %v2536, 4294901760
  %2538 = vmatpush1.msra.mxu0 %v2537
  %v2539 = vand.u32 %v1780, 4294901760
  %v2540 = vsub.f32 %v1780, %v2539
  %v2541 = vand.u32 %v2540, 4294901760
  %v2542 = vsub.f32 %v2540, %v2541
  %v2543 = vand.u32 %v2542, 4294901760
  %2544 = vmatprep.subr.mxu0 %v2543
  %v2545 = vand.u32 %v1779, 4294901760
  %v2546 = vsub.f32 %v1779, %v2545
  %v2547 = vand.u32 %v2546, 4294901760
  %v2548 = vsub.f32 %v2546, %v2547
  %v2549 = vand.u32 %v2548, 4294901760
  %2550 = vmatpush1.msra.mxu0 %v2549
  %2551 = vmatprep.subr.mxu0 0.0
  %2552 = vmatpush2.msra.mxu0 0.0
  %2553 = vmatprep.subr.mxu0 0.0
  %2554 = vmatpush2.msra.mxu0 0.0
  %2555 = vmatprep.subr.mxu0 0.0
  %2556 = vmatpush2.msra.mxu0 0.0
  %2557 = vmatprep.subr.mxu0 0.0
  %2558 = vmatpush2.msra.mxu0 0.0
  %2559 = vmatprep.subr.mxu0 0.0
  %2560 = vmatpush2.msra.mxu0 0.0
  %2561 = vmatprep.subr.mxu0 0.0
  %2562 = vmatpush2.msra.mxu0 0.0
  %2563 = vmatprep.subr.mxu0 0.0
  %2564 = vmatpush2.msra.mxu0 0.0
  %2565 = vmatprep.subr.mxu0 0.0
  %2566 = vmatpush2.msra.mxu0 0.0
  %2567 = vmatprep.subr.mxu0 0.0
  %2568 = vmatpush2.msra.mxu0 0.0
  %2569 = vmatprep.subr.mxu0 0.0
  %2570 = vmatpush2.msra.mxu0 0.0
  %2571 = vmatprep.subr.mxu0 0.0
  %2572 = vmatpush2.msra.mxu0 0.0
  %2573 = vmatprep.subr.mxu0 0.0
  %2574 = vmatpush2.msra.mxu0 0.0
  %2575 = vmatprep.subr.mxu0 0.0
  %2576 = vmatpush2.msra.mxu0 0.0
  %2577 = vmatprep.subr.mxu0 0.0
  %2578 = vmatpush2.msra.mxu0 0.0
  %2579 = vmatprep.subr.mxu0 0.0
  %2580 = vmatpush2.msra.mxu0 0.0
  %2581 = vmatprep.subr.mxu0 0.0
  %2582 = vmatpush2.msra.mxu0 0.0
  %2583 = vmatprep.mubr.f32.mxu0 0.0
  %v2584 = vand.u32 %v1800, 4294901760
  %2585 = vmatmul.mubr.f32.gmra.mxu0 %v2584
  %v2586 = vpop.f32.mrf.mxu0
  %v2587 = vadd.f32 %v2465, %v2586
  %v2588 = vpop.f32.mrf.mxu0
  %v2589 = vadd.f32 %v2467, %v2588
  %2590 = vdwg.mxu0
  %2591 = vmatprep.subr.mxu0 0.0
  %2592 = vmatpush1.msra.mxu0 0.0
  %2593 = vmatprep.subr.mxu0 0.0
  %2594 = vmatpush1.msra.mxu0 0.0
  %2595 = vmatprep.subr.mxu0 0.0
  %2596 = vmatpush1.msra.mxu0 0.0
  %2597 = vmatprep.subr.mxu0 0.0
  %2598 = vmatpush1.msra.mxu0 0.0
  %2599 = vmatprep.subr.mxu0 0.0
  %2600 = vmatpush1.msra.mxu0 0.0
  %2601 = vmatprep.subr.mxu0 0.0
  %2602 = vmatpush1.msra.mxu0 0.0
  %2603 = vmatprep.subr.mxu0 0.0
  %2604 = vmatpush1.msra.mxu0 0.0
  %2605 = vmatprep.subr.mxu0 0.0
  %2606 = vmatpush1.msra.mxu0 0.0
  %2607 = vmatprep.subr.mxu0 0.0
  %2608 = vmatpush1.msra.mxu0 0.0
  %2609 = vmatprep.subr.mxu0 0.0
  %2610 = vmatpush1.msra.mxu0 0.0
  %2611 = vmatprep.subr.mxu0 0.0
  %2612 = vmatpush1.msra.mxu0 0.0
  %v2613 = vand.u32 %v1812, 4294901760
  %v2614 = vsub.f32 %v1812, %v2613
  %2615 = vmatprep.subr.mxu0 %v2614
  %v2616 = vand.u32 %v1809, 4294901760
  %v2617 = vsub.f32 %v1809, %v2616
  %2618 = vmatpush1.msra.mxu0 %v2617
  %v2619 = vand.u32 %v1792, 4294901760
  %v2620 = vsub.f32 %v1792, %v2619
  %2621 = vmatprep.subr.mxu0 %v2620
  %v2622 = vand.u32 %v1791, 4294901760
  %v2623 = vsub.f32 %v1791, %v2622
  %2624 = vmatpush1.msra.mxu0 %v2623
  %v2625 = vand.u32 %v1788, 4294901760
  %v2626 = vsub.f32 %v1788, %v2625
  %2627 = vmatprep.subr.mxu0 %v2626
  %v2628 = vand.u32 %v1787, 4294901760
  %v2629 = vsub.f32 %v1787, %v2628
  %2630 = vmatpush1.msra.mxu0 %v2629
  %v2631 = vand.u32 %v1784, 4294901760
  %v2632 = vsub.f32 %v1784, %v2631
  %2633 = vmatprep.subr.mxu0 %v2632
  %v2634 = vand.u32 %v1783, 4294901760
  %v2635 = vsub.f32 %v1783, %v2634
  %2636 = vmatpush1.msra.mxu0 %v2635
  %v2637 = vand.u32 %v1780, 4294901760
  %v2638 = vsub.f32 %v1780, %v2637
  %2639 = vmatprep.subr.mxu0 %v2638
  %v2640 = vand.u32 %v1779, 4294901760
  %v2641 = vsub.f32 %v1779, %v2640
  %2642 = vmatpush1.msra.mxu0 %v2641
  %2643 = vmatprep.subr.mxu0 0.0
  %2644 = vmatpush2.msra.mxu0 0.0
  %2645 = vmatprep.subr.mxu0 0.0
  %2646 = vmatpush2.msra.mxu0 0.0
  %2647 = vmatprep.subr.mxu0 0.0
  %2648 = vmatpush2.msra.mxu0 0.0
  %2649 = vmatprep.subr.mxu0 0.0
  %2650 = vmatpush2.msra.mxu0 0.0
  %2651 = vmatprep.subr.mxu0 0.0
  %2652 = vmatpush2.msra.mxu0 0.0
  %2653 = vmatprep.subr.mxu0 0.0
  %2654 = vmatpush2.msra.mxu0 0.0
  %2655 = vmatprep.subr.mxu0 0.0
  %2656 = vmatpush2.msra.mxu0 0.0
  %2657 = vmatprep.subr.mxu0 0.0
  %2658 = vmatpush2.msra.mxu0 0.0
  %2659 = vmatprep.subr.mxu0 0.0
  %2660 = vmatpush2.msra.mxu0 0.0
  %2661 = vmatprep.subr.mxu0 0.0
  %2662 = vmatpush2.msra.mxu0 0.0
  %2663 = vmatprep.subr.mxu0 0.0
  %2664 = vmatpush2.msra.mxu0 0.0
  %2665 = vmatprep.subr.mxu0 0.0
  %2666 = vmatpush2.msra.mxu0 0.0
  %2667 = vmatprep.subr.mxu0 0.0
  %2668 = vmatpush2.msra.mxu0 0.0
  %2669 = vmatprep.subr.mxu0 0.0
  %2670 = vmatpush2.msra.mxu0 0.0
  %2671 = vmatprep.subr.mxu0 0.0
  %2672 = vmatpush2.msra.mxu0 0.0
  %2673 = vmatprep.subr.mxu0 0.0
  %2674 = vmatpush2.msra.mxu0 0.0
  %2675 = vmatprep.mubr.f32.mxu0 0.0
  %v2676 = vand.u32 %v1800, 4294901760
  %v2677 = vsub.f32 %v1800, %v2676
  %2678 = vmatmul.mubr.f32.gmra.mxu0 %v2677
  %v2679 = vpop.f32.mrf.mxu0
  %v2680 = vadd.f32 %v2587, %v2679
  %v2681 = vpop.f32.mrf.mxu0
  %v2682 = vadd.f32 %v2589, %v2681
  %2683 = vdwg.mxu0
  %2684 = vmatprep.subr.mxu0 0.0
  %2685 = vmatpush1.msra.mxu0 0.0
  %2686 = vmatprep.subr.mxu0 0.0
  %2687 = vmatpush1.msra.mxu0 0.0
  %2688 = vmatprep.subr.mxu0 0.0
  %2689 = vmatpush1.msra.mxu0 0.0
  %2690 = vmatprep.subr.mxu0 0.0
  %2691 = vmatpush1.msra.mxu0 0.0
  %2692 = vmatprep.subr.mxu0 0.0
  %2693 = vmatpush1.msra.mxu0 0.0
  %2694 = vmatprep.subr.mxu0 0.0
  %2695 = vmatpush1.msra.mxu0 0.0
  %2696 = vmatprep.subr.mxu0 0.0
  %2697 = vmatpush1.msra.mxu0 0.0
  %2698 = vmatprep.subr.mxu0 0.0
  %2699 = vmatpush1.msra.mxu0 0.0
  %2700 = vmatprep.subr.mxu0 0.0
  %2701 = vmatpush1.msra.mxu0 0.0
  %2702 = vmatprep.subr.mxu0 0.0
  %2703 = vmatpush1.msra.mxu0 0.0
  %2704 = vmatprep.subr.mxu0 0.0
  %2705 = vmatpush1.msra.mxu0 0.0
  %v2706 = vand.u32 %v1812, 4294901760
  %2707 = vmatprep.subr.mxu0 %v2706
  %v2708 = vand.u32 %v1809, 4294901760
  %2709 = vmatpush1.msra.mxu0 %v2708
  %v2710 = vand.u32 %v1792, 4294901760
  %2711 = vmatprep.subr.mxu0 %v2710
  %v2712 = vand.u32 %v1791, 4294901760
  %2713 = vmatpush1.msra.mxu0 %v2712
  %v2714 = vand.u32 %v1788, 4294901760
  %2715 = vmatprep.subr.mxu0 %v2714
  %v2716 = vand.u32 %v1787, 4294901760
  %2717 = vmatpush1.msra.mxu0 %v2716
  %v2718 = vand.u32 %v1784, 4294901760
  %2719 = vmatprep.subr.mxu0 %v2718
  %v2720 = vand.u32 %v1783, 4294901760
  %2721 = vmatpush1.msra.mxu0 %v2720
  %v2722 = vand.u32 %v1780, 4294901760
  %2723 = vmatprep.subr.mxu0 %v2722
  %v2724 = vand.u32 %v1779, 4294901760
  %2725 = vmatpush1.msra.mxu0 %v2724
  %2726 = vmatprep.subr.mxu0 0.0
  %2727 = vmatpush2.msra.mxu0 0.0
  %2728 = vmatprep.subr.mxu0 0.0
  %2729 = vmatpush2.msra.mxu0 0.0
  %2730 = vmatprep.subr.mxu0 0.0
  %2731 = vmatpush2.msra.mxu0 0.0
  %2732 = vmatprep.subr.mxu0 0.0
  %2733 = vmatpush2.msra.mxu0 0.0
  %2734 = vmatprep.subr.mxu0 0.0
  %2735 = vmatpush2.msra.mxu0 0.0
  %2736 = vmatprep.subr.mxu0 0.0
  %2737 = vmatpush2.msra.mxu0 0.0
  %2738 = vmatprep.subr.mxu0 0.0
  %2739 = vmatpush2.msra.mxu0 0.0
  %2740 = vmatprep.subr.mxu0 0.0
  %2741 = vmatpush2.msra.mxu0 0.0
  %2742 = vmatprep.subr.mxu0 0.0
  %2743 = vmatpush2.msra.mxu0 0.0
  %2744 = vmatprep.subr.mxu0 0.0
  %2745 = vmatpush2.msra.mxu0 0.0
  %2746 = vmatprep.subr.mxu0 0.0
  %2747 = vmatpush2.msra.mxu0 0.0
  %2748 = vmatprep.subr.mxu0 0.0
  %2749 = vmatpush2.msra.mxu0 0.0
  %2750 = vmatprep.subr.mxu0 0.0
  %2751 = vmatpush2.msra.mxu0 0.0
  %2752 = vmatprep.subr.mxu0 0.0
  %2753 = vmatpush2.msra.mxu0 0.0
  %2754 = vmatprep.subr.mxu0 0.0
  %2755 = vmatpush2.msra.mxu0 0.0
  %2756 = vmatprep.subr.mxu0 0.0
  %2757 = vmatpush2.msra.mxu0 0.0
  %2758 = vmatprep.mubr.f32.mxu0 0.0
  %v2759 = vand.u32 %v1800, 4294901760
  %v2760 = vsub.f32 %v1800, %v2759
  %v2761 = vand.u32 %v2760, 4294901760
  %2762 = vmatmul.mubr.f32.gmra.mxu0 %v2761
  %v2763 = vpop.f32.mrf.mxu0
  %v2764 = vadd.f32 %v2680, %v2763
  %v2765 = vpop.f32.mrf.mxu0
  %v2766 = vadd.f32 %v2682, %v2765
  %2767 = vdwg.mxu0
  %2768 = vmatprep.subr.mxu0 0.0
  %2769 = vmatpush1.msra.mxu0 0.0
  %2770 = vmatprep.subr.mxu0 0.0
  %2771 = vmatpush1.msra.mxu0 0.0
  %2772 = vmatprep.subr.mxu0 0.0
  %2773 = vmatpush1.msra.mxu0 0.0
  %2774 = vmatprep.subr.mxu0 0.0
  %2775 = vmatpush1.msra.mxu0 0.0
  %2776 = vmatprep.subr.mxu0 0.0
  %2777 = vmatpush1.msra.mxu0 0.0
  %2778 = vmatprep.subr.mxu0 0.0
  %2779 = vmatpush1.msra.mxu0 0.0
  %2780 = vmatprep.subr.mxu0 0.0
  %2781 = vmatpush1.msra.mxu0 0.0
  %2782 = vmatprep.subr.mxu0 0.0
  %2783 = vmatpush1.msra.mxu0 0.0
  %2784 = vmatprep.subr.mxu0 0.0
  %2785 = vmatpush1.msra.mxu0 0.0
  %2786 = vmatprep.subr.mxu0 0.0
  %2787 = vmatpush1.msra.mxu0 0.0
  %2788 = vmatprep.subr.mxu0 0.0
  %2789 = vmatpush1.msra.mxu0 0.0
  %v2790 = vand.u32 %v1812, 4294901760
  %v2791 = vsub.f32 %v1812, %v2790
  %v2792 = vand.u32 %v2791, 4294901760
  %2793 = vmatprep.subr.mxu0 %v2792
  %v2794 = vand.u32 %v1809, 4294901760
  %v2795 = vsub.f32 %v1809, %v2794
  %v2796 = vand.u32 %v2795, 4294901760
  %2797 = vmatpush1.msra.mxu0 %v2796
  %v2798 = vand.u32 %v1792, 4294901760
  %v2799 = vsub.f32 %v1792, %v2798
  %v2800 = vand.u32 %v2799, 4294901760
  %2801 = vmatprep.subr.mxu0 %v2800
  %v2802 = vand.u32 %v1791, 4294901760
  %v2803 = vsub.f32 %v1791, %v2802
  %v2804 = vand.u32 %v2803, 4294901760
  %2805 = vmatpush1.msra.mxu0 %v2804
  %v2806 = vand.u32 %v1788, 4294901760
  %v2807 = vsub.f32 %v1788, %v2806
  %v2808 = vand.u32 %v2807, 4294901760
  %2809 = vmatprep.subr.mxu0 %v2808
  %v2810 = vand.u32 %v1787, 4294901760
  %v2811 = vsub.f32 %v1787, %v2810
  %v2812 = vand.u32 %v2811, 4294901760
  %2813 = vmatpush1.msra.mxu0 %v2812
  %v2814 = vand.u32 %v1784, 4294901760
  %v2815 = vsub.f32 %v1784, %v2814
  %v2816 = vand.u32 %v2815, 4294901760
  %2817 = vmatprep.subr.mxu0 %v2816
  %v2818 = vand.u32 %v1783, 4294901760
  %v2819 = vsub.f32 %v1783, %v2818
  %v2820 = vand.u32 %v2819, 4294901760
  %2821 = vmatpush1.msra.mxu0 %v2820
  %v2822 = vand.u32 %v1780, 4294901760
  %v2823 = vsub.f32 %v1780, %v2822
  %v2824 = vand.u32 %v2823, 4294901760
  %2825 = vmatprep.subr.mxu0 %v2824
  %v2826 = vand.u32 %v1779, 4294901760
  %v2827 = vsub.f32 %v1779, %v2826
  %v2828 = vand.u32 %v2827, 4294901760
  %2829 = vmatpush1.msra.mxu0 %v2828
  %2830 = vmatprep.subr.mxu0 0.0
  %2831 = vmatpush2.msra.mxu0 0.0
  %2832 = vmatprep.subr.mxu0 0.0
  %2833 = vmatpush2.msra.mxu0 0.0
  %2834 = vmatprep.subr.mxu0 0.0
  %2835 = vmatpush2.msra.mxu0 0.0
  %2836 = vmatprep.subr.mxu0 0.0
  %2837 = vmatpush2.msra.mxu0 0.0
  %2838 = vmatprep.subr.mxu0 0.0
  %2839 = vmatpush2.msra.mxu0 0.0
  %2840 = vmatprep.subr.mxu0 0.0
  %2841 = vmatpush2.msra.mxu0 0.0
  %2842 = vmatprep.subr.mxu0 0.0
  %2843 = vmatpush2.msra.mxu0 0.0
  %2844 = vmatprep.subr.mxu0 0.0
  %2845 = vmatpush2.msra.mxu0 0.0
  %2846 = vmatprep.subr.mxu0 0.0
  %2847 = vmatpush2.msra.mxu0 0.0
  %2848 = vmatprep.subr.mxu0 0.0
  %2849 = vmatpush2.msra.mxu0 0.0
  %2850 = vmatprep.subr.mxu0 0.0
  %2851 = vmatpush2.msra.mxu0 0.0
  %2852 = vmatprep.subr.mxu0 0.0
  %2853 = vmatpush2.msra.mxu0 0.0
  %2854 = vmatprep.subr.mxu0 0.0
  %2855 = vmatpush2.msra.mxu0 0.0
  %2856 = vmatprep.subr.mxu0 0.0
  %2857 = vmatpush2.msra.mxu0 0.0
  %2858 = vmatprep.subr.mxu0 0.0
  %2859 = vmatpush2.msra.mxu0 0.0
  %2860 = vmatprep.subr.mxu0 0.0
  %2861 = vmatpush2.msra.mxu0 0.0
  %2862 = vmatprep.mubr.f32.mxu0 0.0
  %v2863 = vand.u32 %v1800, 4294901760
  %2864 = vmatmul.mubr.f32.gmra.mxu0 %v2863
  %v2865 = vpop.f32.mrf.mxu0
  %v2866 = vadd.f32 %v2764, %v2865
  %v2867 = vpop.f32.mrf.mxu0
  %v2868 = vadd.f32 %v2766, %v2867
  %2869 = vdwg.mxu0
  %2870 = vmatprep.subr.mxu0 0.0
  %2871 = vmatpush1.msra.mxu0 0.0
  %2872 = vmatprep.subr.mxu0 0.0
  %2873 = vmatpush1.msra.mxu0 0.0
  %2874 = vmatprep.subr.mxu0 0.0
  %2875 = vmatpush1.msra.mxu0 0.0
  %2876 = vmatprep.subr.mxu0 0.0
  %2877 = vmatpush1.msra.mxu0 0.0
  %2878 = vmatprep.subr.mxu0 0.0
  %2879 = vmatpush1.msra.mxu0 0.0
  %2880 = vmatprep.subr.mxu0 0.0
  %2881 = vmatpush1.msra.mxu0 0.0
  %2882 = vmatprep.subr.mxu0 0.0
  %2883 = vmatpush1.msra.mxu0 0.0
  %2884 = vmatprep.subr.mxu0 0.0
  %2885 = vmatpush1.msra.mxu0 0.0
  %2886 = vmatprep.subr.mxu0 0.0
  %2887 = vmatpush1.msra.mxu0 0.0
  %2888 = vmatprep.subr.mxu0 0.0
  %2889 = vmatpush1.msra.mxu0 0.0
  %2890 = vmatprep.subr.mxu0 0.0
  %2891 = vmatpush1.msra.mxu0 0.0
  %v2892 = vand.u32 %v1812, 4294901760
  %2893 = vmatprep.subr.mxu0 %v2892
  %v2894 = vand.u32 %v1809, 4294901760
  %2895 = vmatpush1.msra.mxu0 %v2894
  %v2896 = vand.u32 %v1792, 4294901760
  %2897 = vmatprep.subr.mxu0 %v2896
  %v2898 = vand.u32 %v1791, 4294901760
  %2899 = vmatpush1.msra.mxu0 %v2898
  %v2900 = vand.u32 %v1788, 4294901760
  %2901 = vmatprep.subr.mxu0 %v2900
  %v2902 = vand.u32 %v1787, 4294901760
  %2903 = vmatpush1.msra.mxu0 %v2902
  %v2904 = vand.u32 %v1784, 4294901760
  %2905 = vmatprep.subr.mxu0 %v2904
  %v2906 = vand.u32 %v1783, 4294901760
  %2907 = vmatpush1.msra.mxu0 %v2906
  %v2908 = vand.u32 %v1780, 4294901760
  %2909 = vmatprep.subr.mxu0 %v2908
  %v2910 = vand.u32 %v1779, 4294901760
  %2911 = vmatpush1.msra.mxu0 %v2910
  %2912 = vmatprep.subr.mxu0 0.0
  %2913 = vmatpush2.msra.mxu0 0.0
  %2914 = vmatprep.subr.mxu0 0.0
  %2915 = vmatpush2.msra.mxu0 0.0
  %2916 = vmatprep.subr.mxu0 0.0
  %2917 = vmatpush2.msra.mxu0 0.0
  %2918 = vmatprep.subr.mxu0 0.0
  %2919 = vmatpush2.msra.mxu0 0.0
  %2920 = vmatprep.subr.mxu0 0.0
  %2921 = vmatpush2.msra.mxu0 0.0
  %2922 = vmatprep.subr.mxu0 0.0
  %2923 = vmatpush2.msra.mxu0 0.0
  %2924 = vmatprep.subr.mxu0 0.0
  %2925 = vmatpush2.msra.mxu0 0.0
  %2926 = vmatprep.subr.mxu0 0.0
  %2927 = vmatpush2.msra.mxu0 0.0
  %2928 = vmatprep.subr.mxu0 0.0
  %2929 = vmatpush2.msra.mxu0 0.0
  %2930 = vmatprep.subr.mxu0 0.0
  %2931 = vmatpush2.msra.mxu0 0.0
  %2932 = vmatprep.subr.mxu0 0.0
  %2933 = vmatpush2.msra.mxu0 0.0
  %2934 = vmatprep.subr.mxu0 0.0
  %2935 = vmatpush2.msra.mxu0 0.0
  %2936 = vmatprep.subr.mxu0 0.0
  %2937 = vmatpush2.msra.mxu0 0.0
  %2938 = vmatprep.subr.mxu0 0.0
  %2939 = vmatpush2.msra.mxu0 0.0
  %2940 = vmatprep.subr.mxu0 0.0
  %2941 = vmatpush2.msra.mxu0 0.0
  %2942 = vmatprep.subr.mxu0 0.0
  %2943 = vmatpush2.msra.mxu0 0.0
  %2944 = vmatprep.mubr.f32.mxu0 0.0
  %v2945 = vand.u32 %v1800, 4294901760
  %2946 = vmatmul.mubr.f32.gmra.mxu0 %v2945
  %v2947 = vpop.f32.mrf.mxu0
  %v2948 = vadd.f32 %v2866, %v2947
  %v2949 = vpop.f32.mrf.mxu0
  %v2950 = vadd.f32 %v2868, %v2949
  %2951 = vdwg.mxu0
  %v2952 = vxor.u32 %v2379, 2147483648
  %v2953 = vxor.u32 %v2381, 2147483648
  %v2954 = vxor.u32 %v2948, 2147483648
  %v2955 = vxor.u32 %v2950, 2147483648
  %v2956 = vmul.f32 %v2952, 1.442695
  %v2957 = vpow.pop %v2956
  %v2958 = vmul.f32 %v2953, 1.442695
  %v2959 = vpow.pop %v2958
  %v2960 = vmul.f32 %v2954, 1.442695
  %v2961 = vpow.pop %v2960
  %v2962 = vmul.f32 %v2955, 1.442695
  %v2963 = vpow.pop %v2962
  %v2964 = vadd.f32 %v2957, 1.0
  %v2965 = vadd.f32 %v2959, 1.0
  %v2966 = vadd.f32 %v2961, 1.0
  %v2967 = vadd.f32 %v2963, 1.0
  %v2968 = vrcp.pop %v2964
  %v2969 = vmul.f32 1.0, %v2968
  %v2970 = vrcp.pop %v2965
  %v2971 = vmul.f32 1.0, %v2970
  %v2972 = vrcp.pop %v2966
  %v2973 = vmul.f32 1.0, %v2972
  %v2974 = vrcp.pop %v2967
  %v2975 = vmul.f32 1.0, %v2974
  %2980 = vrot.lane.b32.xlu0 %v2969, 17
  %v2981 = vpop.permute.xlu0 %2980
  %2982 = vrot.lane.b32.xlu0 %v2971, 17
  %v2983 = vpop.permute.xlu0 %2982
  %2984 = vrot.lane.b32.xlu0 %v2973, 17
  %v2985 = vpop.permute.xlu0 %2984
  %2986 = vrot.lane.b32.xlu0 %v2975, 17
  %v2987 = vpop.permute.xlu0 %2986
  %v2988 = vsel %vm74, %v2981, %v2983
  %v2989 = vsel %vm74, %v2983, %v2985
  %v2990 = vsel %vm74, %v2985, %v2987
  %v2996 = vsel %vm74, 0.0, %v2981
  %v2997 = vsel %vm74, %v2987, 0.0
  %v2998 = vsel %vm89, %v2996, 0.0
  %v2999 = vsel %vm90, %v2988, 0.0
  %v3000 = vsel %vm91, %v2989, 0.0
  %v3001 = vsel %vm92, %v2990, 0.0
  %3004 = vrot.lane.b32.xlu0 %v2996, 127
  %v3005 = vpop.permute.xlu0 %3004
  %3006 = vrot.lane.b32.xlu0 %v2988, 127
  %v3007 = vpop.permute.xlu0 %3006
  %3008 = vrot.lane.b32.xlu0 %v2989, 127
  %v3009 = vpop.permute.xlu0 %3008
  %3010 = vrot.lane.b32.xlu0 %v2990, 127
  %v3011 = vpop.permute.xlu0 %3010
  %3012 = vrot.lane.b32.xlu0 %v2997, 127
  %v3013 = vpop.permute.xlu0 %3012
  %v3014 = vsel %vm117, %v3005, %v3007
  %v3015 = vsel %vm117, %v3007, %v3009
  %v3016 = vsel %vm117, %v3009, %v3011
  %v3017 = vsel %vm117, %v3011, %v3013
  %v3022 = vsel %vm101, %v3014, 0.0
  %v3023 = vsel %vm102, %v3015, 0.0
  %v3024 = vsel %vm103, %v3016, 0.0
  %v3025 = vsel %vm104, %v3017, 0.0
  %3026 = vrot.lane.b32.xlu0 %v2996, 126
  %v3027 = vpop.permute.xlu0 %3026
  %3028 = vrot.lane.b32.xlu0 %v2988, 126
  %v3029 = vpop.permute.xlu0 %3028
  %3030 = vrot.lane.b32.xlu0 %v2989, 126
  %v3031 = vpop.permute.xlu0 %3030
  %3032 = vrot.lane.b32.xlu0 %v2990, 126
  %v3033 = vpop.permute.xlu0 %3032
  %3034 = vrot.lane.b32.xlu0 %v2997, 126
  %v3035 = vpop.permute.xlu0 %3034
  %v3036 = vsel %vm148, %v3027, %v3029
  %v3037 = vsel %vm148, %v3029, %v3031
  %v3038 = vsel %vm148, %v3031, %v3033
  %v3039 = vsel %vm148, %v3033, %v3035
  %v3044 = vsel %vm134, %v3036, 0.0
  %v3045 = vsel %vm135, %v3037, 0.0
  %v3046 = vsel %vm136, %v3038, 0.0
  %v3047 = vsel %vm137, %v3039, 0.0
  %3048 = vrot.lane.b32.xlu0 %v2996, 112
  %v3049 = vpop.permute.xlu0 %3048
  %3050 = vrot.lane.b32.xlu0 %v2988, 112
  %v3051 = vpop.permute.xlu0 %3050
  %3052 = vrot.lane.b32.xlu0 %v2989, 112
  %v3053 = vpop.permute.xlu0 %3052
  %3054 = vrot.lane.b32.xlu0 %v2990, 112
  %v3055 = vpop.permute.xlu0 %3054
  %3056 = vrot.lane.b32.xlu0 %v2997, 112
  %v3057 = vpop.permute.xlu0 %3056
  %v3058 = vsel %vm179, %v3049, %v3051
  %v3059 = vsel %vm179, %v3051, %v3053
  %v3060 = vsel %vm179, %v3053, %v3055
  %v3061 = vsel %vm179, %v3055, %v3057
  %v3066 = vsel %vm165, %v3058, 0.0
  %v3067 = vsel %vm166, %v3059, 0.0
  %v3068 = vsel %vm167, %v3060, 0.0
  %v3069 = vsel %vm168, %v3061, 0.0
  %3070 = vrot.lane.b32.xlu0 %v2996, 110
  %v3071 = vpop.permute.xlu0 %3070
  %3072 = vrot.lane.b32.xlu0 %v2988, 110
  %v3073 = vpop.permute.xlu0 %3072
  %3074 = vrot.lane.b32.xlu0 %v2989, 110
  %v3075 = vpop.permute.xlu0 %3074
  %3076 = vrot.lane.b32.xlu0 %v2990, 110
  %v3077 = vpop.permute.xlu0 %3076
  %3078 = vrot.lane.b32.xlu0 %v2997, 110
  %v3079 = vpop.permute.xlu0 %3078
  %v3080 = vsel %vm210, %v3071, %v3073
  %v3081 = vsel %vm210, %v3073, %v3075
  %v3082 = vsel %vm210, %v3075, %v3077
  %v3083 = vsel %vm210, %v3077, %v3079
  %v3088 = vsel %vm196, %v3080, 0.0
  %v3089 = vsel %vm197, %v3081, 0.0
  %v3090 = vsel %vm198, %v3082, 0.0
  %v3091 = vsel %vm199, %v3083, 0.0
  %3092 = vrot.lane.b32.xlu0 %v2996, 96
  %v3093 = vpop.permute.xlu0 %3092
  %3094 = vrot.lane.b32.xlu0 %v2988, 96
  %v3095 = vpop.permute.xlu0 %3094
  %3096 = vrot.lane.b32.xlu0 %v2989, 96
  %v3097 = vpop.permute.xlu0 %3096
  %3098 = vrot.lane.b32.xlu0 %v2990, 96
  %v3099 = vpop.permute.xlu0 %3098
  %3100 = vrot.lane.b32.xlu0 %v2997, 96
  %v3101 = vpop.permute.xlu0 %3100
  %v3102 = vsel %vm241, %v3093, %v3095
  %v3103 = vsel %vm241, %v3095, %v3097
  %v3104 = vsel %vm241, %v3097, %v3099
  %v3105 = vsel %vm241, %v3099, %v3101
  %v3110 = vsel %vm227, %v3102, 0.0
  %v3111 = vsel %vm228, %v3103, 0.0
  %v3112 = vsel %vm229, %v3104, 0.0
  %v3113 = vsel %vm230, %v3105, 0.0
  %3114 = vrot.lane.b32.xlu0 %v2996, 95
  %v3115 = vpop.permute.xlu0 %3114
  %3116 = vrot.lane.b32.xlu0 %v2988, 95
  %v3117 = vpop.permute.xlu0 %3116
  %3118 = vrot.lane.b32.xlu0 %v2989, 95
  %v3119 = vpop.permute.xlu0 %3118
  %3120 = vrot.lane.b32.xlu0 %v2990, 95
  %v3121 = vpop.permute.xlu0 %3120
  %3122 = vrot.lane.b32.xlu0 %v2997, 95
  %v3123 = vpop.permute.xlu0 %3122
  %v3124 = vsel %vm272, %v3115, %v3117
  %v3125 = vsel %vm272, %v3117, %v3119
  %v3126 = vsel %vm272, %v3119, %v3121
  %v3127 = vsel %vm272, %v3121, %v3123
  %v3132 = vsel %vm258, %v3124, 0.0
  %v3133 = vsel %vm259, %v3125, 0.0
  %v3134 = vsel %vm260, %v3126, 0.0
  %v3135 = vsel %vm261, %v3127, 0.0
  %3136 = vrot.lane.b32.xlu0 %v2996, 94
  %v3137 = vpop.permute.xlu0 %3136
  %3138 = vrot.lane.b32.xlu0 %v2988, 94
  %v3139 = vpop.permute.xlu0 %3138
  %3140 = vrot.lane.b32.xlu0 %v2989, 94
  %v3141 = vpop.permute.xlu0 %3140
  %3142 = vrot.lane.b32.xlu0 %v2990, 94
  %v3143 = vpop.permute.xlu0 %3142
  %3144 = vrot.lane.b32.xlu0 %v2997, 94
  %v3145 = vpop.permute.xlu0 %3144
  %v3146 = vsel %vm303, %v3137, %v3139
  %v3147 = vsel %vm303, %v3139, %v3141
  %v3148 = vsel %vm303, %v3141, %v3143
  %v3149 = vsel %vm303, %v3143, %v3145
  %v3154 = vsel %vm289, %v3146, 0.0
  %v3155 = vsel %vm290, %v3147, 0.0
  %v3156 = vsel %vm291, %v3148, 0.0
  %v3157 = vsel %vm292, %v3149, 0.0
  %v3162 = vrot.slane %v3022, 5
  %v3163 = vrot.slane %v3023, 5
  %v3164 = vrot.slane %v3024, 5
  %v3165 = vrot.slane %v3025, 5
  %v3174 = vrot.slane %v3044, 2
  %v3175 = vrot.slane %v3045, 2
  %v3176 = vrot.slane %v3046, 2
  %v3177 = vrot.slane %v3047, 2
  %v3186 = vrot.slane %v3066, 7
  %v3187 = vrot.slane %v3067, 7
  %v3188 = vrot.slane %v3068, 7
  %v3189 = vrot.slane %v3069, 7
  %v3194 = vrot.slane %v2969, 4
  %v3195 = vrot.slane %v2971, 4
  %v3196 = vrot.slane %v2973, 4
  %v3197 = vrot.slane %v2975, 4
  %v3206 = vrot.slane %v3088, 1
  %v3207 = vrot.slane %v3089, 1
  %v3208 = vrot.slane %v3090, 1
  %v3209 = vrot.slane %v3091, 1
  %v3218 = vrot.slane %v3110, 6
  %v3219 = vrot.slane %v3111, 6
  %v3220 = vrot.slane %v3112, 6
  %v3221 = vrot.slane %v3113, 6
  %v3230 = vrot.slane %v3132, 3
  %v3231 = vrot.slane %v3133, 3
  %v3232 = vrot.slane %v3134, 3
  %v3233 = vrot.slane %v3135, 3
  %vm3238 = vcmask 1042432
  %v3239 = vsel %vm3238, %v2998, %v3162
  %v3240 = vsel %vm3238, %v2999, %v3163
  %v3241 = vsel %vm3238, %v3000, %v3164
  %v3242 = vsel %vm3238, %v3001, %v3165
  %vm3243 = vcmask 1045504
  %v3244 = vsel %vm3243, %v3239, %v3174
  %v3245 = vsel %vm3243, %v3240, %v3175
  %v3246 = vsel %vm3243, %v3241, %v3176
  %v3247 = vsel %vm3243, %v3242, %v3177
  %vm3248 = vcmask 1040384
  %v3249 = vsel %vm3248, %v3174, %v3186
  %v3250 = vsel %vm3248, %v3175, %v3187
  %v3251 = vsel %vm3248, %v3176, %v3188
  %v3252 = vsel %vm3248, %v3177, %v3189
  %v3253 = vsel %vm366, %v3249, %v3194
  %v3254 = vsel %vm366, %v3250, %v3195
  %v3255 = vsel %vm366, %v3251, %v3196
  %v3256 = vsel %vm366, %v3252, %v3197
  %vm3257 = vcmask 1046528
  %v3258 = vsel %vm3257, %v3253, %v3206
  %v3259 = vsel %vm3257, %v3254, %v3207
  %v3260 = vsel %vm3257, %v3255, %v3208
  %v3261 = vsel %vm3257, %v3256, %v3209
  %vm3262 = vcmask 1041408
  %v3263 = vsel %vm3262, %v3206, %v3218
  %v3264 = vsel %vm3262, %v3207, %v3219
  %v3265 = vsel %vm3262, %v3208, %v3220
  %v3266 = vsel %vm3262, %v3209, %v3221
  %v3267 = vsel %vm392, %v3263, %v3230
  %v3268 = vsel %vm392, %v3264, %v3231
  %v3269 = vsel %vm392, %v3265, %v3232
  %v3270 = vsel %vm392, %v3266, %v3233
  %v3271 = vsel %vm3238, %v3154, 1.0
  %v3272 = vsel %vm3238, %v3155, 1.0
  %v3273 = vsel %vm3238, %v3156, 1.0
  %v3274 = vsel %vm3238, %v3157, 1.0
  %s3275 = scalar_lea.vmem %s0, 8
  %v3276 = vld [vmem:[%s3275] sm:$0xf]
  %vm3277 = vcmask 228352
  %v3279 = vsel %vm3277, %v3276, 0
  %v3282 = vsel %vm366, %v3271, 0
  %v3285 = vsel %vm366, %v3272, 0
  %v3288 = vsel %vm366, %v3273, 0
  %v3291 = vsel %vm366, %v3274, 0
  %3293 = vmatprep.subr.mxu0 0.0
  %3294 = vmatpush1.msra.mxu0 0.0
  %3295 = vmatprep.subr.mxu0 0.0
  %3296 = vmatpush1.msra.mxu0 0.0
  %3297 = vmatprep.subr.mxu0 0.0
  %3298 = vmatpush1.msra.mxu0 0.0
  %3299 = vmatprep.subr.mxu0 0.0
  %3300 = vmatpush1.msra.mxu0 0.0
  %3301 = vmatprep.subr.mxu0 0.0
  %3302 = vmatpush1.msra.mxu0 0.0
  %3303 = vmatprep.subr.mxu0 0.0
  %3304 = vmatpush1.msra.mxu0 0.0
  %3305 = vmatprep.subr.mxu0 0.0
  %3306 = vmatpush1.msra.mxu0 0.0
  %3307 = vmatprep.subr.mxu0 0.0
  %3308 = vmatpush1.msra.mxu0 0.0
  %3309 = vmatprep.subr.mxu0 0.0
  %3310 = vmatpush1.msra.mxu0 0.0
  %3311 = vmatprep.subr.mxu0 0.0
  %3312 = vmatpush1.msra.mxu0 0.0
  %3313 = vmatprep.subr.mxu0 0.0
  %3314 = vmatpush1.msra.mxu0 0.0
  %3315 = vmatprep.subr.mxu0 0.0
  %3316 = vmatpush1.msra.mxu0 0.0
  %v3317 = vand.u32 %v3285, 4294901760
  %3318 = vmatprep.subr.mxu0 %v3317
  %v3319 = vand.u32 %v3282, 4294901760
  %3320 = vmatpush1.msra.mxu0 %v3319
  %v3321 = vand.u32 %v3268, 4294901760
  %3322 = vmatprep.subr.mxu0 %v3321
  %v3323 = vand.u32 %v3267, 4294901760
  %3324 = vmatpush1.msra.mxu0 %v3323
  %v3325 = vand.u32 %v3259, 4294901760
  %3326 = vmatprep.subr.mxu0 %v3325
  %v3327 = vand.u32 %v3258, 4294901760
  %3328 = vmatpush1.msra.mxu0 %v3327
  %v3329 = vand.u32 %v3245, 4294901760
  %3330 = vmatprep.subr.mxu0 %v3329
  %v3331 = vand.u32 %v3244, 4294901760
  %3332 = vmatpush1.msra.mxu0 %v3331
  %3333 = vmatprep.subr.mxu0 0.0
  %3334 = vmatpush2.msra.mxu0 0.0
  %3335 = vmatprep.subr.mxu0 0.0
  %3336 = vmatpush2.msra.mxu0 0.0
  %3337 = vmatprep.subr.mxu0 0.0
  %3338 = vmatpush2.msra.mxu0 0.0
  %3339 = vmatprep.subr.mxu0 0.0
  %3340 = vmatpush2.msra.mxu0 0.0
  %3341 = vmatprep.subr.mxu0 0.0
  %3342 = vmatpush2.msra.mxu0 0.0
  %3343 = vmatprep.subr.mxu0 0.0
  %3344 = vmatpush2.msra.mxu0 0.0
  %3345 = vmatprep.subr.mxu0 0.0
  %3346 = vmatpush2.msra.mxu0 0.0
  %3347 = vmatprep.subr.mxu0 0.0
  %3348 = vmatpush2.msra.mxu0 0.0
  %3349 = vmatprep.subr.mxu0 0.0
  %3350 = vmatpush2.msra.mxu0 0.0
  %3351 = vmatprep.subr.mxu0 0.0
  %3352 = vmatpush2.msra.mxu0 0.0
  %3353 = vmatprep.subr.mxu0 0.0
  %3354 = vmatpush2.msra.mxu0 0.0
  %3355 = vmatprep.subr.mxu0 0.0
  %3356 = vmatpush2.msra.mxu0 0.0
  %3357 = vmatprep.subr.mxu0 0.0
  %3358 = vmatpush2.msra.mxu0 0.0
  %3359 = vmatprep.subr.mxu0 0.0
  %3360 = vmatpush2.msra.mxu0 0.0
  %3361 = vmatprep.subr.mxu0 0.0
  %3362 = vmatpush2.msra.mxu0 0.0
  %3363 = vmatprep.subr.mxu0 0.0
  %3364 = vmatpush2.msra.mxu0 0.0
  %3365 = vmatprep.mubr.f32.mxu0 0.0
  %v3366 = vand.u32 %v3279, 4294901760
  %v3367 = vsub.f32 %v3279, %v3366
  %v3368 = vand.u32 %v3367, 4294901760
  %v3369 = vsub.f32 %v3367, %v3368
  %v3370 = vand.u32 %v3369, 4294901760
  %3371 = vmatmul.mubr.f32.gmra.mxu0 %v3370
  %v3372 = vpop.f32.mrf.mxu0
  %v3373 = vadd.f32 0.0, %v3372
  %v3374 = vpop.f32.mrf.mxu0
  %v3375 = vadd.f32 0.0, %v3374
  %3376 = vdwg.mxu0
  %3377 = vmatprep.subr.mxu0 0.0
  %3378 = vmatpush1.msra.mxu0 0.0
  %3379 = vmatprep.subr.mxu0 0.0
  %3380 = vmatpush1.msra.mxu0 0.0
  %3381 = vmatprep.subr.mxu0 0.0
  %3382 = vmatpush1.msra.mxu0 0.0
  %3383 = vmatprep.subr.mxu0 0.0
  %3384 = vmatpush1.msra.mxu0 0.0
  %3385 = vmatprep.subr.mxu0 0.0
  %3386 = vmatpush1.msra.mxu0 0.0
  %3387 = vmatprep.subr.mxu0 0.0
  %3388 = vmatpush1.msra.mxu0 0.0
  %3389 = vmatprep.subr.mxu0 0.0
  %3390 = vmatpush1.msra.mxu0 0.0
  %3391 = vmatprep.subr.mxu0 0.0
  %3392 = vmatpush1.msra.mxu0 0.0
  %3393 = vmatprep.subr.mxu0 0.0
  %3394 = vmatpush1.msra.mxu0 0.0
  %3395 = vmatprep.subr.mxu0 0.0
  %3396 = vmatpush1.msra.mxu0 0.0
  %3397 = vmatprep.subr.mxu0 0.0
  %3398 = vmatpush1.msra.mxu0 0.0
  %3399 = vmatprep.subr.mxu0 0.0
  %3400 = vmatpush1.msra.mxu0 0.0
  %v3401 = vand.u32 %v3285, 4294901760
  %v3402 = vsub.f32 %v3285, %v3401
  %v3403 = vand.u32 %v3402, 4294901760
  %v3404 = vsub.f32 %v3402, %v3403
  %v3405 = vand.u32 %v3404, 4294901760
  %3406 = vmatprep.subr.mxu0 %v3405
  %v3407 = vand.u32 %v3282, 4294901760
  %v3408 = vsub.f32 %v3282, %v3407
  %v3409 = vand.u32 %v3408, 4294901760
  %v3410 = vsub.f32 %v3408, %v3409
  %v3411 = vand.u32 %v3410, 4294901760
  %3412 = vmatpush1.msra.mxu0 %v3411
  %v3413 = vand.u32 %v3268, 4294901760
  %v3414 = vsub.f32 %v3268, %v3413
  %v3415 = vand.u32 %v3414, 4294901760
  %v3416 = vsub.f32 %v3414, %v3415
  %v3417 = vand.u32 %v3416, 4294901760
  %3418 = vmatprep.subr.mxu0 %v3417
  %v3419 = vand.u32 %v3267, 4294901760
  %v3420 = vsub.f32 %v3267, %v3419
  %v3421 = vand.u32 %v3420, 4294901760
  %v3422 = vsub.f32 %v3420, %v3421
  %v3423 = vand.u32 %v3422, 4294901760
  %3424 = vmatpush1.msra.mxu0 %v3423
  %v3425 = vand.u32 %v3259, 4294901760
  %v3426 = vsub.f32 %v3259, %v3425
  %v3427 = vand.u32 %v3426, 4294901760
  %v3428 = vsub.f32 %v3426, %v3427
  %v3429 = vand.u32 %v3428, 4294901760
  %3430 = vmatprep.subr.mxu0 %v3429
  %v3431 = vand.u32 %v3258, 4294901760
  %v3432 = vsub.f32 %v3258, %v3431
  %v3433 = vand.u32 %v3432, 4294901760
  %v3434 = vsub.f32 %v3432, %v3433
  %v3435 = vand.u32 %v3434, 4294901760
  %3436 = vmatpush1.msra.mxu0 %v3435
  %v3437 = vand.u32 %v3245, 4294901760
  %v3438 = vsub.f32 %v3245, %v3437
  %v3439 = vand.u32 %v3438, 4294901760
  %v3440 = vsub.f32 %v3438, %v3439
  %v3441 = vand.u32 %v3440, 4294901760
  %3442 = vmatprep.subr.mxu0 %v3441
  %v3443 = vand.u32 %v3244, 4294901760
  %v3444 = vsub.f32 %v3244, %v3443
  %v3445 = vand.u32 %v3444, 4294901760
  %v3446 = vsub.f32 %v3444, %v3445
  %v3447 = vand.u32 %v3446, 4294901760
  %3448 = vmatpush1.msra.mxu0 %v3447
  %3449 = vmatprep.subr.mxu0 0.0
  %3450 = vmatpush2.msra.mxu0 0.0
  %3451 = vmatprep.subr.mxu0 0.0
  %3452 = vmatpush2.msra.mxu0 0.0
  %3453 = vmatprep.subr.mxu0 0.0
  %3454 = vmatpush2.msra.mxu0 0.0
  %3455 = vmatprep.subr.mxu0 0.0
  %3456 = vmatpush2.msra.mxu0 0.0
  %3457 = vmatprep.subr.mxu0 0.0
  %3458 = vmatpush2.msra.mxu0 0.0
  %3459 = vmatprep.subr.mxu0 0.0
  %3460 = vmatpush2.msra.mxu0 0.0
  %3461 = vmatprep.subr.mxu0 0.0
  %3462 = vmatpush2.msra.mxu0 0.0
  %3463 = vmatprep.subr.mxu0 0.0
  %3464 = vmatpush2.msra.mxu0 0.0
  %3465 = vmatprep.subr.mxu0 0.0
  %3466 = vmatpush2.msra.mxu0 0.0
  %3467 = vmatprep.subr.mxu0 0.0
  %3468 = vmatpush2.msra.mxu0 0.0
  %3469 = vmatprep.subr.mxu0 0.0
  %3470 = vmatpush2.msra.mxu0 0.0
  %3471 = vmatprep.subr.mxu0 0.0
  %3472 = vmatpush2.msra.mxu0 0.0
  %3473 = vmatprep.subr.mxu0 0.0
  %3474 = vmatpush2.msra.mxu0 0.0
  %3475 = vmatprep.subr.mxu0 0.0
  %3476 = vmatpush2.msra.mxu0 0.0
  %3477 = vmatprep.subr.mxu0 0.0
  %3478 = vmatpush2.msra.mxu0 0.0
  %3479 = vmatprep.subr.mxu0 0.0
  %3480 = vmatpush2.msra.mxu0 0.0
  %3481 = vmatprep.mubr.f32.mxu0 0.0
  %v3482 = vand.u32 %v3279, 4294901760
  %3483 = vmatmul.mubr.f32.gmra.mxu0 %v3482
  %v3484 = vpop.f32.mrf.mxu0
  %v3485 = vadd.f32 %v3373, %v3484
  %v3486 = vpop.f32.mrf.mxu0
  %v3487 = vadd.f32 %v3375, %v3486
  %3488 = vdwg.mxu0
  %3489 = vmatprep.subr.mxu0 0.0
  %3490 = vmatpush1.msra.mxu0 0.0
  %3491 = vmatprep.subr.mxu0 0.0
  %3492 = vmatpush1.msra.mxu0 0.0
  %3493 = vmatprep.subr.mxu0 0.0
  %3494 = vmatpush1.msra.mxu0 0.0
  %3495 = vmatprep.subr.mxu0 0.0
  %3496 = vmatpush1.msra.mxu0 0.0
  %3497 = vmatprep.subr.mxu0 0.0
  %3498 = vmatpush1.msra.mxu0 0.0
  %3499 = vmatprep.subr.mxu0 0.0
  %3500 = vmatpush1.msra.mxu0 0.0
  %3501 = vmatprep.subr.mxu0 0.0
  %3502 = vmatpush1.msra.mxu0 0.0
  %3503 = vmatprep.subr.mxu0 0.0
  %3504 = vmatpush1.msra.mxu0 0.0
  %3505 = vmatprep.subr.mxu0 0.0
  %3506 = vmatpush1.msra.mxu0 0.0
  %3507 = vmatprep.subr.mxu0 0.0
  %3508 = vmatpush1.msra.mxu0 0.0
  %3509 = vmatprep.subr.mxu0 0.0
  %3510 = vmatpush1.msra.mxu0 0.0
  %3511 = vmatprep.subr.mxu0 0.0
  %3512 = vmatpush1.msra.mxu0 0.0
  %v3513 = vand.u32 %v3285, 4294901760
  %v3514 = vsub.f32 %v3285, %v3513
  %3515 = vmatprep.subr.mxu0 %v3514
  %v3516 = vand.u32 %v3282, 4294901760
  %v3517 = vsub.f32 %v3282, %v3516
  %3518 = vmatpush1.msra.mxu0 %v3517
  %v3519 = vand.u32 %v3268, 4294901760
  %v3520 = vsub.f32 %v3268, %v3519
  %3521 = vmatprep.subr.mxu0 %v3520
  %v3522 = vand.u32 %v3267, 4294901760
  %v3523 = vsub.f32 %v3267, %v3522
  %3524 = vmatpush1.msra.mxu0 %v3523
  %v3525 = vand.u32 %v3259, 4294901760
  %v3526 = vsub.f32 %v3259, %v3525
  %3527 = vmatprep.subr.mxu0 %v3526
  %v3528 = vand.u32 %v3258, 4294901760
  %v3529 = vsub.f32 %v3258, %v3528
  %3530 = vmatpush1.msra.mxu0 %v3529
  %v3531 = vand.u32 %v3245, 4294901760
  %v3532 = vsub.f32 %v3245, %v3531
  %3533 = vmatprep.subr.mxu0 %v3532
  %v3534 = vand.u32 %v3244, 4294901760
  %v3535 = vsub.f32 %v3244, %v3534
  %3536 = vmatpush1.msra.mxu0 %v3535
  %3537 = vmatprep.subr.mxu0 0.0
  %3538 = vmatpush2.msra.mxu0 0.0
  %3539 = vmatprep.subr.mxu0 0.0
  %3540 = vmatpush2.msra.mxu0 0.0
  %3541 = vmatprep.subr.mxu0 0.0
  %3542 = vmatpush2.msra.mxu0 0.0
  %3543 = vmatprep.subr.mxu0 0.0
  %3544 = vmatpush2.msra.mxu0 0.0
  %3545 = vmatprep.subr.mxu0 0.0
  %3546 = vmatpush2.msra.mxu0 0.0
  %3547 = vmatprep.subr.mxu0 0.0
  %3548 = vmatpush2.msra.mxu0 0.0
  %3549 = vmatprep.subr.mxu0 0.0
  %3550 = vmatpush2.msra.mxu0 0.0
  %3551 = vmatprep.subr.mxu0 0.0
  %3552 = vmatpush2.msra.mxu0 0.0
  %3553 = vmatprep.subr.mxu0 0.0
  %3554 = vmatpush2.msra.mxu0 0.0
  %3555 = vmatprep.subr.mxu0 0.0
  %3556 = vmatpush2.msra.mxu0 0.0
  %3557 = vmatprep.subr.mxu0 0.0
  %3558 = vmatpush2.msra.mxu0 0.0
  %3559 = vmatprep.subr.mxu0 0.0
  %3560 = vmatpush2.msra.mxu0 0.0
  %3561 = vmatprep.subr.mxu0 0.0
  %3562 = vmatpush2.msra.mxu0 0.0
  %3563 = vmatprep.subr.mxu0 0.0
  %3564 = vmatpush2.msra.mxu0 0.0
  %3565 = vmatprep.subr.mxu0 0.0
  %3566 = vmatpush2.msra.mxu0 0.0
  %3567 = vmatprep.subr.mxu0 0.0
  %3568 = vmatpush2.msra.mxu0 0.0
  %3569 = vmatprep.mubr.f32.mxu0 0.0
  %v3570 = vand.u32 %v3279, 4294901760
  %v3571 = vsub.f32 %v3279, %v3570
  %3572 = vmatmul.mubr.f32.gmra.mxu0 %v3571
  %v3573 = vpop.f32.mrf.mxu0
  %v3574 = vadd.f32 %v3485, %v3573
  %v3575 = vpop.f32.mrf.mxu0
  %v3576 = vadd.f32 %v3487, %v3575
  %3577 = vdwg.mxu0
  %3578 = vmatprep.subr.mxu0 0.0
  %3579 = vmatpush1.msra.mxu0 0.0
  %3580 = vmatprep.subr.mxu0 0.0
  %3581 = vmatpush1.msra.mxu0 0.0
  %3582 = vmatprep.subr.mxu0 0.0
  %3583 = vmatpush1.msra.mxu0 0.0
  %3584 = vmatprep.subr.mxu0 0.0
  %3585 = vmatpush1.msra.mxu0 0.0
  %3586 = vmatprep.subr.mxu0 0.0
  %3587 = vmatpush1.msra.mxu0 0.0
  %3588 = vmatprep.subr.mxu0 0.0
  %3589 = vmatpush1.msra.mxu0 0.0
  %3590 = vmatprep.subr.mxu0 0.0
  %3591 = vmatpush1.msra.mxu0 0.0
  %3592 = vmatprep.subr.mxu0 0.0
  %3593 = vmatpush1.msra.mxu0 0.0
  %3594 = vmatprep.subr.mxu0 0.0
  %3595 = vmatpush1.msra.mxu0 0.0
  %3596 = vmatprep.subr.mxu0 0.0
  %3597 = vmatpush1.msra.mxu0 0.0
  %3598 = vmatprep.subr.mxu0 0.0
  %3599 = vmatpush1.msra.mxu0 0.0
  %3600 = vmatprep.subr.mxu0 0.0
  %3601 = vmatpush1.msra.mxu0 0.0
  %v3602 = vand.u32 %v3285, 4294901760
  %3603 = vmatprep.subr.mxu0 %v3602
  %v3604 = vand.u32 %v3282, 4294901760
  %3605 = vmatpush1.msra.mxu0 %v3604
  %v3606 = vand.u32 %v3268, 4294901760
  %3607 = vmatprep.subr.mxu0 %v3606
  %v3608 = vand.u32 %v3267, 4294901760
  %3609 = vmatpush1.msra.mxu0 %v3608
  %v3610 = vand.u32 %v3259, 4294901760
  %3611 = vmatprep.subr.mxu0 %v3610
  %v3612 = vand.u32 %v3258, 4294901760
  %3613 = vmatpush1.msra.mxu0 %v3612
  %v3614 = vand.u32 %v3245, 4294901760
  %3615 = vmatprep.subr.mxu0 %v3614
  %v3616 = vand.u32 %v3244, 4294901760
  %3617 = vmatpush1.msra.mxu0 %v3616
  %3618 = vmatprep.subr.mxu0 0.0
  %3619 = vmatpush2.msra.mxu0 0.0
  %3620 = vmatprep.subr.mxu0 0.0
  %3621 = vmatpush2.msra.mxu0 0.0
  %3622 = vmatprep.subr.mxu0 0.0
  %3623 = vmatpush2.msra.mxu0 0.0
  %3624 = vmatprep.subr.mxu0 0.0
  %3625 = vmatpush2.msra.mxu0 0.0
  %3626 = vmatprep.subr.mxu0 0.0
  %3627 = vmatpush2.msra.mxu0 0.0
  %3628 = vmatprep.subr.mxu0 0.0
  %3629 = vmatpush2.msra.mxu0 0.0
  %3630 = vmatprep.subr.mxu0 0.0
  %3631 = vmatpush2.msra.mxu0 0.0
  %3632 = vmatprep.subr.mxu0 0.0
  %3633 = vmatpush2.msra.mxu0 0.0
  %3634 = vmatprep.subr.mxu0 0.0
  %3635 = vmatpush2.msra.mxu0 0.0
  %3636 = vmatprep.subr.mxu0 0.0
  %3637 = vmatpush2.msra.mxu0 0.0
  %3638 = vmatprep.subr.mxu0 0.0
  %3639 = vmatpush2.msra.mxu0 0.0
  %3640 = vmatprep.subr.mxu0 0.0
  %3641 = vmatpush2.msra.mxu0 0.0
  %3642 = vmatprep.subr.mxu0 0.0
  %3643 = vmatpush2.msra.mxu0 0.0
  %3644 = vmatprep.subr.mxu0 0.0
  %3645 = vmatpush2.msra.mxu0 0.0
  %3646 = vmatprep.subr.mxu0 0.0
  %3647 = vmatpush2.msra.mxu0 0.0
  %3648 = vmatprep.subr.mxu0 0.0
  %3649 = vmatpush2.msra.mxu0 0.0
  %3650 = vmatprep.mubr.f32.mxu0 0.0
  %v3651 = vand.u32 %v3279, 4294901760
  %v3652 = vsub.f32 %v3279, %v3651
  %v3653 = vand.u32 %v3652, 4294901760
  %3654 = vmatmul.mubr.f32.gmra.mxu0 %v3653
  %v3655 = vpop.f32.mrf.mxu0
  %v3656 = vadd.f32 %v3574, %v3655
  %v3657 = vpop.f32.mrf.mxu0
  %v3658 = vadd.f32 %v3576, %v3657
  %3659 = vdwg.mxu0
  %3660 = vmatprep.subr.mxu0 0.0
  %3661 = vmatpush1.msra.mxu0 0.0
  %3662 = vmatprep.subr.mxu0 0.0
  %3663 = vmatpush1.msra.mxu0 0.0
  %3664 = vmatprep.subr.mxu0 0.0
  %3665 = vmatpush1.msra.mxu0 0.0
  %3666 = vmatprep.subr.mxu0 0.0
  %3667 = vmatpush1.msra.mxu0 0.0
  %3668 = vmatprep.subr.mxu0 0.0
  %3669 = vmatpush1.msra.mxu0 0.0
  %3670 = vmatprep.subr.mxu0 0.0
  %3671 = vmatpush1.msra.mxu0 0.0
  %3672 = vmatprep.subr.mxu0 0.0
  %3673 = vmatpush1.msra.mxu0 0.0
  %3674 = vmatprep.subr.mxu0 0.0
  %3675 = vmatpush1.msra.mxu0 0.0
  %3676 = vmatprep.subr.mxu0 0.0
  %3677 = vmatpush1.msra.mxu0 0.0
  %3678 = vmatprep.subr.mxu0 0.0
  %3679 = vmatpush1.msra.mxu0 0.0
  %3680 = vmatprep.subr.mxu0 0.0
  %3681 = vmatpush1.msra.mxu0 0.0
  %3682 = vmatprep.subr.mxu0 0.0
  %3683 = vmatpush1.msra.mxu0 0.0
  %v3684 = vand.u32 %v3285, 4294901760
  %v3685 = vsub.f32 %v3285, %v3684
  %v3686 = vand.u32 %v3685, 4294901760
  %3687 = vmatprep.subr.mxu0 %v3686
  %v3688 = vand.u32 %v3282, 4294901760
  %v3689 = vsub.f32 %v3282, %v3688
  %v3690 = vand.u32 %v3689, 4294901760
  %3691 = vmatpush1.msra.mxu0 %v3690
  %v3692 = vand.u32 %v3268, 4294901760
  %v3693 = vsub.f32 %v3268, %v3692
  %v3694 = vand.u32 %v3693, 4294901760
  %3695 = vmatprep.subr.mxu0 %v3694
  %v3696 = vand.u32 %v3267, 4294901760
  %v3697 = vsub.f32 %v3267, %v3696
  %v3698 = vand.u32 %v3697, 4294901760
  %3699 = vmatpush1.msra.mxu0 %v3698
  %v3700 = vand.u32 %v3259, 4294901760
  %v3701 = vsub.f32 %v3259, %v3700
  %v3702 = vand.u32 %v3701, 4294901760
  %3703 = vmatprep.subr.mxu0 %v3702
  %v3704 = vand.u32 %v3258, 4294901760
  %v3705 = vsub.f32 %v3258, %v3704
  %v3706 = vand.u32 %v3705, 4294901760
  %3707 = vmatpush1.msra.mxu0 %v3706
  %v3708 = vand.u32 %v3245, 4294901760
  %v3709 = vsub.f32 %v3245, %v3708
  %v3710 = vand.u32 %v3709, 4294901760
  %3711 = vmatprep.subr.mxu0 %v3710
  %v3712 = vand.u32 %v3244, 4294901760
  %v3713 = vsub.f32 %v3244, %v3712
  %v3714 = vand.u32 %v3713, 4294901760
  %3715 = vmatpush1.msra.mxu0 %v3714
  %3716 = vmatprep.subr.mxu0 0.0
  %3717 = vmatpush2.msra.mxu0 0.0
  %3718 = vmatprep.subr.mxu0 0.0
  %3719 = vmatpush2.msra.mxu0 0.0
  %3720 = vmatprep.subr.mxu0 0.0
  %3721 = vmatpush2.msra.mxu0 0.0
  %3722 = vmatprep.subr.mxu0 0.0
  %3723 = vmatpush2.msra.mxu0 0.0
  %3724 = vmatprep.subr.mxu0 0.0
  %3725 = vmatpush2.msra.mxu0 0.0
  %3726 = vmatprep.subr.mxu0 0.0
  %3727 = vmatpush2.msra.mxu0 0.0
  %3728 = vmatprep.subr.mxu0 0.0
  %3729 = vmatpush2.msra.mxu0 0.0
  %3730 = vmatprep.subr.mxu0 0.0
  %3731 = vmatpush2.msra.mxu0 0.0
  %3732 = vmatprep.subr.mxu0 0.0
  %3733 = vmatpush2.msra.mxu0 0.0
  %3734 = vmatprep.subr.mxu0 0.0
  %3735 = vmatpush2.msra.mxu0 0.0
  %3736 = vmatprep.subr.mxu0 0.0
  %3737 = vmatpush2.msra.mxu0 0.0
  %3738 = vmatprep.subr.mxu0 0.0
  %3739 = vmatpush2.msra.mxu0 0.0
  %3740 = vmatprep.subr.mxu0 0.0
  %3741 = vmatpush2.msra.mxu0 0.0
  %3742 = vmatprep.subr.mxu0 0.0
  %3743 = vmatpush2.msra.mxu0 0.0
  %3744 = vmatprep.subr.mxu0 0.0
  %3745 = vmatpush2.msra.mxu0 0.0
  %3746 = vmatprep.subr.mxu0 0.0
  %3747 = vmatpush2.msra.mxu0 0.0
  %3748 = vmatprep.mubr.f32.mxu0 0.0
  %v3749 = vand.u32 %v3279, 4294901760
  %3750 = vmatmul.mubr.f32.gmra.mxu0 %v3749
  %v3751 = vpop.f32.mrf.mxu0
  %v3752 = vadd.f32 %v3656, %v3751
  %v3753 = vpop.f32.mrf.mxu0
  %v3754 = vadd.f32 %v3658, %v3753
  %3755 = vdwg.mxu0
  %3756 = vmatprep.subr.mxu0 0.0
  %3757 = vmatpush1.msra.mxu0 0.0
  %3758 = vmatprep.subr.mxu0 0.0
  %3759 = vmatpush1.msra.mxu0 0.0
  %3760 = vmatprep.subr.mxu0 0.0
  %3761 = vmatpush1.msra.mxu0 0.0
  %3762 = vmatprep.subr.mxu0 0.0
  %3763 = vmatpush1.msra.mxu0 0.0
  %3764 = vmatprep.subr.mxu0 0.0
  %3765 = vmatpush1.msra.mxu0 0.0
  %3766 = vmatprep.subr.mxu0 0.0
  %3767 = vmatpush1.msra.mxu0 0.0
  %3768 = vmatprep.subr.mxu0 0.0
  %3769 = vmatpush1.msra.mxu0 0.0
  %3770 = vmatprep.subr.mxu0 0.0
  %3771 = vmatpush1.msra.mxu0 0.0
  %3772 = vmatprep.subr.mxu0 0.0
  %3773 = vmatpush1.msra.mxu0 0.0
  %3774 = vmatprep.subr.mxu0 0.0
  %3775 = vmatpush1.msra.mxu0 0.0
  %3776 = vmatprep.subr.mxu0 0.0
  %3777 = vmatpush1.msra.mxu0 0.0
  %3778 = vmatprep.subr.mxu0 0.0
  %3779 = vmatpush1.msra.mxu0 0.0
  %v3780 = vand.u32 %v3285, 4294901760
  %3781 = vmatprep.subr.mxu0 %v3780
  %v3782 = vand.u32 %v3282, 4294901760
  %3783 = vmatpush1.msra.mxu0 %v3782
  %v3784 = vand.u32 %v3268, 4294901760
  %3785 = vmatprep.subr.mxu0 %v3784
  %v3786 = vand.u32 %v3267, 4294901760
  %3787 = vmatpush1.msra.mxu0 %v3786
  %v3788 = vand.u32 %v3259, 4294901760
  %3789 = vmatprep.subr.mxu0 %v3788
  %v3790 = vand.u32 %v3258, 4294901760
  %3791 = vmatpush1.msra.mxu0 %v3790
  %v3792 = vand.u32 %v3245, 4294901760
  %3793 = vmatprep.subr.mxu0 %v3792
  %v3794 = vand.u32 %v3244, 4294901760
  %3795 = vmatpush1.msra.mxu0 %v3794
  %3796 = vmatprep.subr.mxu0 0.0
  %3797 = vmatpush2.msra.mxu0 0.0
  %3798 = vmatprep.subr.mxu0 0.0
  %3799 = vmatpush2.msra.mxu0 0.0
  %3800 = vmatprep.subr.mxu0 0.0
  %3801 = vmatpush2.msra.mxu0 0.0
  %3802 = vmatprep.subr.mxu0 0.0
  %3803 = vmatpush2.msra.mxu0 0.0
  %3804 = vmatprep.subr.mxu0 0.0
  %3805 = vmatpush2.msra.mxu0 0.0
  %3806 = vmatprep.subr.mxu0 0.0
  %3807 = vmatpush2.msra.mxu0 0.0
  %3808 = vmatprep.subr.mxu0 0.0
  %3809 = vmatpush2.msra.mxu0 0.0
  %3810 = vmatprep.subr.mxu0 0.0
  %3811 = vmatpush2.msra.mxu0 0.0
  %3812 = vmatprep.subr.mxu0 0.0
  %3813 = vmatpush2.msra.mxu0 0.0
  %3814 = vmatprep.subr.mxu0 0.0
  %3815 = vmatpush2.msra.mxu0 0.0
  %3816 = vmatprep.subr.mxu0 0.0
  %3817 = vmatpush2.msra.mxu0 0.0
  %3818 = vmatprep.subr.mxu0 0.0
  %3819 = vmatpush2.msra.mxu0 0.0
  %3820 = vmatprep.subr.mxu0 0.0
  %3821 = vmatpush2.msra.mxu0 0.0
  %3822 = vmatprep.subr.mxu0 0.0
  %3823 = vmatpush2.msra.mxu0 0.0
  %3824 = vmatprep.subr.mxu0 0.0
  %3825 = vmatpush2.msra.mxu0 0.0
  %3826 = vmatprep.subr.mxu0 0.0
  %3827 = vmatpush2.msra.mxu0 0.0
  %3828 = vmatprep.mubr.f32.mxu0 0.0
  %v3829 = vand.u32 %v3279, 4294901760
  %3830 = vmatmul.mubr.f32.gmra.mxu0 %v3829
  %v3831 = vpop.f32.mrf.mxu0
  %v3832 = vadd.f32 %v3752, %v3831
  %v3833 = vpop.f32.mrf.mxu0
  %v3834 = vadd.f32 %v3754, %v3833
  %3835 = vdwg.mxu0
  %3836 = vmatprep.subr.mxu0 0.0
  %3837 = vmatpush1.msra.mxu0 0.0
  %3838 = vmatprep.subr.mxu0 0.0
  %3839 = vmatpush1.msra.mxu0 0.0
  %3840 = vmatprep.subr.mxu0 0.0
  %3841 = vmatpush1.msra.mxu0 0.0
  %3842 = vmatprep.subr.mxu0 0.0
  %3843 = vmatpush1.msra.mxu0 0.0
  %3844 = vmatprep.subr.mxu0 0.0
  %3845 = vmatpush1.msra.mxu0 0.0
  %3846 = vmatprep.subr.mxu0 0.0
  %3847 = vmatpush1.msra.mxu0 0.0
  %3848 = vmatprep.subr.mxu0 0.0
  %3849 = vmatpush1.msra.mxu0 0.0
  %3850 = vmatprep.subr.mxu0 0.0
  %3851 = vmatpush1.msra.mxu0 0.0
  %3852 = vmatprep.subr.mxu0 0.0
  %3853 = vmatpush1.msra.mxu0 0.0
  %3854 = vmatprep.subr.mxu0 0.0
  %3855 = vmatpush1.msra.mxu0 0.0
  %3856 = vmatprep.subr.mxu0 0.0
  %3857 = vmatpush1.msra.mxu0 0.0
  %3858 = vmatprep.subr.mxu0 0.0
  %3859 = vmatpush1.msra.mxu0 0.0
  %v3860 = vand.u32 %v3291, 4294901760
  %3861 = vmatprep.subr.mxu0 %v3860
  %v3862 = vand.u32 %v3288, 4294901760
  %3863 = vmatpush1.msra.mxu0 %v3862
  %v3864 = vand.u32 %v3270, 4294901760
  %3865 = vmatprep.subr.mxu0 %v3864
  %v3866 = vand.u32 %v3269, 4294901760
  %3867 = vmatpush1.msra.mxu0 %v3866
  %v3868 = vand.u32 %v3261, 4294901760
  %3869 = vmatprep.subr.mxu0 %v3868
  %v3870 = vand.u32 %v3260, 4294901760
  %3871 = vmatpush1.msra.mxu0 %v3870
  %v3872 = vand.u32 %v3247, 4294901760
  %3873 = vmatprep.subr.mxu0 %v3872
  %v3874 = vand.u32 %v3246, 4294901760
  %3875 = vmatpush1.msra.mxu0 %v3874
  %3876 = vmatprep.subr.mxu0 0.0
  %3877 = vmatpush2.msra.mxu0 0.0
  %3878 = vmatprep.subr.mxu0 0.0
  %3879 = vmatpush2.msra.mxu0 0.0
  %3880 = vmatprep.subr.mxu0 0.0
  %3881 = vmatpush2.msra.mxu0 0.0
  %3882 = vmatprep.subr.mxu0 0.0
  %3883 = vmatpush2.msra.mxu0 0.0
  %3884 = vmatprep.subr.mxu0 0.0
  %3885 = vmatpush2.msra.mxu0 0.0
  %3886 = vmatprep.subr.mxu0 0.0
  %3887 = vmatpush2.msra.mxu0 0.0
  %3888 = vmatprep.subr.mxu0 0.0
  %3889 = vmatpush2.msra.mxu0 0.0
  %3890 = vmatprep.subr.mxu0 0.0
  %3891 = vmatpush2.msra.mxu0 0.0
  %3892 = vmatprep.subr.mxu0 0.0
  %3893 = vmatpush2.msra.mxu0 0.0
  %3894 = vmatprep.subr.mxu0 0.0
  %3895 = vmatpush2.msra.mxu0 0.0
  %3896 = vmatprep.subr.mxu0 0.0
  %3897 = vmatpush2.msra.mxu0 0.0
  %3898 = vmatprep.subr.mxu0 0.0
  %3899 = vmatpush2.msra.mxu0 0.0
  %3900 = vmatprep.subr.mxu0 0.0
  %3901 = vmatpush2.msra.mxu0 0.0
  %3902 = vmatprep.subr.mxu0 0.0
  %3903 = vmatpush2.msra.mxu0 0.0
  %3904 = vmatprep.subr.mxu0 0.0
  %3905 = vmatpush2.msra.mxu0 0.0
  %3906 = vmatprep.subr.mxu0 0.0
  %3907 = vmatpush2.msra.mxu0 0.0
  %3908 = vmatprep.mubr.f32.mxu0 0.0
  %v3909 = vand.u32 %v3279, 4294901760
  %v3910 = vsub.f32 %v3279, %v3909
  %v3911 = vand.u32 %v3910, 4294901760
  %v3912 = vsub.f32 %v3910, %v3911
  %v3913 = vand.u32 %v3912, 4294901760
  %3914 = vmatmul.mubr.f32.gmra.mxu0 %v3913
  %v3915 = vpop.f32.mrf.mxu0
  %v3916 = vadd.f32 0.0, %v3915
  %v3917 = vpop.f32.mrf.mxu0
  %v3918 = vadd.f32 0.0, %v3917
  %3919 = vdwg.mxu0
  %3920 = vmatprep.subr.mxu0 0.0
  %3921 = vmatpush1.msra.mxu0 0.0
  %3922 = vmatprep.subr.mxu0 0.0
  %3923 = vmatpush1.msra.mxu0 0.0
  %3924 = vmatprep.subr.mxu0 0.0
  %3925 = vmatpush1.msra.mxu0 0.0
  %3926 = vmatprep.subr.mxu0 0.0
  %3927 = vmatpush1.msra.mxu0 0.0
  %3928 = vmatprep.subr.mxu0 0.0
  %3929 = vmatpush1.msra.mxu0 0.0
  %3930 = vmatprep.subr.mxu0 0.0
  %3931 = vmatpush1.msra.mxu0 0.0
  %3932 = vmatprep.subr.mxu0 0.0
  %3933 = vmatpush1.msra.mxu0 0.0
  %3934 = vmatprep.subr.mxu0 0.0
  %3935 = vmatpush1.msra.mxu0 0.0
  %3936 = vmatprep.subr.mxu0 0.0
  %3937 = vmatpush1.msra.mxu0 0.0
  %3938 = vmatprep.subr.mxu0 0.0
  %3939 = vmatpush1.msra.mxu0 0.0
  %3940 = vmatprep.subr.mxu0 0.0
  %3941 = vmatpush1.msra.mxu0 0.0
  %3942 = vmatprep.subr.mxu0 0.0
  %3943 = vmatpush1.msra.mxu0 0.0
  %v3944 = vand.u32 %v3291, 4294901760
  %v3945 = vsub.f32 %v3291, %v3944
  %v3946 = vand.u32 %v3945, 4294901760
  %v3947 = vsub.f32 %v3945, %v3946
  %v3948 = vand.u32 %v3947, 4294901760
  %3949 = vmatprep.subr.mxu0 %v3948
  %v3950 = vand.u32 %v3288, 4294901760
  %v3951 = vsub.f32 %v3288, %v3950
  %v3952 = vand.u32 %v3951, 4294901760
  %v3953 = vsub.f32 %v3951, %v3952
  %v3954 = vand.u32 %v3953, 4294901760
  %3955 = vmatpush1.msra.mxu0 %v3954
  %v3956 = vand.u32 %v3270, 4294901760
  %v3957 = vsub.f32 %v3270, %v3956
  %v3958 = vand.u32 %v3957, 4294901760
  %v3959 = vsub.f32 %v3957, %v3958
  %v3960 = vand.u32 %v3959, 4294901760
  %3961 = vmatprep.subr.mxu0 %v3960
  %v3962 = vand.u32 %v3269, 4294901760
  %v3963 = vsub.f32 %v3269, %v3962
  %v3964 = vand.u32 %v3963, 4294901760
  %v3965 = vsub.f32 %v3963, %v3964
  %v3966 = vand.u32 %v3965, 4294901760
  %3967 = vmatpush1.msra.mxu0 %v3966
  %v3968 = vand.u32 %v3261, 4294901760
  %v3969 = vsub.f32 %v3261, %v3968
  %v3970 = vand.u32 %v3969, 4294901760
  %v3971 = vsub.f32 %v3969, %v3970
  %v3972 = vand.u32 %v3971, 4294901760
  %3973 = vmatprep.subr.mxu0 %v3972
  %v3974 = vand.u32 %v3260, 4294901760
  %v3975 = vsub.f32 %v3260, %v3974
  %v3976 = vand.u32 %v3975, 4294901760
  %v3977 = vsub.f32 %v3975, %v3976
  %v3978 = vand.u32 %v3977, 4294901760
  %3979 = vmatpush1.msra.mxu0 %v3978
  %v3980 = vand.u32 %v3247, 4294901760
  %v3981 = vsub.f32 %v3247, %v3980
  %v3982 = vand.u32 %v3981, 4294901760
  %v3983 = vsub.f32 %v3981, %v3982
  %v3984 = vand.u32 %v3983, 4294901760
  %3985 = vmatprep.subr.mxu0 %v3984
  %v3986 = vand.u32 %v3246, 4294901760
  %v3987 = vsub.f32 %v3246, %v3986
  %v3988 = vand.u32 %v3987, 4294901760
  %v3989 = vsub.f32 %v3987, %v3988
  %v3990 = vand.u32 %v3989, 4294901760
  %3991 = vmatpush1.msra.mxu0 %v3990
  %3992 = vmatprep.subr.mxu0 0.0
  %3993 = vmatpush2.msra.mxu0 0.0
  %3994 = vmatprep.subr.mxu0 0.0
  %3995 = vmatpush2.msra.mxu0 0.0
  %3996 = vmatprep.subr.mxu0 0.0
  %3997 = vmatpush2.msra.mxu0 0.0
  %3998 = vmatprep.subr.mxu0 0.0
  %3999 = vmatpush2.msra.mxu0 0.0
  %4000 = vmatprep.subr.mxu0 0.0
  %4001 = vmatpush2.msra.mxu0 0.0
  %4002 = vmatprep.subr.mxu0 0.0
  %4003 = vmatpush2.msra.mxu0 0.0
  %4004 = vmatprep.subr.mxu0 0.0
  %4005 = vmatpush2.msra.mxu0 0.0
  %4006 = vmatprep.subr.mxu0 0.0
  %4007 = vmatpush2.msra.mxu0 0.0
  %4008 = vmatprep.subr.mxu0 0.0
  %4009 = vmatpush2.msra.mxu0 0.0
  %4010 = vmatprep.subr.mxu0 0.0
  %4011 = vmatpush2.msra.mxu0 0.0
  %4012 = vmatprep.subr.mxu0 0.0
  %4013 = vmatpush2.msra.mxu0 0.0
  %4014 = vmatprep.subr.mxu0 0.0
  %4015 = vmatpush2.msra.mxu0 0.0
  %4016 = vmatprep.subr.mxu0 0.0
  %4017 = vmatpush2.msra.mxu0 0.0
  %4018 = vmatprep.subr.mxu0 0.0
  %4019 = vmatpush2.msra.mxu0 0.0
  %4020 = vmatprep.subr.mxu0 0.0
  %4021 = vmatpush2.msra.mxu0 0.0
  %4022 = vmatprep.subr.mxu0 0.0
  %4023 = vmatpush2.msra.mxu0 0.0
  %4024 = vmatprep.mubr.f32.mxu0 0.0
  %v4025 = vand.u32 %v3279, 4294901760
  %4026 = vmatmul.mubr.f32.gmra.mxu0 %v4025
  %v4027 = vpop.f32.mrf.mxu0
  %v4028 = vadd.f32 %v3916, %v4027
  %v4029 = vpop.f32.mrf.mxu0
  %v4030 = vadd.f32 %v3918, %v4029
  %4031 = vdwg.mxu0
  %4032 = vmatprep.subr.mxu0 0.0
  %4033 = vmatpush1.msra.mxu0 0.0
  %4034 = vmatprep.subr.mxu0 0.0
  %4035 = vmatpush1.msra.mxu0 0.0
  %4036 = vmatprep.subr.mxu0 0.0
  %4037 = vmatpush1.msra.mxu0 0.0
  %4038 = vmatprep.subr.mxu0 0.0
  %4039 = vmatpush1.msra.mxu0 0.0
  %4040 = vmatprep.subr.mxu0 0.0
  %4041 = vmatpush1.msra.mxu0 0.0
  %4042 = vmatprep.subr.mxu0 0.0
  %4043 = vmatpush1.msra.mxu0 0.0
  %4044 = vmatprep.subr.mxu0 0.0
  %4045 = vmatpush1.msra.mxu0 0.0
  %4046 = vmatprep.subr.mxu0 0.0
  %4047 = vmatpush1.msra.mxu0 0.0
  %4048 = vmatprep.subr.mxu0 0.0
  %4049 = vmatpush1.msra.mxu0 0.0
  %4050 = vmatprep.subr.mxu0 0.0
  %4051 = vmatpush1.msra.mxu0 0.0
  %4052 = vmatprep.subr.mxu0 0.0
  %4053 = vmatpush1.msra.mxu0 0.0
  %4054 = vmatprep.subr.mxu0 0.0
  %4055 = vmatpush1.msra.mxu0 0.0
  %v4056 = vand.u32 %v3291, 4294901760
  %v4057 = vsub.f32 %v3291, %v4056
  %4058 = vmatprep.subr.mxu0 %v4057
  %v4059 = vand.u32 %v3288, 4294901760
  %v4060 = vsub.f32 %v3288, %v4059
  %4061 = vmatpush1.msra.mxu0 %v4060
  %v4062 = vand.u32 %v3270, 4294901760
  %v4063 = vsub.f32 %v3270, %v4062
  %4064 = vmatprep.subr.mxu0 %v4063
  %v4065 = vand.u32 %v3269, 4294901760
  %v4066 = vsub.f32 %v3269, %v4065
  %4067 = vmatpush1.msra.mxu0 %v4066
  %v4068 = vand.u32 %v3261, 4294901760
  %v4069 = vsub.f32 %v3261, %v4068
  %4070 = vmatprep.subr.mxu0 %v4069
  %v4071 = vand.u32 %v3260, 4294901760
  %v4072 = vsub.f32 %v3260, %v4071
  %4073 = vmatpush1.msra.mxu0 %v4072
  %v4074 = vand.u32 %v3247, 4294901760
  %v4075 = vsub.f32 %v3247, %v4074
  %4076 = vmatprep.subr.mxu0 %v4075
  %v4077 = vand.u32 %v3246, 4294901760
  %v4078 = vsub.f32 %v3246, %v4077
  %4079 = vmatpush1.msra.mxu0 %v4078
  %4080 = vmatprep.subr.mxu0 0.0
  %4081 = vmatpush2.msra.mxu0 0.0
  %4082 = vmatprep.subr.mxu0 0.0
  %4083 = vmatpush2.msra.mxu0 0.0
  %4084 = vmatprep.subr.mxu0 0.0
  %4085 = vmatpush2.msra.mxu0 0.0
  %4086 = vmatprep.subr.mxu0 0.0
  %4087 = vmatpush2.msra.mxu0 0.0
  %4088 = vmatprep.subr.mxu0 0.0
  %4089 = vmatpush2.msra.mxu0 0.0
  %4090 = vmatprep.subr.mxu0 0.0
  %4091 = vmatpush2.msra.mxu0 0.0
  %4092 = vmatprep.subr.mxu0 0.0
  %4093 = vmatpush2.msra.mxu0 0.0
  %4094 = vmatprep.subr.mxu0 0.0
  %4095 = vmatpush2.msra.mxu0 0.0
  %4096 = vmatprep.subr.mxu0 0.0
  %4097 = vmatpush2.msra.mxu0 0.0
  %4098 = vmatprep.subr.mxu0 0.0
  %4099 = vmatpush2.msra.mxu0 0.0
  %4100 = vmatprep.subr.mxu0 0.0
  %4101 = vmatpush2.msra.mxu0 0.0
  %4102 = vmatprep.subr.mxu0 0.0
  %4103 = vmatpush2.msra.mxu0 0.0
  %4104 = vmatprep.subr.mxu0 0.0
  %4105 = vmatpush2.msra.mxu0 0.0
  %4106 = vmatprep.subr.mxu0 0.0
  %4107 = vmatpush2.msra.mxu0 0.0
  %4108 = vmatprep.subr.mxu0 0.0
  %4109 = vmatpush2.msra.mxu0 0.0
  %4110 = vmatprep.subr.mxu0 0.0
  %4111 = vmatpush2.msra.mxu0 0.0
  %4112 = vmatprep.mubr.f32.mxu0 0.0
  %v4113 = vand.u32 %v3279, 4294901760
  %v4114 = vsub.f32 %v3279, %v4113
  %4115 = vmatmul.mubr.f32.gmra.mxu0 %v4114
  %v4116 = vpop.f32.mrf.mxu0
  %v4117 = vadd.f32 %v4028, %v4116
  %v4118 = vpop.f32.mrf.mxu0
  %v4119 = vadd.f32 %v4030, %v4118
  %4120 = vdwg.mxu0
  %4121 = vmatprep.subr.mxu0 0.0
  %4122 = vmatpush1.msra.mxu0 0.0
  %4123 = vmatprep.subr.mxu0 0.0
  %4124 = vmatpush1.msra.mxu0 0.0
  %4125 = vmatprep.subr.mxu0 0.0
  %4126 = vmatpush1.msra.mxu0 0.0
  %4127 = vmatprep.subr.mxu0 0.0
  %4128 = vmatpush1.msra.mxu0 0.0
  %4129 = vmatprep.subr.mxu0 0.0
  %4130 = vmatpush1.msra.mxu0 0.0
  %4131 = vmatprep.subr.mxu0 0.0
  %4132 = vmatpush1.msra.mxu0 0.0
  %4133 = vmatprep.subr.mxu0 0.0
  %4134 = vmatpush1.msra.mxu0 0.0
  %4135 = vmatprep.subr.mxu0 0.0
  %4136 = vmatpush1.msra.mxu0 0.0
  %4137 = vmatprep.subr.mxu0 0.0
  %4138 = vmatpush1.msra.mxu0 0.0
  %4139 = vmatprep.subr.mxu0 0.0
  %4140 = vmatpush1.msra.mxu0 0.0
  %4141 = vmatprep.subr.mxu0 0.0
  %4142 = vmatpush1.msra.mxu0 0.0
  %4143 = vmatprep.subr.mxu0 0.0
  %4144 = vmatpush1.msra.mxu0 0.0
  %v4145 = vand.u32 %v3291, 4294901760
  %4146 = vmatprep.subr.mxu0 %v4145
  %v4147 = vand.u32 %v3288, 4294901760
  %4148 = vmatpush1.msra.mxu0 %v4147
  %v4149 = vand.u32 %v3270, 4294901760
  %4150 = vmatprep.subr.mxu0 %v4149
  %v4151 = vand.u32 %v3269, 4294901760
  %4152 = vmatpush1.msra.mxu0 %v4151
  %v4153 = vand.u32 %v3261, 4294901760
  %4154 = vmatprep.subr.mxu0 %v4153
  %v4155 = vand.u32 %v3260, 4294901760
  %4156 = vmatpush1.msra.mxu0 %v4155
  %v4157 = vand.u32 %v3247, 4294901760
  %4158 = vmatprep.subr.mxu0 %v4157
  %v4159 = vand.u32 %v3246, 4294901760
  %4160 = vmatpush1.msra.mxu0 %v4159
  %4161 = vmatprep.subr.mxu0 0.0
  %4162 = vmatpush2.msra.mxu0 0.0
  %4163 = vmatprep.subr.mxu0 0.0
  %4164 = vmatpush2.msra.mxu0 0.0
  %4165 = vmatprep.subr.mxu0 0.0
  %4166 = vmatpush2.msra.mxu0 0.0
  %4167 = vmatprep.subr.mxu0 0.0
  %4168 = vmatpush2.msra.mxu0 0.0
  %4169 = vmatprep.subr.mxu0 0.0
  %4170 = vmatpush2.msra.mxu0 0.0
  %4171 = vmatprep.subr.mxu0 0.0
  %4172 = vmatpush2.msra.mxu0 0.0
  %4173 = vmatprep.subr.mxu0 0.0
  %4174 = vmatpush2.msra.mxu0 0.0
  %4175 = vmatprep.subr.mxu0 0.0
  %4176 = vmatpush2.msra.mxu0 0.0
  %4177 = vmatprep.subr.mxu0 0.0
  %4178 = vmatpush2.msra.mxu0 0.0
  %4179 = vmatprep.subr.mxu0 0.0
  %4180 = vmatpush2.msra.mxu0 0.0
  %4181 = vmatprep.subr.mxu0 0.0
  %4182 = vmatpush2.msra.mxu0 0.0
  %4183 = vmatprep.subr.mxu0 0.0
  %4184 = vmatpush2.msra.mxu0 0.0
  %4185 = vmatprep.subr.mxu0 0.0
  %4186 = vmatpush2.msra.mxu0 0.0
  %4187 = vmatprep.subr.mxu0 0.0
  %4188 = vmatpush2.msra.mxu0 0.0
  %4189 = vmatprep.subr.mxu0 0.0
  %4190 = vmatpush2.msra.mxu0 0.0
  %4191 = vmatprep.subr.mxu0 0.0
  %4192 = vmatpush2.msra.mxu0 0.0
  %4193 = vmatprep.mubr.f32.mxu0 0.0
  %v4194 = vand.u32 %v3279, 4294901760
  %v4195 = vsub.f32 %v3279, %v4194
  %v4196 = vand.u32 %v4195, 4294901760
  %4197 = vmatmul.mubr.f32.gmra.mxu0 %v4196
  %v4198 = vpop.f32.mrf.mxu0
  %v4199 = vadd.f32 %v4117, %v4198
  %v4200 = vpop.f32.mrf.mxu0
  %v4201 = vadd.f32 %v4119, %v4200
  %4202 = vdwg.mxu0
  %4203 = vmatprep.subr.mxu0 0.0
  %4204 = vmatpush1.msra.mxu0 0.0
  %4205 = vmatprep.subr.mxu0 0.0
  %4206 = vmatpush1.msra.mxu0 0.0
  %4207 = vmatprep.subr.mxu0 0.0
  %4208 = vmatpush1.msra.mxu0 0.0
  %4209 = vmatprep.subr.mxu0 0.0
  %4210 = vmatpush1.msra.mxu0 0.0
  %4211 = vmatprep.subr.mxu0 0.0
  %4212 = vmatpush1.msra.mxu0 0.0
  %4213 = vmatprep.subr.mxu0 0.0
  %4214 = vmatpush1.msra.mxu0 0.0
  %4215 = vmatprep.subr.mxu0 0.0
  %4216 = vmatpush1.msra.mxu0 0.0
  %4217 = vmatprep.subr.mxu0 0.0
  %4218 = vmatpush1.msra.mxu0 0.0
  %4219 = vmatprep.subr.mxu0 0.0
  %4220 = vmatpush1.msra.mxu0 0.0
  %4221 = vmatprep.subr.mxu0 0.0
  %4222 = vmatpush1.msra.mxu0 0.0
  %4223 = vmatprep.subr.mxu0 0.0
  %4224 = vmatpush1.msra.mxu0 0.0
  %4225 = vmatprep.subr.mxu0 0.0
  %4226 = vmatpush1.msra.mxu0 0.0
  %v4227 = vand.u32 %v3291, 4294901760
  %v4228 = vsub.f32 %v3291, %v4227
  %v4229 = vand.u32 %v4228, 4294901760
  %4230 = vmatprep.subr.mxu0 %v4229
  %v4231 = vand.u32 %v3288, 4294901760
  %v4232 = vsub.f32 %v3288, %v4231
  %v4233 = vand.u32 %v4232, 4294901760
  %4234 = vmatpush1.msra.mxu0 %v4233
  %v4235 = vand.u32 %v3270, 4294901760
  %v4236 = vsub.f32 %v3270, %v4235
  %v4237 = vand.u32 %v4236, 4294901760
  %4238 = vmatprep.subr.mxu0 %v4237
  %v4239 = vand.u32 %v3269, 4294901760
  %v4240 = vsub.f32 %v3269, %v4239
  %v4241 = vand.u32 %v4240, 4294901760
  %4242 = vmatpush1.msra.mxu0 %v4241
  %v4243 = vand.u32 %v3261, 4294901760
  %v4244 = vsub.f32 %v3261, %v4243
  %v4245 = vand.u32 %v4244, 4294901760
  %4246 = vmatprep.subr.mxu0 %v4245
  %v4247 = vand.u32 %v3260, 4294901760
  %v4248 = vsub.f32 %v3260, %v4247
  %v4249 = vand.u32 %v4248, 4294901760
  %4250 = vmatpush1.msra.mxu0 %v4249
  %v4251 = vand.u32 %v3247, 4294901760
  %v4252 = vsub.f32 %v3247, %v4251
  %v4253 = vand.u32 %v4252, 4294901760
  %4254 = vmatprep.subr.mxu0 %v4253
  %v4255 = vand.u32 %v3246, 4294901760
  %v4256 = vsub.f32 %v3246, %v4255
  %v4257 = vand.u32 %v4256, 4294901760
  %4258 = vmatpush1.msra.mxu0 %v4257
  %4259 = vmatprep.subr.mxu0 0.0
  %4260 = vmatpush2.msra.mxu0 0.0
  %4261 = vmatprep.subr.mxu0 0.0
  %4262 = vmatpush2.msra.mxu0 0.0
  %4263 = vmatprep.subr.mxu0 0.0
  %4264 = vmatpush2.msra.mxu0 0.0
  %4265 = vmatprep.subr.mxu0 0.0
  %4266 = vmatpush2.msra.mxu0 0.0
  %4267 = vmatprep.subr.mxu0 0.0
  %4268 = vmatpush2.msra.mxu0 0.0
  %4269 = vmatprep.subr.mxu0 0.0
  %4270 = vmatpush2.msra.mxu0 0.0
  %4271 = vmatprep.subr.mxu0 0.0
  %4272 = vmatpush2.msra.mxu0 0.0
  %4273 = vmatprep.subr.mxu0 0.0
  %4274 = vmatpush2.msra.mxu0 0.0
  %4275 = vmatprep.subr.mxu0 0.0
  %4276 = vmatpush2.msra.mxu0 0.0
  %4277 = vmatprep.subr.mxu0 0.0
  %4278 = vmatpush2.msra.mxu0 0.0
  %4279 = vmatprep.subr.mxu0 0.0
  %4280 = vmatpush2.msra.mxu0 0.0
  %4281 = vmatprep.subr.mxu0 0.0
  %4282 = vmatpush2.msra.mxu0 0.0
  %4283 = vmatprep.subr.mxu0 0.0
  %4284 = vmatpush2.msra.mxu0 0.0
  %4285 = vmatprep.subr.mxu0 0.0
  %4286 = vmatpush2.msra.mxu0 0.0
  %4287 = vmatprep.subr.mxu0 0.0
  %4288 = vmatpush2.msra.mxu0 0.0
  %4289 = vmatprep.subr.mxu0 0.0
  %4290 = vmatpush2.msra.mxu0 0.0
  %4291 = vmatprep.mubr.f32.mxu0 0.0
  %v4292 = vand.u32 %v3279, 4294901760
  %4293 = vmatmul.mubr.f32.gmra.mxu0 %v4292
  %v4294 = vpop.f32.mrf.mxu0
  %v4295 = vadd.f32 %v4199, %v4294
  %v4296 = vpop.f32.mrf.mxu0
  %v4297 = vadd.f32 %v4201, %v4296
  %4298 = vdwg.mxu0
  %4299 = vmatprep.subr.mxu0 0.0
  %4300 = vmatpush1.msra.mxu0 0.0
  %4301 = vmatprep.subr.mxu0 0.0
  %4302 = vmatpush1.msra.mxu0 0.0
  %4303 = vmatprep.subr.mxu0 0.0
  %4304 = vmatpush1.msra.mxu0 0.0
  %4305 = vmatprep.subr.mxu0 0.0
  %4306 = vmatpush1.msra.mxu0 0.0
  %4307 = vmatprep.subr.mxu0 0.0
  %4308 = vmatpush1.msra.mxu0 0.0
  %4309 = vmatprep.subr.mxu0 0.0
  %4310 = vmatpush1.msra.mxu0 0.0
  %4311 = vmatprep.subr.mxu0 0.0
  %4312 = vmatpush1.msra.mxu0 0.0
  %4313 = vmatprep.subr.mxu0 0.0
  %4314 = vmatpush1.msra.mxu0 0.0
  %4315 = vmatprep.subr.mxu0 0.0
  %4316 = vmatpush1.msra.mxu0 0.0
  %4317 = vmatprep.subr.mxu0 0.0
  %4318 = vmatpush1.msra.mxu0 0.0
  %4319 = vmatprep.subr.mxu0 0.0
  %4320 = vmatpush1.msra.mxu0 0.0
  %4321 = vmatprep.subr.mxu0 0.0
  %4322 = vmatpush1.msra.mxu0 0.0
  %v4323 = vand.u32 %v3291, 4294901760
  %4324 = vmatprep.subr.mxu0 %v4323
  %v4325 = vand.u32 %v3288, 4294901760
  %4326 = vmatpush1.msra.mxu0 %v4325
  %v4327 = vand.u32 %v3270, 4294901760
  %4328 = vmatprep.subr.mxu0 %v4327
  %v4329 = vand.u32 %v3269, 4294901760
  %4330 = vmatpush1.msra.mxu0 %v4329
  %v4331 = vand.u32 %v3261, 4294901760
  %4332 = vmatprep.subr.mxu0 %v4331
  %v4333 = vand.u32 %v3260, 4294901760
  %4334 = vmatpush1.msra.mxu0 %v4333
  %v4335 = vand.u32 %v3247, 4294901760
  %4336 = vmatprep.subr.mxu0 %v4335
  %v4337 = vand.u32 %v3246, 4294901760
  %4338 = vmatpush1.msra.mxu0 %v4337
  %4339 = vmatprep.subr.mxu0 0.0
  %4340 = vmatpush2.msra.mxu0 0.0
  %4341 = vmatprep.subr.mxu0 0.0
  %4342 = vmatpush2.msra.mxu0 0.0
  %4343 = vmatprep.subr.mxu0 0.0
  %4344 = vmatpush2.msra.mxu0 0.0
  %4345 = vmatprep.subr.mxu0 0.0
  %4346 = vmatpush2.msra.mxu0 0.0
  %4347 = vmatprep.subr.mxu0 0.0
  %4348 = vmatpush2.msra.mxu0 0.0
  %4349 = vmatprep.subr.mxu0 0.0
  %4350 = vmatpush2.msra.mxu0 0.0
  %4351 = vmatprep.subr.mxu0 0.0
  %4352 = vmatpush2.msra.mxu0 0.0
  %4353 = vmatprep.subr.mxu0 0.0
  %4354 = vmatpush2.msra.mxu0 0.0
  %4355 = vmatprep.subr.mxu0 0.0
  %4356 = vmatpush2.msra.mxu0 0.0
  %4357 = vmatprep.subr.mxu0 0.0
  %4358 = vmatpush2.msra.mxu0 0.0
  %4359 = vmatprep.subr.mxu0 0.0
  %4360 = vmatpush2.msra.mxu0 0.0
  %4361 = vmatprep.subr.mxu0 0.0
  %4362 = vmatpush2.msra.mxu0 0.0
  %4363 = vmatprep.subr.mxu0 0.0
  %4364 = vmatpush2.msra.mxu0 0.0
  %4365 = vmatprep.subr.mxu0 0.0
  %4366 = vmatpush2.msra.mxu0 0.0
  %4367 = vmatprep.subr.mxu0 0.0
  %4368 = vmatpush2.msra.mxu0 0.0
  %4369 = vmatprep.subr.mxu0 0.0
  %4370 = vmatpush2.msra.mxu0 0.0
  %4371 = vmatprep.mubr.f32.mxu0 0.0
  %v4372 = vand.u32 %v3279, 4294901760
  %4373 = vmatmul.mubr.f32.gmra.mxu0 %v4372
  %v4374 = vpop.f32.mrf.mxu0
  %v4375 = vadd.f32 %v4295, %v4374
  %v4376 = vpop.f32.mrf.mxu0
  %v4377 = vadd.f32 %v4297, %v4376
  %4378 = vdwg.mxu0
  %v4379 = vmax.f32 %v3832, 0.0
  %v4380 = vmax.f32 %v3834, 0.0
  %v4381 = vmax.f32 %v4375, 0.0
  %v4382 = vmax.f32 %v4377, 0.0
  %4387 = vrot.lane.b32.xlu0 %v4379, 17
  %v4388 = vpop.permute.xlu0 %4387
  %4389 = vrot.lane.b32.xlu0 %v4380, 17
  %v4390 = vpop.permute.xlu0 %4389
  %4391 = vrot.lane.b32.xlu0 %v4381, 17
  %v4392 = vpop.permute.xlu0 %4391
  %4393 = vrot.lane.b32.xlu0 %v4382, 17
  %v4394 = vpop.permute.xlu0 %4393
  %v4395 = vsel %vm74, %v4388, %v4390
  %v4396 = vsel %vm74, %v4390, %v4392
  %v4397 = vsel %vm74, %v4392, %v4394
  %v4403 = vsel %vm74, 0.0, %v4388
  %v4404 = vsel %vm74, %v4394, 0.0
  %v4405 = vsel %vm89, %v4403, 0.0
  %v4406 = vsel %vm90, %v4395, 0.0
  %v4407 = vsel %vm91, %v4396, 0.0
  %v4408 = vsel %vm92, %v4397, 0.0
  %4411 = vrot.lane.b32.xlu0 %v4403, 127
  %v4412 = vpop.permute.xlu0 %4411
  %4413 = vrot.lane.b32.xlu0 %v4395, 127
  %v4414 = vpop.permute.xlu0 %4413
  %4415 = vrot.lane.b32.xlu0 %v4396, 127
  %v4416 = vpop.permute.xlu0 %4415
  %4417 = vrot.lane.b32.xlu0 %v4397, 127
  %v4418 = vpop.permute.xlu0 %4417
  %4419 = vrot.lane.b32.xlu0 %v4404, 127
  %v4420 = vpop.permute.xlu0 %4419
  %v4421 = vsel %vm117, %v4412, %v4414
  %v4422 = vsel %vm117, %v4414, %v4416
  %v4423 = vsel %vm117, %v4416, %v4418
  %v4424 = vsel %vm117, %v4418, %v4420
  %v4429 = vsel %vm101, %v4421, 0.0
  %v4430 = vsel %vm102, %v4422, 0.0
  %v4431 = vsel %vm103, %v4423, 0.0
  %v4432 = vsel %vm104, %v4424, 0.0
  %4433 = vrot.lane.b32.xlu0 %v4403, 126
  %v4434 = vpop.permute.xlu0 %4433
  %4435 = vrot.lane.b32.xlu0 %v4395, 126
  %v4436 = vpop.permute.xlu0 %4435
  %4437 = vrot.lane.b32.xlu0 %v4396, 126
  %v4438 = vpop.permute.xlu0 %4437
  %4439 = vrot.lane.b32.xlu0 %v4397, 126
  %v4440 = vpop.permute.xlu0 %4439
  %4441 = vrot.lane.b32.xlu0 %v4404, 126
  %v4442 = vpop.permute.xlu0 %4441
  %v4443 = vsel %vm148, %v4434, %v4436
  %v4444 = vsel %vm148, %v4436, %v4438
  %v4445 = vsel %vm148, %v4438, %v4440
  %v4446 = vsel %vm148, %v4440, %v4442
  %v4451 = vsel %vm134, %v4443, 0.0
  %v4452 = vsel %vm135, %v4444, 0.0
  %v4453 = vsel %vm136, %v4445, 0.0
  %v4454 = vsel %vm137, %v4446, 0.0
  %4455 = vrot.lane.b32.xlu0 %v4403, 112
  %v4456 = vpop.permute.xlu0 %4455
  %4457 = vrot.lane.b32.xlu0 %v4395, 112
  %v4458 = vpop.permute.xlu0 %4457
  %4459 = vrot.lane.b32.xlu0 %v4396, 112
  %v4460 = vpop.permute.xlu0 %4459
  %4461 = vrot.lane.b32.xlu0 %v4397, 112
  %v4462 = vpop.permute.xlu0 %4461
  %4463 = vrot.lane.b32.xlu0 %v4404, 112
  %v4464 = vpop.permute.xlu0 %4463
  %v4465 = vsel %vm179, %v4456, %v4458
  %v4466 = vsel %vm179, %v4458, %v4460
  %v4467 = vsel %vm179, %v4460, %v4462
  %v4468 = vsel %vm179, %v4462, %v4464
  %v4473 = vsel %vm165, %v4465, 0.0
  %v4474 = vsel %vm166, %v4466, 0.0
  %v4475 = vsel %vm167, %v4467, 0.0
  %v4476 = vsel %vm168, %v4468, 0.0
  %4477 = vrot.lane.b32.xlu0 %v4403, 110
  %v4478 = vpop.permute.xlu0 %4477
  %4479 = vrot.lane.b32.xlu0 %v4395, 110
  %v4480 = vpop.permute.xlu0 %4479
  %4481 = vrot.lane.b32.xlu0 %v4396, 110
  %v4482 = vpop.permute.xlu0 %4481
  %4483 = vrot.lane.b32.xlu0 %v4397, 110
  %v4484 = vpop.permute.xlu0 %4483
  %4485 = vrot.lane.b32.xlu0 %v4404, 110
  %v4486 = vpop.permute.xlu0 %4485
  %v4487 = vsel %vm210, %v4478, %v4480
  %v4488 = vsel %vm210, %v4480, %v4482
  %v4489 = vsel %vm210, %v4482, %v4484
  %v4490 = vsel %vm210, %v4484, %v4486
  %v4495 = vsel %vm196, %v4487, 0.0
  %v4496 = vsel %vm197, %v4488, 0.0
  %v4497 = vsel %vm198, %v4489, 0.0
  %v4498 = vsel %vm199, %v4490, 0.0
  %4499 = vrot.lane.b32.xlu0 %v4403, 96
  %v4500 = vpop.permute.xlu0 %4499
  %4501 = vrot.lane.b32.xlu0 %v4395, 96
  %v4502 = vpop.permute.xlu0 %4501
  %4503 = vrot.lane.b32.xlu0 %v4396, 96
  %v4504 = vpop.permute.xlu0 %4503
  %4505 = vrot.lane.b32.xlu0 %v4397, 96
  %v4506 = vpop.permute.xlu0 %4505
  %4507 = vrot.lane.b32.xlu0 %v4404, 96
  %v4508 = vpop.permute.xlu0 %4507
  %v4509 = vsel %vm241, %v4500, %v4502
  %v4510 = vsel %vm241, %v4502, %v4504
  %v4511 = vsel %vm241, %v4504, %v4506
  %v4512 = vsel %vm241, %v4506, %v4508
  %v4517 = vsel %vm227, %v4509, 0.0
  %v4518 = vsel %vm228, %v4510, 0.0
  %v4519 = vsel %vm229, %v4511, 0.0
  %v4520 = vsel %vm230, %v4512, 0.0
  %4521 = vrot.lane.b32.xlu0 %v4403, 95
  %v4522 = vpop.permute.xlu0 %4521
  %4523 = vrot.lane.b32.xlu0 %v4395, 95
  %v4524 = vpop.permute.xlu0 %4523
  %4525 = vrot.lane.b32.xlu0 %v4396, 95
  %v4526 = vpop.permute.xlu0 %4525
  %4527 = vrot.lane.b32.xlu0 %v4397, 95
  %v4528 = vpop.permute.xlu0 %4527
  %4529 = vrot.lane.b32.xlu0 %v4404, 95
  %v4530 = vpop.permute.xlu0 %4529
  %v4531 = vsel %vm272, %v4522, %v4524
  %v4532 = vsel %vm272, %v4524, %v4526
  %v4533 = vsel %vm272, %v4526, %v4528
  %v4534 = vsel %vm272, %v4528, %v4530
  %v4539 = vsel %vm258, %v4531, 0.0
  %v4540 = vsel %vm259, %v4532, 0.0
  %v4541 = vsel %vm260, %v4533, 0.0
  %v4542 = vsel %vm261, %v4534, 0.0
  %4543 = vrot.lane.b32.xlu0 %v4403, 94
  %v4544 = vpop.permute.xlu0 %4543
  %4545 = vrot.lane.b32.xlu0 %v4395, 94
  %v4546 = vpop.permute.xlu0 %4545
  %4547 = vrot.lane.b32.xlu0 %v4396, 94
  %v4548 = vpop.permute.xlu0 %4547
  %4549 = vrot.lane.b32.xlu0 %v4397, 94
  %v4550 = vpop.permute.xlu0 %4549
  %4551 = vrot.lane.b32.xlu0 %v4404, 94
  %v4552 = vpop.permute.xlu0 %4551
  %v4553 = vsel %vm303, %v4544, %v4546
  %v4554 = vsel %vm303, %v4546, %v4548
  %v4555 = vsel %vm303, %v4548, %v4550
  %v4556 = vsel %vm303, %v4550, %v4552
  %v4561 = vsel %vm289, %v4553, 0.0
  %v4562 = vsel %vm290, %v4554, 0.0
  %v4563 = vsel %vm291, %v4555, 0.0
  %v4564 = vsel %vm292, %v4556, 0.0
  %v4569 = vrot.slane %v4429, 4
  %v4570 = vrot.slane %v4430, 4
  %v4571 = vrot.slane %v4431, 4
  %v4572 = vrot.slane %v4432, 4
  %v4581 = vrot.slane %v4473, 4
  %v4582 = vrot.slane %v4474, 4
  %v4583 = vrot.slane %v4475, 4
  %v4584 = vrot.slane %v4476, 4
  %v4593 = vrot.slane %v4495, 4
  %v4594 = vrot.slane %v4496, 4
  %v4595 = vrot.slane %v4497, 4
  %v4596 = vrot.slane %v4498, 4
  %v4605 = vrot.slane %v4539, 4
  %v4606 = vrot.slane %v4540, 4
  %v4607 = vrot.slane %v4541, 4
  %v4608 = vrot.slane %v4542, 4
  %v4613 = vsel %vm366, %v4405, %v4569
  %v4614 = vsel %vm366, %v4406, %v4570
  %v4615 = vsel %vm366, %v4407, %v4571
  %v4616 = vsel %vm366, %v4408, %v4572
  %v4617 = vsel %vm366, %v4451, %v4581
  %v4618 = vsel %vm366, %v4452, %v4582
  %v4619 = vsel %vm366, %v4453, %v4583
  %v4620 = vsel %vm366, %v4454, %v4584
  %v4621 = vsel %vm366, %v4379, %v4593
  %v4622 = vsel %vm366, %v4380, %v4594
  %v4623 = vsel %vm366, %v4381, %v4595
  %v4624 = vsel %vm366, %v4382, %v4596
  %v4625 = vsel %vm366, %v4517, %v4605
  %v4626 = vsel %vm366, %v4518, %v4606
  %v4627 = vsel %vm366, %v4519, %v4607
  %v4628 = vsel %vm366, %v4520, %v4608
  %v4629 = vsel %vm366, %v4561, 1.0
  %v4630 = vsel %vm366, %v4562, 1.0
  %v4631 = vsel %vm366, %v4563, 1.0
  %v4632 = vsel %vm366, %v4564, 1.0
  %s4633 = scalar_lea.vmem %s0, 12
  %v4634 = vld [vmem:[%s4633] sm:$0xf]
  %v4636 = vsel %vm388, %v4634, 0
  %v4639 = vsel %vm392, %v4629, 0
  %v4642 = vsel %vm392, %v4630, 0
  %v4645 = vsel %vm392, %v4631, 0
  %v4648 = vsel %vm392, %v4632, 0
  %4650 = vmatprep.subr.mxu0 0.0
  %4651 = vmatpush1.msra.mxu0 0.0
  %4652 = vmatprep.subr.mxu0 0.0
  %4653 = vmatpush1.msra.mxu0 0.0
  %4654 = vmatprep.subr.mxu0 0.0
  %4655 = vmatpush1.msra.mxu0 0.0
  %4656 = vmatprep.subr.mxu0 0.0
  %4657 = vmatpush1.msra.mxu0 0.0
  %4658 = vmatprep.subr.mxu0 0.0
  %4659 = vmatpush1.msra.mxu0 0.0
  %4660 = vmatprep.subr.mxu0 0.0
  %4661 = vmatpush1.msra.mxu0 0.0
  %4662 = vmatprep.subr.mxu0 0.0
  %4663 = vmatpush1.msra.mxu0 0.0
  %4664 = vmatprep.subr.mxu0 0.0
  %4665 = vmatpush1.msra.mxu0 0.0
  %4666 = vmatprep.subr.mxu0 0.0
  %4667 = vmatpush1.msra.mxu0 0.0
  %4668 = vmatprep.subr.mxu0 0.0
  %4669 = vmatpush1.msra.mxu0 0.0
  %4670 = vmatprep.subr.mxu0 0.0
  %4671 = vmatpush1.msra.mxu0 0.0
  %v4672 = vand.u32 %v4642, 4294901760
  %4673 = vmatprep.subr.mxu0 %v4672
  %v4674 = vand.u32 %v4639, 4294901760
  %4675 = vmatpush1.msra.mxu0 %v4674
  %v4676 = vand.u32 %v4626, 4294901760
  %4677 = vmatprep.subr.mxu0 %v4676
  %v4678 = vand.u32 %v4625, 4294901760
  %4679 = vmatpush1.msra.mxu0 %v4678
  %v4680 = vand.u32 %v4622, 4294901760
  %4681 = vmatprep.subr.mxu0 %v4680
  %v4682 = vand.u32 %v4621, 4294901760
  %4683 = vmatpush1.msra.mxu0 %v4682
  %v4684 = vand.u32 %v4618, 4294901760
  %4685 = vmatprep.subr.mxu0 %v4684
  %v4686 = vand.u32 %v4617, 4294901760
  %4687 = vmatpush1.msra.mxu0 %v4686
  %v4688 = vand.u32 %v4614, 4294901760
  %4689 = vmatprep.subr.mxu0 %v4688
  %v4690 = vand.u32 %v4613, 4294901760
  %4691 = vmatpush1.msra.mxu0 %v4690
  %4692 = vmatprep.subr.mxu0 0.0
  %4693 = vmatpush2.msra.mxu0 0.0
  %4694 = vmatprep.subr.mxu0 0.0
  %4695 = vmatpush2.msra.mxu0 0.0
  %4696 = vmatprep.subr.mxu0 0.0
  %4697 = vmatpush2.msra.mxu0 0.0
  %4698 = vmatprep.subr.mxu0 0.0
  %4699 = vmatpush2.msra.mxu0 0.0
  %4700 = vmatprep.subr.mxu0 0.0
  %4701 = vmatpush2.msra.mxu0 0.0
  %4702 = vmatprep.subr.mxu0 0.0
  %4703 = vmatpush2.msra.mxu0 0.0
  %4704 = vmatprep.subr.mxu0 0.0
  %4705 = vmatpush2.msra.mxu0 0.0
  %4706 = vmatprep.subr.mxu0 0.0
  %4707 = vmatpush2.msra.mxu0 0.0
  %4708 = vmatprep.subr.mxu0 0.0
  %4709 = vmatpush2.msra.mxu0 0.0
  %4710 = vmatprep.subr.mxu0 0.0
  %4711 = vmatpush2.msra.mxu0 0.0
  %4712 = vmatprep.subr.mxu0 0.0
  %4713 = vmatpush2.msra.mxu0 0.0
  %4714 = vmatprep.subr.mxu0 0.0
  %4715 = vmatpush2.msra.mxu0 0.0
  %4716 = vmatprep.subr.mxu0 0.0
  %4717 = vmatpush2.msra.mxu0 0.0
  %4718 = vmatprep.subr.mxu0 0.0
  %4719 = vmatpush2.msra.mxu0 0.0
  %4720 = vmatprep.subr.mxu0 0.0
  %4721 = vmatpush2.msra.mxu0 0.0
  %4722 = vmatprep.subr.mxu0 0.0
  %4723 = vmatpush2.msra.mxu0 0.0
  %4724 = vmatprep.mubr.f32.mxu0 0.0
  %v4725 = vand.u32 %v4636, 4294901760
  %v4726 = vsub.f32 %v4636, %v4725
  %v4727 = vand.u32 %v4726, 4294901760
  %v4728 = vsub.f32 %v4726, %v4727
  %v4729 = vand.u32 %v4728, 4294901760
  %4730 = vmatmul.mubr.f32.gmra.mxu0 %v4729
  %v4731 = vpop.f32.mrf.mxu0
  %v4732 = vadd.f32 0.0, %v4731
  %v4733 = vpop.f32.mrf.mxu0
  %v4734 = vadd.f32 0.0, %v4733
  %4735 = vdwg.mxu0
  %4736 = vmatprep.subr.mxu0 0.0
  %4737 = vmatpush1.msra.mxu0 0.0
  %4738 = vmatprep.subr.mxu0 0.0
  %4739 = vmatpush1.msra.mxu0 0.0
  %4740 = vmatprep.subr.mxu0 0.0
  %4741 = vmatpush1.msra.mxu0 0.0
  %4742 = vmatprep.subr.mxu0 0.0
  %4743 = vmatpush1.msra.mxu0 0.0
  %4744 = vmatprep.subr.mxu0 0.0
  %4745 = vmatpush1.msra.mxu0 0.0
  %4746 = vmatprep.subr.mxu0 0.0
  %4747 = vmatpush1.msra.mxu0 0.0
  %4748 = vmatprep.subr.mxu0 0.0
  %4749 = vmatpush1.msra.mxu0 0.0
  %4750 = vmatprep.subr.mxu0 0.0
  %4751 = vmatpush1.msra.mxu0 0.0
  %4752 = vmatprep.subr.mxu0 0.0
  %4753 = vmatpush1.msra.mxu0 0.0
  %4754 = vmatprep.subr.mxu0 0.0
  %4755 = vmatpush1.msra.mxu0 0.0
  %4756 = vmatprep.subr.mxu0 0.0
  %4757 = vmatpush1.msra.mxu0 0.0
  %v4758 = vand.u32 %v4642, 4294901760
  %v4759 = vsub.f32 %v4642, %v4758
  %v4760 = vand.u32 %v4759, 4294901760
  %v4761 = vsub.f32 %v4759, %v4760
  %v4762 = vand.u32 %v4761, 4294901760
  %4763 = vmatprep.subr.mxu0 %v4762
  %v4764 = vand.u32 %v4639, 4294901760
  %v4765 = vsub.f32 %v4639, %v4764
  %v4766 = vand.u32 %v4765, 4294901760
  %v4767 = vsub.f32 %v4765, %v4766
  %v4768 = vand.u32 %v4767, 4294901760
  %4769 = vmatpush1.msra.mxu0 %v4768
  %v4770 = vand.u32 %v4626, 4294901760
  %v4771 = vsub.f32 %v4626, %v4770
  %v4772 = vand.u32 %v4771, 4294901760
  %v4773 = vsub.f32 %v4771, %v4772
  %v4774 = vand.u32 %v4773, 4294901760
  %4775 = vmatprep.subr.mxu0 %v4774
  %v4776 = vand.u32 %v4625, 4294901760
  %v4777 = vsub.f32 %v4625, %v4776
  %v4778 = vand.u32 %v4777, 4294901760
  %v4779 = vsub.f32 %v4777, %v4778
  %v4780 = vand.u32 %v4779, 4294901760
  %4781 = vmatpush1.msra.mxu0 %v4780
  %v4782 = vand.u32 %v4622, 4294901760
  %v4783 = vsub.f32 %v4622, %v4782
  %v4784 = vand.u32 %v4783, 4294901760
  %v4785 = vsub.f32 %v4783, %v4784
  %v4786 = vand.u32 %v4785, 4294901760
  %4787 = vmatprep.subr.mxu0 %v4786
  %v4788 = vand.u32 %v4621, 4294901760
  %v4789 = vsub.f32 %v4621, %v4788
  %v4790 = vand.u32 %v4789, 4294901760
  %v4791 = vsub.f32 %v4789, %v4790
  %v4792 = vand.u32 %v4791, 4294901760
  %4793 = vmatpush1.msra.mxu0 %v4792
  %v4794 = vand.u32 %v4618, 4294901760
  %v4795 = vsub.f32 %v4618, %v4794
  %v4796 = vand.u32 %v4795, 4294901760
  %v4797 = vsub.f32 %v4795, %v4796
  %v4798 = vand.u32 %v4797, 4294901760
  %4799 = vmatprep.subr.mxu0 %v4798
  %v4800 = vand.u32 %v4617, 4294901760
  %v4801 = vsub.f32 %v4617, %v4800
  %v4802 = vand.u32 %v4801, 4294901760
  %v4803 = vsub.f32 %v4801, %v4802
  %v4804 = vand.u32 %v4803, 4294901760
  %4805 = vmatpush1.msra.mxu0 %v4804
  %v4806 = vand.u32 %v4614, 4294901760
  %v4807 = vsub.f32 %v4614, %v4806
  %v4808 = vand.u32 %v4807, 4294901760
  %v4809 = vsub.f32 %v4807, %v4808
  %v4810 = vand.u32 %v4809, 4294901760
  %4811 = vmatprep.subr.mxu0 %v4810
  %v4812 = vand.u32 %v4613, 4294901760
  %v4813 = vsub.f32 %v4613, %v4812
  %v4814 = vand.u32 %v4813, 4294901760
  %v4815 = vsub.f32 %v4813, %v4814
  %v4816 = vand.u32 %v4815, 4294901760
  %4817 = vmatpush1.msra.mxu0 %v4816
  %4818 = vmatprep.subr.mxu0 0.0
  %4819 = vmatpush2.msra.mxu0 0.0
  %4820 = vmatprep.subr.mxu0 0.0
  %4821 = vmatpush2.msra.mxu0 0.0
  %4822 = vmatprep.subr.mxu0 0.0
  %4823 = vmatpush2.msra.mxu0 0.0
  %4824 = vmatprep.subr.mxu0 0.0
  %4825 = vmatpush2.msra.mxu0 0.0
  %4826 = vmatprep.subr.mxu0 0.0
  %4827 = vmatpush2.msra.mxu0 0.0
  %4828 = vmatprep.subr.mxu0 0.0
  %4829 = vmatpush2.msra.mxu0 0.0
  %4830 = vmatprep.subr.mxu0 0.0
  %4831 = vmatpush2.msra.mxu0 0.0
  %4832 = vmatprep.subr.mxu0 0.0
  %4833 = vmatpush2.msra.mxu0 0.0
  %4834 = vmatprep.subr.mxu0 0.0
  %4835 = vmatpush2.msra.mxu0 0.0
  %4836 = vmatprep.subr.mxu0 0.0
  %4837 = vmatpush2.msra.mxu0 0.0
  %4838 = vmatprep.subr.mxu0 0.0
  %4839 = vmatpush2.msra.mxu0 0.0
  %4840 = vmatprep.subr.mxu0 0.0
  %4841 = vmatpush2.msra.mxu0 0.0
  %4842 = vmatprep.subr.mxu0 0.0
  %4843 = vmatpush2.msra.mxu0 0.0
  %4844 = vmatprep.subr.mxu0 0.0
  %4845 = vmatpush2.msra.mxu0 0.0
  %4846 = vmatprep.subr.mxu0 0.0
  %4847 = vmatpush2.msra.mxu0 0.0
  %4848 = vmatprep.subr.mxu0 0.0
  %4849 = vmatpush2.msra.mxu0 0.0
  %4850 = vmatprep.mubr.f32.mxu0 0.0
  %v4851 = vand.u32 %v4636, 4294901760
  %4852 = vmatmul.mubr.f32.gmra.mxu0 %v4851
  %v4853 = vpop.f32.mrf.mxu0
  %v4854 = vadd.f32 %v4732, %v4853
  %v4855 = vpop.f32.mrf.mxu0
  %v4856 = vadd.f32 %v4734, %v4855
  %4857 = vdwg.mxu0
  %4858 = vmatprep.subr.mxu0 0.0
  %4859 = vmatpush1.msra.mxu0 0.0
  %4860 = vmatprep.subr.mxu0 0.0
  %4861 = vmatpush1.msra.mxu0 0.0
  %4862 = vmatprep.subr.mxu0 0.0
  %4863 = vmatpush1.msra.mxu0 0.0
  %4864 = vmatprep.subr.mxu0 0.0
  %4865 = vmatpush1.msra.mxu0 0.0
  %4866 = vmatprep.subr.mxu0 0.0
  %4867 = vmatpush1.msra.mxu0 0.0
  %4868 = vmatprep.subr.mxu0 0.0
  %4869 = vmatpush1.msra.mxu0 0.0
  %4870 = vmatprep.subr.mxu0 0.0
  %4871 = vmatpush1.msra.mxu0 0.0
  %4872 = vmatprep.subr.mxu0 0.0
  %4873 = vmatpush1.msra.mxu0 0.0
  %4874 = vmatprep.subr.mxu0 0.0
  %4875 = vmatpush1.msra.mxu0 0.0
  %4876 = vmatprep.subr.mxu0 0.0
  %4877 = vmatpush1.msra.mxu0 0.0
  %4878 = vmatprep.subr.mxu0 0.0
  %4879 = vmatpush1.msra.mxu0 0.0
  %v4880 = vand.u32 %v4642, 4294901760
  %v4881 = vsub.f32 %v4642, %v4880
  %4882 = vmatprep.subr.mxu0 %v4881
  %v4883 = vand.u32 %v4639, 4294901760
  %v4884 = vsub.f32 %v4639, %v4883
  %4885 = vmatpush1.msra.mxu0 %v4884
  %v4886 = vand.u32 %v4626, 4294901760
  %v4887 = vsub.f32 %v4626, %v4886
  %4888 = vmatprep.subr.mxu0 %v4887
  %v4889 = vand.u32 %v4625, 4294901760
  %v4890 = vsub.f32 %v4625, %v4889
  %4891 = vmatpush1.msra.mxu0 %v4890
  %v4892 = vand.u32 %v4622, 4294901760
  %v4893 = vsub.f32 %v4622, %v4892
  %4894 = vmatprep.subr.mxu0 %v4893
  %v4895 = vand.u32 %v4621, 4294901760
  %v4896 = vsub.f32 %v4621, %v4895
  %4897 = vmatpush1.msra.mxu0 %v4896
  %v4898 = vand.u32 %v4618, 4294901760
  %v4899 = vsub.f32 %v4618, %v4898
  %4900 = vmatprep.subr.mxu0 %v4899
  %v4901 = vand.u32 %v4617, 4294901760
  %v4902 = vsub.f32 %v4617, %v4901
  %4903 = vmatpush1.msra.mxu0 %v4902
  %v4904 = vand.u32 %v4614, 4294901760
  %v4905 = vsub.f32 %v4614, %v4904
  %4906 = vmatprep.subr.mxu0 %v4905
  %v4907 = vand.u32 %v4613, 4294901760
  %v4908 = vsub.f32 %v4613, %v4907
  %4909 = vmatpush1.msra.mxu0 %v4908
  %4910 = vmatprep.subr.mxu0 0.0
  %4911 = vmatpush2.msra.mxu0 0.0
  %4912 = vmatprep.subr.mxu0 0.0
  %4913 = vmatpush2.msra.mxu0 0.0
  %4914 = vmatprep.subr.mxu0 0.0
  %4915 = vmatpush2.msra.mxu0 0.0
  %4916 = vmatprep.subr.mxu0 0.0
  %4917 = vmatpush2.msra.mxu0 0.0
  %4918 = vmatprep.subr.mxu0 0.0
  %4919 = vmatpush2.msra.mxu0 0.0
  %4920 = vmatprep.subr.mxu0 0.0
  %4921 = vmatpush2.msra.mxu0 0.0
  %4922 = vmatprep.subr.mxu0 0.0
  %4923 = vmatpush2.msra.mxu0 0.0
  %4924 = vmatprep.subr.mxu0 0.0
  %4925 = vmatpush2.msra.mxu0 0.0
  %4926 = vmatprep.subr.mxu0 0.0
  %4927 = vmatpush2.msra.mxu0 0.0
  %4928 = vmatprep.subr.mxu0 0.0
  %4929 = vmatpush2.msra.mxu0 0.0
  %4930 = vmatprep.subr.mxu0 0.0
  %4931 = vmatpush2.msra.mxu0 0.0
  %4932 = vmatprep.subr.mxu0 0.0
  %4933 = vmatpush2.msra.mxu0 0.0
  %4934 = vmatprep.subr.mxu0 0.0
  %4935 = vmatpush2.msra.mxu0 0.0
  %4936 = vmatprep.subr.mxu0 0.0
  %4937 = vmatpush2.msra.mxu0 0.0
  %4938 = vmatprep.subr.mxu0 0.0
  %4939 = vmatpush2.msra.mxu0 0.0
  %4940 = vmatprep.subr.mxu0 0.0
  %4941 = vmatpush2.msra.mxu0 0.0
  %4942 = vmatprep.mubr.f32.mxu0 0.0
  %v4943 = vand.u32 %v4636, 4294901760
  %v4944 = vsub.f32 %v4636, %v4943
  %4945 = vmatmul.mubr.f32.gmra.mxu0 %v4944
  %v4946 = vpop.f32.mrf.mxu0
  %v4947 = vadd.f32 %v4854, %v4946
  %v4948 = vpop.f32.mrf.mxu0
  %v4949 = vadd.f32 %v4856, %v4948
  %4950 = vdwg.mxu0
  %4951 = vmatprep.subr.mxu0 0.0
  %4952 = vmatpush1.msra.mxu0 0.0
  %4953 = vmatprep.subr.mxu0 0.0
  %4954 = vmatpush1.msra.mxu0 0.0
  %4955 = vmatprep.subr.mxu0 0.0
  %4956 = vmatpush1.msra.mxu0 0.0
  %4957 = vmatprep.subr.mxu0 0.0
  %4958 = vmatpush1.msra.mxu0 0.0
  %4959 = vmatprep.subr.mxu0 0.0
  %4960 = vmatpush1.msra.mxu0 0.0
  %4961 = vmatprep.subr.mxu0 0.0
  %4962 = vmatpush1.msra.mxu0 0.0
  %4963 = vmatprep.subr.mxu0 0.0
  %4964 = vmatpush1.msra.mxu0 0.0
  %4965 = vmatprep.subr.mxu0 0.0
  %4966 = vmatpush1.msra.mxu0 0.0
  %4967 = vmatprep.subr.mxu0 0.0
  %4968 = vmatpush1.msra.mxu0 0.0
  %4969 = vmatprep.subr.mxu0 0.0
  %4970 = vmatpush1.msra.mxu0 0.0
  %4971 = vmatprep.subr.mxu0 0.0
  %4972 = vmatpush1.msra.mxu0 0.0
  %v4973 = vand.u32 %v4642, 4294901760
  %4974 = vmatprep.subr.mxu0 %v4973
  %v4975 = vand.u32 %v4639, 4294901760
  %4976 = vmatpush1.msra.mxu0 %v4975
  %v4977 = vand.u32 %v4626, 4294901760
  %4978 = vmatprep.subr.mxu0 %v4977
  %v4979 = vand.u32 %v4625, 4294901760
  %4980 = vmatpush1.msra.mxu0 %v4979
  %v4981 = vand.u32 %v4622, 4294901760
  %4982 = vmatprep.subr.mxu0 %v4981
  %v4983 = vand.u32 %v4621, 4294901760
  %4984 = vmatpush1.msra.mxu0 %v4983
  %v4985 = vand.u32 %v4618, 4294901760
  %4986 = vmatprep.subr.mxu0 %v4985
  %v4987 = vand.u32 %v4617, 4294901760
  %4988 = vmatpush1.msra.mxu0 %v4987
  %v4989 = vand.u32 %v4614, 4294901760
  %4990 = vmatprep.subr.mxu0 %v4989
  %v4991 = vand.u32 %v4613, 4294901760
  %4992 = vmatpush1.msra.mxu0 %v4991
  %4993 = vmatprep.subr.mxu0 0.0
  %4994 = vmatpush2.msra.mxu0 0.0
  %4995 = vmatprep.subr.mxu0 0.0
  %4996 = vmatpush2.msra.mxu0 0.0
  %4997 = vmatprep.subr.mxu0 0.0
  %4998 = vmatpush2.msra.mxu0 0.0
  %4999 = vmatprep.subr.mxu0 0.0
  %5000 = vmatpush2.msra.mxu0 0.0
  %5001 = vmatprep.subr.mxu0 0.0
  %5002 = vmatpush2.msra.mxu0 0.0
  %5003 = vmatprep.subr.mxu0 0.0
  %5004 = vmatpush2.msra.mxu0 0.0
  %5005 = vmatprep.subr.mxu0 0.0
  %5006 = vmatpush2.msra.mxu0 0.0
  %5007 = vmatprep.subr.mxu0 0.0
  %5008 = vmatpush2.msra.mxu0 0.0
  %5009 = vmatprep.subr.mxu0 0.0
  %5010 = vmatpush2.msra.mxu0 0.0
  %5011 = vmatprep.subr.mxu0 0.0
  %5012 = vmatpush2.msra.mxu0 0.0
  %5013 = vmatprep.subr.mxu0 0.0
  %5014 = vmatpush2.msra.mxu0 0.0
  %5015 = vmatprep.subr.mxu0 0.0
  %5016 = vmatpush2.msra.mxu0 0.0
  %5017 = vmatprep.subr.mxu0 0.0
  %5018 = vmatpush2.msra.mxu0 0.0
  %5019 = vmatprep.subr.mxu0 0.0
  %5020 = vmatpush2.msra.mxu0 0.0
  %5021 = vmatprep.subr.mxu0 0.0
  %5022 = vmatpush2.msra.mxu0 0.0
  %5023 = vmatprep.subr.mxu0 0.0
  %5024 = vmatpush2.msra.mxu0 0.0
  %5025 = vmatprep.mubr.f32.mxu0 0.0
  %v5026 = vand.u32 %v4636, 4294901760
  %v5027 = vsub.f32 %v4636, %v5026
  %v5028 = vand.u32 %v5027, 4294901760
  %5029 = vmatmul.mubr.f32.gmra.mxu0 %v5028
  %v5030 = vpop.f32.mrf.mxu0
  %v5031 = vadd.f32 %v4947, %v5030
  %v5032 = vpop.f32.mrf.mxu0
  %v5033 = vadd.f32 %v4949, %v5032
  %5034 = vdwg.mxu0
  %5035 = vmatprep.subr.mxu0 0.0
  %5036 = vmatpush1.msra.mxu0 0.0
  %5037 = vmatprep.subr.mxu0 0.0
  %5038 = vmatpush1.msra.mxu0 0.0
  %5039 = vmatprep.subr.mxu0 0.0
  %5040 = vmatpush1.msra.mxu0 0.0
  %5041 = vmatprep.subr.mxu0 0.0
  %5042 = vmatpush1.msra.mxu0 0.0
  %5043 = vmatprep.subr.mxu0 0.0
  %5044 = vmatpush1.msra.mxu0 0.0
  %5045 = vmatprep.subr.mxu0 0.0
  %5046 = vmatpush1.msra.mxu0 0.0
  %5047 = vmatprep.subr.mxu0 0.0
  %5048 = vmatpush1.msra.mxu0 0.0
  %5049 = vmatprep.subr.mxu0 0.0
  %5050 = vmatpush1.msra.mxu0 0.0
  %5051 = vmatprep.subr.mxu0 0.0
  %5052 = vmatpush1.msra.mxu0 0.0
  %5053 = vmatprep.subr.mxu0 0.0
  %5054 = vmatpush1.msra.mxu0 0.0
  %5055 = vmatprep.subr.mxu0 0.0
  %5056 = vmatpush1.msra.mxu0 0.0
  %v5057 = vand.u32 %v4642, 4294901760
  %v5058 = vsub.f32 %v4642, %v5057
  %v5059 = vand.u32 %v5058, 4294901760
  %5060 = vmatprep.subr.mxu0 %v5059
  %v5061 = vand.u32 %v4639, 4294901760
  %v5062 = vsub.f32 %v4639, %v5061
  %v5063 = vand.u32 %v5062, 4294901760
  %5064 = vmatpush1.msra.mxu0 %v5063
  %v5065 = vand.u32 %v4626, 4294901760
  %v5066 = vsub.f32 %v4626, %v5065
  %v5067 = vand.u32 %v5066, 4294901760
  %5068 = vmatprep.subr.mxu0 %v5067
  %v5069 = vand.u32 %v4625, 4294901760
  %v5070 = vsub.f32 %v4625, %v5069
  %v5071 = vand.u32 %v5070, 4294901760
  %5072 = vmatpush1.msra.mxu0 %v5071
  %v5073 = vand.u32 %v4622, 4294901760
  %v5074 = vsub.f32 %v4622, %v5073
  %v5075 = vand.u32 %v5074, 4294901760
  %5076 = vmatprep.subr.mxu0 %v5075
  %v5077 = vand.u32 %v4621, 4294901760
  %v5078 = vsub.f32 %v4621, %v5077
  %v5079 = vand.u32 %v5078, 4294901760
  %5080 = vmatpush1.msra.mxu0 %v5079
  %v5081 = vand.u32 %v4618, 4294901760
  %v5082 = vsub.f32 %v4618, %v5081
  %v5083 = vand.u32 %v5082, 4294901760
  %5084 = vmatprep.subr.mxu0 %v5083
  %v5085 = vand.u32 %v4617, 4294901760
  %v5086 = vsub.f32 %v4617, %v5085
  %v5087 = vand.u32 %v5086, 4294901760
  %5088 = vmatpush1.msra.mxu0 %v5087
  %v5089 = vand.u32 %v4614, 4294901760
  %v5090 = vsub.f32 %v4614, %v5089
  %v5091 = vand.u32 %v5090, 4294901760
  %5092 = vmatprep.subr.mxu0 %v5091
  %v5093 = vand.u32 %v4613, 4294901760
  %v5094 = vsub.f32 %v4613, %v5093
  %v5095 = vand.u32 %v5094, 4294901760
  %5096 = vmatpush1.msra.mxu0 %v5095
  %5097 = vmatprep.subr.mxu0 0.0
  %5098 = vmatpush2.msra.mxu0 0.0
  %5099 = vmatprep.subr.mxu0 0.0
  %5100 = vmatpush2.msra.mxu0 0.0
  %5101 = vmatprep.subr.mxu0 0.0
  %5102 = vmatpush2.msra.mxu0 0.0
  %5103 = vmatprep.subr.mxu0 0.0
  %5104 = vmatpush2.msra.mxu0 0.0
  %5105 = vmatprep.subr.mxu0 0.0
  %5106 = vmatpush2.msra.mxu0 0.0
  %5107 = vmatprep.subr.mxu0 0.0
  %5108 = vmatpush2.msra.mxu0 0.0
  %5109 = vmatprep.subr.mxu0 0.0
  %5110 = vmatpush2.msra.mxu0 0.0
  %5111 = vmatprep.subr.mxu0 0.0
  %5112 = vmatpush2.msra.mxu0 0.0
  %5113 = vmatprep.subr.mxu0 0.0
  %5114 = vmatpush2.msra.mxu0 0.0
  %5115 = vmatprep.subr.mxu0 0.0
  %5116 = vmatpush2.msra.mxu0 0.0
  %5117 = vmatprep.subr.mxu0 0.0
  %5118 = vmatpush2.msra.mxu0 0.0
  %5119 = vmatprep.subr.mxu0 0.0
  %5120 = vmatpush2.msra.mxu0 0.0
  %5121 = vmatprep.subr.mxu0 0.0
  %5122 = vmatpush2.msra.mxu0 0.0
  %5123 = vmatprep.subr.mxu0 0.0
  %5124 = vmatpush2.msra.mxu0 0.0
  %5125 = vmatprep.subr.mxu0 0.0
  %5126 = vmatpush2.msra.mxu0 0.0
  %5127 = vmatprep.subr.mxu0 0.0
  %5128 = vmatpush2.msra.mxu0 0.0
  %5129 = vmatprep.mubr.f32.mxu0 0.0
  %v5130 = vand.u32 %v4636, 4294901760
  %5131 = vmatmul.mubr.f32.gmra.mxu0 %v5130
  %v5132 = vpop.f32.mrf.mxu0
  %v5133 = vadd.f32 %v5031, %v5132
  %v5134 = vpop.f32.mrf.mxu0
  %v5135 = vadd.f32 %v5033, %v5134
  %5136 = vdwg.mxu0
  %5137 = vmatprep.subr.mxu0 0.0
  %5138 = vmatpush1.msra.mxu0 0.0
  %5139 = vmatprep.subr.mxu0 0.0
  %5140 = vmatpush1.msra.mxu0 0.0
  %5141 = vmatprep.subr.mxu0 0.0
  %5142 = vmatpush1.msra.mxu0 0.0
  %5143 = vmatprep.subr.mxu0 0.0
  %5144 = vmatpush1.msra.mxu0 0.0
  %5145 = vmatprep.subr.mxu0 0.0
  %5146 = vmatpush1.msra.mxu0 0.0
  %5147 = vmatprep.subr.mxu0 0.0
  %5148 = vmatpush1.msra.mxu0 0.0
  %5149 = vmatprep.subr.mxu0 0.0
  %5150 = vmatpush1.msra.mxu0 0.0
  %5151 = vmatprep.subr.mxu0 0.0
  %5152 = vmatpush1.msra.mxu0 0.0
  %5153 = vmatprep.subr.mxu0 0.0
  %5154 = vmatpush1.msra.mxu0 0.0
  %5155 = vmatprep.subr.mxu0 0.0
  %5156 = vmatpush1.msra.mxu0 0.0
  %5157 = vmatprep.subr.mxu0 0.0
  %5158 = vmatpush1.msra.mxu0 0.0
  %v5159 = vand.u32 %v4642, 4294901760
  %5160 = vmatprep.subr.mxu0 %v5159
  %v5161 = vand.u32 %v4639, 4294901760
  %5162 = vmatpush1.msra.mxu0 %v5161
  %v5163 = vand.u32 %v4626, 4294901760
  %5164 = vmatprep.subr.mxu0 %v5163
  %v5165 = vand.u32 %v4625, 4294901760
  %5166 = vmatpush1.msra.mxu0 %v5165
  %v5167 = vand.u32 %v4622, 4294901760
  %5168 = vmatprep.subr.mxu0 %v5167
  %v5169 = vand.u32 %v4621, 4294901760
  %5170 = vmatpush1.msra.mxu0 %v5169
  %v5171 = vand.u32 %v4618, 4294901760
  %5172 = vmatprep.subr.mxu0 %v5171
  %v5173 = vand.u32 %v4617, 4294901760
  %5174 = vmatpush1.msra.mxu0 %v5173
  %v5175 = vand.u32 %v4614, 4294901760
  %5176 = vmatprep.subr.mxu0 %v5175
  %v5177 = vand.u32 %v4613, 4294901760
  %5178 = vmatpush1.msra.mxu0 %v5177
  %5179 = vmatprep.subr.mxu0 0.0
  %5180 = vmatpush2.msra.mxu0 0.0
  %5181 = vmatprep.subr.mxu0 0.0
  %5182 = vmatpush2.msra.mxu0 0.0
  %5183 = vmatprep.subr.mxu0 0.0
  %5184 = vmatpush2.msra.mxu0 0.0
  %5185 = vmatprep.subr.mxu0 0.0
  %5186 = vmatpush2.msra.mxu0 0.0
  %5187 = vmatprep.subr.mxu0 0.0
  %5188 = vmatpush2.msra.mxu0 0.0
  %5189 = vmatprep.subr.mxu0 0.0
  %5190 = vmatpush2.msra.mxu0 0.0
  %5191 = vmatprep.subr.mxu0 0.0
  %5192 = vmatpush2.msra.mxu0 0.0
  %5193 = vmatprep.subr.mxu0 0.0
  %5194 = vmatpush2.msra.mxu0 0.0
  %5195 = vmatprep.subr.mxu0 0.0
  %5196 = vmatpush2.msra.mxu0 0.0
  %5197 = vmatprep.subr.mxu0 0.0
  %5198 = vmatpush2.msra.mxu0 0.0
  %5199 = vmatprep.subr.mxu0 0.0
  %5200 = vmatpush2.msra.mxu0 0.0
  %5201 = vmatprep.subr.mxu0 0.0
  %5202 = vmatpush2.msra.mxu0 0.0
  %5203 = vmatprep.subr.mxu0 0.0
  %5204 = vmatpush2.msra.mxu0 0.0
  %5205 = vmatprep.subr.mxu0 0.0
  %5206 = vmatpush2.msra.mxu0 0.0
  %5207 = vmatprep.subr.mxu0 0.0
  %5208 = vmatpush2.msra.mxu0 0.0
  %5209 = vmatprep.subr.mxu0 0.0
  %5210 = vmatpush2.msra.mxu0 0.0
  %5211 = vmatprep.mubr.f32.mxu0 0.0
  %v5212 = vand.u32 %v4636, 4294901760
  %5213 = vmatmul.mubr.f32.gmra.mxu0 %v5212
  %v5214 = vpop.f32.mrf.mxu0
  %v5215 = vadd.f32 %v5133, %v5214
  %v5216 = vpop.f32.mrf.mxu0
  %v5217 = vadd.f32 %v5135, %v5216
  %5218 = vdwg.mxu0
  %5219 = vmatprep.subr.mxu0 0.0
  %5220 = vmatpush1.msra.mxu0 0.0
  %5221 = vmatprep.subr.mxu0 0.0
  %5222 = vmatpush1.msra.mxu0 0.0
  %5223 = vmatprep.subr.mxu0 0.0
  %5224 = vmatpush1.msra.mxu0 0.0
  %5225 = vmatprep.subr.mxu0 0.0
  %5226 = vmatpush1.msra.mxu0 0.0
  %5227 = vmatprep.subr.mxu0 0.0
  %5228 = vmatpush1.msra.mxu0 0.0
  %5229 = vmatprep.subr.mxu0 0.0
  %5230 = vmatpush1.msra.mxu0 0.0
  %5231 = vmatprep.subr.mxu0 0.0
  %5232 = vmatpush1.msra.mxu0 0.0
  %5233 = vmatprep.subr.mxu0 0.0
  %5234 = vmatpush1.msra.mxu0 0.0
  %5235 = vmatprep.subr.mxu0 0.0
  %5236 = vmatpush1.msra.mxu0 0.0
  %5237 = vmatprep.subr.mxu0 0.0
  %5238 = vmatpush1.msra.mxu0 0.0
  %5239 = vmatprep.subr.mxu0 0.0
  %5240 = vmatpush1.msra.mxu0 0.0
  %v5241 = vand.u32 %v4648, 4294901760
  %5242 = vmatprep.subr.mxu0 %v5241
  %v5243 = vand.u32 %v4645, 4294901760
  %5244 = vmatpush1.msra.mxu0 %v5243
  %v5245 = vand.u32 %v4628, 4294901760
  %5246 = vmatprep.subr.mxu0 %v5245
  %v5247 = vand.u32 %v4627, 4294901760
  %5248 = vmatpush1.msra.mxu0 %v5247
  %v5249 = vand.u32 %v4624, 4294901760
  %5250 = vmatprep.subr.mxu0 %v5249
  %v5251 = vand.u32 %v4623, 4294901760
  %5252 = vmatpush1.msra.mxu0 %v5251
  %v5253 = vand.u32 %v4620, 4294901760
  %5254 = vmatprep.subr.mxu0 %v5253
  %v5255 = vand.u32 %v4619, 4294901760
  %5256 = vmatpush1.msra.mxu0 %v5255
  %v5257 = vand.u32 %v4616, 4294901760
  %5258 = vmatprep.subr.mxu0 %v5257
  %v5259 = vand.u32 %v4615, 4294901760
  %5260 = vmatpush1.msra.mxu0 %v5259
  %5261 = vmatprep.subr.mxu0 0.0
  %5262 = vmatpush2.msra.mxu0 0.0
  %5263 = vmatprep.subr.mxu0 0.0
  %5264 = vmatpush2.msra.mxu0 0.0
  %5265 = vmatprep.subr.mxu0 0.0
  %5266 = vmatpush2.msra.mxu0 0.0
  %5267 = vmatprep.subr.mxu0 0.0
  %5268 = vmatpush2.msra.mxu0 0.0
  %5269 = vmatprep.subr.mxu0 0.0
  %5270 = vmatpush2.msra.mxu0 0.0
  %5271 = vmatprep.subr.mxu0 0.0
  %5272 = vmatpush2.msra.mxu0 0.0
  %5273 = vmatprep.subr.mxu0 0.0
  %5274 = vmatpush2.msra.mxu0 0.0
  %5275 = vmatprep.subr.mxu0 0.0
  %5276 = vmatpush2.msra.mxu0 0.0
  %5277 = vmatprep.subr.mxu0 0.0
  %5278 = vmatpush2.msra.mxu0 0.0
  %5279 = vmatprep.subr.mxu0 0.0
  %5280 = vmatpush2.msra.mxu0 0.0
  %5281 = vmatprep.subr.mxu0 0.0
  %5282 = vmatpush2.msra.mxu0 0.0
  %5283 = vmatprep.subr.mxu0 0.0
  %5284 = vmatpush2.msra.mxu0 0.0
  %5285 = vmatprep.subr.mxu0 0.0
  %5286 = vmatpush2.msra.mxu0 0.0
  %5287 = vmatprep.subr.mxu0 0.0
  %5288 = vmatpush2.msra.mxu0 0.0
  %5289 = vmatprep.subr.mxu0 0.0
  %5290 = vmatpush2.msra.mxu0 0.0
  %5291 = vmatprep.subr.mxu0 0.0
  %5292 = vmatpush2.msra.mxu0 0.0
  %5293 = vmatprep.mubr.f32.mxu0 0.0
  %v5294 = vand.u32 %v4636, 4294901760
  %v5295 = vsub.f32 %v4636, %v5294
  %v5296 = vand.u32 %v5295, 4294901760
  %v5297 = vsub.f32 %v5295, %v5296
  %v5298 = vand.u32 %v5297, 4294901760
  %5299 = vmatmul.mubr.f32.gmra.mxu0 %v5298
  %v5300 = vpop.f32.mrf.mxu0
  %v5301 = vadd.f32 0.0, %v5300
  %v5302 = vpop.f32.mrf.mxu0
  %v5303 = vadd.f32 0.0, %v5302
  %5304 = vdwg.mxu0
  %5305 = vmatprep.subr.mxu0 0.0
  %5306 = vmatpush1.msra.mxu0 0.0
  %5307 = vmatprep.subr.mxu0 0.0
  %5308 = vmatpush1.msra.mxu0 0.0
  %5309 = vmatprep.subr.mxu0 0.0
  %5310 = vmatpush1.msra.mxu0 0.0
  %5311 = vmatprep.subr.mxu0 0.0
  %5312 = vmatpush1.msra.mxu0 0.0
  %5313 = vmatprep.subr.mxu0 0.0
  %5314 = vmatpush1.msra.mxu0 0.0
  %5315 = vmatprep.subr.mxu0 0.0
  %5316 = vmatpush1.msra.mxu0 0.0
  %5317 = vmatprep.subr.mxu0 0.0
  %5318 = vmatpush1.msra.mxu0 0.0
  %5319 = vmatprep.subr.mxu0 0.0
  %5320 = vmatpush1.msra.mxu0 0.0
  %5321 = vmatprep.subr.mxu0 0.0
  %5322 = vmatpush1.msra.mxu0 0.0
  %5323 = vmatprep.subr.mxu0 0.0
  %5324 = vmatpush1.msra.mxu0 0.0
  %5325 = vmatprep.subr.mxu0 0.0
  %5326 = vmatpush1.msra.mxu0 0.0
  %v5327 = vand.u32 %v4648, 4294901760
  %v5328 = vsub.f32 %v4648, %v5327
  %v5329 = vand.u32 %v5328, 4294901760
  %v5330 = vsub.f32 %v5328, %v5329
  %v5331 = vand.u32 %v5330, 4294901760
  %5332 = vmatprep.subr.mxu0 %v5331
  %v5333 = vand.u32 %v4645, 4294901760
  %v5334 = vsub.f32 %v4645, %v5333
  %v5335 = vand.u32 %v5334, 4294901760
  %v5336 = vsub.f32 %v5334, %v5335
  %v5337 = vand.u32 %v5336, 4294901760
  %5338 = vmatpush1.msra.mxu0 %v5337
  %v5339 = vand.u32 %v4628, 4294901760
  %v5340 = vsub.f32 %v4628, %v5339
  %v5341 = vand.u32 %v5340, 4294901760
  %v5342 = vsub.f32 %v5340, %v5341
  %v5343 = vand.u32 %v5342, 4294901760
  %5344 = vmatprep.subr.mxu0 %v5343
  %v5345 = vand.u32 %v4627, 4294901760
  %v5346 = vsub.f32 %v4627, %v5345
  %v5347 = vand.u32 %v5346, 4294901760
  %v5348 = vsub.f32 %v5346, %v5347
  %v5349 = vand.u32 %v5348, 4294901760
  %5350 = vmatpush1.msra.mxu0 %v5349
  %v5351 = vand.u32 %v4624, 4294901760
  %v5352 = vsub.f32 %v4624, %v5351
  %v5353 = vand.u32 %v5352, 4294901760
  %v5354 = vsub.f32 %v5352, %v5353
  %v5355 = vand.u32 %v5354, 4294901760
  %5356 = vmatprep.subr.mxu0 %v5355
  %v5357 = vand.u32 %v4623, 4294901760
  %v5358 = vsub.f32 %v4623, %v5357
  %v5359 = vand.u32 %v5358, 4294901760
  %v5360 = vsub.f32 %v5358, %v5359
  %v5361 = vand.u32 %v5360, 4294901760
  %5362 = vmatpush1.msra.mxu0 %v5361
  %v5363 = vand.u32 %v4620, 4294901760
  %v5364 = vsub.f32 %v4620, %v5363
  %v5365 = vand.u32 %v5364, 4294901760
  %v5366 = vsub.f32 %v5364, %v5365
  %v5367 = vand.u32 %v5366, 4294901760
  %5368 = vmatprep.subr.mxu0 %v5367
  %v5369 = vand.u32 %v4619, 4294901760
  %v5370 = vsub.f32 %v4619, %v5369
  %v5371 = vand.u32 %v5370, 4294901760
  %v5372 = vsub.f32 %v5370, %v5371
  %v5373 = vand.u32 %v5372, 4294901760
  %5374 = vmatpush1.msra.mxu0 %v5373
  %v5375 = vand.u32 %v4616, 4294901760
  %v5376 = vsub.f32 %v4616, %v5375
  %v5377 = vand.u32 %v5376, 4294901760
  %v5378 = vsub.f32 %v5376, %v5377
  %v5379 = vand.u32 %v5378, 4294901760
  %5380 = vmatprep.subr.mxu0 %v5379
  %v5381 = vand.u32 %v4615, 4294901760
  %v5382 = vsub.f32 %v4615, %v5381
  %v5383 = vand.u32 %v5382, 4294901760
  %v5384 = vsub.f32 %v5382, %v5383
  %v5385 = vand.u32 %v5384, 4294901760
  %5386 = vmatpush1.msra.mxu0 %v5385
  %5387 = vmatprep.subr.mxu0 0.0
  %5388 = vmatpush2.msra.mxu0 0.0
  %5389 = vmatprep.subr.mxu0 0.0
  %5390 = vmatpush2.msra.mxu0 0.0
  %5391 = vmatprep.subr.mxu0 0.0
  %5392 = vmatpush2.msra.mxu0 0.0
  %5393 = vmatprep.subr.mxu0 0.0
  %5394 = vmatpush2.msra.mxu0 0.0
  %5395 = vmatprep.subr.mxu0 0.0
  %5396 = vmatpush2.msra.mxu0 0.0
  %5397 = vmatprep.subr.mxu0 0.0
  %5398 = vmatpush2.msra.mxu0 0.0
  %5399 = vmatprep.subr.mxu0 0.0
  %5400 = vmatpush2.msra.mxu0 0.0
  %5401 = vmatprep.subr.mxu0 0.0
  %5402 = vmatpush2.msra.mxu0 0.0
  %5403 = vmatprep.subr.mxu0 0.0
  %5404 = vmatpush2.msra.mxu0 0.0
  %5405 = vmatprep.subr.mxu0 0.0
  %5406 = vmatpush2.msra.mxu0 0.0
  %5407 = vmatprep.subr.mxu0 0.0
  %5408 = vmatpush2.msra.mxu0 0.0
  %5409 = vmatprep.subr.mxu0 0.0
  %5410 = vmatpush2.msra.mxu0 0.0
  %5411 = vmatprep.subr.mxu0 0.0
  %5412 = vmatpush2.msra.mxu0 0.0
  %5413 = vmatprep.subr.mxu0 0.0
  %5414 = vmatpush2.msra.mxu0 0.0
  %5415 = vmatprep.subr.mxu0 0.0
  %5416 = vmatpush2.msra.mxu0 0.0
  %5417 = vmatprep.subr.mxu0 0.0
  %5418 = vmatpush2.msra.mxu0 0.0
  %5419 = vmatprep.mubr.f32.mxu0 0.0
  %v5420 = vand.u32 %v4636, 4294901760
  %5421 = vmatmul.mubr.f32.gmra.mxu0 %v5420
  %v5422 = vpop.f32.mrf.mxu0
  %v5423 = vadd.f32 %v5301, %v5422
  %v5424 = vpop.f32.mrf.mxu0
  %v5425 = vadd.f32 %v5303, %v5424
  %5426 = vdwg.mxu0
  %5427 = vmatprep.subr.mxu0 0.0
  %5428 = vmatpush1.msra.mxu0 0.0
  %5429 = vmatprep.subr.mxu0 0.0
  %5430 = vmatpush1.msra.mxu0 0.0
  %5431 = vmatprep.subr.mxu0 0.0
  %5432 = vmatpush1.msra.mxu0 0.0
  %5433 = vmatprep.subr.mxu0 0.0
  %5434 = vmatpush1.msra.mxu0 0.0
  %5435 = vmatprep.subr.mxu0 0.0
  %5436 = vmatpush1.msra.mxu0 0.0
  %5437 = vmatprep.subr.mxu0 0.0
  %5438 = vmatpush1.msra.mxu0 0.0
  %5439 = vmatprep.subr.mxu0 0.0
  %5440 = vmatpush1.msra.mxu0 0.0
  %5441 = vmatprep.subr.mxu0 0.0
  %5442 = vmatpush1.msra.mxu0 0.0
  %5443 = vmatprep.subr.mxu0 0.0
  %5444 = vmatpush1.msra.mxu0 0.0
  %5445 = vmatprep.subr.mxu0 0.0
  %5446 = vmatpush1.msra.mxu0 0.0
  %5447 = vmatprep.subr.mxu0 0.0
  %5448 = vmatpush1.msra.mxu0 0.0
  %v5449 = vand.u32 %v4648, 4294901760
  %v5450 = vsub.f32 %v4648, %v5449
  %5451 = vmatprep.subr.mxu0 %v5450
  %v5452 = vand.u32 %v4645, 4294901760
  %v5453 = vsub.f32 %v4645, %v5452
  %5454 = vmatpush1.msra.mxu0 %v5453
  %v5455 = vand.u32 %v4628, 4294901760
  %v5456 = vsub.f32 %v4628, %v5455
  %5457 = vmatprep.subr.mxu0 %v5456
  %v5458 = vand.u32 %v4627, 4294901760
  %v5459 = vsub.f32 %v4627, %v5458
  %5460 = vmatpush1.msra.mxu0 %v5459
  %v5461 = vand.u32 %v4624, 4294901760
  %v5462 = vsub.f32 %v4624, %v5461
  %5463 = vmatprep.subr.mxu0 %v5462
  %v5464 = vand.u32 %v4623, 4294901760
  %v5465 = vsub.f32 %v4623, %v5464
  %5466 = vmatpush1.msra.mxu0 %v5465
  %v5467 = vand.u32 %v4620, 4294901760
  %v5468 = vsub.f32 %v4620, %v5467
  %5469 = vmatprep.subr.mxu0 %v5468
  %v5470 = vand.u32 %v4619, 4294901760
  %v5471 = vsub.f32 %v4619, %v5470
  %5472 = vmatpush1.msra.mxu0 %v5471
  %v5473 = vand.u32 %v4616, 4294901760
  %v5474 = vsub.f32 %v4616, %v5473
  %5475 = vmatprep.subr.mxu0 %v5474
  %v5476 = vand.u32 %v4615, 4294901760
  %v5477 = vsub.f32 %v4615, %v5476
  %5478 = vmatpush1.msra.mxu0 %v5477
  %5479 = vmatprep.subr.mxu0 0.0
  %5480 = vmatpush2.msra.mxu0 0.0
  %5481 = vmatprep.subr.mxu0 0.0
  %5482 = vmatpush2.msra.mxu0 0.0
  %5483 = vmatprep.subr.mxu0 0.0
  %5484 = vmatpush2.msra.mxu0 0.0
  %5485 = vmatprep.subr.mxu0 0.0
  %5486 = vmatpush2.msra.mxu0 0.0
  %5487 = vmatprep.subr.mxu0 0.0
  %5488 = vmatpush2.msra.mxu0 0.0
  %5489 = vmatprep.subr.mxu0 0.0
  %5490 = vmatpush2.msra.mxu0 0.0
  %5491 = vmatprep.subr.mxu0 0.0
  %5492 = vmatpush2.msra.mxu0 0.0
  %5493 = vmatprep.subr.mxu0 0.0
  %5494 = vmatpush2.msra.mxu0 0.0
  %5495 = vmatprep.subr.mxu0 0.0
  %5496 = vmatpush2.msra.mxu0 0.0
  %5497 = vmatprep.subr.mxu0 0.0
  %5498 = vmatpush2.msra.mxu0 0.0
  %5499 = vmatprep.subr.mxu0 0.0
  %5500 = vmatpush2.msra.mxu0 0.0
  %5501 = vmatprep.subr.mxu0 0.0
  %5502 = vmatpush2.msra.mxu0 0.0
  %5503 = vmatprep.subr.mxu0 0.0
  %5504 = vmatpush2.msra.mxu0 0.0
  %5505 = vmatprep.subr.mxu0 0.0
  %5506 = vmatpush2.msra.mxu0 0.0
  %5507 = vmatprep.subr.mxu0 0.0
  %5508 = vmatpush2.msra.mxu0 0.0
  %5509 = vmatprep.subr.mxu0 0.0
  %5510 = vmatpush2.msra.mxu0 0.0
  %5511 = vmatprep.mubr.f32.mxu0 0.0
  %v5512 = vand.u32 %v4636, 4294901760
  %v5513 = vsub.f32 %v4636, %v5512
  %5514 = vmatmul.mubr.f32.gmra.mxu0 %v5513
  %v5515 = vpop.f32.mrf.mxu0
  %v5516 = vadd.f32 %v5423, %v5515
  %v5517 = vpop.f32.mrf.mxu0
  %v5518 = vadd.f32 %v5425, %v5517
  %5519 = vdwg.mxu0
  %5520 = vmatprep.subr.mxu0 0.0
  %5521 = vmatpush1.msra.mxu0 0.0
  %5522 = vmatprep.subr.mxu0 0.0
  %5523 = vmatpush1.msra.mxu0 0.0
  %5524 = vmatprep.subr.mxu0 0.0
  %5525 = vmatpush1.msra.mxu0 0.0
  %5526 = vmatprep.subr.mxu0 0.0
  %5527 = vmatpush1.msra.mxu0 0.0
  %5528 = vmatprep.subr.mxu0 0.0
  %5529 = vmatpush1.msra.mxu0 0.0
  %5530 = vmatprep.subr.mxu0 0.0
  %5531 = vmatpush1.msra.mxu0 0.0
  %5532 = vmatprep.subr.mxu0 0.0
  %5533 = vmatpush1.msra.mxu0 0.0
  %5534 = vmatprep.subr.mxu0 0.0
  %5535 = vmatpush1.msra.mxu0 0.0
  %5536 = vmatprep.subr.mxu0 0.0
  %5537 = vmatpush1.msra.mxu0 0.0
  %5538 = vmatprep.subr.mxu0 0.0
  %5539 = vmatpush1.msra.mxu0 0.0
  %5540 = vmatprep.subr.mxu0 0.0
  %5541 = vmatpush1.msra.mxu0 0.0
  %v5542 = vand.u32 %v4648, 4294901760
  %5543 = vmatprep.subr.mxu0 %v5542
  %v5544 = vand.u32 %v4645, 4294901760
  %5545 = vmatpush1.msra.mxu0 %v5544
  %v5546 = vand.u32 %v4628, 4294901760
  %5547 = vmatprep.subr.mxu0 %v5546
  %v5548 = vand.u32 %v4627, 4294901760
  %5549 = vmatpush1.msra.mxu0 %v5548
  %v5550 = vand.u32 %v4624, 4294901760
  %5551 = vmatprep.subr.mxu0 %v5550
  %v5552 = vand.u32 %v4623, 4294901760
  %5553 = vmatpush1.msra.mxu0 %v5552
  %v5554 = vand.u32 %v4620, 4294901760
  %5555 = vmatprep.subr.mxu0 %v5554
  %v5556 = vand.u32 %v4619, 4294901760
  %5557 = vmatpush1.msra.mxu0 %v5556
  %v5558 = vand.u32 %v4616, 4294901760
  %5559 = vmatprep.subr.mxu0 %v5558
  %v5560 = vand.u32 %v4615, 4294901760
  %5561 = vmatpush1.msra.mxu0 %v5560
  %5562 = vmatprep.subr.mxu0 0.0
  %5563 = vmatpush2.msra.mxu0 0.0
  %5564 = vmatprep.subr.mxu0 0.0
  %5565 = vmatpush2.msra.mxu0 0.0
  %5566 = vmatprep.subr.mxu0 0.0
  %5567 = vmatpush2.msra.mxu0 0.0
  %5568 = vmatprep.subr.mxu0 0.0
  %5569 = vmatpush2.msra.mxu0 0.0
  %5570 = vmatprep.subr.mxu0 0.0
  %5571 = vmatpush2.msra.mxu0 0.0
  %5572 = vmatprep.subr.mxu0 0.0
  %5573 = vmatpush2.msra.mxu0 0.0
  %5574 = vmatprep.subr.mxu0 0.0
  %5575 = vmatpush2.msra.mxu0 0.0
  %5576 = vmatprep.subr.mxu0 0.0
  %5577 = vmatpush2.msra.mxu0 0.0
  %5578 = vmatprep.subr.mxu0 0.0
  %5579 = vmatpush2.msra.mxu0 0.0
  %5580 = vmatprep.subr.mxu0 0.0
  %5581 = vmatpush2.msra.mxu0 0.0
  %5582 = vmatprep.subr.mxu0 0.0
  %5583 = vmatpush2.msra.mxu0 0.0
  %5584 = vmatprep.subr.mxu0 0.0
  %5585 = vmatpush2.msra.mxu0 0.0
  %5586 = vmatprep.subr.mxu0 0.0
  %5587 = vmatpush2.msra.mxu0 0.0
  %5588 = vmatprep.subr.mxu0 0.0
  %5589 = vmatpush2.msra.mxu0 0.0
  %5590 = vmatprep.subr.mxu0 0.0
  %5591 = vmatpush2.msra.mxu0 0.0
  %5592 = vmatprep.subr.mxu0 0.0
  %5593 = vmatpush2.msra.mxu0 0.0
  %5594 = vmatprep.mubr.f32.mxu0 0.0
  %v5595 = vand.u32 %v4636, 4294901760
  %v5596 = vsub.f32 %v4636, %v5595
  %v5597 = vand.u32 %v5596, 4294901760
  %5598 = vmatmul.mubr.f32.gmra.mxu0 %v5597
  %v5599 = vpop.f32.mrf.mxu0
  %v5600 = vadd.f32 %v5516, %v5599
  %v5601 = vpop.f32.mrf.mxu0
  %v5602 = vadd.f32 %v5518, %v5601
  %5603 = vdwg.mxu0
  %5604 = vmatprep.subr.mxu0 0.0
  %5605 = vmatpush1.msra.mxu0 0.0
  %5606 = vmatprep.subr.mxu0 0.0
  %5607 = vmatpush1.msra.mxu0 0.0
  %5608 = vmatprep.subr.mxu0 0.0
  %5609 = vmatpush1.msra.mxu0 0.0
  %5610 = vmatprep.subr.mxu0 0.0
  %5611 = vmatpush1.msra.mxu0 0.0
  %5612 = vmatprep.subr.mxu0 0.0
  %5613 = vmatpush1.msra.mxu0 0.0
  %5614 = vmatprep.subr.mxu0 0.0
  %5615 = vmatpush1.msra.mxu0 0.0
  %5616 = vmatprep.subr.mxu0 0.0
  %5617 = vmatpush1.msra.mxu0 0.0
  %5618 = vmatprep.subr.mxu0 0.0
  %5619 = vmatpush1.msra.mxu0 0.0
  %5620 = vmatprep.subr.mxu0 0.0
  %5621 = vmatpush1.msra.mxu0 0.0
  %5622 = vmatprep.subr.mxu0 0.0
  %5623 = vmatpush1.msra.mxu0 0.0
  %5624 = vmatprep.subr.mxu0 0.0
  %5625 = vmatpush1.msra.mxu0 0.0
  %v5626 = vand.u32 %v4648, 4294901760
  %v5627 = vsub.f32 %v4648, %v5626
  %v5628 = vand.u32 %v5627, 4294901760
  %5629 = vmatprep.subr.mxu0 %v5628
  %v5630 = vand.u32 %v4645, 4294901760
  %v5631 = vsub.f32 %v4645, %v5630
  %v5632 = vand.u32 %v5631, 4294901760
  %5633 = vmatpush1.msra.mxu0 %v5632
  %v5634 = vand.u32 %v4628, 4294901760
  %v5635 = vsub.f32 %v4628, %v5634
  %v5636 = vand.u32 %v5635, 4294901760
  %5637 = vmatprep.subr.mxu0 %v5636
  %v5638 = vand.u32 %v4627, 4294901760
  %v5639 = vsub.f32 %v4627, %v5638
  %v5640 = vand.u32 %v5639, 4294901760
  %5641 = vmatpush1.msra.mxu0 %v5640
  %v5642 = vand.u32 %v4624, 4294901760
  %v5643 = vsub.f32 %v4624, %v5642
  %v5644 = vand.u32 %v5643, 4294901760
  %5645 = vmatprep.subr.mxu0 %v5644
  %v5646 = vand.u32 %v4623, 4294901760
  %v5647 = vsub.f32 %v4623, %v5646
  %v5648 = vand.u32 %v5647, 4294901760
  %5649 = vmatpush1.msra.mxu0 %v5648
  %v5650 = vand.u32 %v4620, 4294901760
  %v5651 = vsub.f32 %v4620, %v5650
  %v5652 = vand.u32 %v5651, 4294901760
  %5653 = vmatprep.subr.mxu0 %v5652
  %v5654 = vand.u32 %v4619, 4294901760
  %v5655 = vsub.f32 %v4619, %v5654
  %v5656 = vand.u32 %v5655, 4294901760
  %5657 = vmatpush1.msra.mxu0 %v5656
  %v5658 = vand.u32 %v4616, 4294901760
  %v5659 = vsub.f32 %v4616, %v5658
  %v5660 = vand.u32 %v5659, 4294901760
  %5661 = vmatprep.subr.mxu0 %v5660
  %v5662 = vand.u32 %v4615, 4294901760
  %v5663 = vsub.f32 %v4615, %v5662
  %v5664 = vand.u32 %v5663, 4294901760
  %5665 = vmatpush1.msra.mxu0 %v5664
  %5666 = vmatprep.subr.mxu0 0.0
  %5667 = vmatpush2.msra.mxu0 0.0
  %5668 = vmatprep.subr.mxu0 0.0
  %5669 = vmatpush2.msra.mxu0 0.0
  %5670 = vmatprep.subr.mxu0 0.0
  %5671 = vmatpush2.msra.mxu0 0.0
  %5672 = vmatprep.subr.mxu0 0.0
  %5673 = vmatpush2.msra.mxu0 0.0
  %5674 = vmatprep.subr.mxu0 0.0
  %5675 = vmatpush2.msra.mxu0 0.0
  %5676 = vmatprep.subr.mxu0 0.0
  %5677 = vmatpush2.msra.mxu0 0.0
  %5678 = vmatprep.subr.mxu0 0.0
  %5679 = vmatpush2.msra.mxu0 0.0
  %5680 = vmatprep.subr.mxu0 0.0
  %5681 = vmatpush2.msra.mxu0 0.0
  %5682 = vmatprep.subr.mxu0 0.0
  %5683 = vmatpush2.msra.mxu0 0.0
  %5684 = vmatprep.subr.mxu0 0.0
  %5685 = vmatpush2.msra.mxu0 0.0
  %5686 = vmatprep.subr.mxu0 0.0
  %5687 = vmatpush2.msra.mxu0 0.0
  %5688 = vmatprep.subr.mxu0 0.0
  %5689 = vmatpush2.msra.mxu0 0.0
  %5690 = vmatprep.subr.mxu0 0.0
  %5691 = vmatpush2.msra.mxu0 0.0
  %5692 = vmatprep.subr.mxu0 0.0
  %5693 = vmatpush2.msra.mxu0 0.0
  %5694 = vmatprep.subr.mxu0 0.0
  %5695 = vmatpush2.msra.mxu0 0.0
  %5696 = vmatprep.subr.mxu0 0.0
  %5697 = vmatpush2.msra.mxu0 0.0
  %5698 = vmatprep.mubr.f32.mxu0 0.0
  %v5699 = vand.u32 %v4636, 4294901760
  %5700 = vmatmul.mubr.f32.gmra.mxu0 %v5699
  %v5701 = vpop.f32.mrf.mxu0
  %v5702 = vadd.f32 %v5600, %v5701
  %v5703 = vpop.f32.mrf.mxu0
  %v5704 = vadd.f32 %v5602, %v5703
  %5705 = vdwg.mxu0
  %5706 = vmatprep.subr.mxu0 0.0
  %5707 = vmatpush1.msra.mxu0 0.0
  %5708 = vmatprep.subr.mxu0 0.0
  %5709 = vmatpush1.msra.mxu0 0.0
  %5710 = vmatprep.subr.mxu0 0.0
  %5711 = vmatpush1.msra.mxu0 0.0
  %5712 = vmatprep.subr.mxu0 0.0
  %5713 = vmatpush1.msra.mxu0 0.0
  %5714 = vmatprep.subr.mxu0 0.0
  %5715 = vmatpush1.msra.mxu0 0.0
  %5716 = vmatprep.subr.mxu0 0.0
  %5717 = vmatpush1.msra.mxu0 0.0
  %5718 = vmatprep.subr.mxu0 0.0
  %5719 = vmatpush1.msra.mxu0 0.0
  %5720 = vmatprep.subr.mxu0 0.0
  %5721 = vmatpush1.msra.mxu0 0.0
  %5722 = vmatprep.subr.mxu0 0.0
  %5723 = vmatpush1.msra.mxu0 0.0
  %5724 = vmatprep.subr.mxu0 0.0
  %5725 = vmatpush1.msra.mxu0 0.0
  %5726 = vmatprep.subr.mxu0 0.0
  %5727 = vmatpush1.msra.mxu0 0.0
  %v5728 = vand.u32 %v4648, 4294901760
  %5729 = vmatprep.subr.mxu0 %v5728
  %v5730 = vand.u32 %v4645, 4294901760
  %5731 = vmatpush1.msra.mxu0 %v5730
  %v5732 = vand.u32 %v4628, 4294901760
  %5733 = vmatprep.subr.mxu0 %v5732
  %v5734 = vand.u32 %v4627, 4294901760
  %5735 = vmatpush1.msra.mxu0 %v5734
  %v5736 = vand.u32 %v4624, 4294901760
  %5737 = vmatprep.subr.mxu0 %v5736
  %v5738 = vand.u32 %v4623, 4294901760
  %5739 = vmatpush1.msra.mxu0 %v5738
  %v5740 = vand.u32 %v4620, 4294901760
  %5741 = vmatprep.subr.mxu0 %v5740
  %v5742 = vand.u32 %v4619, 4294901760
  %5743 = vmatpush1.msra.mxu0 %v5742
  %v5744 = vand.u32 %v4616, 4294901760
  %5745 = vmatprep.subr.mxu0 %v5744
  %v5746 = vand.u32 %v4615, 4294901760
  %5747 = vmatpush1.msra.mxu0 %v5746
  %5748 = vmatprep.subr.mxu0 0.0
  %5749 = vmatpush2.msra.mxu0 0.0
  %5750 = vmatprep.subr.mxu0 0.0
  %5751 = vmatpush2.msra.mxu0 0.0
  %5752 = vmatprep.subr.mxu0 0.0
  %5753 = vmatpush2.msra.mxu0 0.0
  %5754 = vmatprep.subr.mxu0 0.0
  %5755 = vmatpush2.msra.mxu0 0.0
  %5756 = vmatprep.subr.mxu0 0.0
  %5757 = vmatpush2.msra.mxu0 0.0
  %5758 = vmatprep.subr.mxu0 0.0
  %5759 = vmatpush2.msra.mxu0 0.0
  %5760 = vmatprep.subr.mxu0 0.0
  %5761 = vmatpush2.msra.mxu0 0.0
  %5762 = vmatprep.subr.mxu0 0.0
  %5763 = vmatpush2.msra.mxu0 0.0
  %5764 = vmatprep.subr.mxu0 0.0
  %5765 = vmatpush2.msra.mxu0 0.0
  %5766 = vmatprep.subr.mxu0 0.0
  %5767 = vmatpush2.msra.mxu0 0.0
  %5768 = vmatprep.subr.mxu0 0.0
  %5769 = vmatpush2.msra.mxu0 0.0
  %5770 = vmatprep.subr.mxu0 0.0
  %5771 = vmatpush2.msra.mxu0 0.0
  %5772 = vmatprep.subr.mxu0 0.0
  %5773 = vmatpush2.msra.mxu0 0.0
  %5774 = vmatprep.subr.mxu0 0.0
  %5775 = vmatpush2.msra.mxu0 0.0
  %5776 = vmatprep.subr.mxu0 0.0
  %5777 = vmatpush2.msra.mxu0 0.0
  %5778 = vmatprep.subr.mxu0 0.0
  %5779 = vmatpush2.msra.mxu0 0.0
  %5780 = vmatprep.mubr.f32.mxu0 0.0
  %v5781 = vand.u32 %v4636, 4294901760
  %5782 = vmatmul.mubr.f32.gmra.mxu0 %v5781
  %v5783 = vpop.f32.mrf.mxu0
  %v5784 = vadd.f32 %v5702, %v5783
  %v5785 = vpop.f32.mrf.mxu0
  %v5786 = vadd.f32 %v5704, %v5785
  %5787 = vdwg.mxu0
  %v5788 = vmax.f32 %v5215, 0.0
  %v5789 = vmax.f32 %v5217, 0.0
  %v5790 = vmax.f32 %v5784, 0.0
  %v5791 = vmax.f32 %v5786, 0.0
  %s5792 = scalar_lea.vmem %s0, 16
  %v5793 = vld [vmem:[%s5792] sm:$0xf]
  %v5795 = vsel %vm388, %v5793, 0
  %5797 = vmatprep.subr.mxu0 0.0
  %5798 = vmatpush1.msra.mxu0 0.0
  %5799 = vmatprep.subr.mxu0 0.0
  %5800 = vmatpush1.msra.mxu0 0.0
  %5801 = vmatprep.subr.mxu0 0.0
  %5802 = vmatpush1.msra.mxu0 0.0
  %5803 = vmatprep.subr.mxu0 0.0
  %5804 = vmatpush1.msra.mxu0 0.0
  %5805 = vmatprep.subr.mxu0 0.0
  %5806 = vmatpush1.msra.mxu0 0.0
  %5807 = vmatprep.subr.mxu0 0.0
  %5808 = vmatpush1.msra.mxu0 0.0
  %5809 = vmatprep.subr.mxu0 0.0
  %5810 = vmatpush1.msra.mxu0 0.0
  %5811 = vmatprep.subr.mxu0 0.0
  %5812 = vmatpush1.msra.mxu0 0.0
  %5813 = vmatprep.subr.mxu0 0.0
  %5814 = vmatpush1.msra.mxu0 0.0
  %5815 = vmatprep.subr.mxu0 0.0
  %5816 = vmatpush1.msra.mxu0 0.0
  %5817 = vmatprep.subr.mxu0 0.0
  %5818 = vmatpush1.msra.mxu0 0.0
  %v5819 = vand.u32 %v397, 4294901760
  %5820 = vmatprep.subr.mxu0 %v5819
  %v5821 = vand.u32 %v394, 4294901760
  %5822 = vmatpush1.msra.mxu0 %v5821
  %v5823 = vand.u32 %v380, 4294901760
  %5824 = vmatprep.subr.mxu0 %v5823
  %v5825 = vand.u32 %v379, 4294901760
  %5826 = vmatpush1.msra.mxu0 %v5825
  %v5827 = vand.u32 %v376, 4294901760
  %5828 = vmatprep.subr.mxu0 %v5827
  %v5829 = vand.u32 %v375, 4294901760
  %5830 = vmatpush1.msra.mxu0 %v5829
  %v5831 = vand.u32 %v372, 4294901760
  %5832 = vmatprep.subr.mxu0 %v5831
  %v5833 = vand.u32 %v371, 4294901760
  %5834 = vmatpush1.msra.mxu0 %v5833
  %v5835 = vand.u32 %v368, 4294901760
  %5836 = vmatprep.subr.mxu0 %v5835
  %v5837 = vand.u32 %v367, 4294901760
  %5838 = vmatpush1.msra.mxu0 %v5837
  %5839 = vmatprep.subr.mxu0 0.0
  %5840 = vmatpush2.msra.mxu0 0.0
  %5841 = vmatprep.subr.mxu0 0.0
  %5842 = vmatpush2.msra.mxu0 0.0
  %5843 = vmatprep.subr.mxu0 0.0
  %5844 = vmatpush2.msra.mxu0 0.0
  %5845 = vmatprep.subr.mxu0 0.0
  %5846 = vmatpush2.msra.mxu0 0.0
  %5847 = vmatprep.subr.mxu0 0.0
  %5848 = vmatpush2.msra.mxu0 0.0
  %5849 = vmatprep.subr.mxu0 0.0
  %5850 = vmatpush2.msra.mxu0 0.0
  %5851 = vmatprep.subr.mxu0 0.0
  %5852 = vmatpush2.msra.mxu0 0.0
  %5853 = vmatprep.subr.mxu0 0.0
  %5854 = vmatpush2.msra.mxu0 0.0
  %5855 = vmatprep.subr.mxu0 0.0
  %5856 = vmatpush2.msra.mxu0 0.0
  %5857 = vmatprep.subr.mxu0 0.0
  %5858 = vmatpush2.msra.mxu0 0.0
  %5859 = vmatprep.subr.mxu0 0.0
  %5860 = vmatpush2.msra.mxu0 0.0
  %5861 = vmatprep.subr.mxu0 0.0
  %5862 = vmatpush2.msra.mxu0 0.0
  %5863 = vmatprep.subr.mxu0 0.0
  %5864 = vmatpush2.msra.mxu0 0.0
  %5865 = vmatprep.subr.mxu0 0.0
  %5866 = vmatpush2.msra.mxu0 0.0
  %5867 = vmatprep.subr.mxu0 0.0
  %5868 = vmatpush2.msra.mxu0 0.0
  %5869 = vmatprep.subr.mxu0 0.0
  %5870 = vmatpush2.msra.mxu0 0.0
  %5871 = vmatprep.mubr.f32.mxu0 0.0
  %v5872 = vand.u32 %v5795, 4294901760
  %v5873 = vsub.f32 %v5795, %v5872
  %v5874 = vand.u32 %v5873, 4294901760
  %v5875 = vsub.f32 %v5873, %v5874
  %v5876 = vand.u32 %v5875, 4294901760
  %5877 = vmatmul.mubr.f32.gmra.mxu0 %v5876
  %v5878 = vpop.f32.mrf.mxu0
  %v5879 = vadd.f32 0.0, %v5878
  %v5880 = vpop.f32.mrf.mxu0
  %v5881 = vadd.f32 0.0, %v5880
  %5882 = vdwg.mxu0
  %5883 = vmatprep.subr.mxu0 0.0
  %5884 = vmatpush1.msra.mxu0 0.0
  %5885 = vmatprep.subr.mxu0 0.0
  %5886 = vmatpush1.msra.mxu0 0.0
  %5887 = vmatprep.subr.mxu0 0.0
  %5888 = vmatpush1.msra.mxu0 0.0
  %5889 = vmatprep.subr.mxu0 0.0
  %5890 = vmatpush1.msra.mxu0 0.0
  %5891 = vmatprep.subr.mxu0 0.0
  %5892 = vmatpush1.msra.mxu0 0.0
  %5893 = vmatprep.subr.mxu0 0.0
  %5894 = vmatpush1.msra.mxu0 0.0
  %5895 = vmatprep.subr.mxu0 0.0
  %5896 = vmatpush1.msra.mxu0 0.0
  %5897 = vmatprep.subr.mxu0 0.0
  %5898 = vmatpush1.msra.mxu0 0.0
  %5899 = vmatprep.subr.mxu0 0.0
  %5900 = vmatpush1.msra.mxu0 0.0
  %5901 = vmatprep.subr.mxu0 0.0
  %5902 = vmatpush1.msra.mxu0 0.0
  %5903 = vmatprep.subr.mxu0 0.0
  %5904 = vmatpush1.msra.mxu0 0.0
  %v5905 = vand.u32 %v397, 4294901760
  %v5906 = vsub.f32 %v397, %v5905
  %v5907 = vand.u32 %v5906, 4294901760
  %v5908 = vsub.f32 %v5906, %v5907
  %v5909 = vand.u32 %v5908, 4294901760
  %5910 = vmatprep.subr.mxu0 %v5909
  %v5911 = vand.u32 %v394, 4294901760
  %v5912 = vsub.f32 %v394, %v5911
  %v5913 = vand.u32 %v5912, 4294901760
  %v5914 = vsub.f32 %v5912, %v5913
  %v5915 = vand.u32 %v5914, 4294901760
  %5916 = vmatpush1.msra.mxu0 %v5915
  %v5917 = vand.u32 %v380, 4294901760
  %v5918 = vsub.f32 %v380, %v5917
  %v5919 = vand.u32 %v5918, 4294901760
  %v5920 = vsub.f32 %v5918, %v5919
  %v5921 = vand.u32 %v5920, 4294901760
  %5922 = vmatprep.subr.mxu0 %v5921
  %v5923 = vand.u32 %v379, 4294901760
  %v5924 = vsub.f32 %v379, %v5923
  %v5925 = vand.u32 %v5924, 4294901760
  %v5926 = vsub.f32 %v5924, %v5925
  %v5927 = vand.u32 %v5926, 4294901760
  %5928 = vmatpush1.msra.mxu0 %v5927
  %v5929 = vand.u32 %v376, 4294901760
  %v5930 = vsub.f32 %v376, %v5929
  %v5931 = vand.u32 %v5930, 4294901760
  %v5932 = vsub.f32 %v5930, %v5931
  %v5933 = vand.u32 %v5932, 4294901760
  %5934 = vmatprep.subr.mxu0 %v5933
  %v5935 = vand.u32 %v375, 4294901760
  %v5936 = vsub.f32 %v375, %v5935
  %v5937 = vand.u32 %v5936, 4294901760
  %v5938 = vsub.f32 %v5936, %v5937
  %v5939 = vand.u32 %v5938, 4294901760
  %5940 = vmatpush1.msra.mxu0 %v5939
  %v5941 = vand.u32 %v372, 4294901760
  %v5942 = vsub.f32 %v372, %v5941
  %v5943 = vand.u32 %v5942, 4294901760
  %v5944 = vsub.f32 %v5942, %v5943
  %v5945 = vand.u32 %v5944, 4294901760
  %5946 = vmatprep.subr.mxu0 %v5945
  %v5947 = vand.u32 %v371, 4294901760
  %v5948 = vsub.f32 %v371, %v5947
  %v5949 = vand.u32 %v5948, 4294901760
  %v5950 = vsub.f32 %v5948, %v5949
  %v5951 = vand.u32 %v5950, 4294901760
  %5952 = vmatpush1.msra.mxu0 %v5951
  %v5953 = vand.u32 %v368, 4294901760
  %v5954 = vsub.f32 %v368, %v5953
  %v5955 = vand.u32 %v5954, 4294901760
  %v5956 = vsub.f32 %v5954, %v5955
  %v5957 = vand.u32 %v5956, 4294901760
  %5958 = vmatprep.subr.mxu0 %v5957
  %v5959 = vand.u32 %v367, 4294901760
  %v5960 = vsub.f32 %v367, %v5959
  %v5961 = vand.u32 %v5960, 4294901760
  %v5962 = vsub.f32 %v5960, %v5961
  %v5963 = vand.u32 %v5962, 4294901760
  %5964 = vmatpush1.msra.mxu0 %v5963
  %5965 = vmatprep.subr.mxu0 0.0
  %5966 = vmatpush2.msra.mxu0 0.0
  %5967 = vmatprep.subr.mxu0 0.0
  %5968 = vmatpush2.msra.mxu0 0.0
  %5969 = vmatprep.subr.mxu0 0.0
  %5970 = vmatpush2.msra.mxu0 0.0
  %5971 = vmatprep.subr.mxu0 0.0
  %5972 = vmatpush2.msra.mxu0 0.0
  %5973 = vmatprep.subr.mxu0 0.0
  %5974 = vmatpush2.msra.mxu0 0.0
  %5975 = vmatprep.subr.mxu0 0.0
  %5976 = vmatpush2.msra.mxu0 0.0
  %5977 = vmatprep.subr.mxu0 0.0
  %5978 = vmatpush2.msra.mxu0 0.0
  %5979 = vmatprep.subr.mxu0 0.0
  %5980 = vmatpush2.msra.mxu0 0.0
  %5981 = vmatprep.subr.mxu0 0.0
  %5982 = vmatpush2.msra.mxu0 0.0
  %5983 = vmatprep.subr.mxu0 0.0
  %5984 = vmatpush2.msra.mxu0 0.0
  %5985 = vmatprep.subr.mxu0 0.0
  %5986 = vmatpush2.msra.mxu0 0.0
  %5987 = vmatprep.subr.mxu0 0.0
  %5988 = vmatpush2.msra.mxu0 0.0
  %5989 = vmatprep.subr.mxu0 0.0
  %5990 = vmatpush2.msra.mxu0 0.0
  %5991 = vmatprep.subr.mxu0 0.0
  %5992 = vmatpush2.msra.mxu0 0.0
  %5993 = vmatprep.subr.mxu0 0.0
  %5994 = vmatpush2.msra.mxu0 0.0
  %5995 = vmatprep.subr.mxu0 0.0
  %5996 = vmatpush2.msra.mxu0 0.0
  %5997 = vmatprep.mubr.f32.mxu0 0.0
  %v5998 = vand.u32 %v5795, 4294901760
  %5999 = vmatmul.mubr.f32.gmra.mxu0 %v5998
  %v6000 = vpop.f32.mrf.mxu0
  %v6001 = vadd.f32 %v5879, %v6000
  %v6002 = vpop.f32.mrf.mxu0
  %v6003 = vadd.f32 %v5881, %v6002
  %6004 = vdwg.mxu0
  %6005 = vmatprep.subr.mxu0 0.0
  %6006 = vmatpush1.msra.mxu0 0.0
  %6007 = vmatprep.subr.mxu0 0.0
  %6008 = vmatpush1.msra.mxu0 0.0
  %6009 = vmatprep.subr.mxu0 0.0
  %6010 = vmatpush1.msra.mxu0 0.0
  %6011 = vmatprep.subr.mxu0 0.0
  %6012 = vmatpush1.msra.mxu0 0.0
  %6013 = vmatprep.subr.mxu0 0.0
  %6014 = vmatpush1.msra.mxu0 0.0
  %6015 = vmatprep.subr.mxu0 0.0
  %6016 = vmatpush1.msra.mxu0 0.0
  %6017 = vmatprep.subr.mxu0 0.0
  %6018 = vmatpush1.msra.mxu0 0.0
  %6019 = vmatprep.subr.mxu0 0.0
  %6020 = vmatpush1.msra.mxu0 0.0
  %6021 = vmatprep.subr.mxu0 0.0
  %6022 = vmatpush1.msra.mxu0 0.0
  %6023 = vmatprep.subr.mxu0 0.0
  %6024 = vmatpush1.msra.mxu0 0.0
  %6025 = vmatprep.subr.mxu0 0.0
  %6026 = vmatpush1.msra.mxu0 0.0
  %v6027 = vand.u32 %v397, 4294901760
  %v6028 = vsub.f32 %v397, %v6027
  %6029 = vmatprep.subr.mxu0 %v6028
  %v6030 = vand.u32 %v394, 4294901760
  %v6031 = vsub.f32 %v394, %v6030
  %6032 = vmatpush1.msra.mxu0 %v6031
  %v6033 = vand.u32 %v380, 4294901760
  %v6034 = vsub.f32 %v380, %v6033
  %6035 = vmatprep.subr.mxu0 %v6034
  %v6036 = vand.u32 %v379, 4294901760
  %v6037 = vsub.f32 %v379, %v6036
  %6038 = vmatpush1.msra.mxu0 %v6037
  %v6039 = vand.u32 %v376, 4294901760
  %v6040 = vsub.f32 %v376, %v6039
  %6041 = vmatprep.subr.mxu0 %v6040
  %v6042 = vand.u32 %v375, 4294901760
  %v6043 = vsub.f32 %v375, %v6042
  %6044 = vmatpush1.msra.mxu0 %v6043
  %v6045 = vand.u32 %v372, 4294901760
  %v6046 = vsub.f32 %v372, %v6045
  %6047 = vmatprep.subr.mxu0 %v6046
  %v6048 = vand.u32 %v371, 4294901760
  %v6049 = vsub.f32 %v371, %v6048
  %6050 = vmatpush1.msra.mxu0 %v6049
  %v6051 = vand.u32 %v368, 4294901760
  %v6052 = vsub.f32 %v368, %v6051
  %6053 = vmatprep.subr.mxu0 %v6052
  %v6054 = vand.u32 %v367, 4294901760
  %v6055 = vsub.f32 %v367, %v6054
  %6056 = vmatpush1.msra.mxu0 %v6055
  %6057 = vmatprep.subr.mxu0 0.0
  %6058 = vmatpush2.msra.mxu0 0.0
  %6059 = vmatprep.subr.mxu0 0.0
  %6060 = vmatpush2.msra.mxu0 0.0
  %6061 = vmatprep.subr.mxu0 0.0
  %6062 = vmatpush2.msra.mxu0 0.0
  %6063 = vmatprep.subr.mxu0 0.0
  %6064 = vmatpush2.msra.mxu0 0.0
  %6065 = vmatprep.subr.mxu0 0.0
  %6066 = vmatpush2.msra.mxu0 0.0
  %6067 = vmatprep.subr.mxu0 0.0
  %6068 = vmatpush2.msra.mxu0 0.0
  %6069 = vmatprep.subr.mxu0 0.0
  %6070 = vmatpush2.msra.mxu0 0.0
  %6071 = vmatprep.subr.mxu0 0.0
  %6072 = vmatpush2.msra.mxu0 0.0
  %6073 = vmatprep.subr.mxu0 0.0
  %6074 = vmatpush2.msra.mxu0 0.0
  %6075 = vmatprep.subr.mxu0 0.0
  %6076 = vmatpush2.msra.mxu0 0.0
  %6077 = vmatprep.subr.mxu0 0.0
  %6078 = vmatpush2.msra.mxu0 0.0
  %6079 = vmatprep.subr.mxu0 0.0
  %6080 = vmatpush2.msra.mxu0 0.0
  %6081 = vmatprep.subr.mxu0 0.0
  %6082 = vmatpush2.msra.mxu0 0.0
  %6083 = vmatprep.subr.mxu0 0.0
  %6084 = vmatpush2.msra.mxu0 0.0
  %6085 = vmatprep.subr.mxu0 0.0
  %6086 = vmatpush2.msra.mxu0 0.0
  %6087 = vmatprep.subr.mxu0 0.0
  %6088 = vmatpush2.msra.mxu0 0.0
  %6089 = vmatprep.mubr.f32.mxu0 0.0
  %v6090 = vand.u32 %v5795, 4294901760
  %v6091 = vsub.f32 %v5795, %v6090
  %6092 = vmatmul.mubr.f32.gmra.mxu0 %v6091
  %v6093 = vpop.f32.mrf.mxu0
  %v6094 = vadd.f32 %v6001, %v6093
  %v6095 = vpop.f32.mrf.mxu0
  %v6096 = vadd.f32 %v6003, %v6095
  %6097 = vdwg.mxu0
  %6098 = vmatprep.subr.mxu0 0.0
  %6099 = vmatpush1.msra.mxu0 0.0
  %6100 = vmatprep.subr.mxu0 0.0
  %6101 = vmatpush1.msra.mxu0 0.0
  %6102 = vmatprep.subr.mxu0 0.0
  %6103 = vmatpush1.msra.mxu0 0.0
  %6104 = vmatprep.subr.mxu0 0.0
  %6105 = vmatpush1.msra.mxu0 0.0
  %6106 = vmatprep.subr.mxu0 0.0
  %6107 = vmatpush1.msra.mxu0 0.0
  %6108 = vmatprep.subr.mxu0 0.0
  %6109 = vmatpush1.msra.mxu0 0.0
  %6110 = vmatprep.subr.mxu0 0.0
  %6111 = vmatpush1.msra.mxu0 0.0
  %6112 = vmatprep.subr.mxu0 0.0
  %6113 = vmatpush1.msra.mxu0 0.0
  %6114 = vmatprep.subr.mxu0 0.0
  %6115 = vmatpush1.msra.mxu0 0.0
  %6116 = vmatprep.subr.mxu0 0.0
  %6117 = vmatpush1.msra.mxu0 0.0
  %6118 = vmatprep.subr.mxu0 0.0
  %6119 = vmatpush1.msra.mxu0 0.0
  %v6120 = vand.u32 %v397, 4294901760
  %6121 = vmatprep.subr.mxu0 %v6120
  %v6122 = vand.u32 %v394, 4294901760
  %6123 = vmatpush1.msra.mxu0 %v6122
  %v6124 = vand.u32 %v380, 4294901760
  %6125 = vmatprep.subr.mxu0 %v6124
  %v6126 = vand.u32 %v379, 4294901760
  %6127 = vmatpush1.msra.mxu0 %v6126
  %v6128 = vand.u32 %v376, 4294901760
  %6129 = vmatprep.subr.mxu0 %v6128
  %v6130 = vand.u32 %v375, 4294901760
  %6131 = vmatpush1.msra.mxu0 %v6130
  %v6132 = vand.u32 %v372, 4294901760
  %6133 = vmatprep.subr.mxu0 %v6132
  %v6134 = vand.u32 %v371, 4294901760
  %6135 = vmatpush1.msra.mxu0 %v6134
  %v6136 = vand.u32 %v368, 4294901760
  %6137 = vmatprep.subr.mxu0 %v6136
  %v6138 = vand.u32 %v367, 4294901760
  %6139 = vmatpush1.msra.mxu0 %v6138
  %6140 = vmatprep.subr.mxu0 0.0
  %6141 = vmatpush2.msra.mxu0 0.0
  %6142 = vmatprep.subr.mxu0 0.0
  %6143 = vmatpush2.msra.mxu0 0.0
  %6144 = vmatprep.subr.mxu0 0.0
  %6145 = vmatpush2.msra.mxu0 0.0
  %6146 = vmatprep.subr.mxu0 0.0
  %6147 = vmatpush2.msra.mxu0 0.0
  %6148 = vmatprep.subr.mxu0 0.0
  %6149 = vmatpush2.msra.mxu0 0.0
  %6150 = vmatprep.subr.mxu0 0.0
  %6151 = vmatpush2.msra.mxu0 0.0
  %6152 = vmatprep.subr.mxu0 0.0
  %6153 = vmatpush2.msra.mxu0 0.0
  %6154 = vmatprep.subr.mxu0 0.0
  %6155 = vmatpush2.msra.mxu0 0.0
  %6156 = vmatprep.subr.mxu0 0.0
  %6157 = vmatpush2.msra.mxu0 0.0
  %6158 = vmatprep.subr.mxu0 0.0
  %6159 = vmatpush2.msra.mxu0 0.0
  %6160 = vmatprep.subr.mxu0 0.0
  %6161 = vmatpush2.msra.mxu0 0.0
  %6162 = vmatprep.subr.mxu0 0.0
  %6163 = vmatpush2.msra.mxu0 0.0
  %6164 = vmatprep.subr.mxu0 0.0
  %6165 = vmatpush2.msra.mxu0 0.0
  %6166 = vmatprep.subr.mxu0 0.0
  %6167 = vmatpush2.msra.mxu0 0.0
  %6168 = vmatprep.subr.mxu0 0.0
  %6169 = vmatpush2.msra.mxu0 0.0
  %6170 = vmatprep.subr.mxu0 0.0
  %6171 = vmatpush2.msra.mxu0 0.0
  %6172 = vmatprep.mubr.f32.mxu0 0.0
  %v6173 = vand.u32 %v5795, 4294901760
  %v6174 = vsub.f32 %v5795, %v6173
  %v6175 = vand.u32 %v6174, 4294901760
  %6176 = vmatmul.mubr.f32.gmra.mxu0 %v6175
  %v6177 = vpop.f32.mrf.mxu0
  %v6178 = vadd.f32 %v6094, %v6177
  %v6179 = vpop.f32.mrf.mxu0
  %v6180 = vadd.f32 %v6096, %v6179
  %6181 = vdwg.mxu0
  %6182 = vmatprep.subr.mxu0 0.0
  %6183 = vmatpush1.msra.mxu0 0.0
  %6184 = vmatprep.subr.mxu0 0.0
  %6185 = vmatpush1.msra.mxu0 0.0
  %6186 = vmatprep.subr.mxu0 0.0
  %6187 = vmatpush1.msra.mxu0 0.0
  %6188 = vmatprep.subr.mxu0 0.0
  %6189 = vmatpush1.msra.mxu0 0.0
  %6190 = vmatprep.subr.mxu0 0.0
  %6191 = vmatpush1.msra.mxu0 0.0
  %6192 = vmatprep.subr.mxu0 0.0
  %6193 = vmatpush1.msra.mxu0 0.0
  %6194 = vmatprep.subr.mxu0 0.0
  %6195 = vmatpush1.msra.mxu0 0.0
  %6196 = vmatprep.subr.mxu0 0.0
  %6197 = vmatpush1.msra.mxu0 0.0
  %6198 = vmatprep.subr.mxu0 0.0
  %6199 = vmatpush1.msra.mxu0 0.0
  %6200 = vmatprep.subr.mxu0 0.0
  %6201 = vmatpush1.msra.mxu0 0.0
  %6202 = vmatprep.subr.mxu0 0.0
  %6203 = vmatpush1.msra.mxu0 0.0
  %v6204 = vand.u32 %v397, 4294901760
  %v6205 = vsub.f32 %v397, %v6204
  %v6206 = vand.u32 %v6205, 4294901760
  %6207 = vmatprep.subr.mxu0 %v6206
  %v6208 = vand.u32 %v394, 4294901760
  %v6209 = vsub.f32 %v394, %v6208
  %v6210 = vand.u32 %v6209, 4294901760
  %6211 = vmatpush1.msra.mxu0 %v6210
  %v6212 = vand.u32 %v380, 4294901760
  %v6213 = vsub.f32 %v380, %v6212
  %v6214 = vand.u32 %v6213, 4294901760
  %6215 = vmatprep.subr.mxu0 %v6214
  %v6216 = vand.u32 %v379, 4294901760
  %v6217 = vsub.f32 %v379, %v6216
  %v6218 = vand.u32 %v6217, 4294901760
  %6219 = vmatpush1.msra.mxu0 %v6218
  %v6220 = vand.u32 %v376, 4294901760
  %v6221 = vsub.f32 %v376, %v6220
  %v6222 = vand.u32 %v6221, 4294901760
  %6223 = vmatprep.subr.mxu0 %v6222
  %v6224 = vand.u32 %v375, 4294901760
  %v6225 = vsub.f32 %v375, %v6224
  %v6226 = vand.u32 %v6225, 4294901760
  %6227 = vmatpush1.msra.mxu0 %v6226
  %v6228 = vand.u32 %v372, 4294901760
  %v6229 = vsub.f32 %v372, %v6228
  %v6230 = vand.u32 %v6229, 4294901760
  %6231 = vmatprep.subr.mxu0 %v6230
  %v6232 = vand.u32 %v371, 4294901760
  %v6233 = vsub.f32 %v371, %v6232
  %v6234 = vand.u32 %v6233, 4294901760
  %6235 = vmatpush1.msra.mxu0 %v6234
  %v6236 = vand.u32 %v368, 4294901760
  %v6237 = vsub.f32 %v368, %v6236
  %v6238 = vand.u32 %v6237, 4294901760
  %6239 = vmatprep.subr.mxu0 %v6238
  %v6240 = vand.u32 %v367, 4294901760
  %v6241 = vsub.f32 %v367, %v6240
  %v6242 = vand.u32 %v6241, 4294901760
  %6243 = vmatpush1.msra.mxu0 %v6242
  %6244 = vmatprep.subr.mxu0 0.0
  %6245 = vmatpush2.msra.mxu0 0.0
  %6246 = vmatprep.subr.mxu0 0.0
  %6247 = vmatpush2.msra.mxu0 0.0
  %6248 = vmatprep.subr.mxu0 0.0
  %6249 = vmatpush2.msra.mxu0 0.0
  %6250 = vmatprep.subr.mxu0 0.0
  %6251 = vmatpush2.msra.mxu0 0.0
  %6252 = vmatprep.subr.mxu0 0.0
  %6253 = vmatpush2.msra.mxu0 0.0
  %6254 = vmatprep.subr.mxu0 0.0
  %6255 = vmatpush2.msra.mxu0 0.0
  %6256 = vmatprep.subr.mxu0 0.0
  %6257 = vmatpush2.msra.mxu0 0.0
  %6258 = vmatprep.subr.mxu0 0.0
  %6259 = vmatpush2.msra.mxu0 0.0
  %6260 = vmatprep.subr.mxu0 0.0
  %6261 = vmatpush2.msra.mxu0 0.0
  %6262 = vmatprep.subr.mxu0 0.0
  %6263 = vmatpush2.msra.mxu0 0.0
  %6264 = vmatprep.subr.mxu0 0.0
  %6265 = vmatpush2.msra.mxu0 0.0
  %6266 = vmatprep.subr.mxu0 0.0
  %6267 = vmatpush2.msra.mxu0 0.0
  %6268 = vmatprep.subr.mxu0 0.0
  %6269 = vmatpush2.msra.mxu0 0.0
  %6270 = vmatprep.subr.mxu0 0.0
  %6271 = vmatpush2.msra.mxu0 0.0
  %6272 = vmatprep.subr.mxu0 0.0
  %6273 = vmatpush2.msra.mxu0 0.0
  %6274 = vmatprep.subr.mxu0 0.0
  %6275 = vmatpush2.msra.mxu0 0.0
  %6276 = vmatprep.mubr.f32.mxu0 0.0
  %v6277 = vand.u32 %v5795, 4294901760
  %6278 = vmatmul.mubr.f32.gmra.mxu0 %v6277
  %v6279 = vpop.f32.mrf.mxu0
  %v6280 = vadd.f32 %v6178, %v6279
  %v6281 = vpop.f32.mrf.mxu0
  %v6282 = vadd.f32 %v6180, %v6281
  %6283 = vdwg.mxu0
  %6284 = vmatprep.subr.mxu0 0.0
  %6285 = vmatpush1.msra.mxu0 0.0
  %6286 = vmatprep.subr.mxu0 0.0
  %6287 = vmatpush1.msra.mxu0 0.0
  %6288 = vmatprep.subr.mxu0 0.0
  %6289 = vmatpush1.msra.mxu0 0.0
  %6290 = vmatprep.subr.mxu0 0.0
  %6291 = vmatpush1.msra.mxu0 0.0
  %6292 = vmatprep.subr.mxu0 0.0
  %6293 = vmatpush1.msra.mxu0 0.0
  %6294 = vmatprep.subr.mxu0 0.0
  %6295 = vmatpush1.msra.mxu0 0.0
  %6296 = vmatprep.subr.mxu0 0.0
  %6297 = vmatpush1.msra.mxu0 0.0
  %6298 = vmatprep.subr.mxu0 0.0
  %6299 = vmatpush1.msra.mxu0 0.0
  %6300 = vmatprep.subr.mxu0 0.0
  %6301 = vmatpush1.msra.mxu0 0.0
  %6302 = vmatprep.subr.mxu0 0.0
  %6303 = vmatpush1.msra.mxu0 0.0
  %6304 = vmatprep.subr.mxu0 0.0
  %6305 = vmatpush1.msra.mxu0 0.0
  %v6306 = vand.u32 %v397, 4294901760
  %6307 = vmatprep.subr.mxu0 %v6306
  %v6308 = vand.u32 %v394, 4294901760
  %6309 = vmatpush1.msra.mxu0 %v6308
  %v6310 = vand.u32 %v380, 4294901760
  %6311 = vmatprep.subr.mxu0 %v6310
  %v6312 = vand.u32 %v379, 4294901760
  %6313 = vmatpush1.msra.mxu0 %v6312
  %v6314 = vand.u32 %v376, 4294901760
  %6315 = vmatprep.subr.mxu0 %v6314
  %v6316 = vand.u32 %v375, 4294901760
  %6317 = vmatpush1.msra.mxu0 %v6316
  %v6318 = vand.u32 %v372, 4294901760
  %6319 = vmatprep.subr.mxu0 %v6318
  %v6320 = vand.u32 %v371, 4294901760
  %6321 = vmatpush1.msra.mxu0 %v6320
  %v6322 = vand.u32 %v368, 4294901760
  %6323 = vmatprep.subr.mxu0 %v6322
  %v6324 = vand.u32 %v367, 4294901760
  %6325 = vmatpush1.msra.mxu0 %v6324
  %6326 = vmatprep.subr.mxu0 0.0
  %6327 = vmatpush2.msra.mxu0 0.0
  %6328 = vmatprep.subr.mxu0 0.0
  %6329 = vmatpush2.msra.mxu0 0.0
  %6330 = vmatprep.subr.mxu0 0.0
  %6331 = vmatpush2.msra.mxu0 0.0
  %6332 = vmatprep.subr.mxu0 0.0
  %6333 = vmatpush2.msra.mxu0 0.0
  %6334 = vmatprep.subr.mxu0 0.0
  %6335 = vmatpush2.msra.mxu0 0.0
  %6336 = vmatprep.subr.mxu0 0.0
  %6337 = vmatpush2.msra.mxu0 0.0
  %6338 = vmatprep.subr.mxu0 0.0
  %6339 = vmatpush2.msra.mxu0 0.0
  %6340 = vmatprep.subr.mxu0 0.0
  %6341 = vmatpush2.msra.mxu0 0.0
  %6342 = vmatprep.subr.mxu0 0.0
  %6343 = vmatpush2.msra.mxu0 0.0
  %6344 = vmatprep.subr.mxu0 0.0
  %6345 = vmatpush2.msra.mxu0 0.0
  %6346 = vmatprep.subr.mxu0 0.0
  %6347 = vmatpush2.msra.mxu0 0.0
  %6348 = vmatprep.subr.mxu0 0.0
  %6349 = vmatpush2.msra.mxu0 0.0
  %6350 = vmatprep.subr.mxu0 0.0
  %6351 = vmatpush2.msra.mxu0 0.0
  %6352 = vmatprep.subr.mxu0 0.0
  %6353 = vmatpush2.msra.mxu0 0.0
  %6354 = vmatprep.subr.mxu0 0.0
  %6355 = vmatpush2.msra.mxu0 0.0
  %6356 = vmatprep.subr.mxu0 0.0
  %6357 = vmatpush2.msra.mxu0 0.0
  %6358 = vmatprep.mubr.f32.mxu0 0.0
  %v6359 = vand.u32 %v5795, 4294901760
  %6360 = vmatmul.mubr.f32.gmra.mxu0 %v6359
  %v6361 = vpop.f32.mrf.mxu0
  %v6362 = vadd.f32 %v6280, %v6361
  %v6363 = vpop.f32.mrf.mxu0
  %v6364 = vadd.f32 %v6282, %v6363
  %6365 = vdwg.mxu0
  %6366 = vmatprep.subr.mxu0 0.0
  %6367 = vmatpush1.msra.mxu0 0.0
  %6368 = vmatprep.subr.mxu0 0.0
  %6369 = vmatpush1.msra.mxu0 0.0
  %6370 = vmatprep.subr.mxu0 0.0
  %6371 = vmatpush1.msra.mxu0 0.0
  %6372 = vmatprep.subr.mxu0 0.0
  %6373 = vmatpush1.msra.mxu0 0.0
  %6374 = vmatprep.subr.mxu0 0.0
  %6375 = vmatpush1.msra.mxu0 0.0
  %6376 = vmatprep.subr.mxu0 0.0
  %6377 = vmatpush1.msra.mxu0 0.0
  %6378 = vmatprep.subr.mxu0 0.0
  %6379 = vmatpush1.msra.mxu0 0.0
  %6380 = vmatprep.subr.mxu0 0.0
  %6381 = vmatpush1.msra.mxu0 0.0
  %6382 = vmatprep.subr.mxu0 0.0
  %6383 = vmatpush1.msra.mxu0 0.0
  %6384 = vmatprep.subr.mxu0 0.0
  %6385 = vmatpush1.msra.mxu0 0.0
  %6386 = vmatprep.subr.mxu0 0.0
  %6387 = vmatpush1.msra.mxu0 0.0
  %v6388 = vand.u32 %v403, 4294901760
  %6389 = vmatprep.subr.mxu0 %v6388
  %v6390 = vand.u32 %v400, 4294901760
  %6391 = vmatpush1.msra.mxu0 %v6390
  %v6392 = vand.u32 %v382, 4294901760
  %6393 = vmatprep.subr.mxu0 %v6392
  %v6394 = vand.u32 %v381, 4294901760
  %6395 = vmatpush1.msra.mxu0 %v6394
  %v6396 = vand.u32 %v378, 4294901760
  %6397 = vmatprep.subr.mxu0 %v6396
  %v6398 = vand.u32 %v377, 4294901760
  %6399 = vmatpush1.msra.mxu0 %v6398
  %v6400 = vand.u32 %v374, 4294901760
  %6401 = vmatprep.subr.mxu0 %v6400
  %v6402 = vand.u32 %v373, 4294901760
  %6403 = vmatpush1.msra.mxu0 %v6402
  %v6404 = vand.u32 %v370, 4294901760
  %6405 = vmatprep.subr.mxu0 %v6404
  %v6406 = vand.u32 %v369, 4294901760
  %6407 = vmatpush1.msra.mxu0 %v6406
  %6408 = vmatprep.subr.mxu0 0.0
  %6409 = vmatpush2.msra.mxu0 0.0
  %6410 = vmatprep.subr.mxu0 0.0
  %6411 = vmatpush2.msra.mxu0 0.0
  %6412 = vmatprep.subr.mxu0 0.0
  %6413 = vmatpush2.msra.mxu0 0.0
  %6414 = vmatprep.subr.mxu0 0.0
  %6415 = vmatpush2.msra.mxu0 0.0
  %6416 = vmatprep.subr.mxu0 0.0
  %6417 = vmatpush2.msra.mxu0 0.0
  %6418 = vmatprep.subr.mxu0 0.0
  %6419 = vmatpush2.msra.mxu0 0.0
  %6420 = vmatprep.subr.mxu0 0.0
  %6421 = vmatpush2.msra.mxu0 0.0
  %6422 = vmatprep.subr.mxu0 0.0
  %6423 = vmatpush2.msra.mxu0 0.0
  %6424 = vmatprep.subr.mxu0 0.0
  %6425 = vmatpush2.msra.mxu0 0.0
  %6426 = vmatprep.subr.mxu0 0.0
  %6427 = vmatpush2.msra.mxu0 0.0
  %6428 = vmatprep.subr.mxu0 0.0
  %6429 = vmatpush2.msra.mxu0 0.0
  %6430 = vmatprep.subr.mxu0 0.0
  %6431 = vmatpush2.msra.mxu0 0.0
  %6432 = vmatprep.subr.mxu0 0.0
  %6433 = vmatpush2.msra.mxu0 0.0
  %6434 = vmatprep.subr.mxu0 0.0
  %6435 = vmatpush2.msra.mxu0 0.0
  %6436 = vmatprep.subr.mxu0 0.0
  %6437 = vmatpush2.msra.mxu0 0.0
  %6438 = vmatprep.subr.mxu0 0.0
  %6439 = vmatpush2.msra.mxu0 0.0
  %6440 = vmatprep.mubr.f32.mxu0 0.0
  %v6441 = vand.u32 %v5795, 4294901760
  %v6442 = vsub.f32 %v5795, %v6441
  %v6443 = vand.u32 %v6442, 4294901760
  %v6444 = vsub.f32 %v6442, %v6443
  %v6445 = vand.u32 %v6444, 4294901760
  %6446 = vmatmul.mubr.f32.gmra.mxu0 %v6445
  %v6447 = vpop.f32.mrf.mxu0
  %v6448 = vadd.f32 0.0, %v6447
  %v6449 = vpop.f32.mrf.mxu0
  %v6450 = vadd.f32 0.0, %v6449
  %6451 = vdwg.mxu0
  %6452 = vmatprep.subr.mxu0 0.0
  %6453 = vmatpush1.msra.mxu0 0.0
  %6454 = vmatprep.subr.mxu0 0.0
  %6455 = vmatpush1.msra.mxu0 0.0
  %6456 = vmatprep.subr.mxu0 0.0
  %6457 = vmatpush1.msra.mxu0 0.0
  %6458 = vmatprep.subr.mxu0 0.0
  %6459 = vmatpush1.msra.mxu0 0.0
  %6460 = vmatprep.subr.mxu0 0.0
  %6461 = vmatpush1.msra.mxu0 0.0
  %6462 = vmatprep.subr.mxu0 0.0
  %6463 = vmatpush1.msra.mxu0 0.0
  %6464 = vmatprep.subr.mxu0 0.0
  %6465 = vmatpush1.msra.mxu0 0.0
  %6466 = vmatprep.subr.mxu0 0.0
  %6467 = vmatpush1.msra.mxu0 0.0
  %6468 = vmatprep.subr.mxu0 0.0
  %6469 = vmatpush1.msra.mxu0 0.0
  %6470 = vmatprep.subr.mxu0 0.0
  %6471 = vmatpush1.msra.mxu0 0.0
  %6472 = vmatprep.subr.mxu0 0.0
  %6473 = vmatpush1.msra.mxu0 0.0
  %v6474 = vand.u32 %v403, 4294901760
  %v6475 = vsub.f32 %v403, %v6474
  %v6476 = vand.u32 %v6475, 4294901760
  %v6477 = vsub.f32 %v6475, %v6476
  %v6478 = vand.u32 %v6477, 4294901760
  %6479 = vmatprep.subr.mxu0 %v6478
  %v6480 = vand.u32 %v400, 4294901760
  %v6481 = vsub.f32 %v400, %v6480
  %v6482 = vand.u32 %v6481, 4294901760
  %v6483 = vsub.f32 %v6481, %v6482
  %v6484 = vand.u32 %v6483, 4294901760
  %6485 = vmatpush1.msra.mxu0 %v6484
  %v6486 = vand.u32 %v382, 4294901760
  %v6487 = vsub.f32 %v382, %v6486
  %v6488 = vand.u32 %v6487, 4294901760
  %v6489 = vsub.f32 %v6487, %v6488
  %v6490 = vand.u32 %v6489, 4294901760
  %6491 = vmatprep.subr.mxu0 %v6490
  %v6492 = vand.u32 %v381, 4294901760
  %v6493 = vsub.f32 %v381, %v6492
  %v6494 = vand.u32 %v6493, 4294901760
  %v6495 = vsub.f32 %v6493, %v6494
  %v6496 = vand.u32 %v6495, 4294901760
  %6497 = vmatpush1.msra.mxu0 %v6496
  %v6498 = vand.u32 %v378, 4294901760
  %v6499 = vsub.f32 %v378, %v6498
  %v6500 = vand.u32 %v6499, 4294901760
  %v6501 = vsub.f32 %v6499, %v6500
  %v6502 = vand.u32 %v6501, 4294901760
  %6503 = vmatprep.subr.mxu0 %v6502
  %v6504 = vand.u32 %v377, 4294901760
  %v6505 = vsub.f32 %v377, %v6504
  %v6506 = vand.u32 %v6505, 4294901760
  %v6507 = vsub.f32 %v6505, %v6506
  %v6508 = vand.u32 %v6507, 4294901760
  %6509 = vmatpush1.msra.mxu0 %v6508
  %v6510 = vand.u32 %v374, 4294901760
  %v6511 = vsub.f32 %v374, %v6510
  %v6512 = vand.u32 %v6511, 4294901760
  %v6513 = vsub.f32 %v6511, %v6512
  %v6514 = vand.u32 %v6513, 4294901760
  %6515 = vmatprep.subr.mxu0 %v6514
  %v6516 = vand.u32 %v373, 4294901760
  %v6517 = vsub.f32 %v373, %v6516
  %v6518 = vand.u32 %v6517, 4294901760
  %v6519 = vsub.f32 %v6517, %v6518
  %v6520 = vand.u32 %v6519, 4294901760
  %6521 = vmatpush1.msra.mxu0 %v6520
  %v6522 = vand.u32 %v370, 4294901760
  %v6523 = vsub.f32 %v370, %v6522
  %v6524 = vand.u32 %v6523, 4294901760
  %v6525 = vsub.f32 %v6523, %v6524
  %v6526 = vand.u32 %v6525, 4294901760
  %6527 = vmatprep.subr.mxu0 %v6526
  %v6528 = vand.u32 %v369, 4294901760
  %v6529 = vsub.f32 %v369, %v6528
  %v6530 = vand.u32 %v6529, 4294901760
  %v6531 = vsub.f32 %v6529, %v6530
  %v6532 = vand.u32 %v6531, 4294901760
  %6533 = vmatpush1.msra.mxu0 %v6532
  %6534 = vmatprep.subr.mxu0 0.0
  %6535 = vmatpush2.msra.mxu0 0.0
  %6536 = vmatprep.subr.mxu0 0.0
  %6537 = vmatpush2.msra.mxu0 0.0
  %6538 = vmatprep.subr.mxu0 0.0
  %6539 = vmatpush2.msra.mxu0 0.0
  %6540 = vmatprep.subr.mxu0 0.0
  %6541 = vmatpush2.msra.mxu0 0.0
  %6542 = vmatprep.subr.mxu0 0.0
  %6543 = vmatpush2.msra.mxu0 0.0
  %6544 = vmatprep.subr.mxu0 0.0
  %6545 = vmatpush2.msra.mxu0 0.0
  %6546 = vmatprep.subr.mxu0 0.0
  %6547 = vmatpush2.msra.mxu0 0.0
  %6548 = vmatprep.subr.mxu0 0.0
  %6549 = vmatpush2.msra.mxu0 0.0
  %6550 = vmatprep.subr.mxu0 0.0
  %6551 = vmatpush2.msra.mxu0 0.0
  %6552 = vmatprep.subr.mxu0 0.0
  %6553 = vmatpush2.msra.mxu0 0.0
  %6554 = vmatprep.subr.mxu0 0.0
  %6555 = vmatpush2.msra.mxu0 0.0
  %6556 = vmatprep.subr.mxu0 0.0
  %6557 = vmatpush2.msra.mxu0 0.0
  %6558 = vmatprep.subr.mxu0 0.0
  %6559 = vmatpush2.msra.mxu0 0.0
  %6560 = vmatprep.subr.mxu0 0.0
  %6561 = vmatpush2.msra.mxu0 0.0
  %6562 = vmatprep.subr.mxu0 0.0
  %6563 = vmatpush2.msra.mxu0 0.0
  %6564 = vmatprep.subr.mxu0 0.0
  %6565 = vmatpush2.msra.mxu0 0.0
  %6566 = vmatprep.mubr.f32.mxu0 0.0
  %v6567 = vand.u32 %v5795, 4294901760
  %6568 = vmatmul.mubr.f32.gmra.mxu0 %v6567
  %v6569 = vpop.f32.mrf.mxu0
  %v6570 = vadd.f32 %v6448, %v6569
  %v6571 = vpop.f32.mrf.mxu0
  %v6572 = vadd.f32 %v6450, %v6571
  %6573 = vdwg.mxu0
  %6574 = vmatprep.subr.mxu0 0.0
  %6575 = vmatpush1.msra.mxu0 0.0
  %6576 = vmatprep.subr.mxu0 0.0
  %6577 = vmatpush1.msra.mxu0 0.0
  %6578 = vmatprep.subr.mxu0 0.0
  %6579 = vmatpush1.msra.mxu0 0.0
  %6580 = vmatprep.subr.mxu0 0.0
  %6581 = vmatpush1.msra.mxu0 0.0
  %6582 = vmatprep.subr.mxu0 0.0
  %6583 = vmatpush1.msra.mxu0 0.0
  %6584 = vmatprep.subr.mxu0 0.0
  %6585 = vmatpush1.msra.mxu0 0.0
  %6586 = vmatprep.subr.mxu0 0.0
  %6587 = vmatpush1.msra.mxu0 0.0
  %6588 = vmatprep.subr.mxu0 0.0
  %6589 = vmatpush1.msra.mxu0 0.0
  %6590 = vmatprep.subr.mxu0 0.0
  %6591 = vmatpush1.msra.mxu0 0.0
  %6592 = vmatprep.subr.mxu0 0.0
  %6593 = vmatpush1.msra.mxu0 0.0
  %6594 = vmatprep.subr.mxu0 0.0
  %6595 = vmatpush1.msra.mxu0 0.0
  %v6596 = vand.u32 %v403, 4294901760
  %v6597 = vsub.f32 %v403, %v6596
  %6598 = vmatprep.subr.mxu0 %v6597
  %v6599 = vand.u32 %v400, 4294901760
  %v6600 = vsub.f32 %v400, %v6599
  %6601 = vmatpush1.msra.mxu0 %v6600
  %v6602 = vand.u32 %v382, 4294901760
  %v6603 = vsub.f32 %v382, %v6602
  %6604 = vmatprep.subr.mxu0 %v6603
  %v6605 = vand.u32 %v381, 4294901760
  %v6606 = vsub.f32 %v381, %v6605
  %6607 = vmatpush1.msra.mxu0 %v6606
  %v6608 = vand.u32 %v378, 4294901760
  %v6609 = vsub.f32 %v378, %v6608
  %6610 = vmatprep.subr.mxu0 %v6609
  %v6611 = vand.u32 %v377, 4294901760
  %v6612 = vsub.f32 %v377, %v6611
  %6613 = vmatpush1.msra.mxu0 %v6612
  %v6614 = vand.u32 %v374, 4294901760
  %v6615 = vsub.f32 %v374, %v6614
  %6616 = vmatprep.subr.mxu0 %v6615
  %v6617 = vand.u32 %v373, 4294901760
  %v6618 = vsub.f32 %v373, %v6617
  %6619 = vmatpush1.msra.mxu0 %v6618
  %v6620 = vand.u32 %v370, 4294901760
  %v6621 = vsub.f32 %v370, %v6620
  %6622 = vmatprep.subr.mxu0 %v6621
  %v6623 = vand.u32 %v369, 4294901760
  %v6624 = vsub.f32 %v369, %v6623
  %6625 = vmatpush1.msra.mxu0 %v6624
  %6626 = vmatprep.subr.mxu0 0.0
  %6627 = vmatpush2.msra.mxu0 0.0
  %6628 = vmatprep.subr.mxu0 0.0
  %6629 = vmatpush2.msra.mxu0 0.0
  %6630 = vmatprep.subr.mxu0 0.0
  %6631 = vmatpush2.msra.mxu0 0.0
  %6632 = vmatprep.subr.mxu0 0.0
  %6633 = vmatpush2.msra.mxu0 0.0
  %6634 = vmatprep.subr.mxu0 0.0
  %6635 = vmatpush2.msra.mxu0 0.0
  %6636 = vmatprep.subr.mxu0 0.0
  %6637 = vmatpush2.msra.mxu0 0.0
  %6638 = vmatprep.subr.mxu0 0.0
  %6639 = vmatpush2.msra.mxu0 0.0
  %6640 = vmatprep.subr.mxu0 0.0
  %6641 = vmatpush2.msra.mxu0 0.0
  %6642 = vmatprep.subr.mxu0 0.0
  %6643 = vmatpush2.msra.mxu0 0.0
  %6644 = vmatprep.subr.mxu0 0.0
  %6645 = vmatpush2.msra.mxu0 0.0
  %6646 = vmatprep.subr.mxu0 0.0
  %6647 = vmatpush2.msra.mxu0 0.0
  %6648 = vmatprep.subr.mxu0 0.0
  %6649 = vmatpush2.msra.mxu0 0.0
  %6650 = vmatprep.subr.mxu0 0.0
  %6651 = vmatpush2.msra.mxu0 0.0
  %6652 = vmatprep.subr.mxu0 0.0
  %6653 = vmatpush2.msra.mxu0 0.0
  %6654 = vmatprep.subr.mxu0 0.0
  %6655 = vmatpush2.msra.mxu0 0.0
  %6656 = vmatprep.subr.mxu0 0.0
  %6657 = vmatpush2.msra.mxu0 0.0
  %6658 = vmatprep.mubr.f32.mxu0 0.0
  %v6659 = vand.u32 %v5795, 4294901760
  %v6660 = vsub.f32 %v5795, %v6659
  %6661 = vmatmul.mubr.f32.gmra.mxu0 %v6660
  %v6662 = vpop.f32.mrf.mxu0
  %v6663 = vadd.f32 %v6570, %v6662
  %v6664 = vpop.f32.mrf.mxu0
  %v6665 = vadd.f32 %v6572, %v6664
  %6666 = vdwg.mxu0
  %6667 = vmatprep.subr.mxu0 0.0
  %6668 = vmatpush1.msra.mxu0 0.0
  %6669 = vmatprep.subr.mxu0 0.0
  %6670 = vmatpush1.msra.mxu0 0.0
  %6671 = vmatprep.subr.mxu0 0.0
  %6672 = vmatpush1.msra.mxu0 0.0
  %6673 = vmatprep.subr.mxu0 0.0
  %6674 = vmatpush1.msra.mxu0 0.0
  %6675 = vmatprep.subr.mxu0 0.0
  %6676 = vmatpush1.msra.mxu0 0.0
  %6677 = vmatprep.subr.mxu0 0.0
  %6678 = vmatpush1.msra.mxu0 0.0
  %6679 = vmatprep.subr.mxu0 0.0
  %6680 = vmatpush1.msra.mxu0 0.0
  %6681 = vmatprep.subr.mxu0 0.0
  %6682 = vmatpush1.msra.mxu0 0.0
  %6683 = vmatprep.subr.mxu0 0.0
  %6684 = vmatpush1.msra.mxu0 0.0
  %6685 = vmatprep.subr.mxu0 0.0
  %6686 = vmatpush1.msra.mxu0 0.0
  %6687 = vmatprep.subr.mxu0 0.0
  %6688 = vmatpush1.msra.mxu0 0.0
  %v6689 = vand.u32 %v403, 4294901760
  %6690 = vmatprep.subr.mxu0 %v6689
  %v6691 = vand.u32 %v400, 4294901760
  %6692 = vmatpush1.msra.mxu0 %v6691
  %v6693 = vand.u32 %v382, 4294901760
  %6694 = vmatprep.subr.mxu0 %v6693
  %v6695 = vand.u32 %v381, 4294901760
  %6696 = vmatpush1.msra.mxu0 %v6695
  %v6697 = vand.u32 %v378, 4294901760
  %6698 = vmatprep.subr.mxu0 %v6697
  %v6699 = vand.u32 %v377, 4294901760
  %6700 = vmatpush1.msra.mxu0 %v6699
  %v6701 = vand.u32 %v374, 4294901760
  %6702 = vmatprep.subr.mxu0 %v6701
  %v6703 = vand.u32 %v373, 4294901760
  %6704 = vmatpush1.msra.mxu0 %v6703
  %v6705 = vand.u32 %v370, 4294901760
  %6706 = vmatprep.subr.mxu0 %v6705
  %v6707 = vand.u32 %v369, 4294901760
  %6708 = vmatpush1.msra.mxu0 %v6707
  %6709 = vmatprep.subr.mxu0 0.0
  %6710 = vmatpush2.msra.mxu0 0.0
  %6711 = vmatprep.subr.mxu0 0.0
  %6712 = vmatpush2.msra.mxu0 0.0
  %6713 = vmatprep.subr.mxu0 0.0
  %6714 = vmatpush2.msra.mxu0 0.0
  %6715 = vmatprep.subr.mxu0 0.0
  %6716 = vmatpush2.msra.mxu0 0.0
  %6717 = vmatprep.subr.mxu0 0.0
  %6718 = vmatpush2.msra.mxu0 0.0
  %6719 = vmatprep.subr.mxu0 0.0
  %6720 = vmatpush2.msra.mxu0 0.0
  %6721 = vmatprep.subr.mxu0 0.0
  %6722 = vmatpush2.msra.mxu0 0.0
  %6723 = vmatprep.subr.mxu0 0.0
  %6724 = vmatpush2.msra.mxu0 0.0
  %6725 = vmatprep.subr.mxu0 0.0
  %6726 = vmatpush2.msra.mxu0 0.0
  %6727 = vmatprep.subr.mxu0 0.0
  %6728 = vmatpush2.msra.mxu0 0.0
  %6729 = vmatprep.subr.mxu0 0.0
  %6730 = vmatpush2.msra.mxu0 0.0
  %6731 = vmatprep.subr.mxu0 0.0
  %6732 = vmatpush2.msra.mxu0 0.0
  %6733 = vmatprep.subr.mxu0 0.0
  %6734 = vmatpush2.msra.mxu0 0.0
  %6735 = vmatprep.subr.mxu0 0.0
  %6736 = vmatpush2.msra.mxu0 0.0
  %6737 = vmatprep.subr.mxu0 0.0
  %6738 = vmatpush2.msra.mxu0 0.0
  %6739 = vmatprep.subr.mxu0 0.0
  %6740 = vmatpush2.msra.mxu0 0.0
  %6741 = vmatprep.mubr.f32.mxu0 0.0
  %v6742 = vand.u32 %v5795, 4294901760
  %v6743 = vsub.f32 %v5795, %v6742
  %v6744 = vand.u32 %v6743, 4294901760
  %6745 = vmatmul.mubr.f32.gmra.mxu0 %v6744
  %v6746 = vpop.f32.mrf.mxu0
  %v6747 = vadd.f32 %v6663, %v6746
  %v6748 = vpop.f32.mrf.mxu0
  %v6749 = vadd.f32 %v6665, %v6748
  %6750 = vdwg.mxu0
  %6751 = vmatprep.subr.mxu0 0.0
  %6752 = vmatpush1.msra.mxu0 0.0
  %6753 = vmatprep.subr.mxu0 0.0
  %6754 = vmatpush1.msra.mxu0 0.0
  %6755 = vmatprep.subr.mxu0 0.0
  %6756 = vmatpush1.msra.mxu0 0.0
  %6757 = vmatprep.subr.mxu0 0.0
  %6758 = vmatpush1.msra.mxu0 0.0
  %6759 = vmatprep.subr.mxu0 0.0
  %6760 = vmatpush1.msra.mxu0 0.0
  %6761 = vmatprep.subr.mxu0 0.0
  %6762 = vmatpush1.msra.mxu0 0.0
  %6763 = vmatprep.subr.mxu0 0.0
  %6764 = vmatpush1.msra.mxu0 0.0
  %6765 = vmatprep.subr.mxu0 0.0
  %6766 = vmatpush1.msra.mxu0 0.0
  %6767 = vmatprep.subr.mxu0 0.0
  %6768 = vmatpush1.msra.mxu0 0.0
  %6769 = vmatprep.subr.mxu0 0.0
  %6770 = vmatpush1.msra.mxu0 0.0
  %6771 = vmatprep.subr.mxu0 0.0
  %6772 = vmatpush1.msra.mxu0 0.0
  %v6773 = vand.u32 %v403, 4294901760
  %v6774 = vsub.f32 %v403, %v6773
  %v6775 = vand.u32 %v6774, 4294901760
  %6776 = vmatprep.subr.mxu0 %v6775
  %v6777 = vand.u32 %v400, 4294901760
  %v6778 = vsub.f32 %v400, %v6777
  %v6779 = vand.u32 %v6778, 4294901760
  %6780 = vmatpush1.msra.mxu0 %v6779
  %v6781 = vand.u32 %v382, 4294901760
  %v6782 = vsub.f32 %v382, %v6781
  %v6783 = vand.u32 %v6782, 4294901760
  %6784 = vmatprep.subr.mxu0 %v6783
  %v6785 = vand.u32 %v381, 4294901760
  %v6786 = vsub.f32 %v381, %v6785
  %v6787 = vand.u32 %v6786, 4294901760
  %6788 = vmatpush1.msra.mxu0 %v6787
  %v6789 = vand.u32 %v378, 4294901760
  %v6790 = vsub.f32 %v378, %v6789
  %v6791 = vand.u32 %v6790, 4294901760
  %6792 = vmatprep.subr.mxu0 %v6791
  %v6793 = vand.u32 %v377, 4294901760
  %v6794 = vsub.f32 %v377, %v6793
  %v6795 = vand.u32 %v6794, 4294901760
  %6796 = vmatpush1.msra.mxu0 %v6795
  %v6797 = vand.u32 %v374, 4294901760
  %v6798 = vsub.f32 %v374, %v6797
  %v6799 = vand.u32 %v6798, 4294901760
  %6800 = vmatprep.subr.mxu0 %v6799
  %v6801 = vand.u32 %v373, 4294901760
  %v6802 = vsub.f32 %v373, %v6801
  %v6803 = vand.u32 %v6802, 4294901760
  %6804 = vmatpush1.msra.mxu0 %v6803
  %v6805 = vand.u32 %v370, 4294901760
  %v6806 = vsub.f32 %v370, %v6805
  %v6807 = vand.u32 %v6806, 4294901760
  %6808 = vmatprep.subr.mxu0 %v6807
  %v6809 = vand.u32 %v369, 4294901760
  %v6810 = vsub.f32 %v369, %v6809
  %v6811 = vand.u32 %v6810, 4294901760
  %6812 = vmatpush1.msra.mxu0 %v6811
  %6813 = vmatprep.subr.mxu0 0.0
  %6814 = vmatpush2.msra.mxu0 0.0
  %6815 = vmatprep.subr.mxu0 0.0
  %6816 = vmatpush2.msra.mxu0 0.0
  %6817 = vmatprep.subr.mxu0 0.0
  %6818 = vmatpush2.msra.mxu0 0.0
  %6819 = vmatprep.subr.mxu0 0.0
  %6820 = vmatpush2.msra.mxu0 0.0
  %6821 = vmatprep.subr.mxu0 0.0
  %6822 = vmatpush2.msra.mxu0 0.0
  %6823 = vmatprep.subr.mxu0 0.0
  %6824 = vmatpush2.msra.mxu0 0.0
  %6825 = vmatprep.subr.mxu0 0.0
  %6826 = vmatpush2.msra.mxu0 0.0
  %6827 = vmatprep.subr.mxu0 0.0
  %6828 = vmatpush2.msra.mxu0 0.0
  %6829 = vmatprep.subr.mxu0 0.0
  %6830 = vmatpush2.msra.mxu0 0.0
  %6831 = vmatprep.subr.mxu0 0.0
  %6832 = vmatpush2.msra.mxu0 0.0
  %6833 = vmatprep.subr.mxu0 0.0
  %6834 = vmatpush2.msra.mxu0 0.0
  %6835 = vmatprep.subr.mxu0 0.0
  %6836 = vmatpush2.msra.mxu0 0.0
  %6837 = vmatprep.subr.mxu0 0.0
  %6838 = vmatpush2.msra.mxu0 0.0
  %6839 = vmatprep.subr.mxu0 0.0
  %6840 = vmatpush2.msra.mxu0 0.0
  %6841 = vmatprep.subr.mxu0 0.0
  %6842 = vmatpush2.msra.mxu0 0.0
  %6843 = vmatprep.subr.mxu0 0.0
  %6844 = vmatpush2.msra.mxu0 0.0
  %6845 = vmatprep.mubr.f32.mxu0 0.0
  %v6846 = vand.u32 %v5795, 4294901760
  %6847 = vmatmul.mubr.f32.gmra.mxu0 %v6846
  %v6848 = vpop.f32.mrf.mxu0
  %v6849 = vadd.f32 %v6747, %v6848
  %v6850 = vpop.f32.mrf.mxu0
  %v6851 = vadd.f32 %v6749, %v6850
  %6852 = vdwg.mxu0
  %6853 = vmatprep.subr.mxu0 0.0
  %6854 = vmatpush1.msra.mxu0 0.0
  %6855 = vmatprep.subr.mxu0 0.0
  %6856 = vmatpush1.msra.mxu0 0.0
  %6857 = vmatprep.subr.mxu0 0.0
  %6858 = vmatpush1.msra.mxu0 0.0
  %6859 = vmatprep.subr.mxu0 0.0
  %6860 = vmatpush1.msra.mxu0 0.0
  %6861 = vmatprep.subr.mxu0 0.0
  %6862 = vmatpush1.msra.mxu0 0.0
  %6863 = vmatprep.subr.mxu0 0.0
  %6864 = vmatpush1.msra.mxu0 0.0
  %6865 = vmatprep.subr.mxu0 0.0
  %6866 = vmatpush1.msra.mxu0 0.0
  %6867 = vmatprep.subr.mxu0 0.0
  %6868 = vmatpush1.msra.mxu0 0.0
  %6869 = vmatprep.subr.mxu0 0.0
  %6870 = vmatpush1.msra.mxu0 0.0
  %6871 = vmatprep.subr.mxu0 0.0
  %6872 = vmatpush1.msra.mxu0 0.0
  %6873 = vmatprep.subr.mxu0 0.0
  %6874 = vmatpush1.msra.mxu0 0.0
  %v6875 = vand.u32 %v403, 4294901760
  %6876 = vmatprep.subr.mxu0 %v6875
  %v6877 = vand.u32 %v400, 4294901760
  %6878 = vmatpush1.msra.mxu0 %v6877
  %v6879 = vand.u32 %v382, 4294901760
  %6880 = vmatprep.subr.mxu0 %v6879
  %v6881 = vand.u32 %v381, 4294901760
  %6882 = vmatpush1.msra.mxu0 %v6881
  %v6883 = vand.u32 %v378, 4294901760
  %6884 = vmatprep.subr.mxu0 %v6883
  %v6885 = vand.u32 %v377, 4294901760
  %6886 = vmatpush1.msra.mxu0 %v6885
  %v6887 = vand.u32 %v374, 4294901760
  %6888 = vmatprep.subr.mxu0 %v6887
  %v6889 = vand.u32 %v373, 4294901760
  %6890 = vmatpush1.msra.mxu0 %v6889
  %v6891 = vand.u32 %v370, 4294901760
  %6892 = vmatprep.subr.mxu0 %v6891
  %v6893 = vand.u32 %v369, 4294901760
  %6894 = vmatpush1.msra.mxu0 %v6893
  %6895 = vmatprep.subr.mxu0 0.0
  %6896 = vmatpush2.msra.mxu0 0.0
  %6897 = vmatprep.subr.mxu0 0.0
  %6898 = vmatpush2.msra.mxu0 0.0
  %6899 = vmatprep.subr.mxu0 0.0
  %6900 = vmatpush2.msra.mxu0 0.0
  %6901 = vmatprep.subr.mxu0 0.0
  %6902 = vmatpush2.msra.mxu0 0.0
  %6903 = vmatprep.subr.mxu0 0.0
  %6904 = vmatpush2.msra.mxu0 0.0
  %6905 = vmatprep.subr.mxu0 0.0
  %6906 = vmatpush2.msra.mxu0 0.0
  %6907 = vmatprep.subr.mxu0 0.0
  %6908 = vmatpush2.msra.mxu0 0.0
  %6909 = vmatprep.subr.mxu0 0.0
  %6910 = vmatpush2.msra.mxu0 0.0
  %6911 = vmatprep.subr.mxu0 0.0
  %6912 = vmatpush2.msra.mxu0 0.0
  %6913 = vmatprep.subr.mxu0 0.0
  %6914 = vmatpush2.msra.mxu0 0.0
  %6915 = vmatprep.subr.mxu0 0.0
  %6916 = vmatpush2.msra.mxu0 0.0
  %6917 = vmatprep.subr.mxu0 0.0
  %6918 = vmatpush2.msra.mxu0 0.0
  %6919 = vmatprep.subr.mxu0 0.0
  %6920 = vmatpush2.msra.mxu0 0.0
  %6921 = vmatprep.subr.mxu0 0.0
  %6922 = vmatpush2.msra.mxu0 0.0
  %6923 = vmatprep.subr.mxu0 0.0
  %6924 = vmatpush2.msra.mxu0 0.0
  %6925 = vmatprep.subr.mxu0 0.0
  %6926 = vmatpush2.msra.mxu0 0.0
  %6927 = vmatprep.mubr.f32.mxu0 0.0
  %v6928 = vand.u32 %v5795, 4294901760
  %6929 = vmatmul.mubr.f32.gmra.mxu0 %v6928
  %v6930 = vpop.f32.mrf.mxu0
  %v6931 = vadd.f32 %v6849, %v6930
  %v6932 = vpop.f32.mrf.mxu0
  %v6933 = vadd.f32 %v6851, %v6932
  %6934 = vdwg.mxu0
  %v6935 = vmax.f32 %v6362, 0.0
  %v6936 = vmax.f32 %v6364, 0.0
  %v6937 = vmax.f32 %v6931, 0.0
  %v6938 = vmax.f32 %v6933, 0.0
  %6943 = vrot.lane.b32.xlu0 %v6935, 17
  %v6944 = vpop.permute.xlu0 %6943
  %6945 = vrot.lane.b32.xlu0 %v6936, 17
  %v6946 = vpop.permute.xlu0 %6945
  %6947 = vrot.lane.b32.xlu0 %v6937, 17
  %v6948 = vpop.permute.xlu0 %6947
  %6949 = vrot.lane.b32.xlu0 %v6938, 17
  %v6950 = vpop.permute.xlu0 %6949
  %v6951 = vsel %vm74, %v6944, %v6946
  %v6952 = vsel %vm74, %v6946, %v6948
  %v6953 = vsel %vm74, %v6948, %v6950
  %v6959 = vsel %vm74, 0.0, %v6944
  %v6960 = vsel %vm74, %v6950, 0.0
  %v6961 = vsel %vm89, %v6959, 0.0
  %v6962 = vsel %vm90, %v6951, 0.0
  %v6963 = vsel %vm91, %v6952, 0.0
  %v6964 = vsel %vm92, %v6953, 0.0
  %6967 = vrot.lane.b32.xlu0 %v6959, 127
  %v6968 = vpop.permute.xlu0 %6967
  %6969 = vrot.lane.b32.xlu0 %v6951, 127
  %v6970 = vpop.permute.xlu0 %6969
  %6971 = vrot.lane.b32.xlu0 %v6952, 127
  %v6972 = vpop.permute.xlu0 %6971
  %6973 = vrot.lane.b32.xlu0 %v6953, 127
  %v6974 = vpop.permute.xlu0 %6973
  %6975 = vrot.lane.b32.xlu0 %v6960, 127
  %v6976 = vpop.permute.xlu0 %6975
  %v6977 = vsel %vm117, %v6968, %v6970
  %v6978 = vsel %vm117, %v6970, %v6972
  %v6979 = vsel %vm117, %v6972, %v6974
  %v6980 = vsel %vm117, %v6974, %v6976
  %v6985 = vsel %vm101, %v6977, 0.0
  %v6986 = vsel %vm102, %v6978, 0.0
  %v6987 = vsel %vm103, %v6979, 0.0
  %v6988 = vsel %vm104, %v6980, 0.0
  %6989 = vrot.lane.b32.xlu0 %v6959, 126
  %v6990 = vpop.permute.xlu0 %6989
  %6991 = vrot.lane.b32.xlu0 %v6951, 126
  %v6992 = vpop.permute.xlu0 %6991
  %6993 = vrot.lane.b32.xlu0 %v6952, 126
  %v6994 = vpop.permute.xlu0 %6993
  %6995 = vrot.lane.b32.xlu0 %v6953, 126
  %v6996 = vpop.permute.xlu0 %6995
  %6997 = vrot.lane.b32.xlu0 %v6960, 126
  %v6998 = vpop.permute.xlu0 %6997
  %v6999 = vsel %vm148, %v6990, %v6992
  %v7000 = vsel %vm148, %v6992, %v6994
  %v7001 = vsel %vm148, %v6994, %v6996
  %v7002 = vsel %vm148, %v6996, %v6998
  %v7007 = vsel %vm134, %v6999, 0.0
  %v7008 = vsel %vm135, %v7000, 0.0
  %v7009 = vsel %vm136, %v7001, 0.0
  %v7010 = vsel %vm137, %v7002, 0.0
  %7011 = vrot.lane.b32.xlu0 %v6959, 112
  %v7012 = vpop.permute.xlu0 %7011
  %7013 = vrot.lane.b32.xlu0 %v6951, 112
  %v7014 = vpop.permute.xlu0 %7013
  %7015 = vrot.lane.b32.xlu0 %v6952, 112
  %v7016 = vpop.permute.xlu0 %7015
  %7017 = vrot.lane.b32.xlu0 %v6953, 112
  %v7018 = vpop.permute.xlu0 %7017
  %7019 = vrot.lane.b32.xlu0 %v6960, 112
  %v7020 = vpop.permute.xlu0 %7019
  %v7021 = vsel %vm179, %v7012, %v7014
  %v7022 = vsel %vm179, %v7014, %v7016
  %v7023 = vsel %vm179, %v7016, %v7018
  %v7024 = vsel %vm179, %v7018, %v7020
  %v7029 = vsel %vm165, %v7021, 0.0
  %v7030 = vsel %vm166, %v7022, 0.0
  %v7031 = vsel %vm167, %v7023, 0.0
  %v7032 = vsel %vm168, %v7024, 0.0
  %7033 = vrot.lane.b32.xlu0 %v6959, 110
  %v7034 = vpop.permute.xlu0 %7033
  %7035 = vrot.lane.b32.xlu0 %v6951, 110
  %v7036 = vpop.permute.xlu0 %7035
  %7037 = vrot.lane.b32.xlu0 %v6952, 110
  %v7038 = vpop.permute.xlu0 %7037
  %7039 = vrot.lane.b32.xlu0 %v6953, 110
  %v7040 = vpop.permute.xlu0 %7039
  %7041 = vrot.lane.b32.xlu0 %v6960, 110
  %v7042 = vpop.permute.xlu0 %7041
  %v7043 = vsel %vm210, %v7034, %v7036
  %v7044 = vsel %vm210, %v7036, %v7038
  %v7045 = vsel %vm210, %v7038, %v7040
  %v7046 = vsel %vm210, %v7040, %v7042
  %v7051 = vsel %vm196, %v7043, 0.0
  %v7052 = vsel %vm197, %v7044, 0.0
  %v7053 = vsel %vm198, %v7045, 0.0
  %v7054 = vsel %vm199, %v7046, 0.0
  %7055 = vrot.lane.b32.xlu0 %v6959, 96
  %v7056 = vpop.permute.xlu0 %7055
  %7057 = vrot.lane.b32.xlu0 %v6951, 96
  %v7058 = vpop.permute.xlu0 %7057
  %7059 = vrot.lane.b32.xlu0 %v6952, 96
  %v7060 = vpop.permute.xlu0 %7059
  %7061 = vrot.lane.b32.xlu0 %v6953, 96
  %v7062 = vpop.permute.xlu0 %7061
  %7063 = vrot.lane.b32.xlu0 %v6960, 96
  %v7064 = vpop.permute.xlu0 %7063
  %v7065 = vsel %vm241, %v7056, %v7058
  %v7066 = vsel %vm241, %v7058, %v7060
  %v7067 = vsel %vm241, %v7060, %v7062
  %v7068 = vsel %vm241, %v7062, %v7064
  %v7073 = vsel %vm227, %v7065, 0.0
  %v7074 = vsel %vm228, %v7066, 0.0
  %v7075 = vsel %vm229, %v7067, 0.0
  %v7076 = vsel %vm230, %v7068, 0.0
  %7077 = vrot.lane.b32.xlu0 %v6959, 95
  %v7078 = vpop.permute.xlu0 %7077
  %7079 = vrot.lane.b32.xlu0 %v6951, 95
  %v7080 = vpop.permute.xlu0 %7079
  %7081 = vrot.lane.b32.xlu0 %v6952, 95
  %v7082 = vpop.permute.xlu0 %7081
  %7083 = vrot.lane.b32.xlu0 %v6953, 95
  %v7084 = vpop.permute.xlu0 %7083
  %7085 = vrot.lane.b32.xlu0 %v6960, 95
  %v7086 = vpop.permute.xlu0 %7085
  %v7087 = vsel %vm272, %v7078, %v7080
  %v7088 = vsel %vm272, %v7080, %v7082
  %v7089 = vsel %vm272, %v7082, %v7084
  %v7090 = vsel %vm272, %v7084, %v7086
  %v7095 = vsel %vm258, %v7087, 0.0
  %v7096 = vsel %vm259, %v7088, 0.0
  %v7097 = vsel %vm260, %v7089, 0.0
  %v7098 = vsel %vm261, %v7090, 0.0
  %7099 = vrot.lane.b32.xlu0 %v6959, 94
  %v7100 = vpop.permute.xlu0 %7099
  %7101 = vrot.lane.b32.xlu0 %v6951, 94
  %v7102 = vpop.permute.xlu0 %7101
  %7103 = vrot.lane.b32.xlu0 %v6952, 94
  %v7104 = vpop.permute.xlu0 %7103
  %7105 = vrot.lane.b32.xlu0 %v6953, 94
  %v7106 = vpop.permute.xlu0 %7105
  %7107 = vrot.lane.b32.xlu0 %v6960, 94
  %v7108 = vpop.permute.xlu0 %7107
  %v7109 = vsel %vm303, %v7100, %v7102
  %v7110 = vsel %vm303, %v7102, %v7104
  %v7111 = vsel %vm303, %v7104, %v7106
  %v7112 = vsel %vm303, %v7106, %v7108
  %v7117 = vsel %vm289, %v7109, 0.0
  %v7118 = vsel %vm290, %v7110, 0.0
  %v7119 = vsel %vm291, %v7111, 0.0
  %v7120 = vsel %vm292, %v7112, 0.0
  %v7125 = vrot.slane %v6985, 6
  %v7126 = vrot.slane %v6986, 6
  %v7127 = vrot.slane %v6987, 6
  %v7128 = vrot.slane %v6988, 6
  %v7137 = vrot.slane %v7007, 4
  %v7138 = vrot.slane %v7008, 4
  %v7139 = vrot.slane %v7009, 4
  %v7140 = vrot.slane %v7010, 4
  %v7149 = vrot.slane %v7029, 2
  %v7150 = vrot.slane %v7030, 2
  %v7151 = vrot.slane %v7031, 2
  %v7152 = vrot.slane %v7032, 2
  %v7161 = vrot.slane %v7051, 6
  %v7162 = vrot.slane %v7052, 6
  %v7163 = vrot.slane %v7053, 6
  %v7164 = vrot.slane %v7054, 6
  %v7173 = vrot.slane %v7073, 4
  %v7174 = vrot.slane %v7074, 4
  %v7175 = vrot.slane %v7075, 4
  %v7176 = vrot.slane %v7076, 4
  %v7185 = vrot.slane %v7095, 2
  %v7186 = vrot.slane %v7096, 2
  %v7187 = vrot.slane %v7097, 2
  %v7188 = vrot.slane %v7098, 2
  %v7193 = vsel %vm3262, %v6961, %v7125
  %v7194 = vsel %vm3262, %v6962, %v7126
  %v7195 = vsel %vm3262, %v6963, %v7127
  %v7196 = vsel %vm3262, %v6964, %v7128
  %v7197 = vsel %vm366, %v7193, %v7137
  %v7198 = vsel %vm366, %v7194, %v7138
  %v7199 = vsel %vm366, %v7195, %v7139
  %v7200 = vsel %vm366, %v7196, %v7140
  %v7201 = vsel %vm3243, %v7197, %v7149
  %v7202 = vsel %vm3243, %v7198, %v7150
  %v7203 = vsel %vm3243, %v7199, %v7151
  %v7204 = vsel %vm3243, %v7200, %v7152
  %v7205 = vsel %vm3262, %v6935, %v7161
  %v7206 = vsel %vm3262, %v6936, %v7162
  %v7207 = vsel %vm3262, %v6937, %v7163
  %v7208 = vsel %vm3262, %v6938, %v7164
  %v7209 = vsel %vm366, %v7205, %v7173
  %v7210 = vsel %vm366, %v7206, %v7174
  %v7211 = vsel %vm366, %v7207, %v7175
  %v7212 = vsel %vm366, %v7208, %v7176
  %v7213 = vsel %vm3243, %v7209, %v7185
  %v7214 = vsel %vm3243, %v7210, %v7186
  %v7215 = vsel %vm3243, %v7211, %v7187
  %v7216 = vsel %vm3243, %v7212, %v7188
  %v7217 = vsel %vm3262, %v7117, 1.0
  %v7218 = vsel %vm3262, %v7118, 1.0
  %v7219 = vsel %vm3262, %v7119, 1.0
  %v7220 = vsel %vm3262, %v7120, 1.0
  %s7221 = scalar_lea.vmem %s0, 20
  %v7222 = vld [vmem:[%s7221] sm:$0xf]
  %vm7223 = vcmask 154624
  %v7225 = vsel %vm7223, %v7222, 0
  %v7228 = vsel %vm3238, %v7217, 0
  %v7231 = vsel %vm3238, %v7218, 0
  %v7234 = vsel %vm3238, %v7219, 0
  %v7237 = vsel %vm3238, %v7220, 0
  %7239 = vmatprep.subr.mxu0 0.0
  %7240 = vmatpush1.msra.mxu0 0.0
  %7241 = vmatprep.subr.mxu0 0.0
  %7242 = vmatpush1.msra.mxu0 0.0
  %7243 = vmatprep.subr.mxu0 0.0
  %7244 = vmatpush1.msra.mxu0 0.0
  %7245 = vmatprep.subr.mxu0 0.0
  %7246 = vmatpush1.msra.mxu0 0.0
  %7247 = vmatprep.subr.mxu0 0.0
  %7248 = vmatpush1.msra.mxu0 0.0
  %7249 = vmatprep.subr.mxu0 0.0
  %7250 = vmatpush1.msra.mxu0 0.0
  %7251 = vmatprep.subr.mxu0 0.0
  %7252 = vmatpush1.msra.mxu0 0.0
  %7253 = vmatprep.subr.mxu0 0.0
  %7254 = vmatpush1.msra.mxu0 0.0
  %7255 = vmatprep.subr.mxu0 0.0
  %7256 = vmatpush1.msra.mxu0 0.0
  %7257 = vmatprep.subr.mxu0 0.0
  %7258 = vmatpush1.msra.mxu0 0.0
  %7259 = vmatprep.subr.mxu0 0.0
  %7260 = vmatpush1.msra.mxu0 0.0
  %7261 = vmatprep.subr.mxu0 0.0
  %7262 = vmatpush1.msra.mxu0 0.0
  %7263 = vmatprep.subr.mxu0 0.0
  %7264 = vmatpush1.msra.mxu0 0.0
  %v7265 = vand.u32 %v7231, 4294901760
  %7266 = vmatprep.subr.mxu0 %v7265
  %v7267 = vand.u32 %v7228, 4294901760
  %7268 = vmatpush1.msra.mxu0 %v7267
  %v7269 = vand.u32 %v7214, 4294901760
  %7270 = vmatprep.subr.mxu0 %v7269
  %v7271 = vand.u32 %v7213, 4294901760
  %7272 = vmatpush1.msra.mxu0 %v7271
  %v7273 = vand.u32 %v7202, 4294901760
  %7274 = vmatprep.subr.mxu0 %v7273
  %v7275 = vand.u32 %v7201, 4294901760
  %7276 = vmatpush1.msra.mxu0 %v7275
  %7277 = vmatprep.subr.mxu0 0.0
  %7278 = vmatpush2.msra.mxu0 0.0
  %7279 = vmatprep.subr.mxu0 0.0
  %7280 = vmatpush2.msra.mxu0 0.0
  %7281 = vmatprep.subr.mxu0 0.0
  %7282 = vmatpush2.msra.mxu0 0.0
  %7283 = vmatprep.subr.mxu0 0.0
  %7284 = vmatpush2.msra.mxu0 0.0
  %7285 = vmatprep.subr.mxu0 0.0
  %7286 = vmatpush2.msra.mxu0 0.0
  %7287 = vmatprep.subr.mxu0 0.0
  %7288 = vmatpush2.msra.mxu0 0.0
  %7289 = vmatprep.subr.mxu0 0.0
  %7290 = vmatpush2.msra.mxu0 0.0
  %7291 = vmatprep.subr.mxu0 0.0
  %7292 = vmatpush2.msra.mxu0 0.0
  %7293 = vmatprep.subr.mxu0 0.0
  %7294 = vmatpush2.msra.mxu0 0.0
  %7295 = vmatprep.subr.mxu0 0.0
  %7296 = vmatpush2.msra.mxu0 0.0
  %7297 = vmatprep.subr.mxu0 0.0
  %7298 = vmatpush2.msra.mxu0 0.0
  %7299 = vmatprep.subr.mxu0 0.0
  %7300 = vmatpush2.msra.mxu0 0.0
  %7301 = vmatprep.subr.mxu0 0.0
  %7302 = vmatpush2.msra.mxu0 0.0
  %7303 = vmatprep.subr.mxu0 0.0
  %7304 = vmatpush2.msra.mxu0 0.0
  %7305 = vmatprep.subr.mxu0 0.0
  %7306 = vmatpush2.msra.mxu0 0.0
  %7307 = vmatprep.subr.mxu0 0.0
  %7308 = vmatpush2.msra.mxu0 0.0
  %7309 = vmatprep.mubr.f32.mxu0 0.0
  %v7310 = vand.u32 %v7225, 4294901760
  %v7311 = vsub.f32 %v7225, %v7310
  %v7312 = vand.u32 %v7311, 4294901760
  %v7313 = vsub.f32 %v7311, %v7312
  %v7314 = vand.u32 %v7313, 4294901760
  %7315 = vmatmul.mubr.f32.gmra.mxu0 %v7314
  %v7316 = vpop.f32.mrf.mxu0
  %v7317 = vadd.f32 0.0, %v7316
  %v7318 = vpop.f32.mrf.mxu0
  %v7319 = vadd.f32 0.0, %v7318
  %7320 = vdwg.mxu0
  %7321 = vmatprep.subr.mxu0 0.0
  %7322 = vmatpush1.msra.mxu0 0.0
  %7323 = vmatprep.subr.mxu0 0.0
  %7324 = vmatpush1.msra.mxu0 0.0
  %7325 = vmatprep.subr.mxu0 0.0
  %7326 = vmatpush1.msra.mxu0 0.0
  %7327 = vmatprep.subr.mxu0 0.0
  %7328 = vmatpush1.msra.mxu0 0.0
  %7329 = vmatprep.subr.mxu0 0.0
  %7330 = vmatpush1.msra.mxu0 0.0
  %7331 = vmatprep.subr.mxu0 0.0
  %7332 = vmatpush1.msra.mxu0 0.0
  %7333 = vmatprep.subr.mxu0 0.0
  %7334 = vmatpush1.msra.mxu0 0.0
  %7335 = vmatprep.subr.mxu0 0.0
  %7336 = vmatpush1.msra.mxu0 0.0
  %7337 = vmatprep.subr.mxu0 0.0
  %7338 = vmatpush1.msra.mxu0 0.0
  %7339 = vmatprep.subr.mxu0 0.0
  %7340 = vmatpush1.msra.mxu0 0.0
  %7341 = vmatprep.subr.mxu0 0.0
  %7342 = vmatpush1.msra.mxu0 0.0
  %7343 = vmatprep.subr.mxu0 0.0
  %7344 = vmatpush1.msra.mxu0 0.0
  %7345 = vmatprep.subr.mxu0 0.0
  %7346 = vmatpush1.msra.mxu0 0.0
  %v7347 = vand.u32 %v7231, 4294901760
  %v7348 = vsub.f32 %v7231, %v7347
  %v7349 = vand.u32 %v7348, 4294901760
  %v7350 = vsub.f32 %v7348, %v7349
  %v7351 = vand.u32 %v7350, 4294901760
  %7352 = vmatprep.subr.mxu0 %v7351
  %v7353 = vand.u32 %v7228, 4294901760
  %v7354 = vsub.f32 %v7228, %v7353
  %v7355 = vand.u32 %v7354, 4294901760
  %v7356 = vsub.f32 %v7354, %v7355
  %v7357 = vand.u32 %v7356, 4294901760
  %7358 = vmatpush1.msra.mxu0 %v7357
  %v7359 = vand.u32 %v7214, 4294901760
  %v7360 = vsub.f32 %v7214, %v7359
  %v7361 = vand.u32 %v7360, 4294901760
  %v7362 = vsub.f32 %v7360, %v7361
  %v7363 = vand.u32 %v7362, 4294901760
  %7364 = vmatprep.subr.mxu0 %v7363
  %v7365 = vand.u32 %v7213, 4294901760
  %v7366 = vsub.f32 %v7213, %v7365
  %v7367 = vand.u32 %v7366, 4294901760
  %v7368 = vsub.f32 %v7366, %v7367
  %v7369 = vand.u32 %v7368, 4294901760
  %7370 = vmatpush1.msra.mxu0 %v7369
  %v7371 = vand.u32 %v7202, 4294901760
  %v7372 = vsub.f32 %v7202, %v7371
  %v7373 = vand.u32 %v7372, 4294901760
  %v7374 = vsub.f32 %v7372, %v7373
  %v7375 = vand.u32 %v7374, 4294901760
  %7376 = vmatprep.subr.mxu0 %v7375
  %v7377 = vand.u32 %v7201, 4294901760
  %v7378 = vsub.f32 %v7201, %v7377
  %v7379 = vand.u32 %v7378, 4294901760
  %v7380 = vsub.f32 %v7378, %v7379
  %v7381 = vand.u32 %v7380, 4294901760
  %7382 = vmatpush1.msra.mxu0 %v7381
  %7383 = vmatprep.subr.mxu0 0.0
  %7384 = vmatpush2.msra.mxu0 0.0
  %7385 = vmatprep.subr.mxu0 0.0
  %7386 = vmatpush2.msra.mxu0 0.0
  %7387 = vmatprep.subr.mxu0 0.0
  %7388 = vmatpush2.msra.mxu0 0.0
  %7389 = vmatprep.subr.mxu0 0.0
  %7390 = vmatpush2.msra.mxu0 0.0
  %7391 = vmatprep.subr.mxu0 0.0
  %7392 = vmatpush2.msra.mxu0 0.0
  %7393 = vmatprep.subr.mxu0 0.0
  %7394 = vmatpush2.msra.mxu0 0.0
  %7395 = vmatprep.subr.mxu0 0.0
  %7396 = vmatpush2.msra.mxu0 0.0
  %7397 = vmatprep.subr.mxu0 0.0
  %7398 = vmatpush2.msra.mxu0 0.0
  %7399 = vmatprep.subr.mxu0 0.0
  %7400 = vmatpush2.msra.mxu0 0.0
  %7401 = vmatprep.subr.mxu0 0.0
  %7402 = vmatpush2.msra.mxu0 0.0
  %7403 = vmatprep.subr.mxu0 0.0
  %7404 = vmatpush2.msra.mxu0 0.0
  %7405 = vmatprep.subr.mxu0 0.0
  %7406 = vmatpush2.msra.mxu0 0.0
  %7407 = vmatprep.subr.mxu0 0.0
  %7408 = vmatpush2.msra.mxu0 0.0
  %7409 = vmatprep.subr.mxu0 0.0
  %7410 = vmatpush2.msra.mxu0 0.0
  %7411 = vmatprep.subr.mxu0 0.0
  %7412 = vmatpush2.msra.mxu0 0.0
  %7413 = vmatprep.subr.mxu0 0.0
  %7414 = vmatpush2.msra.mxu0 0.0
  %7415 = vmatprep.mubr.f32.mxu0 0.0
  %v7416 = vand.u32 %v7225, 4294901760
  %7417 = vmatmul.mubr.f32.gmra.mxu0 %v7416
  %v7418 = vpop.f32.mrf.mxu0
  %v7419 = vadd.f32 %v7317, %v7418
  %v7420 = vpop.f32.mrf.mxu0
  %v7421 = vadd.f32 %v7319, %v7420
  %7422 = vdwg.mxu0
  %7423 = vmatprep.subr.mxu0 0.0
  %7424 = vmatpush1.msra.mxu0 0.0
  %7425 = vmatprep.subr.mxu0 0.0
  %7426 = vmatpush1.msra.mxu0 0.0
  %7427 = vmatprep.subr.mxu0 0.0
  %7428 = vmatpush1.msra.mxu0 0.0
  %7429 = vmatprep.subr.mxu0 0.0
  %7430 = vmatpush1.msra.mxu0 0.0
  %7431 = vmatprep.subr.mxu0 0.0
  %7432 = vmatpush1.msra.mxu0 0.0
  %7433 = vmatprep.subr.mxu0 0.0
  %7434 = vmatpush1.msra.mxu0 0.0
  %7435 = vmatprep.subr.mxu0 0.0
  %7436 = vmatpush1.msra.mxu0 0.0
  %7437 = vmatprep.subr.mxu0 0.0
  %7438 = vmatpush1.msra.mxu0 0.0
  %7439 = vmatprep.subr.mxu0 0.0
  %7440 = vmatpush1.msra.mxu0 0.0
  %7441 = vmatprep.subr.mxu0 0.0
  %7442 = vmatpush1.msra.mxu0 0.0
  %7443 = vmatprep.subr.mxu0 0.0
  %7444 = vmatpush1.msra.mxu0 0.0
  %7445 = vmatprep.subr.mxu0 0.0
  %7446 = vmatpush1.msra.mxu0 0.0
  %7447 = vmatprep.subr.mxu0 0.0
  %7448 = vmatpush1.msra.mxu0 0.0
  %v7449 = vand.u32 %v7231, 4294901760
  %v7450 = vsub.f32 %v7231, %v7449
  %7451 = vmatprep.subr.mxu0 %v7450
  %v7452 = vand.u32 %v7228, 4294901760
  %v7453 = vsub.f32 %v7228, %v7452
  %7454 = vmatpush1.msra.mxu0 %v7453
  %v7455 = vand.u32 %v7214, 4294901760
  %v7456 = vsub.f32 %v7214, %v7455
  %7457 = vmatprep.subr.mxu0 %v7456
  %v7458 = vand.u32 %v7213, 4294901760
  %v7459 = vsub.f32 %v7213, %v7458
  %7460 = vmatpush1.msra.mxu0 %v7459
  %v7461 = vand.u32 %v7202, 4294901760
  %v7462 = vsub.f32 %v7202, %v7461
  %7463 = vmatprep.subr.mxu0 %v7462
  %v7464 = vand.u32 %v7201, 4294901760
  %v7465 = vsub.f32 %v7201, %v7464
  %7466 = vmatpush1.msra.mxu0 %v7465
  %7467 = vmatprep.subr.mxu0 0.0
  %7468 = vmatpush2.msra.mxu0 0.0
  %7469 = vmatprep.subr.mxu0 0.0
  %7470 = vmatpush2.msra.mxu0 0.0
  %7471 = vmatprep.subr.mxu0 0.0
  %7472 = vmatpush2.msra.mxu0 0.0
  %7473 = vmatprep.subr.mxu0 0.0
  %7474 = vmatpush2.msra.mxu0 0.0
  %7475 = vmatprep.subr.mxu0 0.0
  %7476 = vmatpush2.msra.mxu0 0.0
  %7477 = vmatprep.subr.mxu0 0.0
  %7478 = vmatpush2.msra.mxu0 0.0
  %7479 = vmatprep.subr.mxu0 0.0
  %7480 = vmatpush2.msra.mxu0 0.0
  %7481 = vmatprep.subr.mxu0 0.0
  %7482 = vmatpush2.msra.mxu0 0.0
  %7483 = vmatprep.subr.mxu0 0.0
  %7484 = vmatpush2.msra.mxu0 0.0
  %7485 = vmatprep.subr.mxu0 0.0
  %7486 = vmatpush2.msra.mxu0 0.0
  %7487 = vmatprep.subr.mxu0 0.0
  %7488 = vmatpush2.msra.mxu0 0.0
  %7489 = vmatprep.subr.mxu0 0.0
  %7490 = vmatpush2.msra.mxu0 0.0
  %7491 = vmatprep.subr.mxu0 0.0
  %7492 = vmatpush2.msra.mxu0 0.0
  %7493 = vmatprep.subr.mxu0 0.0
  %7494 = vmatpush2.msra.mxu0 0.0
  %7495 = vmatprep.subr.mxu0 0.0
  %7496 = vmatpush2.msra.mxu0 0.0
  %7497 = vmatprep.subr.mxu0 0.0
  %7498 = vmatpush2.msra.mxu0 0.0
  %7499 = vmatprep.mubr.f32.mxu0 0.0
  %v7500 = vand.u32 %v7225, 4294901760
  %v7501 = vsub.f32 %v7225, %v7500
  %7502 = vmatmul.mubr.f32.gmra.mxu0 %v7501
  %v7503 = vpop.f32.mrf.mxu0
  %v7504 = vadd.f32 %v7419, %v7503
  %v7505 = vpop.f32.mrf.mxu0
  %v7506 = vadd.f32 %v7421, %v7505
  %7507 = vdwg.mxu0
  %7508 = vmatprep.subr.mxu0 0.0
  %7509 = vmatpush1.msra.mxu0 0.0
  %7510 = vmatprep.subr.mxu0 0.0
  %7511 = vmatpush1.msra.mxu0 0.0
  %7512 = vmatprep.subr.mxu0 0.0
  %7513 = vmatpush1.msra.mxu0 0.0
  %7514 = vmatprep.subr.mxu0 0.0
  %7515 = vmatpush1.msra.mxu0 0.0
  %7516 = vmatprep.subr.mxu0 0.0
  %7517 = vmatpush1.msra.mxu0 0.0
  %7518 = vmatprep.subr.mxu0 0.0
  %7519 = vmatpush1.msra.mxu0 0.0
  %7520 = vmatprep.subr.mxu0 0.0
  %7521 = vmatpush1.msra.mxu0 0.0
  %7522 = vmatprep.subr.mxu0 0.0
  %7523 = vmatpush1.msra.mxu0 0.0
  %7524 = vmatprep.subr.mxu0 0.0
  %7525 = vmatpush1.msra.mxu0 0.0
  %7526 = vmatprep.subr.mxu0 0.0
  %7527 = vmatpush1.msra.mxu0 0.0
  %7528 = vmatprep.subr.mxu0 0.0
  %7529 = vmatpush1.msra.mxu0 0.0
  %7530 = vmatprep.subr.mxu0 0.0
  %7531 = vmatpush1.msra.mxu0 0.0
  %7532 = vmatprep.subr.mxu0 0.0
  %7533 = vmatpush1.msra.mxu0 0.0
  %v7534 = vand.u32 %v7231, 4294901760
  %7535 = vmatprep.subr.mxu0 %v7534
  %v7536 = vand.u32 %v7228, 4294901760
  %7537 = vmatpush1.msra.mxu0 %v7536
  %v7538 = vand.u32 %v7214, 4294901760
  %7539 = vmatprep.subr.mxu0 %v7538
  %v7540 = vand.u32 %v7213, 4294901760
  %7541 = vmatpush1.msra.mxu0 %v7540
  %v7542 = vand.u32 %v7202, 4294901760
  %7543 = vmatprep.subr.mxu0 %v7542
  %v7544 = vand.u32 %v7201, 4294901760
  %7545 = vmatpush1.msra.mxu0 %v7544
  %7546 = vmatprep.subr.mxu0 0.0
  %7547 = vmatpush2.msra.mxu0 0.0
  %7548 = vmatprep.subr.mxu0 0.0
  %7549 = vmatpush2.msra.mxu0 0.0
  %7550 = vmatprep.subr.mxu0 0.0
  %7551 = vmatpush2.msra.mxu0 0.0
  %7552 = vmatprep.subr.mxu0 0.0
  %7553 = vmatpush2.msra.mxu0 0.0
  %7554 = vmatprep.subr.mxu0 0.0
  %7555 = vmatpush2.msra.mxu0 0.0
  %7556 = vmatprep.subr.mxu0 0.0
  %7557 = vmatpush2.msra.mxu0 0.0
  %7558 = vmatprep.subr.mxu0 0.0
  %7559 = vmatpush2.msra.mxu0 0.0
  %7560 = vmatprep.subr.mxu0 0.0
  %7561 = vmatpush2.msra.mxu0 0.0
  %7562 = vmatprep.subr.mxu0 0.0
  %7563 = vmatpush2.msra.mxu0 0.0
  %7564 = vmatprep.subr.mxu0 0.0
  %7565 = vmatpush2.msra.mxu0 0.0
  %7566 = vmatprep.subr.mxu0 0.0
  %7567 = vmatpush2.msra.mxu0 0.0
  %7568 = vmatprep.subr.mxu0 0.0
  %7569 = vmatpush2.msra.mxu0 0.0
  %7570 = vmatprep.subr.mxu0 0.0
  %7571 = vmatpush2.msra.mxu0 0.0
  %7572 = vmatprep.subr.mxu0 0.0
  %7573 = vmatpush2.msra.mxu0 0.0
  %7574 = vmatprep.subr.mxu0 0.0
  %7575 = vmatpush2.msra.mxu0 0.0
  %7576 = vmatprep.subr.mxu0 0.0
  %7577 = vmatpush2.msra.mxu0 0.0
  %7578 = vmatprep.mubr.f32.mxu0 0.0
  %v7579 = vand.u32 %v7225, 4294901760
  %v7580 = vsub.f32 %v7225, %v7579
  %v7581 = vand.u32 %v7580, 4294901760
  %7582 = vmatmul.mubr.f32.gmra.mxu0 %v7581
  %v7583 = vpop.f32.mrf.mxu0
  %v7584 = vadd.f32 %v7504, %v7583
  %v7585 = vpop.f32.mrf.mxu0
  %v7586 = vadd.f32 %v7506, %v7585
  %7587 = vdwg.mxu0
  %7588 = vmatprep.subr.mxu0 0.0
  %7589 = vmatpush1.msra.mxu0 0.0
  %7590 = vmatprep.subr.mxu0 0.0
  %7591 = vmatpush1.msra.mxu0 0.0
  %7592 = vmatprep.subr.mxu0 0.0
  %7593 = vmatpush1.msra.mxu0 0.0
  %7594 = vmatprep.subr.mxu0 0.0
  %7595 = vmatpush1.msra.mxu0 0.0
  %7596 = vmatprep.subr.mxu0 0.0
  %7597 = vmatpush1.msra.mxu0 0.0
  %7598 = vmatprep.subr.mxu0 0.0
  %7599 = vmatpush1.msra.mxu0 0.0
  %7600 = vmatprep.subr.mxu0 0.0
  %7601 = vmatpush1.msra.mxu0 0.0
  %7602 = vmatprep.subr.mxu0 0.0
  %7603 = vmatpush1.msra.mxu0 0.0
  %7604 = vmatprep.subr.mxu0 0.0
  %7605 = vmatpush1.msra.mxu0 0.0
  %7606 = vmatprep.subr.mxu0 0.0
  %7607 = vmatpush1.msra.mxu0 0.0
  %7608 = vmatprep.subr.mxu0 0.0
  %7609 = vmatpush1.msra.mxu0 0.0
  %7610 = vmatprep.subr.mxu0 0.0
  %7611 = vmatpush1.msra.mxu0 0.0
  %7612 = vmatprep.subr.mxu0 0.0
  %7613 = vmatpush1.msra.mxu0 0.0
  %v7614 = vand.u32 %v7231, 4294901760
  %v7615 = vsub.f32 %v7231, %v7614
  %v7616 = vand.u32 %v7615, 4294901760
  %7617 = vmatprep.subr.mxu0 %v7616
  %v7618 = vand.u32 %v7228, 4294901760
  %v7619 = vsub.f32 %v7228, %v7618
  %v7620 = vand.u32 %v7619, 4294901760
  %7621 = vmatpush1.msra.mxu0 %v7620
  %v7622 = vand.u32 %v7214, 4294901760
  %v7623 = vsub.f32 %v7214, %v7622
  %v7624 = vand.u32 %v7623, 4294901760
  %7625 = vmatprep.subr.mxu0 %v7624
  %v7626 = vand.u32 %v7213, 4294901760
  %v7627 = vsub.f32 %v7213, %v7626
  %v7628 = vand.u32 %v7627, 4294901760
  %7629 = vmatpush1.msra.mxu0 %v7628
  %v7630 = vand.u32 %v7202, 4294901760
  %v7631 = vsub.f32 %v7202, %v7630
  %v7632 = vand.u32 %v7631, 4294901760
  %7633 = vmatprep.subr.mxu0 %v7632
  %v7634 = vand.u32 %v7201, 4294901760
  %v7635 = vsub.f32 %v7201, %v7634
  %v7636 = vand.u32 %v7635, 4294901760
  %7637 = vmatpush1.msra.mxu0 %v7636
  %7638 = vmatprep.subr.mxu0 0.0
  %7639 = vmatpush2.msra.mxu0 0.0
  %7640 = vmatprep.subr.mxu0 0.0
  %7641 = vmatpush2.msra.mxu0 0.0
  %7642 = vmatprep.subr.mxu0 0.0
  %7643 = vmatpush2.msra.mxu0 0.0
  %7644 = vmatprep.subr.mxu0 0.0
  %7645 = vmatpush2.msra.mxu0 0.0
  %7646 = vmatprep.subr.mxu0 0.0
  %7647 = vmatpush2.msra.mxu0 0.0
  %7648 = vmatprep.subr.mxu0 0.0
  %7649 = vmatpush2.msra.mxu0 0.0
  %7650 = vmatprep.subr.mxu0 0.0
  %7651 = vmatpush2.msra.mxu0 0.0
  %7652 = vmatprep.subr.mxu0 0.0
  %7653 = vmatpush2.msra.mxu0 0.0
  %7654 = vmatprep.subr.mxu0 0.0
  %7655 = vmatpush2.msra.mxu0 0.0
  %7656 = vmatprep.subr.mxu0 0.0
  %7657 = vmatpush2.msra.mxu0 0.0
  %7658 = vmatprep.subr.mxu0 0.0
  %7659 = vmatpush2.msra.mxu0 0.0
  %7660 = vmatprep.subr.mxu0 0.0
  %7661 = vmatpush2.msra.mxu0 0.0
  %7662 = vmatprep.subr.mxu0 0.0
  %7663 = vmatpush2.msra.mxu0 0.0
  %7664 = vmatprep.subr.mxu0 0.0
  %7665 = vmatpush2.msra.mxu0 0.0
  %7666 = vmatprep.subr.mxu0 0.0
  %7667 = vmatpush2.msra.mxu0 0.0
  %7668 = vmatprep.subr.mxu0 0.0
  %7669 = vmatpush2.msra.mxu0 0.0
  %7670 = vmatprep.mubr.f32.mxu0 0.0
  %v7671 = vand.u32 %v7225, 4294901760
  %7672 = vmatmul.mubr.f32.gmra.mxu0 %v7671
  %v7673 = vpop.f32.mrf.mxu0
  %v7674 = vadd.f32 %v7584, %v7673
  %v7675 = vpop.f32.mrf.mxu0
  %v7676 = vadd.f32 %v7586, %v7675
  %7677 = vdwg.mxu0
  %7678 = vmatprep.subr.mxu0 0.0
  %7679 = vmatpush1.msra.mxu0 0.0
  %7680 = vmatprep.subr.mxu0 0.0
  %7681 = vmatpush1.msra.mxu0 0.0
  %7682 = vmatprep.subr.mxu0 0.0
  %7683 = vmatpush1.msra.mxu0 0.0
  %7684 = vmatprep.subr.mxu0 0.0
  %7685 = vmatpush1.msra.mxu0 0.0
  %7686 = vmatprep.subr.mxu0 0.0
  %7687 = vmatpush1.msra.mxu0 0.0
  %7688 = vmatprep.subr.mxu0 0.0
  %7689 = vmatpush1.msra.mxu0 0.0
  %7690 = vmatprep.subr.mxu0 0.0
  %7691 = vmatpush1.msra.mxu0 0.0
  %7692 = vmatprep.subr.mxu0 0.0
  %7693 = vmatpush1.msra.mxu0 0.0
  %7694 = vmatprep.subr.mxu0 0.0
  %7695 = vmatpush1.msra.mxu0 0.0
  %7696 = vmatprep.subr.mxu0 0.0
  %7697 = vmatpush1.msra.mxu0 0.0
  %7698 = vmatprep.subr.mxu0 0.0
  %7699 = vmatpush1.msra.mxu0 0.0
  %7700 = vmatprep.subr.mxu0 0.0
  %7701 = vmatpush1.msra.mxu0 0.0
  %7702 = vmatprep.subr.mxu0 0.0
  %7703 = vmatpush1.msra.mxu0 0.0
  %v7704 = vand.u32 %v7231, 4294901760
  %7705 = vmatprep.subr.mxu0 %v7704
  %v7706 = vand.u32 %v7228, 4294901760
  %7707 = vmatpush1.msra.mxu0 %v7706
  %v7708 = vand.u32 %v7214, 4294901760
  %7709 = vmatprep.subr.mxu0 %v7708
  %v7710 = vand.u32 %v7213, 4294901760
  %7711 = vmatpush1.msra.mxu0 %v7710
  %v7712 = vand.u32 %v7202, 4294901760
  %7713 = vmatprep.subr.mxu0 %v7712
  %v7714 = vand.u32 %v7201, 4294901760
  %7715 = vmatpush1.msra.mxu0 %v7714
  %7716 = vmatprep.subr.mxu0 0.0
  %7717 = vmatpush2.msra.mxu0 0.0
  %7718 = vmatprep.subr.mxu0 0.0
  %7719 = vmatpush2.msra.mxu0 0.0
  %7720 = vmatprep.subr.mxu0 0.0
  %7721 = vmatpush2.msra.mxu0 0.0
  %7722 = vmatprep.subr.mxu0 0.0
  %7723 = vmatpush2.msra.mxu0 0.0
  %7724 = vmatprep.subr.mxu0 0.0
  %7725 = vmatpush2.msra.mxu0 0.0
  %7726 = vmatprep.subr.mxu0 0.0
  %7727 = vmatpush2.msra.mxu0 0.0
  %7728 = vmatprep.subr.mxu0 0.0
  %7729 = vmatpush2.msra.mxu0 0.0
  %7730 = vmatprep.subr.mxu0 0.0
  %7731 = vmatpush2.msra.mxu0 0.0
  %7732 = vmatprep.subr.mxu0 0.0
  %7733 = vmatpush2.msra.mxu0 0.0
  %7734 = vmatprep.subr.mxu0 0.0
  %7735 = vmatpush2.msra.mxu0 0.0
  %7736 = vmatprep.subr.mxu0 0.0
  %7737 = vmatpush2.msra.mxu0 0.0
  %7738 = vmatprep.subr.mxu0 0.0
  %7739 = vmatpush2.msra.mxu0 0.0
  %7740 = vmatprep.subr.mxu0 0.0
  %7741 = vmatpush2.msra.mxu0 0.0
  %7742 = vmatprep.subr.mxu0 0.0
  %7743 = vmatpush2.msra.mxu0 0.0
  %7744 = vmatprep.subr.mxu0 0.0
  %7745 = vmatpush2.msra.mxu0 0.0
  %7746 = vmatprep.subr.mxu0 0.0
  %7747 = vmatpush2.msra.mxu0 0.0
  %7748 = vmatprep.mubr.f32.mxu0 0.0
  %v7749 = vand.u32 %v7225, 4294901760
  %7750 = vmatmul.mubr.f32.gmra.mxu0 %v7749
  %v7751 = vpop.f32.mrf.mxu0
  %v7752 = vadd.f32 %v7674, %v7751
  %v7753 = vpop.f32.mrf.mxu0
  %v7754 = vadd.f32 %v7676, %v7753
  %7755 = vdwg.mxu0
  %7756 = vmatprep.subr.mxu0 0.0
  %7757 = vmatpush1.msra.mxu0 0.0
  %7758 = vmatprep.subr.mxu0 0.0
  %7759 = vmatpush1.msra.mxu0 0.0
  %7760 = vmatprep.subr.mxu0 0.0
  %7761 = vmatpush1.msra.mxu0 0.0
  %7762 = vmatprep.subr.mxu0 0.0
  %7763 = vmatpush1.msra.mxu0 0.0
  %7764 = vmatprep.subr.mxu0 0.0
  %7765 = vmatpush1.msra.mxu0 0.0
  %7766 = vmatprep.subr.mxu0 0.0
  %7767 = vmatpush1.msra.mxu0 0.0
  %7768 = vmatprep.subr.mxu0 0.0
  %7769 = vmatpush1.msra.mxu0 0.0
  %7770 = vmatprep.subr.mxu0 0.0
  %7771 = vmatpush1.msra.mxu0 0.0
  %7772 = vmatprep.subr.mxu0 0.0
  %7773 = vmatpush1.msra.mxu0 0.0
  %7774 = vmatprep.subr.mxu0 0.0
  %7775 = vmatpush1.msra.mxu0 0.0
  %7776 = vmatprep.subr.mxu0 0.0
  %7777 = vmatpush1.msra.mxu0 0.0
  %7778 = vmatprep.subr.mxu0 0.0
  %7779 = vmatpush1.msra.mxu0 0.0
  %7780 = vmatprep.subr.mxu0 0.0
  %7781 = vmatpush1.msra.mxu0 0.0
  %v7782 = vand.u32 %v7237, 4294901760
  %7783 = vmatprep.subr.mxu0 %v7782
  %v7784 = vand.u32 %v7234, 4294901760
  %7785 = vmatpush1.msra.mxu0 %v7784
  %v7786 = vand.u32 %v7216, 4294901760
  %7787 = vmatprep.subr.mxu0 %v7786
  %v7788 = vand.u32 %v7215, 4294901760
  %7789 = vmatpush1.msra.mxu0 %v7788
  %v7790 = vand.u32 %v7204, 4294901760
  %7791 = vmatprep.subr.mxu0 %v7790
  %v7792 = vand.u32 %v7203, 4294901760
  %7793 = vmatpush1.msra.mxu0 %v7792
  %7794 = vmatprep.subr.mxu0 0.0
  %7795 = vmatpush2.msra.mxu0 0.0
  %7796 = vmatprep.subr.mxu0 0.0
  %7797 = vmatpush2.msra.mxu0 0.0
  %7798 = vmatprep.subr.mxu0 0.0
  %7799 = vmatpush2.msra.mxu0 0.0
  %7800 = vmatprep.subr.mxu0 0.0
  %7801 = vmatpush2.msra.mxu0 0.0
  %7802 = vmatprep.subr.mxu0 0.0
  %7803 = vmatpush2.msra.mxu0 0.0
  %7804 = vmatprep.subr.mxu0 0.0
  %7805 = vmatpush2.msra.mxu0 0.0
  %7806 = vmatprep.subr.mxu0 0.0
  %7807 = vmatpush2.msra.mxu0 0.0
  %7808 = vmatprep.subr.mxu0 0.0
  %7809 = vmatpush2.msra.mxu0 0.0
  %7810 = vmatprep.subr.mxu0 0.0
  %7811 = vmatpush2.msra.mxu0 0.0
  %7812 = vmatprep.subr.mxu0 0.0
  %7813 = vmatpush2.msra.mxu0 0.0
  %7814 = vmatprep.subr.mxu0 0.0
  %7815 = vmatpush2.msra.mxu0 0.0
  %7816 = vmatprep.subr.mxu0 0.0
  %7817 = vmatpush2.msra.mxu0 0.0
  %7818 = vmatprep.subr.mxu0 0.0
  %7819 = vmatpush2.msra.mxu0 0.0
  %7820 = vmatprep.subr.mxu0 0.0
  %7821 = vmatpush2.msra.mxu0 0.0
  %7822 = vmatprep.subr.mxu0 0.0
  %7823 = vmatpush2.msra.mxu0 0.0
  %7824 = vmatprep.subr.mxu0 0.0
  %7825 = vmatpush2.msra.mxu0 0.0
  %7826 = vmatprep.mubr.f32.mxu0 0.0
  %v7827 = vand.u32 %v7225, 4294901760
  %v7828 = vsub.f32 %v7225, %v7827
  %v7829 = vand.u32 %v7828, 4294901760
  %v7830 = vsub.f32 %v7828, %v7829
  %v7831 = vand.u32 %v7830, 4294901760
  %7832 = vmatmul.mubr.f32.gmra.mxu0 %v7831
  %v7833 = vpop.f32.mrf.mxu0
  %v7834 = vadd.f32 0.0, %v7833
  %v7835 = vpop.f32.mrf.mxu0
  %v7836 = vadd.f32 0.0, %v7835
  %7837 = vdwg.mxu0
  %7838 = vmatprep.subr.mxu0 0.0
  %7839 = vmatpush1.msra.mxu0 0.0
  %7840 = vmatprep.subr.mxu0 0.0
  %7841 = vmatpush1.msra.mxu0 0.0
  %7842 = vmatprep.subr.mxu0 0.0
  %7843 = vmatpush1.msra.mxu0 0.0
  %7844 = vmatprep.subr.mxu0 0.0
  %7845 = vmatpush1.msra.mxu0 0.0
  %7846 = vmatprep.subr.mxu0 0.0
  %7847 = vmatpush1.msra.mxu0 0.0
  %7848 = vmatprep.subr.mxu0 0.0
  %7849 = vmatpush1.msra.mxu0 0.0
  %7850 = vmatprep.subr.mxu0 0.0
  %7851 = vmatpush1.msra.mxu0 0.0
  %7852 = vmatprep.subr.mxu0 0.0
  %7853 = vmatpush1.msra.mxu0 0.0
  %7854 = vmatprep.subr.mxu0 0.0
  %7855 = vmatpush1.msra.mxu0 0.0
  %7856 = vmatprep.subr.mxu0 0.0
  %7857 = vmatpush1.msra.mxu0 0.0
  %7858 = vmatprep.subr.mxu0 0.0
  %7859 = vmatpush1.msra.mxu0 0.0
  %7860 = vmatprep.subr.mxu0 0.0
  %7861 = vmatpush1.msra.mxu0 0.0
  %7862 = vmatprep.subr.mxu0 0.0
  %7863 = vmatpush1.msra.mxu0 0.0
  %v7864 = vand.u32 %v7237, 4294901760
  %v7865 = vsub.f32 %v7237, %v7864
  %v7866 = vand.u32 %v7865, 4294901760
  %v7867 = vsub.f32 %v7865, %v7866
  %v7868 = vand.u32 %v7867, 4294901760
  %7869 = vmatprep.subr.mxu0 %v7868
  %v7870 = vand.u32 %v7234, 4294901760
  %v7871 = vsub.f32 %v7234, %v7870
  %v7872 = vand.u32 %v7871, 4294901760
  %v7873 = vsub.f32 %v7871, %v7872
  %v7874 = vand.u32 %v7873, 4294901760
  %7875 = vmatpush1.msra.mxu0 %v7874
  %v7876 = vand.u32 %v7216, 4294901760
  %v7877 = vsub.f32 %v7216, %v7876
  %v7878 = vand.u32 %v7877, 4294901760
  %v7879 = vsub.f32 %v7877, %v7878
  %v7880 = vand.u32 %v7879, 4294901760
  %7881 = vmatprep.subr.mxu0 %v7880
  %v7882 = vand.u32 %v7215, 4294901760
  %v7883 = vsub.f32 %v7215, %v7882
  %v7884 = vand.u32 %v7883, 4294901760
  %v7885 = vsub.f32 %v7883, %v7884
  %v7886 = vand.u32 %v7885, 4294901760
  %7887 = vmatpush1.msra.mxu0 %v7886
  %v7888 = vand.u32 %v7204, 4294901760
  %v7889 = vsub.f32 %v7204, %v7888
  %v7890 = vand.u32 %v7889, 4294901760
  %v7891 = vsub.f32 %v7889, %v7890
  %v7892 = vand.u32 %v7891, 4294901760
  %7893 = vmatprep.subr.mxu0 %v7892
  %v7894 = vand.u32 %v7203, 4294901760
  %v7895 = vsub.f32 %v7203, %v7894
  %v7896 = vand.u32 %v7895, 4294901760
  %v7897 = vsub.f32 %v7895, %v7896
  %v7898 = vand.u32 %v7897, 4294901760
  %7899 = vmatpush1.msra.mxu0 %v7898
  %7900 = vmatprep.subr.mxu0 0.0
  %7901 = vmatpush2.msra.mxu0 0.0
  %7902 = vmatprep.subr.mxu0 0.0
  %7903 = vmatpush2.msra.mxu0 0.0
  %7904 = vmatprep.subr.mxu0 0.0
  %7905 = vmatpush2.msra.mxu0 0.0
  %7906 = vmatprep.subr.mxu0 0.0
  %7907 = vmatpush2.msra.mxu0 0.0
  %7908 = vmatprep.subr.mxu0 0.0
  %7909 = vmatpush2.msra.mxu0 0.0
  %7910 = vmatprep.subr.mxu0 0.0
  %7911 = vmatpush2.msra.mxu0 0.0
  %7912 = vmatprep.subr.mxu0 0.0
  %7913 = vmatpush2.msra.mxu0 0.0
  %7914 = vmatprep.subr.mxu0 0.0
  %7915 = vmatpush2.msra.mxu0 0.0
  %7916 = vmatprep.subr.mxu0 0.0
  %7917 = vmatpush2.msra.mxu0 0.0
  %7918 = vmatprep.subr.mxu0 0.0
  %7919 = vmatpush2.msra.mxu0 0.0
  %7920 = vmatprep.subr.mxu0 0.0
  %7921 = vmatpush2.msra.mxu0 0.0
  %7922 = vmatprep.subr.mxu0 0.0
  %7923 = vmatpush2.msra.mxu0 0.0
  %7924 = vmatprep.subr.mxu0 0.0
  %7925 = vmatpush2.msra.mxu0 0.0
  %7926 = vmatprep.subr.mxu0 0.0
  %7927 = vmatpush2.msra.mxu0 0.0
  %7928 = vmatprep.subr.mxu0 0.0
  %7929 = vmatpush2.msra.mxu0 0.0
  %7930 = vmatprep.subr.mxu0 0.0
  %7931 = vmatpush2.msra.mxu0 0.0
  %7932 = vmatprep.mubr.f32.mxu0 0.0
  %v7933 = vand.u32 %v7225, 4294901760
  %7934 = vmatmul.mubr.f32.gmra.mxu0 %v7933
  %v7935 = vpop.f32.mrf.mxu0
  %v7936 = vadd.f32 %v7834, %v7935
  %v7937 = vpop.f32.mrf.mxu0
  %v7938 = vadd.f32 %v7836, %v7937
  %7939 = vdwg.mxu0
  %7940 = vmatprep.subr.mxu0 0.0
  %7941 = vmatpush1.msra.mxu0 0.0
  %7942 = vmatprep.subr.mxu0 0.0
  %7943 = vmatpush1.msra.mxu0 0.0
  %7944 = vmatprep.subr.mxu0 0.0
  %7945 = vmatpush1.msra.mxu0 0.0
  %7946 = vmatprep.subr.mxu0 0.0
  %7947 = vmatpush1.msra.mxu0 0.0
  %7948 = vmatprep.subr.mxu0 0.0
  %7949 = vmatpush1.msra.mxu0 0.0
  %7950 = vmatprep.subr.mxu0 0.0
  %7951 = vmatpush1.msra.mxu0 0.0
  %7952 = vmatprep.subr.mxu0 0.0
  %7953 = vmatpush1.msra.mxu0 0.0
  %7954 = vmatprep.subr.mxu0 0.0
  %7955 = vmatpush1.msra.mxu0 0.0
  %7956 = vmatprep.subr.mxu0 0.0
  %7957 = vmatpush1.msra.mxu0 0.0
  %7958 = vmatprep.subr.mxu0 0.0
  %7959 = vmatpush1.msra.mxu0 0.0
  %7960 = vmatprep.subr.mxu0 0.0
  %7961 = vmatpush1.msra.mxu0 0.0
  %7962 = vmatprep.subr.mxu0 0.0
  %7963 = vmatpush1.msra.mxu0 0.0
  %7964 = vmatprep.subr.mxu0 0.0
  %7965 = vmatpush1.msra.mxu0 0.0
  %v7966 = vand.u32 %v7237, 4294901760
  %v7967 = vsub.f32 %v7237, %v7966
  %7968 = vmatprep.subr.mxu0 %v7967
  %v7969 = vand.u32 %v7234, 4294901760
  %v7970 = vsub.f32 %v7234, %v7969
  %7971 = vmatpush1.msra.mxu0 %v7970
  %v7972 = vand.u32 %v7216, 4294901760
  %v7973 = vsub.f32 %v7216, %v7972
  %7974 = vmatprep.subr.mxu0 %v7973
  %v7975 = vand.u32 %v7215, 4294901760
  %v7976 = vsub.f32 %v7215, %v7975
  %7977 = vmatpush1.msra.mxu0 %v7976
  %v7978 = vand.u32 %v7204, 4294901760
  %v7979 = vsub.f32 %v7204, %v7978
  %7980 = vmatprep.subr.mxu0 %v7979
  %v7981 = vand.u32 %v7203, 4294901760
  %v7982 = vsub.f32 %v7203, %v7981
  %7983 = vmatpush1.msra.mxu0 %v7982
  %7984 = vmatprep.subr.mxu0 0.0
  %7985 = vmatpush2.msra.mxu0 0.0
  %7986 = vmatprep.subr.mxu0 0.0
  %7987 = vmatpush2.msra.mxu0 0.0
  %7988 = vmatprep.subr.mxu0 0.0
  %7989 = vmatpush2.msra.mxu0 0.0
  %7990 = vmatprep.subr.mxu0 0.0
  %7991 = vmatpush2.msra.mxu0 0.0
  %7992 = vmatprep.subr.mxu0 0.0
  %7993 = vmatpush2.msra.mxu0 0.0
  %7994 = vmatprep.subr.mxu0 0.0
  %7995 = vmatpush2.msra.mxu0 0.0
  %7996 = vmatprep.subr.mxu0 0.0
  %7997 = vmatpush2.msra.mxu0 0.0
  %7998 = vmatprep.subr.mxu0 0.0
  %7999 = vmatpush2.msra.mxu0 0.0
  %8000 = vmatprep.subr.mxu0 0.0
  %8001 = vmatpush2.msra.mxu0 0.0
  %8002 = vmatprep.subr.mxu0 0.0
  %8003 = vmatpush2.msra.mxu0 0.0
  %8004 = vmatprep.subr.mxu0 0.0
  %8005 = vmatpush2.msra.mxu0 0.0
  %8006 = vmatprep.subr.mxu0 0.0
  %8007 = vmatpush2.msra.mxu0 0.0
  %8008 = vmatprep.subr.mxu0 0.0
  %8009 = vmatpush2.msra.mxu0 0.0
  %8010 = vmatprep.subr.mxu0 0.0
  %8011 = vmatpush2.msra.mxu0 0.0
  %8012 = vmatprep.subr.mxu0 0.0
  %8013 = vmatpush2.msra.mxu0 0.0
  %8014 = vmatprep.subr.mxu0 0.0
  %8015 = vmatpush2.msra.mxu0 0.0
  %8016 = vmatprep.mubr.f32.mxu0 0.0
  %v8017 = vand.u32 %v7225, 4294901760
  %v8018 = vsub.f32 %v7225, %v8017
  %8019 = vmatmul.mubr.f32.gmra.mxu0 %v8018
  %v8020 = vpop.f32.mrf.mxu0
  %v8021 = vadd.f32 %v7936, %v8020
  %v8022 = vpop.f32.mrf.mxu0
  %v8023 = vadd.f32 %v7938, %v8022
  %8024 = vdwg.mxu0
  %8025 = vmatprep.subr.mxu0 0.0
  %8026 = vmatpush1.msra.mxu0 0.0
  %8027 = vmatprep.subr.mxu0 0.0
  %8028 = vmatpush1.msra.mxu0 0.0
  %8029 = vmatprep.subr.mxu0 0.0
  %8030 = vmatpush1.msra.mxu0 0.0
  %8031 = vmatprep.subr.mxu0 0.0
  %8032 = vmatpush1.msra.mxu0 0.0
  %8033 = vmatprep.subr.mxu0 0.0
  %8034 = vmatpush1.msra.mxu0 0.0
  %8035 = vmatprep.subr.mxu0 0.0
  %8036 = vmatpush1.msra.mxu0 0.0
  %8037 = vmatprep.subr.mxu0 0.0
  %8038 = vmatpush1.msra.mxu0 0.0
  %8039 = vmatprep.subr.mxu0 0.0
  %8040 = vmatpush1.msra.mxu0 0.0
  %8041 = vmatprep.subr.mxu0 0.0
  %8042 = vmatpush1.msra.mxu0 0.0
  %8043 = vmatprep.subr.mxu0 0.0
  %8044 = vmatpush1.msra.mxu0 0.0
  %8045 = vmatprep.subr.mxu0 0.0
  %8046 = vmatpush1.msra.mxu0 0.0
  %8047 = vmatprep.subr.mxu0 0.0
  %8048 = vmatpush1.msra.mxu0 0.0
  %8049 = vmatprep.subr.mxu0 0.0
  %8050 = vmatpush1.msra.mxu0 0.0
  %v8051 = vand.u32 %v7237, 4294901760
  %8052 = vmatprep.subr.mxu0 %v8051
  %v8053 = vand.u32 %v7234, 4294901760
  %8054 = vmatpush1.msra.mxu0 %v8053
  %v8055 = vand.u32 %v7216, 4294901760
  %8056 = vmatprep.subr.mxu0 %v8055
  %v8057 = vand.u32 %v7215, 4294901760
  %8058 = vmatpush1.msra.mxu0 %v8057
  %v8059 = vand.u32 %v7204, 4294901760
  %8060 = vmatprep.subr.mxu0 %v8059
  %v8061 = vand.u32 %v7203, 4294901760
  %8062 = vmatpush1.msra.mxu0 %v8061
  %8063 = vmatprep.subr.mxu0 0.0
  %8064 = vmatpush2.msra.mxu0 0.0
  %8065 = vmatprep.subr.mxu0 0.0
  %8066 = vmatpush2.msra.mxu0 0.0
  %8067 = vmatprep.subr.mxu0 0.0
  %8068 = vmatpush2.msra.mxu0 0.0
  %8069 = vmatprep.subr.mxu0 0.0
  %8070 = vmatpush2.msra.mxu0 0.0
  %8071 = vmatprep.subr.mxu0 0.0
  %8072 = vmatpush2.msra.mxu0 0.0
  %8073 = vmatprep.subr.mxu0 0.0
  %8074 = vmatpush2.msra.mxu0 0.0
  %8075 = vmatprep.subr.mxu0 0.0
  %8076 = vmatpush2.msra.mxu0 0.0
  %8077 = vmatprep.subr.mxu0 0.0
  %8078 = vmatpush2.msra.mxu0 0.0
  %8079 = vmatprep.subr.mxu0 0.0
  %8080 = vmatpush2.msra.mxu0 0.0
  %8081 = vmatprep.subr.mxu0 0.0
  %8082 = vmatpush2.msra.mxu0 0.0
  %8083 = vmatprep.subr.mxu0 0.0
  %8084 = vmatpush2.msra.mxu0 0.0
  %8085 = vmatprep.subr.mxu0 0.0
  %8086 = vmatpush2.msra.mxu0 0.0
  %8087 = vmatprep.subr.mxu0 0.0
  %8088 = vmatpush2.msra.mxu0 0.0
  %8089 = vmatprep.subr.mxu0 0.0
  %8090 = vmatpush2.msra.mxu0 0.0
  %8091 = vmatprep.subr.mxu0 0.0
  %8092 = vmatpush2.msra.mxu0 0.0
  %8093 = vmatprep.subr.mxu0 0.0
  %8094 = vmatpush2.msra.mxu0 0.0
  %8095 = vmatprep.mubr.f32.mxu0 0.0
  %v8096 = vand.u32 %v7225, 4294901760
  %v8097 = vsub.f32 %v7225, %v8096
  %v8098 = vand.u32 %v8097, 4294901760
  %8099 = vmatmul.mubr.f32.gmra.mxu0 %v8098
  %v8100 = vpop.f32.mrf.mxu0
  %v8101 = vadd.f32 %v8021, %v8100
  %v8102 = vpop.f32.mrf.mxu0
  %v8103 = vadd.f32 %v8023, %v8102
  %8104 = vdwg.mxu0
  %8105 = vmatprep.subr.mxu0 0.0
  %8106 = vmatpush1.msra.mxu0 0.0
  %8107 = vmatprep.subr.mxu0 0.0
  %8108 = vmatpush1.msra.mxu0 0.0
  %8109 = vmatprep.subr.mxu0 0.0
  %8110 = vmatpush1.msra.mxu0 0.0
  %8111 = vmatprep.subr.mxu0 0.0
  %8112 = vmatpush1.msra.mxu0 0.0
  %8113 = vmatprep.subr.mxu0 0.0
  %8114 = vmatpush1.msra.mxu0 0.0
  %8115 = vmatprep.subr.mxu0 0.0
  %8116 = vmatpush1.msra.mxu0 0.0
  %8117 = vmatprep.subr.mxu0 0.0
  %8118 = vmatpush1.msra.mxu0 0.0
  %8119 = vmatprep.subr.mxu0 0.0
  %8120 = vmatpush1.msra.mxu0 0.0
  %8121 = vmatprep.subr.mxu0 0.0
  %8122 = vmatpush1.msra.mxu0 0.0
  %8123 = vmatprep.subr.mxu0 0.0
  %8124 = vmatpush1.msra.mxu0 0.0
  %8125 = vmatprep.subr.mxu0 0.0
  %8126 = vmatpush1.msra.mxu0 0.0
  %8127 = vmatprep.subr.mxu0 0.0
  %8128 = vmatpush1.msra.mxu0 0.0
  %8129 = vmatprep.subr.mxu0 0.0
  %8130 = vmatpush1.msra.mxu0 0.0
  %v8131 = vand.u32 %v7237, 4294901760
  %v8132 = vsub.f32 %v7237, %v8131
  %v8133 = vand.u32 %v8132, 4294901760
  %8134 = vmatprep.subr.mxu0 %v8133
  %v8135 = vand.u32 %v7234, 4294901760
  %v8136 = vsub.f32 %v7234, %v8135
  %v8137 = vand.u32 %v8136, 4294901760
  %8138 = vmatpush1.msra.mxu0 %v8137
  %v8139 = vand.u32 %v7216, 4294901760
  %v8140 = vsub.f32 %v7216, %v8139
  %v8141 = vand.u32 %v8140, 4294901760
  %8142 = vmatprep.subr.mxu0 %v8141
  %v8143 = vand.u32 %v7215, 4294901760
  %v8144 = vsub.f32 %v7215, %v8143
  %v8145 = vand.u32 %v8144, 4294901760
  %8146 = vmatpush1.msra.mxu0 %v8145
  %v8147 = vand.u32 %v7204, 4294901760
  %v8148 = vsub.f32 %v7204, %v8147
  %v8149 = vand.u32 %v8148, 4294901760
  %8150 = vmatprep.subr.mxu0 %v8149
  %v8151 = vand.u32 %v7203, 4294901760
  %v8152 = vsub.f32 %v7203, %v8151
  %v8153 = vand.u32 %v8152, 4294901760
  %8154 = vmatpush1.msra.mxu0 %v8153
  %8155 = vmatprep.subr.mxu0 0.0
  %8156 = vmatpush2.msra.mxu0 0.0
  %8157 = vmatprep.subr.mxu0 0.0
  %8158 = vmatpush2.msra.mxu0 0.0
  %8159 = vmatprep.subr.mxu0 0.0
  %8160 = vmatpush2.msra.mxu0 0.0
  %8161 = vmatprep.subr.mxu0 0.0
  %8162 = vmatpush2.msra.mxu0 0.0
  %8163 = vmatprep.subr.mxu0 0.0
  %8164 = vmatpush2.msra.mxu0 0.0
  %8165 = vmatprep.subr.mxu0 0.0
  %8166 = vmatpush2.msra.mxu0 0.0
  %8167 = vmatprep.subr.mxu0 0.0
  %8168 = vmatpush2.msra.mxu0 0.0
  %8169 = vmatprep.subr.mxu0 0.0
  %8170 = vmatpush2.msra.mxu0 0.0
  %8171 = vmatprep.subr.mxu0 0.0
  %8172 = vmatpush2.msra.mxu0 0.0
  %8173 = vmatprep.subr.mxu0 0.0
  %8174 = vmatpush2.msra.mxu0 0.0
  %8175 = vmatprep.subr.mxu0 0.0
  %8176 = vmatpush2.msra.mxu0 0.0
  %8177 = vmatprep.subr.mxu0 0.0
  %8178 = vmatpush2.msra.mxu0 0.0
  %8179 = vmatprep.subr.mxu0 0.0
  %8180 = vmatpush2.msra.mxu0 0.0
  %8181 = vmatprep.subr.mxu0 0.0
  %8182 = vmatpush2.msra.mxu0 0.0
  %8183 = vmatprep.subr.mxu0 0.0
  %8184 = vmatpush2.msra.mxu0 0.0
  %8185 = vmatprep.subr.mxu0 0.0
  %8186 = vmatpush2.msra.mxu0 0.0
  %8187 = vmatprep.mubr.f32.mxu0 0.0
  %v8188 = vand.u32 %v7225, 4294901760
  %8189 = vmatmul.mubr.f32.gmra.mxu0 %v8188
  %v8190 = vpop.f32.mrf.mxu0
  %v8191 = vadd.f32 %v8101, %v8190
  %v8192 = vpop.f32.mrf.mxu0
  %v8193 = vadd.f32 %v8103, %v8192
  %8194 = vdwg.mxu0
  %8195 = vmatprep.subr.mxu0 0.0
  %8196 = vmatpush1.msra.mxu0 0.0
  %8197 = vmatprep.subr.mxu0 0.0
  %8198 = vmatpush1.msra.mxu0 0.0
  %8199 = vmatprep.subr.mxu0 0.0
  %8200 = vmatpush1.msra.mxu0 0.0
  %8201 = vmatprep.subr.mxu0 0.0
  %8202 = vmatpush1.msra.mxu0 0.0
  %8203 = vmatprep.subr.mxu0 0.0
  %8204 = vmatpush1.msra.mxu0 0.0
  %8205 = vmatprep.subr.mxu0 0.0
  %8206 = vmatpush1.msra.mxu0 0.0
  %8207 = vmatprep.subr.mxu0 0.0
  %8208 = vmatpush1.msra.mxu0 0.0
  %8209 = vmatprep.subr.mxu0 0.0
  %8210 = vmatpush1.msra.mxu0 0.0
  %8211 = vmatprep.subr.mxu0 0.0
  %8212 = vmatpush1.msra.mxu0 0.0
  %8213 = vmatprep.subr.mxu0 0.0
  %8214 = vmatpush1.msra.mxu0 0.0
  %8215 = vmatprep.subr.mxu0 0.0
  %8216 = vmatpush1.msra.mxu0 0.0
  %8217 = vmatprep.subr.mxu0 0.0
  %8218 = vmatpush1.msra.mxu0 0.0
  %8219 = vmatprep.subr.mxu0 0.0
  %8220 = vmatpush1.msra.mxu0 0.0
  %v8221 = vand.u32 %v7237, 4294901760
  %8222 = vmatprep.subr.mxu0 %v8221
  %v8223 = vand.u32 %v7234, 4294901760
  %8224 = vmatpush1.msra.mxu0 %v8223
  %v8225 = vand.u32 %v7216, 4294901760
  %8226 = vmatprep.subr.mxu0 %v8225
  %v8227 = vand.u32 %v7215, 4294901760
  %8228 = vmatpush1.msra.mxu0 %v8227
  %v8229 = vand.u32 %v7204, 4294901760
  %8230 = vmatprep.subr.mxu0 %v8229
  %v8231 = vand.u32 %v7203, 4294901760
  %8232 = vmatpush1.msra.mxu0 %v8231
  %8233 = vmatprep.subr.mxu0 0.0
  %8234 = vmatpush2.msra.mxu0 0.0
  %8235 = vmatprep.subr.mxu0 0.0
  %8236 = vmatpush2.msra.mxu0 0.0
  %8237 = vmatprep.subr.mxu0 0.0
  %8238 = vmatpush2.msra.mxu0 0.0
  %8239 = vmatprep.subr.mxu0 0.0
  %8240 = vmatpush2.msra.mxu0 0.0
  %8241 = vmatprep.subr.mxu0 0.0
  %8242 = vmatpush2.msra.mxu0 0.0
  %8243 = vmatprep.subr.mxu0 0.0
  %8244 = vmatpush2.msra.mxu0 0.0
  %8245 = vmatprep.subr.mxu0 0.0
  %8246 = vmatpush2.msra.mxu0 0.0
  %8247 = vmatprep.subr.mxu0 0.0
  %8248 = vmatpush2.msra.mxu0 0.0
  %8249 = vmatprep.subr.mxu0 0.0
  %8250 = vmatpush2.msra.mxu0 0.0
  %8251 = vmatprep.subr.mxu0 0.0
  %8252 = vmatpush2.msra.mxu0 0.0
  %8253 = vmatprep.subr.mxu0 0.0
  %8254 = vmatpush2.msra.mxu0 0.0
  %8255 = vmatprep.subr.mxu0 0.0
  %8256 = vmatpush2.msra.mxu0 0.0
  %8257 = vmatprep.subr.mxu0 0.0
  %8258 = vmatpush2.msra.mxu0 0.0
  %8259 = vmatprep.subr.mxu0 0.0
  %8260 = vmatpush2.msra.mxu0 0.0
  %8261 = vmatprep.subr.mxu0 0.0
  %8262 = vmatpush2.msra.mxu0 0.0
  %8263 = vmatprep.subr.mxu0 0.0
  %8264 = vmatpush2.msra.mxu0 0.0
  %8265 = vmatprep.mubr.f32.mxu0 0.0
  %v8266 = vand.u32 %v7225, 4294901760
  %8267 = vmatmul.mubr.f32.gmra.mxu0 %v8266
  %v8268 = vpop.f32.mrf.mxu0
  %v8269 = vadd.f32 %v8191, %v8268
  %v8270 = vpop.f32.mrf.mxu0
  %v8271 = vadd.f32 %v8193, %v8270
  %8272 = vdwg.mxu0
  %v8273 = vxor.u32 %v7752, 2147483648
  %v8274 = vxor.u32 %v7754, 2147483648
  %v8275 = vxor.u32 %v8269, 2147483648
  %v8276 = vxor.u32 %v8271, 2147483648
  %v8277 = vmul.f32 %v8273, 1.442695
  %v8278 = vpow.pop %v8277
  %v8279 = vmul.f32 %v8274, 1.442695
  %v8280 = vpow.pop %v8279
  %v8281 = vmul.f32 %v8275, 1.442695
  %v8282 = vpow.pop %v8281
  %v8283 = vmul.f32 %v8276, 1.442695
  %v8284 = vpow.pop %v8283
  %v8285 = vadd.f32 %v8278, 1.0
  %v8286 = vadd.f32 %v8280, 1.0
  %v8287 = vadd.f32 %v8282, 1.0
  %v8288 = vadd.f32 %v8284, 1.0
  %v8289 = vrcp.pop %v8285
  %v8290 = vmul.f32 1.0, %v8289
  %v8291 = vrcp.pop %v8286
  %v8292 = vmul.f32 1.0, %v8291
  %v8293 = vrcp.pop %v8287
  %v8294 = vmul.f32 1.0, %v8293
  %v8295 = vrcp.pop %v8288
  %v8296 = vmul.f32 1.0, %v8295
  %8301 = vrot.lane.b32.xlu0 %v8290, 17
  %v8302 = vpop.permute.xlu0 %8301
  %8303 = vrot.lane.b32.xlu0 %v8292, 17
  %v8304 = vpop.permute.xlu0 %8303
  %8305 = vrot.lane.b32.xlu0 %v8294, 17
  %v8306 = vpop.permute.xlu0 %8305
  %8307 = vrot.lane.b32.xlu0 %v8296, 17
  %v8308 = vpop.permute.xlu0 %8307
  %v8309 = vsel %vm74, %v8302, %v8304
  %v8310 = vsel %vm74, %v8304, %v8306
  %v8311 = vsel %vm74, %v8306, %v8308
  %v8317 = vsel %vm74, 0.0, %v8302
  %v8318 = vsel %vm74, %v8308, 0.0
  %v8319 = vsel %vm36, %v8317, 0.0
  %v8320 = vsel %vm37, %v8309, 0.0
  %v8321 = vsel %vm38, %v8310, 0.0
  %v8322 = vsel %vm39, %v8311, 0.0
  %8325 = vrot.lane.b32.xlu0 %v8317, 127
  %v8326 = vpop.permute.xlu0 %8325
  %8327 = vrot.lane.b32.xlu0 %v8309, 127
  %v8328 = vpop.permute.xlu0 %8327
  %8329 = vrot.lane.b32.xlu0 %v8310, 127
  %v8330 = vpop.permute.xlu0 %8329
  %8331 = vrot.lane.b32.xlu0 %v8311, 127
  %v8332 = vpop.permute.xlu0 %8331
  %8333 = vrot.lane.b32.xlu0 %v8318, 127
  %v8334 = vpop.permute.xlu0 %8333
  %v8335 = vsel %vm117, %v8326, %v8328
  %v8336 = vsel %vm117, %v8328, %v8330
  %v8337 = vsel %vm117, %v8330, %v8332
  %v8338 = vsel %vm117, %v8332, %v8334
  %v8343 = vsel %vm28, %v8335, 0.0
  %v8344 = vsel %vm29, %v8336, 0.0
  %v8345 = vsel %vm30, %v8337, 0.0
  %v8346 = vsel %vm31, %v8338, 0.0
  %8347 = vrot.lane.b32.xlu0 %v8317, 126
  %v8348 = vpop.permute.xlu0 %8347
  %8349 = vrot.lane.b32.xlu0 %v8309, 126
  %v8350 = vpop.permute.xlu0 %8349
  %8351 = vrot.lane.b32.xlu0 %v8310, 126
  %v8352 = vpop.permute.xlu0 %8351
  %8353 = vrot.lane.b32.xlu0 %v8311, 126
  %v8354 = vpop.permute.xlu0 %8353
  %8355 = vrot.lane.b32.xlu0 %v8318, 126
  %v8356 = vpop.permute.xlu0 %8355
  %v8357 = vsel %vm148, %v8348, %v8350
  %v8358 = vsel %vm148, %v8350, %v8352
  %v8359 = vsel %vm148, %v8352, %v8354
  %v8360 = vsel %vm148, %v8354, %v8356
  %v8365 = vsel %vm44, %v8357, 0.0
  %v8366 = vsel %vm45, %v8358, 0.0
  %v8367 = vsel %vm46, %v8359, 0.0
  %v8368 = vsel %vm47, %v8360, 0.0
  %8369 = vrot.lane.b32.xlu0 %v8317, 112
  %v8370 = vpop.permute.xlu0 %8369
  %8371 = vrot.lane.b32.xlu0 %v8309, 112
  %v8372 = vpop.permute.xlu0 %8371
  %8373 = vrot.lane.b32.xlu0 %v8310, 112
  %v8374 = vpop.permute.xlu0 %8373
  %8375 = vrot.lane.b32.xlu0 %v8311, 112
  %v8376 = vpop.permute.xlu0 %8375
  %8377 = vrot.lane.b32.xlu0 %v8318, 112
  %v8378 = vpop.permute.xlu0 %8377
  %v8379 = vsel %vm179, %v8370, %v8372
  %v8380 = vsel %vm179, %v8372, %v8374
  %v8381 = vsel %vm179, %v8374, %v8376
  %v8382 = vsel %vm179, %v8376, %v8378
  %v8387 = vsel %vm32, %v8379, 0.0
  %v8388 = vsel %vm33, %v8380, 0.0
  %v8389 = vsel %vm34, %v8381, 0.0
  %v8390 = vsel %vm35, %v8382, 0.0
  %8391 = vrot.lane.b32.xlu0 %v8317, 110
  %v8392 = vpop.permute.xlu0 %8391
  %8393 = vrot.lane.b32.xlu0 %v8309, 110
  %v8394 = vpop.permute.xlu0 %8393
  %8395 = vrot.lane.b32.xlu0 %v8310, 110
  %v8396 = vpop.permute.xlu0 %8395
  %8397 = vrot.lane.b32.xlu0 %v8311, 110
  %v8398 = vpop.permute.xlu0 %8397
  %8399 = vrot.lane.b32.xlu0 %v8318, 110
  %v8400 = vpop.permute.xlu0 %8399
  %v8401 = vsel %vm210, %v8392, %v8394
  %v8402 = vsel %vm210, %v8394, %v8396
  %v8403 = vsel %vm210, %v8396, %v8398
  %v8404 = vsel %vm210, %v8398, %v8400
  %v8409 = vsel %vm40, %v8401, 0.0
  %v8410 = vsel %vm41, %v8402, 0.0
  %v8411 = vsel %vm42, %v8403, 0.0
  %v8412 = vsel %vm43, %v8404, 0.0
  %8413 = vrot.lane.b32.xlu0 %v8317, 96
  %v8414 = vpop.permute.xlu0 %8413
  %8415 = vrot.lane.b32.xlu0 %v8309, 96
  %v8416 = vpop.permute.xlu0 %8415
  %8417 = vrot.lane.b32.xlu0 %v8310, 96
  %v8418 = vpop.permute.xlu0 %8417
  %8419 = vrot.lane.b32.xlu0 %v8311, 96
  %v8420 = vpop.permute.xlu0 %8419
  %8421 = vrot.lane.b32.xlu0 %v8318, 96
  %v8422 = vpop.permute.xlu0 %8421
  %v8423 = vsel %vm241, %v8414, %v8416
  %v8424 = vsel %vm241, %v8416, %v8418
  %v8425 = vsel %vm241, %v8418, %v8420
  %v8426 = vsel %vm241, %v8420, %v8422
  %v8431 = vsel %vm52, %v8423, 0.0
  %v8432 = vsel %vm53, %v8424, 0.0
  %v8433 = vsel %vm54, %v8425, 0.0
  %v8434 = vsel %vm55, %v8426, 0.0
  %8435 = vrot.lane.b32.xlu0 %v8317, 95
  %v8436 = vpop.permute.xlu0 %8435
  %8437 = vrot.lane.b32.xlu0 %v8309, 95
  %v8438 = vpop.permute.xlu0 %8437
  %8439 = vrot.lane.b32.xlu0 %v8310, 95
  %v8440 = vpop.permute.xlu0 %8439
  %8441 = vrot.lane.b32.xlu0 %v8311, 95
  %v8442 = vpop.permute.xlu0 %8441
  %8443 = vrot.lane.b32.xlu0 %v8318, 95
  %v8444 = vpop.permute.xlu0 %8443
  %v8445 = vsel %vm272, %v8436, %v8438
  %v8446 = vsel %vm272, %v8438, %v8440
  %v8447 = vsel %vm272, %v8440, %v8442
  %v8448 = vsel %vm272, %v8442, %v8444
  %v8453 = vsel %vm48, %v8445, 0.0
  %v8454 = vsel %vm49, %v8446, 0.0
  %v8455 = vsel %vm50, %v8447, 0.0
  %v8456 = vsel %vm51, %v8448, 0.0
  %8457 = vrot.lane.b32.xlu0 %v8317, 94
  %v8458 = vpop.permute.xlu0 %8457
  %8459 = vrot.lane.b32.xlu0 %v8309, 94
  %v8460 = vpop.permute.xlu0 %8459
  %8461 = vrot.lane.b32.xlu0 %v8310, 94
  %v8462 = vpop.permute.xlu0 %8461
  %8463 = vrot.lane.b32.xlu0 %v8311, 94
  %v8464 = vpop.permute.xlu0 %8463
  %8465 = vrot.lane.b32.xlu0 %v8318, 94
  %v8466 = vpop.permute.xlu0 %8465
  %v8467 = vsel %vm303, %v8458, %v8460
  %v8468 = vsel %vm303, %v8460, %v8462
  %v8469 = vsel %vm303, %v8462, %v8464
  %v8470 = vsel %vm303, %v8464, %v8466
  %v8475 = vsel %vm56, %v8467, 0.0
  %v8476 = vsel %vm57, %v8468, 0.0
  %v8477 = vsel %vm58, %v8469, 0.0
  %v8478 = vsel %vm59, %v8470, 0.0
  %v8483 = vrot.slane %v8343, 7
  %v8484 = vrot.slane %v8344, 7
  %v8485 = vrot.slane %v8345, 7
  %v8486 = vrot.slane %v8346, 7
  %v8495 = vrot.slane %v8365, 6
  %v8496 = vrot.slane %v8366, 6
  %v8497 = vrot.slane %v8367, 6
  %v8498 = vrot.slane %v8368, 6
  %v8507 = vrot.slane %v8387, 5
  %v8508 = vrot.slane %v8388, 5
  %v8509 = vrot.slane %v8389, 5
  %v8510 = vrot.slane %v8390, 5
  %v8515 = vrot.slane %v8290, 4
  %v8516 = vrot.slane %v8292, 4
  %v8517 = vrot.slane %v8294, 4
  %v8518 = vrot.slane %v8296, 4
  %v8527 = vrot.slane %v8409, 3
  %v8528 = vrot.slane %v8410, 3
  %v8529 = vrot.slane %v8411, 3
  %v8530 = vrot.slane %v8412, 3
  %v8539 = vrot.slane %v8431, 2
  %v8540 = vrot.slane %v8432, 2
  %v8541 = vrot.slane %v8433, 2
  %v8542 = vrot.slane %v8434, 2
  %v8551 = vrot.slane %v8453, 1
  %v8552 = vrot.slane %v8454, 1
  %v8553 = vrot.slane %v8455, 1
  %v8554 = vrot.slane %v8456, 1
  %v8559 = vsel %vm3248, %v8319, %v8483
  %v8560 = vsel %vm3248, %v8320, %v8484
  %v8561 = vsel %vm3248, %v8321, %v8485
  %v8562 = vsel %vm3248, %v8322, %v8486
  %v8563 = vsel %vm3262, %v8559, %v8495
  %v8564 = vsel %vm3262, %v8560, %v8496
  %v8565 = vsel %vm3262, %v8561, %v8497
  %v8566 = vsel %vm3262, %v8562, %v8498
  %v8567 = vsel %vm3238, %v8563, %v8507
  %v8568 = vsel %vm3238, %v8564, %v8508
  %v8569 = vsel %vm3238, %v8565, %v8509
  %v8570 = vsel %vm3238, %v8566, %v8510
  %v8571 = vsel %vm366, %v8567, %v8515
  %v8572 = vsel %vm366, %v8568, %v8516
  %v8573 = vsel %vm366, %v8569, %v8517
  %v8574 = vsel %vm366, %v8570, %v8518
  %v8575 = vsel %vm392, %v8571, %v8527
  %v8576 = vsel %vm392, %v8572, %v8528
  %v8577 = vsel %vm392, %v8573, %v8529
  %v8578 = vsel %vm392, %v8574, %v8530
  %v8579 = vsel %vm3243, %v8575, %v8539
  %v8580 = vsel %vm3243, %v8576, %v8540
  %v8581 = vsel %vm3243, %v8577, %v8541
  %v8582 = vsel %vm3243, %v8578, %v8542
  %v8583 = vsel %vm3257, %v8579, %v8551
  %v8584 = vsel %vm3257, %v8580, %v8552
  %v8585 = vsel %vm3257, %v8581, %v8553
  %v8586 = vsel %vm3257, %v8582, %v8554
  %v8587 = vsel %vm3248, %v8475, 1.0
  %v8588 = vsel %vm3248, %v8476, 1.0
  %v8589 = vsel %vm3248, %v8477, 1.0
  %v8590 = vsel %vm3248, %v8478, 1.0
  %s8591 = scalar_lea.vmem %s0, 24
  %v8592 = vld [vmem:[%s8591] sm:$0xf]
  %vm8593 = vcmask 80896
  %v8595 = vsel %vm8593, %v8592, 0
  %v8598 = vsel %vm3262, %v8587, 0
  %v8601 = vsel %vm3262, %v8588, 0
  %v8604 = vsel %vm3262, %v8589, 0
  %v8607 = vsel %vm3262, %v8590, 0
  %8609 = vmatprep.subr.mxu0 0.0
  %8610 = vmatpush1.msra.mxu0 0.0
  %8611 = vmatprep.subr.mxu0 0.0
  %8612 = vmatpush1.msra.mxu0 0.0
  %8613 = vmatprep.subr.mxu0 0.0
  %8614 = vmatpush1.msra.mxu0 0.0
  %8615 = vmatprep.subr.mxu0 0.0
  %8616 = vmatpush1.msra.mxu0 0.0
  %8617 = vmatprep.subr.mxu0 0.0
  %8618 = vmatpush1.msra.mxu0 0.0
  %8619 = vmatprep.subr.mxu0 0.0
  %8620 = vmatpush1.msra.mxu0 0.0
  %8621 = vmatprep.subr.mxu0 0.0
  %8622 = vmatpush1.msra.mxu0 0.0
  %8623 = vmatprep.subr.mxu0 0.0
  %8624 = vmatpush1.msra.mxu0 0.0
  %8625 = vmatprep.subr.mxu0 0.0
  %8626 = vmatpush1.msra.mxu0 0.0
  %8627 = vmatprep.subr.mxu0 0.0
  %8628 = vmatpush1.msra.mxu0 0.0
  %8629 = vmatprep.subr.mxu0 0.0
  %8630 = vmatpush1.msra.mxu0 0.0
  %8631 = vmatprep.subr.mxu0 0.0
  %8632 = vmatpush1.msra.mxu0 0.0
  %8633 = vmatprep.subr.mxu0 0.0
  %8634 = vmatpush1.msra.mxu0 0.0
  %8635 = vmatprep.subr.mxu0 0.0
  %8636 = vmatpush1.msra.mxu0 0.0
  %v8637 = vand.u32 %v8601, 4294901760
  %8638 = vmatprep.subr.mxu0 %v8637
  %v8639 = vand.u32 %v8598, 4294901760
  %8640 = vmatpush1.msra.mxu0 %v8639
  %v8641 = vand.u32 %v8584, 4294901760
  %8642 = vmatprep.subr.mxu0 %v8641
  %v8643 = vand.u32 %v8583, 4294901760
  %8644 = vmatpush1.msra.mxu0 %v8643
  %8645 = vmatprep.subr.mxu0 0.0
  %8646 = vmatpush2.msra.mxu0 0.0
  %8647 = vmatprep.subr.mxu0 0.0
  %8648 = vmatpush2.msra.mxu0 0.0
  %8649 = vmatprep.subr.mxu0 0.0
  %8650 = vmatpush2.msra.mxu0 0.0
  %8651 = vmatprep.subr.mxu0 0.0
  %8652 = vmatpush2.msra.mxu0 0.0
  %8653 = vmatprep.subr.mxu0 0.0
  %8654 = vmatpush2.msra.mxu0 0.0
  %8655 = vmatprep.subr.mxu0 0.0
  %8656 = vmatpush2.msra.mxu0 0.0
  %8657 = vmatprep.subr.mxu0 0.0
  %8658 = vmatpush2.msra.mxu0 0.0
  %8659 = vmatprep.subr.mxu0 0.0
  %8660 = vmatpush2.msra.mxu0 0.0
  %8661 = vmatprep.subr.mxu0 0.0
  %8662 = vmatpush2.msra.mxu0 0.0
  %8663 = vmatprep.subr.mxu0 0.0
  %8664 = vmatpush2.msra.mxu0 0.0
  %8665 = vmatprep.subr.mxu0 0.0
  %8666 = vmatpush2.msra.mxu0 0.0
  %8667 = vmatprep.subr.mxu0 0.0
  %8668 = vmatpush2.msra.mxu0 0.0
  %8669 = vmatprep.subr.mxu0 0.0
  %8670 = vmatpush2.msra.mxu0 0.0
  %8671 = vmatprep.subr.mxu0 0.0
  %8672 = vmatpush2.msra.mxu0 0.0
  %8673 = vmatprep.subr.mxu0 0.0
  %8674 = vmatpush2.msra.mxu0 0.0
  %8675 = vmatprep.subr.mxu0 0.0
  %8676 = vmatpush2.msra.mxu0 0.0
  %8677 = vmatprep.mubr.f32.mxu0 0.0
  %v8678 = vand.u32 %v8595, 4294901760
  %v8679 = vsub.f32 %v8595, %v8678
  %v8680 = vand.u32 %v8679, 4294901760
  %v8681 = vsub.f32 %v8679, %v8680
  %v8682 = vand.u32 %v8681, 4294901760
  %8683 = vmatmul.mubr.f32.gmra.mxu0 %v8682
  %v8684 = vpop.f32.mrf.mxu0
  %v8685 = vadd.f32 0.0, %v8684
  %v8686 = vpop.f32.mrf.mxu0
  %v8687 = vadd.f32 0.0, %v8686
  %8688 = vdwg.mxu0
  %8689 = vmatprep.subr.mxu0 0.0
  %8690 = vmatpush1.msra.mxu0 0.0
  %8691 = vmatprep.subr.mxu0 0.0
  %8692 = vmatpush1.msra.mxu0 0.0
  %8693 = vmatprep.subr.mxu0 0.0
  %8694 = vmatpush1.msra.mxu0 0.0
  %8695 = vmatprep.subr.mxu0 0.0
  %8696 = vmatpush1.msra.mxu0 0.0
  %8697 = vmatprep.subr.mxu0 0.0
  %8698 = vmatpush1.msra.mxu0 0.0
  %8699 = vmatprep.subr.mxu0 0.0
  %8700 = vmatpush1.msra.mxu0 0.0
  %8701 = vmatprep.subr.mxu0 0.0
  %8702 = vmatpush1.msra.mxu0 0.0
  %8703 = vmatprep.subr.mxu0 0.0
  %8704 = vmatpush1.msra.mxu0 0.0
  %8705 = vmatprep.subr.mxu0 0.0
  %8706 = vmatpush1.msra.mxu0 0.0
  %8707 = vmatprep.subr.mxu0 0.0
  %8708 = vmatpush1.msra.mxu0 0.0
  %8709 = vmatprep.subr.mxu0 0.0
  %8710 = vmatpush1.msra.mxu0 0.0
  %8711 = vmatprep.subr.mxu0 0.0
  %8712 = vmatpush1.msra.mxu0 0.0
  %8713 = vmatprep.subr.mxu0 0.0
  %8714 = vmatpush1.msra.mxu0 0.0
  %8715 = vmatprep.subr.mxu0 0.0
  %8716 = vmatpush1.msra.mxu0 0.0
  %v8717 = vand.u32 %v8601, 4294901760
  %v8718 = vsub.f32 %v8601, %v8717
  %v8719 = vand.u32 %v8718, 4294901760
  %v8720 = vsub.f32 %v8718, %v8719
  %v8721 = vand.u32 %v8720, 4294901760
  %8722 = vmatprep.subr.mxu0 %v8721
  %v8723 = vand.u32 %v8598, 4294901760
  %v8724 = vsub.f32 %v8598, %v8723
  %v8725 = vand.u32 %v8724, 4294901760
  %v8726 = vsub.f32 %v8724, %v8725
  %v8727 = vand.u32 %v8726, 4294901760
  %8728 = vmatpush1.msra.mxu0 %v8727
  %v8729 = vand.u32 %v8584, 4294901760
  %v8730 = vsub.f32 %v8584, %v8729
  %v8731 = vand.u32 %v8730, 4294901760
  %v8732 = vsub.f32 %v8730, %v8731
  %v8733 = vand.u32 %v8732, 4294901760
  %8734 = vmatprep.subr.mxu0 %v8733
  %v8735 = vand.u32 %v8583, 4294901760
  %v8736 = vsub.f32 %v8583, %v8735
  %v8737 = vand.u32 %v8736, 4294901760
  %v8738 = vsub.f32 %v8736, %v8737
  %v8739 = vand.u32 %v8738, 4294901760
  %8740 = vmatpush1.msra.mxu0 %v8739
  %8741 = vmatprep.subr.mxu0 0.0
  %8742 = vmatpush2.msra.mxu0 0.0
  %8743 = vmatprep.subr.mxu0 0.0
  %8744 = vmatpush2.msra.mxu0 0.0
  %8745 = vmatprep.subr.mxu0 0.0
  %8746 = vmatpush2.msra.mxu0 0.0
  %8747 = vmatprep.subr.mxu0 0.0
  %8748 = vmatpush2.msra.mxu0 0.0
  %8749 = vmatprep.subr.mxu0 0.0
  %8750 = vmatpush2.msra.mxu0 0.0
  %8751 = vmatprep.subr.mxu0 0.0
  %8752 = vmatpush2.msra.mxu0 0.0
  %8753 = vmatprep.subr.mxu0 0.0
  %8754 = vmatpush2.msra.mxu0 0.0
  %8755 = vmatprep.subr.mxu0 0.0
  %8756 = vmatpush2.msra.mxu0 0.0
  %8757 = vmatprep.subr.mxu0 0.0
  %8758 = vmatpush2.msra.mxu0 0.0
  %8759 = vmatprep.subr.mxu0 0.0
  %8760 = vmatpush2.msra.mxu0 0.0
  %8761 = vmatprep.subr.mxu0 0.0
  %8762 = vmatpush2.msra.mxu0 0.0
  %8763 = vmatprep.subr.mxu0 0.0
  %8764 = vmatpush2.msra.mxu0 0.0
  %8765 = vmatprep.subr.mxu0 0.0
  %8766 = vmatpush2.msra.mxu0 0.0
  %8767 = vmatprep.subr.mxu0 0.0
  %8768 = vmatpush2.msra.mxu0 0.0
  %8769 = vmatprep.subr.mxu0 0.0
  %8770 = vmatpush2.msra.mxu0 0.0
  %8771 = vmatprep.subr.mxu0 0.0
  %8772 = vmatpush2.msra.mxu0 0.0
  %8773 = vmatprep.mubr.f32.mxu0 0.0
  %v8774 = vand.u32 %v8595, 4294901760
  %8775 = vmatmul.mubr.f32.gmra.mxu0 %v8774
  %v8776 = vpop.f32.mrf.mxu0
  %v8777 = vadd.f32 %v8685, %v8776
  %v8778 = vpop.f32.mrf.mxu0
  %v8779 = vadd.f32 %v8687, %v8778
  %8780 = vdwg.mxu0
  %8781 = vmatprep.subr.mxu0 0.0
  %8782 = vmatpush1.msra.mxu0 0.0
  %8783 = vmatprep.subr.mxu0 0.0
  %8784 = vmatpush1.msra.mxu0 0.0
  %8785 = vmatprep.subr.mxu0 0.0
  %8786 = vmatpush1.msra.mxu0 0.0
  %8787 = vmatprep.subr.mxu0 0.0
  %8788 = vmatpush1.msra.mxu0 0.0
  %8789 = vmatprep.subr.mxu0 0.0
  %8790 = vmatpush1.msra.mxu0 0.0
  %8791 = vmatprep.subr.mxu0 0.0
  %8792 = vmatpush1.msra.mxu0 0.0
  %8793 = vmatprep.subr.mxu0 0.0
  %8794 = vmatpush1.msra.mxu0 0.0
  %8795 = vmatprep.subr.mxu0 0.0
  %8796 = vmatpush1.msra.mxu0 0.0
  %8797 = vmatprep.subr.mxu0 0.0
  %8798 = vmatpush1.msra.mxu0 0.0
  %8799 = vmatprep.subr.mxu0 0.0
  %8800 = vmatpush1.msra.mxu0 0.0
  %8801 = vmatprep.subr.mxu0 0.0
  %8802 = vmatpush1.msra.mxu0 0.0
  %8803 = vmatprep.subr.mxu0 0.0
  %8804 = vmatpush1.msra.mxu0 0.0
  %8805 = vmatprep.subr.mxu0 0.0
  %8806 = vmatpush1.msra.mxu0 0.0
  %8807 = vmatprep.subr.mxu0 0.0
  %8808 = vmatpush1.msra.mxu0 0.0
  %v8809 = vand.u32 %v8601, 4294901760
  %v8810 = vsub.f32 %v8601, %v8809
  %8811 = vmatprep.subr.mxu0 %v8810
  %v8812 = vand.u32 %v8598, 4294901760
  %v8813 = vsub.f32 %v8598, %v8812
  %8814 = vmatpush1.msra.mxu0 %v8813
  %v8815 = vand.u32 %v8584, 4294901760
  %v8816 = vsub.f32 %v8584, %v8815
  %8817 = vmatprep.subr.mxu0 %v8816
  %v8818 = vand.u32 %v8583, 4294901760
  %v8819 = vsub.f32 %v8583, %v8818
  %8820 = vmatpush1.msra.mxu0 %v8819
  %8821 = vmatprep.subr.mxu0 0.0
  %8822 = vmatpush2.msra.mxu0 0.0
  %8823 = vmatprep.subr.mxu0 0.0
  %8824 = vmatpush2.msra.mxu0 0.0
  %8825 = vmatprep.subr.mxu0 0.0
  %8826 = vmatpush2.msra.mxu0 0.0
  %8827 = vmatprep.subr.mxu0 0.0
  %8828 = vmatpush2.msra.mxu0 0.0
  %8829 = vmatprep.subr.mxu0 0.0
  %8830 = vmatpush2.msra.mxu0 0.0
  %8831 = vmatprep.subr.mxu0 0.0
  %8832 = vmatpush2.msra.mxu0 0.0
  %8833 = vmatprep.subr.mxu0 0.0
  %8834 = vmatpush2.msra.mxu0 0.0
  %8835 = vmatprep.subr.mxu0 0.0
  %8836 = vmatpush2.msra.mxu0 0.0
  %8837 = vmatprep.subr.mxu0 0.0
  %8838 = vmatpush2.msra.mxu0 0.0
  %8839 = vmatprep.subr.mxu0 0.0
  %8840 = vmatpush2.msra.mxu0 0.0
  %8841 = vmatprep.subr.mxu0 0.0
  %8842 = vmatpush2.msra.mxu0 0.0
  %8843 = vmatprep.subr.mxu0 0.0
  %8844 = vmatpush2.msra.mxu0 0.0
  %8845 = vmatprep.subr.mxu0 0.0
  %8846 = vmatpush2.msra.mxu0 0.0
  %8847 = vmatprep.subr.mxu0 0.0
  %8848 = vmatpush2.msra.mxu0 0.0
  %8849 = vmatprep.subr.mxu0 0.0
  %8850 = vmatpush2.msra.mxu0 0.0
  %8851 = vmatprep.subr.mxu0 0.0
  %8852 = vmatpush2.msra.mxu0 0.0
  %8853 = vmatprep.mubr.f32.mxu0 0.0
  %v8854 = vand.u32 %v8595, 4294901760
  %v8855 = vsub.f32 %v8595, %v8854
  %8856 = vmatmul.mubr.f32.gmra.mxu0 %v8855
  %v8857 = vpop.f32.mrf.mxu0
  %v8858 = vadd.f32 %v8777, %v8857
  %v8859 = vpop.f32.mrf.mxu0
  %v8860 = vadd.f32 %v8779, %v8859
  %8861 = vdwg.mxu0
  %8862 = vmatprep.subr.mxu0 0.0
  %8863 = vmatpush1.msra.mxu0 0.0
  %8864 = vmatprep.subr.mxu0 0.0
  %8865 = vmatpush1.msra.mxu0 0.0
  %8866 = vmatprep.subr.mxu0 0.0
  %8867 = vmatpush1.msra.mxu0 0.0
  %8868 = vmatprep.subr.mxu0 0.0
  %8869 = vmatpush1.msra.mxu0 0.0
  %8870 = vmatprep.subr.mxu0 0.0
  %8871 = vmatpush1.msra.mxu0 0.0
  %8872 = vmatprep.subr.mxu0 0.0
  %8873 = vmatpush1.msra.mxu0 0.0
  %8874 = vmatprep.subr.mxu0 0.0
  %8875 = vmatpush1.msra.mxu0 0.0
  %8876 = vmatprep.subr.mxu0 0.0
  %8877 = vmatpush1.msra.mxu0 0.0
  %8878 = vmatprep.subr.mxu0 0.0
  %8879 = vmatpush1.msra.mxu0 0.0
  %8880 = vmatprep.subr.mxu0 0.0
  %8881 = vmatpush1.msra.mxu0 0.0
  %8882 = vmatprep.subr.mxu0 0.0
  %8883 = vmatpush1.msra.mxu0 0.0
  %8884 = vmatprep.subr.mxu0 0.0
  %8885 = vmatpush1.msra.mxu0 0.0
  %8886 = vmatprep.subr.mxu0 0.0
  %8887 = vmatpush1.msra.mxu0 0.0
  %8888 = vmatprep.subr.mxu0 0.0
  %8889 = vmatpush1.msra.mxu0 0.0
  %v8890 = vand.u32 %v8601, 4294901760
  %8891 = vmatprep.subr.mxu0 %v8890
  %v8892 = vand.u32 %v8598, 4294901760
  %8893 = vmatpush1.msra.mxu0 %v8892
  %v8894 = vand.u32 %v8584, 4294901760
  %8895 = vmatprep.subr.mxu0 %v8894
  %v8896 = vand.u32 %v8583, 4294901760
  %8897 = vmatpush1.msra.mxu0 %v8896
  %8898 = vmatprep.subr.mxu0 0.0
  %8899 = vmatpush2.msra.mxu0 0.0
  %8900 = vmatprep.subr.mxu0 0.0
  %8901 = vmatpush2.msra.mxu0 0.0
  %8902 = vmatprep.subr.mxu0 0.0
  %8903 = vmatpush2.msra.mxu0 0.0
  %8904 = vmatprep.subr.mxu0 0.0
  %8905 = vmatpush2.msra.mxu0 0.0
  %8906 = vmatprep.subr.mxu0 0.0
  %8907 = vmatpush2.msra.mxu0 0.0
  %8908 = vmatprep.subr.mxu0 0.0
  %8909 = vmatpush2.msra.mxu0 0.0
  %8910 = vmatprep.subr.mxu0 0.0
  %8911 = vmatpush2.msra.mxu0 0.0
  %8912 = vmatprep.subr.mxu0 0.0
  %8913 = vmatpush2.msra.mxu0 0.0
  %8914 = vmatprep.subr.mxu0 0.0
  %8915 = vmatpush2.msra.mxu0 0.0
  %8916 = vmatprep.subr.mxu0 0.0
  %8917 = vmatpush2.msra.mxu0 0.0
  %8918 = vmatprep.subr.mxu0 0.0
  %8919 = vmatpush2.msra.mxu0 0.0
  %8920 = vmatprep.subr.mxu0 0.0
  %8921 = vmatpush2.msra.mxu0 0.0
  %8922 = vmatprep.subr.mxu0 0.0
  %8923 = vmatpush2.msra.mxu0 0.0
  %8924 = vmatprep.subr.mxu0 0.0
  %8925 = vmatpush2.msra.mxu0 0.0
  %8926 = vmatprep.subr.mxu0 0.0
  %8927 = vmatpush2.msra.mxu0 0.0
  %8928 = vmatprep.subr.mxu0 0.0
  %8929 = vmatpush2.msra.mxu0 0.0
  %8930 = vmatprep.mubr.f32.mxu0 0.0
  %v8931 = vand.u32 %v8595, 4294901760
  %v8932 = vsub.f32 %v8595, %v8931
  %v8933 = vand.u32 %v8932, 4294901760
  %8934 = vmatmul.mubr.f32.gmra.mxu0 %v8933
  %v8935 = vpop.f32.mrf.mxu0
  %v8936 = vadd.f32 %v8858, %v8935
  %v8937 = vpop.f32.mrf.mxu0
  %v8938 = vadd.f32 %v8860, %v8937
  %8939 = vdwg.mxu0
  %8940 = vmatprep.subr.mxu0 0.0
  %8941 = vmatpush1.msra.mxu0 0.0
  %8942 = vmatprep.subr.mxu0 0.0
  %8943 = vmatpush1.msra.mxu0 0.0
  %8944 = vmatprep.subr.mxu0 0.0
  %8945 = vmatpush1.msra.mxu0 0.0
  %8946 = vmatprep.subr.mxu0 0.0
  %8947 = vmatpush1.msra.mxu0 0.0
  %8948 = vmatprep.subr.mxu0 0.0
  %8949 = vmatpush1.msra.mxu0 0.0
  %8950 = vmatprep.subr.mxu0 0.0
  %8951 = vmatpush1.msra.mxu0 0.0
  %8952 = vmatprep.subr.mxu0 0.0
  %8953 = vmatpush1.msra.mxu0 0.0
  %8954 = vmatprep.subr.mxu0 0.0
  %8955 = vmatpush1.msra.mxu0 0.0
  %8956 = vmatprep.subr.mxu0 0.0
  %8957 = vmatpush1.msra.mxu0 0.0
  %8958 = vmatprep.subr.mxu0 0.0
  %8959 = vmatpush1.msra.mxu0 0.0
  %8960 = vmatprep.subr.mxu0 0.0
  %8961 = vmatpush1.msra.mxu0 0.0
  %8962 = vmatprep.subr.mxu0 0.0
  %8963 = vmatpush1.msra.mxu0 0.0
  %8964 = vmatprep.subr.mxu0 0.0
  %8965 = vmatpush1.msra.mxu0 0.0
  %8966 = vmatprep.subr.mxu0 0.0
  %8967 = vmatpush1.msra.mxu0 0.0
  %v8968 = vand.u32 %v8601, 4294901760
  %v8969 = vsub.f32 %v8601, %v8968
  %v8970 = vand.u32 %v8969, 4294901760
  %8971 = vmatprep.subr.mxu0 %v8970
  %v8972 = vand.u32 %v8598, 4294901760
  %v8973 = vsub.f32 %v8598, %v8972
  %v8974 = vand.u32 %v8973, 4294901760
  %8975 = vmatpush1.msra.mxu0 %v8974
  %v8976 = vand.u32 %v8584, 4294901760
  %v8977 = vsub.f32 %v8584, %v8976
  %v8978 = vand.u32 %v8977, 4294901760
  %8979 = vmatprep.subr.mxu0 %v8978
  %v8980 = vand.u32 %v8583, 4294901760
  %v8981 = vsub.f32 %v8583, %v8980
  %v8982 = vand.u32 %v8981, 4294901760
  %8983 = vmatpush1.msra.mxu0 %v8982
  %8984 = vmatprep.subr.mxu0 0.0
  %8985 = vmatpush2.msra.mxu0 0.0
  %8986 = vmatprep.subr.mxu0 0.0
  %8987 = vmatpush2.msra.mxu0 0.0
  %8988 = vmatprep.subr.mxu0 0.0
  %8989 = vmatpush2.msra.mxu0 0.0
  %8990 = vmatprep.subr.mxu0 0.0
  %8991 = vmatpush2.msra.mxu0 0.0
  %8992 = vmatprep.subr.mxu0 0.0
  %8993 = vmatpush2.msra.mxu0 0.0
  %8994 = vmatprep.subr.mxu0 0.0
  %8995 = vmatpush2.msra.mxu0 0.0
  %8996 = vmatprep.subr.mxu0 0.0
  %8997 = vmatpush2.msra.mxu0 0.0
  %8998 = vmatprep.subr.mxu0 0.0
  %8999 = vmatpush2.msra.mxu0 0.0
  %9000 = vmatprep.subr.mxu0 0.0
  %9001 = vmatpush2.msra.mxu0 0.0
  %9002 = vmatprep.subr.mxu0 0.0
  %9003 = vmatpush2.msra.mxu0 0.0
  %9004 = vmatprep.subr.mxu0 0.0
  %9005 = vmatpush2.msra.mxu0 0.0
  %9006 = vmatprep.subr.mxu0 0.0
  %9007 = vmatpush2.msra.mxu0 0.0
  %9008 = vmatprep.subr.mxu0 0.0
  %9009 = vmatpush2.msra.mxu0 0.0
  %9010 = vmatprep.subr.mxu0 0.0
  %9011 = vmatpush2.msra.mxu0 0.0
  %9012 = vmatprep.subr.mxu0 0.0
  %9013 = vmatpush2.msra.mxu0 0.0
  %9014 = vmatprep.subr.mxu0 0.0
  %9015 = vmatpush2.msra.mxu0 0.0
  %9016 = vmatprep.mubr.f32.mxu0 0.0
  %v9017 = vand.u32 %v8595, 4294901760
  %9018 = vmatmul.mubr.f32.gmra.mxu0 %v9017
  %v9019 = vpop.f32.mrf.mxu0
  %v9020 = vadd.f32 %v8936, %v9019
  %v9021 = vpop.f32.mrf.mxu0
  %v9022 = vadd.f32 %v8938, %v9021
  %9023 = vdwg.mxu0
  %9024 = vmatprep.subr.mxu0 0.0
  %9025 = vmatpush1.msra.mxu0 0.0
  %9026 = vmatprep.subr.mxu0 0.0
  %9027 = vmatpush1.msra.mxu0 0.0
  %9028 = vmatprep.subr.mxu0 0.0
  %9029 = vmatpush1.msra.mxu0 0.0
  %9030 = vmatprep.subr.mxu0 0.0
  %9031 = vmatpush1.msra.mxu0 0.0
  %9032 = vmatprep.subr.mxu0 0.0
  %9033 = vmatpush1.msra.mxu0 0.0
  %9034 = vmatprep.subr.mxu0 0.0
  %9035 = vmatpush1.msra.mxu0 0.0
  %9036 = vmatprep.subr.mxu0 0.0
  %9037 = vmatpush1.msra.mxu0 0.0
  %9038 = vmatprep.subr.mxu0 0.0
  %9039 = vmatpush1.msra.mxu0 0.0
  %9040 = vmatprep.subr.mxu0 0.0
  %9041 = vmatpush1.msra.mxu0 0.0
  %9042 = vmatprep.subr.mxu0 0.0
  %9043 = vmatpush1.msra.mxu0 0.0
  %9044 = vmatprep.subr.mxu0 0.0
  %9045 = vmatpush1.msra.mxu0 0.0
  %9046 = vmatprep.subr.mxu0 0.0
  %9047 = vmatpush1.msra.mxu0 0.0
  %9048 = vmatprep.subr.mxu0 0.0
  %9049 = vmatpush1.msra.mxu0 0.0
  %9050 = vmatprep.subr.mxu0 0.0
  %9051 = vmatpush1.msra.mxu0 0.0
  %v9052 = vand.u32 %v8601, 4294901760
  %9053 = vmatprep.subr.mxu0 %v9052
  %v9054 = vand.u32 %v8598, 4294901760
  %9055 = vmatpush1.msra.mxu0 %v9054
  %v9056 = vand.u32 %v8584, 4294901760
  %9057 = vmatprep.subr.mxu0 %v9056
  %v9058 = vand.u32 %v8583, 4294901760
  %9059 = vmatpush1.msra.mxu0 %v9058
  %9060 = vmatprep.subr.mxu0 0.0
  %9061 = vmatpush2.msra.mxu0 0.0
  %9062 = vmatprep.subr.mxu0 0.0
  %9063 = vmatpush2.msra.mxu0 0.0
  %9064 = vmatprep.subr.mxu0 0.0
  %9065 = vmatpush2.msra.mxu0 0.0
  %9066 = vmatprep.subr.mxu0 0.0
  %9067 = vmatpush2.msra.mxu0 0.0
  %9068 = vmatprep.subr.mxu0 0.0
  %9069 = vmatpush2.msra.mxu0 0.0
  %9070 = vmatprep.subr.mxu0 0.0
  %9071 = vmatpush2.msra.mxu0 0.0
  %9072 = vmatprep.subr.mxu0 0.0
  %9073 = vmatpush2.msra.mxu0 0.0
  %9074 = vmatprep.subr.mxu0 0.0
  %9075 = vmatpush2.msra.mxu0 0.0
  %9076 = vmatprep.subr.mxu0 0.0
  %9077 = vmatpush2.msra.mxu0 0.0
  %9078 = vmatprep.subr.mxu0 0.0
  %9079 = vmatpush2.msra.mxu0 0.0
  %9080 = vmatprep.subr.mxu0 0.0
  %9081 = vmatpush2.msra.mxu0 0.0
  %9082 = vmatprep.subr.mxu0 0.0
  %9083 = vmatpush2.msra.mxu0 0.0
  %9084 = vmatprep.subr.mxu0 0.0
  %9085 = vmatpush2.msra.mxu0 0.0
  %9086 = vmatprep.subr.mxu0 0.0
  %9087 = vmatpush2.msra.mxu0 0.0
  %9088 = vmatprep.subr.mxu0 0.0
  %9089 = vmatpush2.msra.mxu0 0.0
  %9090 = vmatprep.subr.mxu0 0.0
  %9091 = vmatpush2.msra.mxu0 0.0
  %9092 = vmatprep.mubr.f32.mxu0 0.0
  %v9093 = vand.u32 %v8595, 4294901760
  %9094 = vmatmul.mubr.f32.gmra.mxu0 %v9093
  %v9095 = vpop.f32.mrf.mxu0
  %v9096 = vadd.f32 %v9020, %v9095
  %v9097 = vpop.f32.mrf.mxu0
  %v9098 = vadd.f32 %v9022, %v9097
  %9099 = vdwg.mxu0
  %9100 = vmatprep.subr.mxu0 0.0
  %9101 = vmatpush1.msra.mxu0 0.0
  %9102 = vmatprep.subr.mxu0 0.0
  %9103 = vmatpush1.msra.mxu0 0.0
  %9104 = vmatprep.subr.mxu0 0.0
  %9105 = vmatpush1.msra.mxu0 0.0
  %9106 = vmatprep.subr.mxu0 0.0
  %9107 = vmatpush1.msra.mxu0 0.0
  %9108 = vmatprep.subr.mxu0 0.0
  %9109 = vmatpush1.msra.mxu0 0.0
  %9110 = vmatprep.subr.mxu0 0.0
  %9111 = vmatpush1.msra.mxu0 0.0
  %9112 = vmatprep.subr.mxu0 0.0
  %9113 = vmatpush1.msra.mxu0 0.0
  %9114 = vmatprep.subr.mxu0 0.0
  %9115 = vmatpush1.msra.mxu0 0.0
  %9116 = vmatprep.subr.mxu0 0.0
  %9117 = vmatpush1.msra.mxu0 0.0
  %9118 = vmatprep.subr.mxu0 0.0
  %9119 = vmatpush1.msra.mxu0 0.0
  %9120 = vmatprep.subr.mxu0 0.0
  %9121 = vmatpush1.msra.mxu0 0.0
  %9122 = vmatprep.subr.mxu0 0.0
  %9123 = vmatpush1.msra.mxu0 0.0
  %9124 = vmatprep.subr.mxu0 0.0
  %9125 = vmatpush1.msra.mxu0 0.0
  %9126 = vmatprep.subr.mxu0 0.0
  %9127 = vmatpush1.msra.mxu0 0.0
  %v9128 = vand.u32 %v8607, 4294901760
  %9129 = vmatprep.subr.mxu0 %v9128
  %v9130 = vand.u32 %v8604, 4294901760
  %9131 = vmatpush1.msra.mxu0 %v9130
  %v9132 = vand.u32 %v8586, 4294901760
  %9133 = vmatprep.subr.mxu0 %v9132
  %v9134 = vand.u32 %v8585, 4294901760
  %9135 = vmatpush1.msra.mxu0 %v9134
  %9136 = vmatprep.subr.mxu0 0.0
  %9137 = vmatpush2.msra.mxu0 0.0
  %9138 = vmatprep.subr.mxu0 0.0
  %9139 = vmatpush2.msra.mxu0 0.0
  %9140 = vmatprep.subr.mxu0 0.0
  %9141 = vmatpush2.msra.mxu0 0.0
  %9142 = vmatprep.subr.mxu0 0.0
  %9143 = vmatpush2.msra.mxu0 0.0
  %9144 = vmatprep.subr.mxu0 0.0
  %9145 = vmatpush2.msra.mxu0 0.0
  %9146 = vmatprep.subr.mxu0 0.0
  %9147 = vmatpush2.msra.mxu0 0.0
  %9148 = vmatprep.subr.mxu0 0.0
  %9149 = vmatpush2.msra.mxu0 0.0
  %9150 = vmatprep.subr.mxu0 0.0
  %9151 = vmatpush2.msra.mxu0 0.0
  %9152 = vmatprep.subr.mxu0 0.0
  %9153 = vmatpush2.msra.mxu0 0.0
  %9154 = vmatprep.subr.mxu0 0.0
  %9155 = vmatpush2.msra.mxu0 0.0
  %9156 = vmatprep.subr.mxu0 0.0
  %9157 = vmatpush2.msra.mxu0 0.0
  %9158 = vmatprep.subr.mxu0 0.0
  %9159 = vmatpush2.msra.mxu0 0.0
  %9160 = vmatprep.subr.mxu0 0.0
  %9161 = vmatpush2.msra.mxu0 0.0
  %9162 = vmatprep.subr.mxu0 0.0
  %9163 = vmatpush2.msra.mxu0 0.0
  %9164 = vmatprep.subr.mxu0 0.0
  %9165 = vmatpush2.msra.mxu0 0.0
  %9166 = vmatprep.subr.mxu0 0.0
  %9167 = vmatpush2.msra.mxu0 0.0
  %9168 = vmatprep.mubr.f32.mxu0 0.0
  %v9169 = vand.u32 %v8595, 4294901760
  %v9170 = vsub.f32 %v8595, %v9169
  %v9171 = vand.u32 %v9170, 4294901760
  %v9172 = vsub.f32 %v9170, %v9171
  %v9173 = vand.u32 %v9172, 4294901760
  %9174 = vmatmul.mubr.f32.gmra.mxu0 %v9173
  %v9175 = vpop.f32.mrf.mxu0
  %v9176 = vadd.f32 0.0, %v9175
  %v9177 = vpop.f32.mrf.mxu0
  %v9178 = vadd.f32 0.0, %v9177
  %9179 = vdwg.mxu0
  %9180 = vmatprep.subr.mxu0 0.0
  %9181 = vmatpush1.msra.mxu0 0.0
  %9182 = vmatprep.subr.mxu0 0.0
  %9183 = vmatpush1.msra.mxu0 0.0
  %9184 = vmatprep.subr.mxu0 0.0
  %9185 = vmatpush1.msra.mxu0 0.0
  %9186 = vmatprep.subr.mxu0 0.0
  %9187 = vmatpush1.msra.mxu0 0.0
  %9188 = vmatprep.subr.mxu0 0.0
  %9189 = vmatpush1.msra.mxu0 0.0
  %9190 = vmatprep.subr.mxu0 0.0
  %9191 = vmatpush1.msra.mxu0 0.0
  %9192 = vmatprep.subr.mxu0 0.0
  %9193 = vmatpush1.msra.mxu0 0.0
  %9194 = vmatprep.subr.mxu0 0.0
  %9195 = vmatpush1.msra.mxu0 0.0
  %9196 = vmatprep.subr.mxu0 0.0
  %9197 = vmatpush1.msra.mxu0 0.0
  %9198 = vmatprep.subr.mxu0 0.0
  %9199 = vmatpush1.msra.mxu0 0.0
  %9200 = vmatprep.subr.mxu0 0.0
  %9201 = vmatpush1.msra.mxu0 0.0
  %9202 = vmatprep.subr.mxu0 0.0
  %9203 = vmatpush1.msra.mxu0 0.0
  %9204 = vmatprep.subr.mxu0 0.0
  %9205 = vmatpush1.msra.mxu0 0.0
  %9206 = vmatprep.subr.mxu0 0.0
  %9207 = vmatpush1.msra.mxu0 0.0
  %v9208 = vand.u32 %v8607, 4294901760
  %v9209 = vsub.f32 %v8607, %v9208
  %v9210 = vand.u32 %v9209, 4294901760
  %v9211 = vsub.f32 %v9209, %v9210
  %v9212 = vand.u32 %v9211, 4294901760
  %9213 = vmatprep.subr.mxu0 %v9212
  %v9214 = vand.u32 %v8604, 4294901760
  %v9215 = vsub.f32 %v8604, %v9214
  %v9216 = vand.u32 %v9215, 4294901760
  %v9217 = vsub.f32 %v9215, %v9216
  %v9218 = vand.u32 %v9217, 4294901760
  %9219 = vmatpush1.msra.mxu0 %v9218
  %v9220 = vand.u32 %v8586, 4294901760
  %v9221 = vsub.f32 %v8586, %v9220
  %v9222 = vand.u32 %v9221, 4294901760
  %v9223 = vsub.f32 %v9221, %v9222
  %v9224 = vand.u32 %v9223, 4294901760
  %9225 = vmatprep.subr.mxu0 %v9224
  %v9226 = vand.u32 %v8585, 4294901760
  %v9227 = vsub.f32 %v8585, %v9226
  %v9228 = vand.u32 %v9227, 4294901760
  %v9229 = vsub.f32 %v9227, %v9228
  %v9230 = vand.u32 %v9229, 4294901760
  %9231 = vmatpush1.msra.mxu0 %v9230
  %9232 = vmatprep.subr.mxu0 0.0
  %9233 = vmatpush2.msra.mxu0 0.0
  %9234 = vmatprep.subr.mxu0 0.0
  %9235 = vmatpush2.msra.mxu0 0.0
  %9236 = vmatprep.subr.mxu0 0.0
  %9237 = vmatpush2.msra.mxu0 0.0
  %9238 = vmatprep.subr.mxu0 0.0
  %9239 = vmatpush2.msra.mxu0 0.0
  %9240 = vmatprep.subr.mxu0 0.0
  %9241 = vmatpush2.msra.mxu0 0.0
  %9242 = vmatprep.subr.mxu0 0.0
  %9243 = vmatpush2.msra.mxu0 0.0
  %9244 = vmatprep.subr.mxu0 0.0
  %9245 = vmatpush2.msra.mxu0 0.0
  %9246 = vmatprep.subr.mxu0 0.0
  %9247 = vmatpush2.msra.mxu0 0.0
  %9248 = vmatprep.subr.mxu0 0.0
  %9249 = vmatpush2.msra.mxu0 0.0
  %9250 = vmatprep.subr.mxu0 0.0
  %9251 = vmatpush2.msra.mxu0 0.0
  %9252 = vmatprep.subr.mxu0 0.0
  %9253 = vmatpush2.msra.mxu0 0.0
  %9254 = vmatprep.subr.mxu0 0.0
  %9255 = vmatpush2.msra.mxu0 0.0
  %9256 = vmatprep.subr.mxu0 0.0
  %9257 = vmatpush2.msra.mxu0 0.0
  %9258 = vmatprep.subr.mxu0 0.0
  %9259 = vmatpush2.msra.mxu0 0.0
  %9260 = vmatprep.subr.mxu0 0.0
  %9261 = vmatpush2.msra.mxu0 0.0
  %9262 = vmatprep.subr.mxu0 0.0
  %9263 = vmatpush2.msra.mxu0 0.0
  %9264 = vmatprep.mubr.f32.mxu0 0.0
  %v9265 = vand.u32 %v8595, 4294901760
  %9266 = vmatmul.mubr.f32.gmra.mxu0 %v9265
  %v9267 = vpop.f32.mrf.mxu0
  %v9268 = vadd.f32 %v9176, %v9267
  %v9269 = vpop.f32.mrf.mxu0
  %v9270 = vadd.f32 %v9178, %v9269
  %9271 = vdwg.mxu0
  %9272 = vmatprep.subr.mxu0 0.0
  %9273 = vmatpush1.msra.mxu0 0.0
  %9274 = vmatprep.subr.mxu0 0.0
  %9275 = vmatpush1.msra.mxu0 0.0
  %9276 = vmatprep.subr.mxu0 0.0
  %9277 = vmatpush1.msra.mxu0 0.0
  %9278 = vmatprep.subr.mxu0 0.0
  %9279 = vmatpush1.msra.mxu0 0.0
  %9280 = vmatprep.subr.mxu0 0.0
  %9281 = vmatpush1.msra.mxu0 0.0
  %9282 = vmatprep.subr.mxu0 0.0
  %9283 = vmatpush1.msra.mxu0 0.0
  %9284 = vmatprep.subr.mxu0 0.0
  %9285 = vmatpush1.msra.mxu0 0.0
  %9286 = vmatprep.subr.mxu0 0.0
  %9287 = vmatpush1.msra.mxu0 0.0
  %9288 = vmatprep.subr.mxu0 0.0
  %9289 = vmatpush1.msra.mxu0 0.0
  %9290 = vmatprep.subr.mxu0 0.0
  %9291 = vmatpush1.msra.mxu0 0.0
  %9292 = vmatprep.subr.mxu0 0.0
  %9293 = vmatpush1.msra.mxu0 0.0
  %9294 = vmatprep.subr.mxu0 0.0
  %9295 = vmatpush1.msra.mxu0 0.0
  %9296 = vmatprep.subr.mxu0 0.0
  %9297 = vmatpush1.msra.mxu0 0.0
  %9298 = vmatprep.subr.mxu0 0.0
  %9299 = vmatpush1.msra.mxu0 0.0
  %v9300 = vand.u32 %v8607, 4294901760
  %v9301 = vsub.f32 %v8607, %v9300
  %9302 = vmatprep.subr.mxu0 %v9301
  %v9303 = vand.u32 %v8604, 4294901760
  %v9304 = vsub.f32 %v8604, %v9303
  %9305 = vmatpush1.msra.mxu0 %v9304
  %v9306 = vand.u32 %v8586, 4294901760
  %v9307 = vsub.f32 %v8586, %v9306
  %9308 = vmatprep.subr.mxu0 %v9307
  %v9309 = vand.u32 %v8585, 4294901760
  %v9310 = vsub.f32 %v8585, %v9309
  %9311 = vmatpush1.msra.mxu0 %v9310
  %9312 = vmatprep.subr.mxu0 0.0
  %9313 = vmatpush2.msra.mxu0 0.0
  %9314 = vmatprep.subr.mxu0 0.0
  %9315 = vmatpush2.msra.mxu0 0.0
  %9316 = vmatprep.subr.mxu0 0.0
  %9317 = vmatpush2.msra.mxu0 0.0
  %9318 = vmatprep.subr.mxu0 0.0
  %9319 = vmatpush2.msra.mxu0 0.0
  %9320 = vmatprep.subr.mxu0 0.0
  %9321 = vmatpush2.msra.mxu0 0.0
  %9322 = vmatprep.subr.mxu0 0.0
  %9323 = vmatpush2.msra.mxu0 0.0
  %9324 = vmatprep.subr.mxu0 0.0
  %9325 = vmatpush2.msra.mxu0 0.0
  %9326 = vmatprep.subr.mxu0 0.0
  %9327 = vmatpush2.msra.mxu0 0.0
  %9328 = vmatprep.subr.mxu0 0.0
  %9329 = vmatpush2.msra.mxu0 0.0
  %9330 = vmatprep.subr.mxu0 0.0
  %9331 = vmatpush2.msra.mxu0 0.0
  %9332 = vmatprep.subr.mxu0 0.0
  %9333 = vmatpush2.msra.mxu0 0.0
  %9334 = vmatprep.subr.mxu0 0.0
  %9335 = vmatpush2.msra.mxu0 0.0
  %9336 = vmatprep.subr.mxu0 0.0
  %9337 = vmatpush2.msra.mxu0 0.0
  %9338 = vmatprep.subr.mxu0 0.0
  %9339 = vmatpush2.msra.mxu0 0.0
  %9340 = vmatprep.subr.mxu0 0.0
  %9341 = vmatpush2.msra.mxu0 0.0
  %9342 = vmatprep.subr.mxu0 0.0
  %9343 = vmatpush2.msra.mxu0 0.0
  %9344 = vmatprep.mubr.f32.mxu0 0.0
  %v9345 = vand.u32 %v8595, 4294901760
  %v9346 = vsub.f32 %v8595, %v9345
  %9347 = vmatmul.mubr.f32.gmra.mxu0 %v9346
  %v9348 = vpop.f32.mrf.mxu0
  %v9349 = vadd.f32 %v9268, %v9348
  %v9350 = vpop.f32.mrf.mxu0
  %v9351 = vadd.f32 %v9270, %v9350
  %9352 = vdwg.mxu0
  %9353 = vmatprep.subr.mxu0 0.0
  %9354 = vmatpush1.msra.mxu0 0.0
  %9355 = vmatprep.subr.mxu0 0.0
  %9356 = vmatpush1.msra.mxu0 0.0
  %9357 = vmatprep.subr.mxu0 0.0
  %9358 = vmatpush1.msra.mxu0 0.0
  %9359 = vmatprep.subr.mxu0 0.0
  %9360 = vmatpush1.msra.mxu0 0.0
  %9361 = vmatprep.subr.mxu0 0.0
  %9362 = vmatpush1.msra.mxu0 0.0
  %9363 = vmatprep.subr.mxu0 0.0
  %9364 = vmatpush1.msra.mxu0 0.0
  %9365 = vmatprep.subr.mxu0 0.0
  %9366 = vmatpush1.msra.mxu0 0.0
  %9367 = vmatprep.subr.mxu0 0.0
  %9368 = vmatpush1.msra.mxu0 0.0
  %9369 = vmatprep.subr.mxu0 0.0
  %9370 = vmatpush1.msra.mxu0 0.0
  %9371 = vmatprep.subr.mxu0 0.0
  %9372 = vmatpush1.msra.mxu0 0.0
  %9373 = vmatprep.subr.mxu0 0.0
  %9374 = vmatpush1.msra.mxu0 0.0
  %9375 = vmatprep.subr.mxu0 0.0
  %9376 = vmatpush1.msra.mxu0 0.0
  %9377 = vmatprep.subr.mxu0 0.0
  %9378 = vmatpush1.msra.mxu0 0.0
  %9379 = vmatprep.subr.mxu0 0.0
  %9380 = vmatpush1.msra.mxu0 0.0
  %v9381 = vand.u32 %v8607, 4294901760
  %9382 = vmatprep.subr.mxu0 %v9381
  %v9383 = vand.u32 %v8604, 4294901760
  %9384 = vmatpush1.msra.mxu0 %v9383
  %v9385 = vand.u32 %v8586, 4294901760
  %9386 = vmatprep.subr.mxu0 %v9385
  %v9387 = vand.u32 %v8585, 4294901760
  %9388 = vmatpush1.msra.mxu0 %v9387
  %9389 = vmatprep.subr.mxu0 0.0
  %9390 = vmatpush2.msra.mxu0 0.0
  %9391 = vmatprep.subr.mxu0 0.0
  %9392 = vmatpush2.msra.mxu0 0.0
  %9393 = vmatprep.subr.mxu0 0.0
  %9394 = vmatpush2.msra.mxu0 0.0
  %9395 = vmatprep.subr.mxu0 0.0
  %9396 = vmatpush2.msra.mxu0 0.0
  %9397 = vmatprep.subr.mxu0 0.0
  %9398 = vmatpush2.msra.mxu0 0.0
  %9399 = vmatprep.subr.mxu0 0.0
  %9400 = vmatpush2.msra.mxu0 0.0
  %9401 = vmatprep.subr.mxu0 0.0
  %9402 = vmatpush2.msra.mxu0 0.0
  %9403 = vmatprep.subr.mxu0 0.0
  %9404 = vmatpush2.msra.mxu0 0.0
  %9405 = vmatprep.subr.mxu0 0.0
  %9406 = vmatpush2.msra.mxu0 0.0
  %9407 = vmatprep.subr.mxu0 0.0
  %9408 = vmatpush2.msra.mxu0 0.0
  %9409 = vmatprep.subr.mxu0 0.0
  %9410 = vmatpush2.msra.mxu0 0.0
  %9411 = vmatprep.subr.mxu0 0.0
  %9412 = vmatpush2.msra.mxu0 0.0
  %9413 = vmatprep.subr.mxu0 0.0
  %9414 = vmatpush2.msra.mxu0 0.0
  %9415 = vmatprep.subr.mxu0 0.0
  %9416 = vmatpush2.msra.mxu0 0.0
  %9417 = vmatprep.subr.mxu0 0.0
  %9418 = vmatpush2.msra.mxu0 0.0
  %9419 = vmatprep.subr.mxu0 0.0
  %9420 = vmatpush2.msra.mxu0 0.0
  %9421 = vmatprep.mubr.f32.mxu0 0.0
  %v9422 = vand.u32 %v8595, 4294901760
  %v9423 = vsub.f32 %v8595, %v9422
  %v9424 = vand.u32 %v9423, 4294901760
  %9425 = vmatmul.mubr.f32.gmra.mxu0 %v9424
  %v9426 = vpop.f32.mrf.mxu0
  %v9427 = vadd.f32 %v9349, %v9426
  %v9428 = vpop.f32.mrf.mxu0
  %v9429 = vadd.f32 %v9351, %v9428
  %9430 = vdwg.mxu0
  %9431 = vmatprep.subr.mxu0 0.0
  %9432 = vmatpush1.msra.mxu0 0.0
  %9433 = vmatprep.subr.mxu0 0.0
  %9434 = vmatpush1.msra.mxu0 0.0
  %9435 = vmatprep.subr.mxu0 0.0
  %9436 = vmatpush1.msra.mxu0 0.0
  %9437 = vmatprep.subr.mxu0 0.0
  %9438 = vmatpush1.msra.mxu0 0.0
  %9439 = vmatprep.subr.mxu0 0.0
  %9440 = vmatpush1.msra.mxu0 0.0
  %9441 = vmatprep.subr.mxu0 0.0
  %9442 = vmatpush1.msra.mxu0 0.0
  %9443 = vmatprep.subr.mxu0 0.0
  %9444 = vmatpush1.msra.mxu0 0.0
  %9445 = vmatprep.subr.mxu0 0.0
  %9446 = vmatpush1.msra.mxu0 0.0
  %9447 = vmatprep.subr.mxu0 0.0
  %9448 = vmatpush1.msra.mxu0 0.0
  %9449 = vmatprep.subr.mxu0 0.0
  %9450 = vmatpush1.msra.mxu0 0.0
  %9451 = vmatprep.subr.mxu0 0.0
  %9452 = vmatpush1.msra.mxu0 0.0
  %9453 = vmatprep.subr.mxu0 0.0
  %9454 = vmatpush1.msra.mxu0 0.0
  %9455 = vmatprep.subr.mxu0 0.0
  %9456 = vmatpush1.msra.mxu0 0.0
  %9457 = vmatprep.subr.mxu0 0.0
  %9458 = vmatpush1.msra.mxu0 0.0
  %v9459 = vand.u32 %v8607, 4294901760
  %v9460 = vsub.f32 %v8607, %v9459
  %v9461 = vand.u32 %v9460, 4294901760
  %9462 = vmatprep.subr.mxu0 %v9461
  %v9463 = vand.u32 %v8604, 4294901760
  %v9464 = vsub.f32 %v8604, %v9463
  %v9465 = vand.u32 %v9464, 4294901760
  %9466 = vmatpush1.msra.mxu0 %v9465
  %v9467 = vand.u32 %v8586, 4294901760
  %v9468 = vsub.f32 %v8586, %v9467
  %v9469 = vand.u32 %v9468, 4294901760
  %9470 = vmatprep.subr.mxu0 %v9469
  %v9471 = vand.u32 %v8585, 4294901760
  %v9472 = vsub.f32 %v8585, %v9471
  %v9473 = vand.u32 %v9472, 4294901760
  %9474 = vmatpush1.msra.mxu0 %v9473
  %9475 = vmatprep.subr.mxu0 0.0
  %9476 = vmatpush2.msra.mxu0 0.0
  %9477 = vmatprep.subr.mxu0 0.0
  %9478 = vmatpush2.msra.mxu0 0.0
  %9479 = vmatprep.subr.mxu0 0.0
  %9480 = vmatpush2.msra.mxu0 0.0
  %9481 = vmatprep.subr.mxu0 0.0
  %9482 = vmatpush2.msra.mxu0 0.0
  %9483 = vmatprep.subr.mxu0 0.0
  %9484 = vmatpush2.msra.mxu0 0.0
  %9485 = vmatprep.subr.mxu0 0.0
  %9486 = vmatpush2.msra.mxu0 0.0
  %9487 = vmatprep.subr.mxu0 0.0
  %9488 = vmatpush2.msra.mxu0 0.0
  %9489 = vmatprep.subr.mxu0 0.0
  %9490 = vmatpush2.msra.mxu0 0.0
  %9491 = vmatprep.subr.mxu0 0.0
  %9492 = vmatpush2.msra.mxu0 0.0
  %9493 = vmatprep.subr.mxu0 0.0
  %9494 = vmatpush2.msra.mxu0 0.0
  %9495 = vmatprep.subr.mxu0 0.0
  %9496 = vmatpush2.msra.mxu0 0.0
  %9497 = vmatprep.subr.mxu0 0.0
  %9498 = vmatpush2.msra.mxu0 0.0
  %9499 = vmatprep.subr.mxu0 0.0
  %9500 = vmatpush2.msra.mxu0 0.0
  %9501 = vmatprep.subr.mxu0 0.0
  %9502 = vmatpush2.msra.mxu0 0.0
  %9503 = vmatprep.subr.mxu0 0.0
  %9504 = vmatpush2.msra.mxu0 0.0
  %9505 = vmatprep.subr.mxu0 0.0
  %9506 = vmatpush2.msra.mxu0 0.0
  %9507 = vmatprep.mubr.f32.mxu0 0.0
  %v9508 = vand.u32 %v8595, 4294901760
  %9509 = vmatmul.mubr.f32.gmra.mxu0 %v9508
  %v9510 = vpop.f32.mrf.mxu0
  %v9511 = vadd.f32 %v9427, %v9510
  %v9512 = vpop.f32.mrf.mxu0
  %v9513 = vadd.f32 %v9429, %v9512
  %9514 = vdwg.mxu0
  %9515 = vmatprep.subr.mxu0 0.0
  %9516 = vmatpush1.msra.mxu0 0.0
  %9517 = vmatprep.subr.mxu0 0.0
  %9518 = vmatpush1.msra.mxu0 0.0
  %9519 = vmatprep.subr.mxu0 0.0
  %9520 = vmatpush1.msra.mxu0 0.0
  %9521 = vmatprep.subr.mxu0 0.0
  %9522 = vmatpush1.msra.mxu0 0.0
  %9523 = vmatprep.subr.mxu0 0.0
  %9524 = vmatpush1.msra.mxu0 0.0
  %9525 = vmatprep.subr.mxu0 0.0
  %9526 = vmatpush1.msra.mxu0 0.0
  %9527 = vmatprep.subr.mxu0 0.0
  %9528 = vmatpush1.msra.mxu0 0.0
  %9529 = vmatprep.subr.mxu0 0.0
  %9530 = vmatpush1.msra.mxu0 0.0
  %9531 = vmatprep.subr.mxu0 0.0
  %9532 = vmatpush1.msra.mxu0 0.0
  %9533 = vmatprep.subr.mxu0 0.0
  %9534 = vmatpush1.msra.mxu0 0.0
  %9535 = vmatprep.subr.mxu0 0.0
  %9536 = vmatpush1.msra.mxu0 0.0
  %9537 = vmatprep.subr.mxu0 0.0
  %9538 = vmatpush1.msra.mxu0 0.0
  %9539 = vmatprep.subr.mxu0 0.0
  %9540 = vmatpush1.msra.mxu0 0.0
  %9541 = vmatprep.subr.mxu0 0.0
  %9542 = vmatpush1.msra.mxu0 0.0
  %v9543 = vand.u32 %v8607, 4294901760
  %9544 = vmatprep.subr.mxu0 %v9543
  %v9545 = vand.u32 %v8604, 4294901760
  %9546 = vmatpush1.msra.mxu0 %v9545
  %v9547 = vand.u32 %v8586, 4294901760
  %9548 = vmatprep.subr.mxu0 %v9547
  %v9549 = vand.u32 %v8585, 4294901760
  %9550 = vmatpush1.msra.mxu0 %v9549
  %9551 = vmatprep.subr.mxu0 0.0
  %9552 = vmatpush2.msra.mxu0 0.0
  %9553 = vmatprep.subr.mxu0 0.0
  %9554 = vmatpush2.msra.mxu0 0.0
  %9555 = vmatprep.subr.mxu0 0.0
  %9556 = vmatpush2.msra.mxu0 0.0
  %9557 = vmatprep.subr.mxu0 0.0
  %9558 = vmatpush2.msra.mxu0 0.0
  %9559 = vmatprep.subr.mxu0 0.0
  %9560 = vmatpush2.msra.mxu0 0.0
  %9561 = vmatprep.subr.mxu0 0.0
  %9562 = vmatpush2.msra.mxu0 0.0
  %9563 = vmatprep.subr.mxu0 0.0
  %9564 = vmatpush2.msra.mxu0 0.0
  %9565 = vmatprep.subr.mxu0 0.0
  %9566 = vmatpush2.msra.mxu0 0.0
  %9567 = vmatprep.subr.mxu0 0.0
  %9568 = vmatpush2.msra.mxu0 0.0
  %9569 = vmatprep.subr.mxu0 0.0
  %9570 = vmatpush2.msra.mxu0 0.0
  %9571 = vmatprep.subr.mxu0 0.0
  %9572 = vmatpush2.msra.mxu0 0.0
  %9573 = vmatprep.subr.mxu0 0.0
  %9574 = vmatpush2.msra.mxu0 0.0
  %9575 = vmatprep.subr.mxu0 0.0
  %9576 = vmatpush2.msra.mxu0 0.0
  %9577 = vmatprep.subr.mxu0 0.0
  %9578 = vmatpush2.msra.mxu0 0.0
  %9579 = vmatprep.subr.mxu0 0.0
  %9580 = vmatpush2.msra.mxu0 0.0
  %9581 = vmatprep.subr.mxu0 0.0
  %9582 = vmatpush2.msra.mxu0 0.0
  %9583 = vmatprep.mubr.f32.mxu0 0.0
  %v9584 = vand.u32 %v8595, 4294901760
  %9585 = vmatmul.mubr.f32.gmra.mxu0 %v9584
  %v9586 = vpop.f32.mrf.mxu0
  %v9587 = vadd.f32 %v9511, %v9586
  %v9588 = vpop.f32.mrf.mxu0
  %v9589 = vadd.f32 %v9513, %v9588
  %9590 = vdwg.mxu0
  %v9591 = vmax.f32 %v9096, 0.0
  %v9592 = vmax.f32 %v9098, 0.0
  %v9593 = vmax.f32 %v9587, 0.0
  %v9594 = vmax.f32 %v9589, 0.0
  %9599 = vrot.lane.b32.xlu0 %v9591, 17
  %v9600 = vpop.permute.xlu0 %9599
  %9601 = vrot.lane.b32.xlu0 %v9592, 17
  %v9602 = vpop.permute.xlu0 %9601
  %9603 = vrot.lane.b32.xlu0 %v9593, 17
  %v9604 = vpop.permute.xlu0 %9603
  %9605 = vrot.lane.b32.xlu0 %v9594, 17
  %v9606 = vpop.permute.xlu0 %9605
  %v9607 = vsel %vm74, %v9600, %v9602
  %v9608 = vsel %vm74, %v9602, %v9604
  %v9609 = vsel %vm74, %v9604, %v9606
  %v9615 = vsel %vm74, 0.0, %v9600
  %v9616 = vsel %vm74, %v9606, 0.0
  %v9617 = vsel %vm89, %v9615, 0.0
  %v9618 = vsel %vm90, %v9607, 0.0
  %v9619 = vsel %vm91, %v9608, 0.0
  %v9620 = vsel %vm92, %v9609, 0.0
  %9623 = vrot.lane.b32.xlu0 %v9615, 127
  %v9624 = vpop.permute.xlu0 %9623
  %9625 = vrot.lane.b32.xlu0 %v9607, 127
  %v9626 = vpop.permute.xlu0 %9625
  %9627 = vrot.lane.b32.xlu0 %v9608, 127
  %v9628 = vpop.permute.xlu0 %9627
  %9629 = vrot.lane.b32.xlu0 %v9609, 127
  %v9630 = vpop.permute.xlu0 %9629
  %9631 = vrot.lane.b32.xlu0 %v9616, 127
  %v9632 = vpop.permute.xlu0 %9631
  %v9633 = vsel %vm117, %v9624, %v9626
  %v9634 = vsel %vm117, %v9626, %v9628
  %v9635 = vsel %vm117, %v9628, %v9630
  %v9636 = vsel %vm117, %v9630, %v9632
  %v9641 = vsel %vm101, %v9633, 0.0
  %v9642 = vsel %vm102, %v9634, 0.0
  %v9643 = vsel %vm103, %v9635, 0.0
  %v9644 = vsel %vm104, %v9636, 0.0
  %9645 = vrot.lane.b32.xlu0 %v9615, 126
  %v9646 = vpop.permute.xlu0 %9645
  %9647 = vrot.lane.b32.xlu0 %v9607, 126
  %v9648 = vpop.permute.xlu0 %9647
  %9649 = vrot.lane.b32.xlu0 %v9608, 126
  %v9650 = vpop.permute.xlu0 %9649
  %9651 = vrot.lane.b32.xlu0 %v9609, 126
  %v9652 = vpop.permute.xlu0 %9651
  %9653 = vrot.lane.b32.xlu0 %v9616, 126
  %v9654 = vpop.permute.xlu0 %9653
  %v9655 = vsel %vm148, %v9646, %v9648
  %v9656 = vsel %vm148, %v9648, %v9650
  %v9657 = vsel %vm148, %v9650, %v9652
  %v9658 = vsel %vm148, %v9652, %v9654
  %v9663 = vsel %vm134, %v9655, 0.0
  %v9664 = vsel %vm135, %v9656, 0.0
  %v9665 = vsel %vm136, %v9657, 0.0
  %v9666 = vsel %vm137, %v9658, 0.0
  %9667 = vrot.lane.b32.xlu0 %v9615, 112
  %v9668 = vpop.permute.xlu0 %9667
  %9669 = vrot.lane.b32.xlu0 %v9607, 112
  %v9670 = vpop.permute.xlu0 %9669
  %9671 = vrot.lane.b32.xlu0 %v9608, 112
  %v9672 = vpop.permute.xlu0 %9671
  %9673 = vrot.lane.b32.xlu0 %v9609, 112
  %v9674 = vpop.permute.xlu0 %9673
  %9675 = vrot.lane.b32.xlu0 %v9616, 112
  %v9676 = vpop.permute.xlu0 %9675
  %v9677 = vsel %vm179, %v9668, %v9670
  %v9678 = vsel %vm179, %v9670, %v9672
  %v9679 = vsel %vm179, %v9672, %v9674
  %v9680 = vsel %vm179, %v9674, %v9676
  %v9685 = vsel %vm165, %v9677, 0.0
  %v9686 = vsel %vm166, %v9678, 0.0
  %v9687 = vsel %vm167, %v9679, 0.0
  %v9688 = vsel %vm168, %v9680, 0.0
  %9689 = vrot.lane.b32.xlu0 %v9615, 110
  %v9690 = vpop.permute.xlu0 %9689
  %9691 = vrot.lane.b32.xlu0 %v9607, 110
  %v9692 = vpop.permute.xlu0 %9691
  %9693 = vrot.lane.b32.xlu0 %v9608, 110
  %v9694 = vpop.permute.xlu0 %9693
  %9695 = vrot.lane.b32.xlu0 %v9609, 110
  %v9696 = vpop.permute.xlu0 %9695
  %9697 = vrot.lane.b32.xlu0 %v9616, 110
  %v9698 = vpop.permute.xlu0 %9697
  %v9699 = vsel %vm210, %v9690, %v9692
  %v9700 = vsel %vm210, %v9692, %v9694
  %v9701 = vsel %vm210, %v9694, %v9696
  %v9702 = vsel %vm210, %v9696, %v9698
  %v9707 = vsel %vm196, %v9699, 0.0
  %v9708 = vsel %vm197, %v9700, 0.0
  %v9709 = vsel %vm198, %v9701, 0.0
  %v9710 = vsel %vm199, %v9702, 0.0
  %9711 = vrot.lane.b32.xlu0 %v9615, 96
  %v9712 = vpop.permute.xlu0 %9711
  %9713 = vrot.lane.b32.xlu0 %v9607, 96
  %v9714 = vpop.permute.xlu0 %9713
  %9715 = vrot.lane.b32.xlu0 %v9608, 96
  %v9716 = vpop.permute.xlu0 %9715
  %9717 = vrot.lane.b32.xlu0 %v9609, 96
  %v9718 = vpop.permute.xlu0 %9717
  %9719 = vrot.lane.b32.xlu0 %v9616, 96
  %v9720 = vpop.permute.xlu0 %9719
  %v9721 = vsel %vm241, %v9712, %v9714
  %v9722 = vsel %vm241, %v9714, %v9716
  %v9723 = vsel %vm241, %v9716, %v9718
  %v9724 = vsel %vm241, %v9718, %v9720
  %v9729 = vsel %vm227, %v9721, 0.0
  %v9730 = vsel %vm228, %v9722, 0.0
  %v9731 = vsel %vm229, %v9723, 0.0
  %v9732 = vsel %vm230, %v9724, 0.0
  %9733 = vrot.lane.b32.xlu0 %v9615, 95
  %v9734 = vpop.permute.xlu0 %9733
  %9735 = vrot.lane.b32.xlu0 %v9607, 95
  %v9736 = vpop.permute.xlu0 %9735
  %9737 = vrot.lane.b32.xlu0 %v9608, 95
  %v9738 = vpop.permute.xlu0 %9737
  %9739 = vrot.lane.b32.xlu0 %v9609, 95
  %v9740 = vpop.permute.xlu0 %9739
  %9741 = vrot.lane.b32.xlu0 %v9616, 95
  %v9742 = vpop.permute.xlu0 %9741
  %v9743 = vsel %vm272, %v9734, %v9736
  %v9744 = vsel %vm272, %v9736, %v9738
  %v9745 = vsel %vm272, %v9738, %v9740
  %v9746 = vsel %vm272, %v9740, %v9742
  %v9751 = vsel %vm258, %v9743, 0.0
  %v9752 = vsel %vm259, %v9744, 0.0
  %v9753 = vsel %vm260, %v9745, 0.0
  %v9754 = vsel %vm261, %v9746, 0.0
  %9755 = vrot.lane.b32.xlu0 %v9615, 94
  %v9756 = vpop.permute.xlu0 %9755
  %9757 = vrot.lane.b32.xlu0 %v9607, 94
  %v9758 = vpop.permute.xlu0 %9757
  %9759 = vrot.lane.b32.xlu0 %v9608, 94
  %v9760 = vpop.permute.xlu0 %9759
  %9761 = vrot.lane.b32.xlu0 %v9609, 94
  %v9762 = vpop.permute.xlu0 %9761
  %9763 = vrot.lane.b32.xlu0 %v9616, 94
  %v9764 = vpop.permute.xlu0 %9763
  %v9765 = vsel %vm303, %v9756, %v9758
  %v9766 = vsel %vm303, %v9758, %v9760
  %v9767 = vsel %vm303, %v9760, %v9762
  %v9768 = vsel %vm303, %v9762, %v9764
  %v9773 = vsel %vm289, %v9765, 0.0
  %v9774 = vsel %vm290, %v9766, 0.0
  %v9775 = vsel %vm291, %v9767, 0.0
  %v9776 = vsel %vm292, %v9768, 0.0
  %v9781 = vrot.slane %v9641, 6
  %v9782 = vrot.slane %v9642, 6
  %v9783 = vrot.slane %v9643, 6
  %v9784 = vrot.slane %v9644, 6
  %v9793 = vrot.slane %v9663, 4
  %v9794 = vrot.slane %v9664, 4
  %v9795 = vrot.slane %v9665, 4
  %v9796 = vrot.slane %v9666, 4
  %v9805 = vrot.slane %v9685, 2
  %v9806 = vrot.slane %v9686, 2
  %v9807 = vrot.slane %v9687, 2
  %v9808 = vrot.slane %v9688, 2
  %v9817 = vrot.slane %v9707, 6
  %v9818 = vrot.slane %v9708, 6
  %v9819 = vrot.slane %v9709, 6
  %v9820 = vrot.slane %v9710, 6
  %v9829 = vrot.slane %v9729, 4
  %v9830 = vrot.slane %v9730, 4
  %v9831 = vrot.slane %v9731, 4
  %v9832 = vrot.slane %v9732, 4
  %v9841 = vrot.slane %v9751, 2
  %v9842 = vrot.slane %v9752, 2
  %v9843 = vrot.slane %v9753, 2
  %v9844 = vrot.slane %v9754, 2
  %v9849 = vsel %vm3262, %v9617, %v9781
  %v9850 = vsel %vm3262, %v9618, %v9782
  %v9851 = vsel %vm3262, %v9619, %v9783
  %v9852 = vsel %vm3262, %v9620, %v9784
  %v9853 = vsel %vm366, %v9849, %v9793
  %v9854 = vsel %vm366, %v9850, %v9794
  %v9855 = vsel %vm366, %v9851, %v9795
  %v9856 = vsel %vm366, %v9852, %v9796
  %v9857 = vsel %vm3243, %v9853, %v9805
  %v9858 = vsel %vm3243, %v9854, %v9806
  %v9859 = vsel %vm3243, %v9855, %v9807
  %v9860 = vsel %vm3243, %v9856, %v9808
  %v9861 = vsel %vm3262, %v9591, %v9817
  %v9862 = vsel %vm3262, %v9592, %v9818
  %v9863 = vsel %vm3262, %v9593, %v9819
  %v9864 = vsel %vm3262, %v9594, %v9820
  %v9865 = vsel %vm366, %v9861, %v9829
  %v9866 = vsel %vm366, %v9862, %v9830
  %v9867 = vsel %vm366, %v9863, %v9831
  %v9868 = vsel %vm366, %v9864, %v9832
  %v9869 = vsel %vm3243, %v9865, %v9841
  %v9870 = vsel %vm3243, %v9866, %v9842
  %v9871 = vsel %vm3243, %v9867, %v9843
  %v9872 = vsel %vm3243, %v9868, %v9844
  %v9873 = vsel %vm3262, %v9773, 1.0
  %v9874 = vsel %vm3262, %v9774, 1.0
  %v9875 = vsel %vm3262, %v9775, 1.0
  %v9876 = vsel %vm3262, %v9776, 1.0
  %s9877 = scalar_lea.vmem %s0, 28
  %v9878 = vld [vmem:[%s9877] sm:$0xf]
  %v9880 = vsel %vm7223, %v9878, 0
  %v9883 = vsel %vm3238, %v9873, 0
  %v9886 = vsel %vm3238, %v9874, 0
  %v9889 = vsel %vm3238, %v9875, 0
  %v9892 = vsel %vm3238, %v9876, 0
  %9894 = vmatprep.subr.mxu0 0.0
  %9895 = vmatpush1.msra.mxu0 0.0
  %9896 = vmatprep.subr.mxu0 0.0
  %9897 = vmatpush1.msra.mxu0 0.0
  %9898 = vmatprep.subr.mxu0 0.0
  %9899 = vmatpush1.msra.mxu0 0.0
  %9900 = vmatprep.subr.mxu0 0.0
  %9901 = vmatpush1.msra.mxu0 0.0
  %9902 = vmatprep.subr.mxu0 0.0
  %9903 = vmatpush1.msra.mxu0 0.0
  %9904 = vmatprep.subr.mxu0 0.0
  %9905 = vmatpush1.msra.mxu0 0.0
  %9906 = vmatprep.subr.mxu0 0.0
  %9907 = vmatpush1.msra.mxu0 0.0
  %9908 = vmatprep.subr.mxu0 0.0
  %9909 = vmatpush1.msra.mxu0 0.0
  %9910 = vmatprep.subr.mxu0 0.0
  %9911 = vmatpush1.msra.mxu0 0.0
  %9912 = vmatprep.subr.mxu0 0.0
  %9913 = vmatpush1.msra.mxu0 0.0
  %9914 = vmatprep.subr.mxu0 0.0
  %9915 = vmatpush1.msra.mxu0 0.0
  %9916 = vmatprep.subr.mxu0 0.0
  %9917 = vmatpush1.msra.mxu0 0.0
  %9918 = vmatprep.subr.mxu0 0.0
  %9919 = vmatpush1.msra.mxu0 0.0
  %v9920 = vand.u32 %v9886, 4294901760
  %9921 = vmatprep.subr.mxu0 %v9920
  %v9922 = vand.u32 %v9883, 4294901760
  %9923 = vmatpush1.msra.mxu0 %v9922
  %v9924 = vand.u32 %v9870, 4294901760
  %9925 = vmatprep.subr.mxu0 %v9924
  %v9926 = vand.u32 %v9869, 4294901760
  %9927 = vmatpush1.msra.mxu0 %v9926
  %v9928 = vand.u32 %v9858, 4294901760
  %9929 = vmatprep.subr.mxu0 %v9928
  %v9930 = vand.u32 %v9857, 4294901760
  %9931 = vmatpush1.msra.mxu0 %v9930
  %9932 = vmatprep.subr.mxu0 0.0
  %9933 = vmatpush2.msra.mxu0 0.0
  %9934 = vmatprep.subr.mxu0 0.0
  %9935 = vmatpush2.msra.mxu0 0.0
  %9936 = vmatprep.subr.mxu0 0.0
  %9937 = vmatpush2.msra.mxu0 0.0
  %9938 = vmatprep.subr.mxu0 0.0
  %9939 = vmatpush2.msra.mxu0 0.0
  %9940 = vmatprep.subr.mxu0 0.0
  %9941 = vmatpush2.msra.mxu0 0.0
  %9942 = vmatprep.subr.mxu0 0.0
  %9943 = vmatpush2.msra.mxu0 0.0
  %9944 = vmatprep.subr.mxu0 0.0
  %9945 = vmatpush2.msra.mxu0 0.0
  %9946 = vmatprep.subr.mxu0 0.0
  %9947 = vmatpush2.msra.mxu0 0.0
  %9948 = vmatprep.subr.mxu0 0.0
  %9949 = vmatpush2.msra.mxu0 0.0
  %9950 = vmatprep.subr.mxu0 0.0
  %9951 = vmatpush2.msra.mxu0 0.0
  %9952 = vmatprep.subr.mxu0 0.0
  %9953 = vmatpush2.msra.mxu0 0.0
  %9954 = vmatprep.subr.mxu0 0.0
  %9955 = vmatpush2.msra.mxu0 0.0
  %9956 = vmatprep.subr.mxu0 0.0
  %9957 = vmatpush2.msra.mxu0 0.0
  %9958 = vmatprep.subr.mxu0 0.0
  %9959 = vmatpush2.msra.mxu0 0.0
  %9960 = vmatprep.subr.mxu0 0.0
  %9961 = vmatpush2.msra.mxu0 0.0
  %9962 = vmatprep.subr.mxu0 0.0
  %9963 = vmatpush2.msra.mxu0 0.0
  %9964 = vmatprep.mubr.f32.mxu0 0.0
  %v9965 = vand.u32 %v9880, 4294901760
  %v9966 = vsub.f32 %v9880, %v9965
  %v9967 = vand.u32 %v9966, 4294901760
  %v9968 = vsub.f32 %v9966, %v9967
  %v9969 = vand.u32 %v9968, 4294901760
  %9970 = vmatmul.mubr.f32.gmra.mxu0 %v9969
  %v9971 = vpop.f32.mrf.mxu0
  %v9972 = vadd.f32 0.0, %v9971
  %v9973 = vpop.f32.mrf.mxu0
  %v9974 = vadd.f32 0.0, %v9973
  %9975 = vdwg.mxu0
  %9976 = vmatprep.subr.mxu0 0.0
  %9977 = vmatpush1.msra.mxu0 0.0
  %9978 = vmatprep.subr.mxu0 0.0
  %9979 = vmatpush1.msra.mxu0 0.0
  %9980 = vmatprep.subr.mxu0 0.0
  %9981 = vmatpush1.msra.mxu0 0.0
  %9982 = vmatprep.subr.mxu0 0.0
  %9983 = vmatpush1.msra.mxu0 0.0
  %9984 = vmatprep.subr.mxu0 0.0
  %9985 = vmatpush1.msra.mxu0 0.0
  %9986 = vmatprep.subr.mxu0 0.0
  %9987 = vmatpush1.msra.mxu0 0.0
  %9988 = vmatprep.subr.mxu0 0.0
  %9989 = vmatpush1.msra.mxu0 0.0
  %9990 = vmatprep.subr.mxu0 0.0
  %9991 = vmatpush1.msra.mxu0 0.0
  %9992 = vmatprep.subr.mxu0 0.0
  %9993 = vmatpush1.msra.mxu0 0.0
  %9994 = vmatprep.subr.mxu0 0.0
  %9995 = vmatpush1.msra.mxu0 0.0
  %9996 = vmatprep.subr.mxu0 0.0
  %9997 = vmatpush1.msra.mxu0 0.0
  %9998 = vmatprep.subr.mxu0 0.0
  %9999 = vmatpush1.msra.mxu0 0.0
  %10000 = vmatprep.subr.mxu0 0.0
  %10001 = vmatpush1.msra.mxu0 0.0
  %v10002 = vand.u32 %v9886, 4294901760
  %v10003 = vsub.f32 %v9886, %v10002
  %v10004 = vand.u32 %v10003, 4294901760
  %v10005 = vsub.f32 %v10003, %v10004
  %v10006 = vand.u32 %v10005, 4294901760
  %10007 = vmatprep.subr.mxu0 %v10006
  %v10008 = vand.u32 %v9883, 4294901760
  %v10009 = vsub.f32 %v9883, %v10008
  %v10010 = vand.u32 %v10009, 4294901760
  %v10011 = vsub.f32 %v10009, %v10010
  %v10012 = vand.u32 %v10011, 4294901760
  %10013 = vmatpush1.msra.mxu0 %v10012
  %v10014 = vand.u32 %v9870, 4294901760
  %v10015 = vsub.f32 %v9870, %v10014
  %v10016 = vand.u32 %v10015, 4294901760
  %v10017 = vsub.f32 %v10015, %v10016
  %v10018 = vand.u32 %v10017, 4294901760
  %10019 = vmatprep.subr.mxu0 %v10018
  %v10020 = vand.u32 %v9869, 4294901760
  %v10021 = vsub.f32 %v9869, %v10020
  %v10022 = vand.u32 %v10021, 4294901760
  %v10023 = vsub.f32 %v10021, %v10022
  %v10024 = vand.u32 %v10023, 4294901760
  %10025 = vmatpush1.msra.mxu0 %v10024
  %v10026 = vand.u32 %v9858, 4294901760
  %v10027 = vsub.f32 %v9858, %v10026
  %v10028 = vand.u32 %v10027, 4294901760
  %v10029 = vsub.f32 %v10027, %v10028
  %v10030 = vand.u32 %v10029, 4294901760
  %10031 = vmatprep.subr.mxu0 %v10030
  %v10032 = vand.u32 %v9857, 4294901760
  %v10033 = vsub.f32 %v9857, %v10032
  %v10034 = vand.u32 %v10033, 4294901760
  %v10035 = vsub.f32 %v10033, %v10034
  %v10036 = vand.u32 %v10035, 4294901760
  %10037 = vmatpush1.msra.mxu0 %v10036
  %10038 = vmatprep.subr.mxu0 0.0
  %10039 = vmatpush2.msra.mxu0 0.0
  %10040 = vmatprep.subr.mxu0 0.0
  %10041 = vmatpush2.msra.mxu0 0.0
  %10042 = vmatprep.subr.mxu0 0.0
  %10043 = vmatpush2.msra.mxu0 0.0
  %10044 = vmatprep.subr.mxu0 0.0
  %10045 = vmatpush2.msra.mxu0 0.0
  %10046 = vmatprep.subr.mxu0 0.0
  %10047 = vmatpush2.msra.mxu0 0.0
  %10048 = vmatprep.subr.mxu0 0.0
  %10049 = vmatpush2.msra.mxu0 0.0
  %10050 = vmatprep.subr.mxu0 0.0
  %10051 = vmatpush2.msra.mxu0 0.0
  %10052 = vmatprep.subr.mxu0 0.0
  %10053 = vmatpush2.msra.mxu0 0.0
  %10054 = vmatprep.subr.mxu0 0.0
  %10055 = vmatpush2.msra.mxu0 0.0
  %10056 = vmatprep.subr.mxu0 0.0
  %10057 = vmatpush2.msra.mxu0 0.0
  %10058 = vmatprep.subr.mxu0 0.0
  %10059 = vmatpush2.msra.mxu0 0.0
  %10060 = vmatprep.subr.mxu0 0.0
  %10061 = vmatpush2.msra.mxu0 0.0
  %10062 = vmatprep.subr.mxu0 0.0
  %10063 = vmatpush2.msra.mxu0 0.0
  %10064 = vmatprep.subr.mxu0 0.0
  %10065 = vmatpush2.msra.mxu0 0.0
  %10066 = vmatprep.subr.mxu0 0.0
  %10067 = vmatpush2.msra.mxu0 0.0
  %10068 = vmatprep.subr.mxu0 0.0
  %10069 = vmatpush2.msra.mxu0 0.0
  %10070 = vmatprep.mubr.f32.mxu0 0.0
  %v10071 = vand.u32 %v9880, 4294901760
  %10072 = vmatmul.mubr.f32.gmra.mxu0 %v10071
  %v10073 = vpop.f32.mrf.mxu0
  %v10074 = vadd.f32 %v9972, %v10073
  %v10075 = vpop.f32.mrf.mxu0
  %v10076 = vadd.f32 %v9974, %v10075
  %10077 = vdwg.mxu0
  %10078 = vmatprep.subr.mxu0 0.0
  %10079 = vmatpush1.msra.mxu0 0.0
  %10080 = vmatprep.subr.mxu0 0.0
  %10081 = vmatpush1.msra.mxu0 0.0
  %10082 = vmatprep.subr.mxu0 0.0
  %10083 = vmatpush1.msra.mxu0 0.0
  %10084 = vmatprep.subr.mxu0 0.0
  %10085 = vmatpush1.msra.mxu0 0.0
  %10086 = vmatprep.subr.mxu0 0.0
  %10087 = vmatpush1.msra.mxu0 0.0
  %10088 = vmatprep.subr.mxu0 0.0
  %10089 = vmatpush1.msra.mxu0 0.0
  %10090 = vmatprep.subr.mxu0 0.0
  %10091 = vmatpush1.msra.mxu0 0.0
  %10092 = vmatprep.subr.mxu0 0.0
  %10093 = vmatpush1.msra.mxu0 0.0
  %10094 = vmatprep.subr.mxu0 0.0
  %10095 = vmatpush1.msra.mxu0 0.0
  %10096 = vmatprep.subr.mxu0 0.0
  %10097 = vmatpush1.msra.mxu0 0.0
  %10098 = vmatprep.subr.mxu0 0.0
  %10099 = vmatpush1.msra.mxu0 0.0
  %10100 = vmatprep.subr.mxu0 0.0
  %10101 = vmatpush1.msra.mxu0 0.0
  %10102 = vmatprep.subr.mxu0 0.0
  %10103 = vmatpush1.msra.mxu0 0.0
  %v10104 = vand.u32 %v9886, 4294901760
  %v10105 = vsub.f32 %v9886, %v10104
  %10106 = vmatprep.subr.mxu0 %v10105
  %v10107 = vand.u32 %v9883, 4294901760
  %v10108 = vsub.f32 %v9883, %v10107
  %10109 = vmatpush1.msra.mxu0 %v10108
  %v10110 = vand.u32 %v9870, 4294901760
  %v10111 = vsub.f32 %v9870, %v10110
  %10112 = vmatprep.subr.mxu0 %v10111
  %v10113 = vand.u32 %v9869, 4294901760
  %v10114 = vsub.f32 %v9869, %v10113
  %10115 = vmatpush1.msra.mxu0 %v10114
  %v10116 = vand.u32 %v9858, 4294901760
  %v10117 = vsub.f32 %v9858, %v10116
  %10118 = vmatprep.subr.mxu0 %v10117
  %v10119 = vand.u32 %v9857, 4294901760
  %v10120 = vsub.f32 %v9857, %v10119
  %10121 = vmatpush1.msra.mxu0 %v10120
  %10122 = vmatprep.subr.mxu0 0.0
  %10123 = vmatpush2.msra.mxu0 0.0
  %10124 = vmatprep.subr.mxu0 0.0
  %10125 = vmatpush2.msra.mxu0 0.0
  %10126 = vmatprep.subr.mxu0 0.0
  %10127 = vmatpush2.msra.mxu0 0.0
  %10128 = vmatprep.subr.mxu0 0.0
  %10129 = vmatpush2.msra.mxu0 0.0
  %10130 = vmatprep.subr.mxu0 0.0
  %10131 = vmatpush2.msra.mxu0 0.0
  %10132 = vmatprep.subr.mxu0 0.0
  %10133 = vmatpush2.msra.mxu0 0.0
  %10134 = vmatprep.subr.mxu0 0.0
  %10135 = vmatpush2.msra.mxu0 0.0
  %10136 = vmatprep.subr.mxu0 0.0
  %10137 = vmatpush2.msra.mxu0 0.0
  %10138 = vmatprep.subr.mxu0 0.0
  %10139 = vmatpush2.msra.mxu0 0.0
  %10140 = vmatprep.subr.mxu0 0.0
  %10141 = vmatpush2.msra.mxu0 0.0
  %10142 = vmatprep.subr.mxu0 0.0
  %10143 = vmatpush2.msra.mxu0 0.0
  %10144 = vmatprep.subr.mxu0 0.0
  %10145 = vmatpush2.msra.mxu0 0.0
  %10146 = vmatprep.subr.mxu0 0.0
  %10147 = vmatpush2.msra.mxu0 0.0
  %10148 = vmatprep.subr.mxu0 0.0
  %10149 = vmatpush2.msra.mxu0 0.0
  %10150 = vmatprep.subr.mxu0 0.0
  %10151 = vmatpush2.msra.mxu0 0.0
  %10152 = vmatprep.subr.mxu0 0.0
  %10153 = vmatpush2.msra.mxu0 0.0
  %10154 = vmatprep.mubr.f32.mxu0 0.0
  %v10155 = vand.u32 %v9880, 4294901760
  %v10156 = vsub.f32 %v9880, %v10155
  %10157 = vmatmul.mubr.f32.gmra.mxu0 %v10156
  %v10158 = vpop.f32.mrf.mxu0
  %v10159 = vadd.f32 %v10074, %v10158
  %v10160 = vpop.f32.mrf.mxu0
  %v10161 = vadd.f32 %v10076, %v10160
  %10162 = vdwg.mxu0
  %10163 = vmatprep.subr.mxu0 0.0
  %10164 = vmatpush1.msra.mxu0 0.0
  %10165 = vmatprep.subr.mxu0 0.0
  %10166 = vmatpush1.msra.mxu0 0.0
  %10167 = vmatprep.subr.mxu0 0.0
  %10168 = vmatpush1.msra.mxu0 0.0
  %10169 = vmatprep.subr.mxu0 0.0
  %10170 = vmatpush1.msra.mxu0 0.0
  %10171 = vmatprep.subr.mxu0 0.0
  %10172 = vmatpush1.msra.mxu0 0.0
  %10173 = vmatprep.subr.mxu0 0.0
  %10174 = vmatpush1.msra.mxu0 0.0
  %10175 = vmatprep.subr.mxu0 0.0
  %10176 = vmatpush1.msra.mxu0 0.0
  %10177 = vmatprep.subr.mxu0 0.0
  %10178 = vmatpush1.msra.mxu0 0.0
  %10179 = vmatprep.subr.mxu0 0.0
  %10180 = vmatpush1.msra.mxu0 0.0
  %10181 = vmatprep.subr.mxu0 0.0
  %10182 = vmatpush1.msra.mxu0 0.0
  %10183 = vmatprep.subr.mxu0 0.0
  %10184 = vmatpush1.msra.mxu0 0.0
  %10185 = vmatprep.subr.mxu0 0.0
  %10186 = vmatpush1.msra.mxu0 0.0
  %10187 = vmatprep.subr.mxu0 0.0
  %10188 = vmatpush1.msra.mxu0 0.0
  %v10189 = vand.u32 %v9886, 4294901760
  %10190 = vmatprep.subr.mxu0 %v10189
  %v10191 = vand.u32 %v9883, 4294901760
  %10192 = vmatpush1.msra.mxu0 %v10191
  %v10193 = vand.u32 %v9870, 4294901760
  %10194 = vmatprep.subr.mxu0 %v10193
  %v10195 = vand.u32 %v9869, 4294901760
  %10196 = vmatpush1.msra.mxu0 %v10195
  %v10197 = vand.u32 %v9858, 4294901760
  %10198 = vmatprep.subr.mxu0 %v10197
  %v10199 = vand.u32 %v9857, 4294901760
  %10200 = vmatpush1.msra.mxu0 %v10199
  %10201 = vmatprep.subr.mxu0 0.0
  %10202 = vmatpush2.msra.mxu0 0.0
  %10203 = vmatprep.subr.mxu0 0.0
  %10204 = vmatpush2.msra.mxu0 0.0
  %10205 = vmatprep.subr.mxu0 0.0
  %10206 = vmatpush2.msra.mxu0 0.0
  %10207 = vmatprep.subr.mxu0 0.0
  %10208 = vmatpush2.msra.mxu0 0.0
  %10209 = vmatprep.subr.mxu0 0.0
  %10210 = vmatpush2.msra.mxu0 0.0
  %10211 = vmatprep.subr.mxu0 0.0
  %10212 = vmatpush2.msra.mxu0 0.0
  %10213 = vmatprep.subr.mxu0 0.0
  %10214 = vmatpush2.msra.mxu0 0.0
  %10215 = vmatprep.subr.mxu0 0.0
  %10216 = vmatpush2.msra.mxu0 0.0
  %10217 = vmatprep.subr.mxu0 0.0
  %10218 = vmatpush2.msra.mxu0 0.0
  %10219 = vmatprep.subr.mxu0 0.0
  %10220 = vmatpush2.msra.mxu0 0.0
  %10221 = vmatprep.subr.mxu0 0.0
  %10222 = vmatpush2.msra.mxu0 0.0
  %10223 = vmatprep.subr.mxu0 0.0
  %10224 = vmatpush2.msra.mxu0 0.0
  %10225 = vmatprep.subr.mxu0 0.0
  %10226 = vmatpush2.msra.mxu0 0.0
  %10227 = vmatprep.subr.mxu0 0.0
  %10228 = vmatpush2.msra.mxu0 0.0
  %10229 = vmatprep.subr.mxu0 0.0
  %10230 = vmatpush2.msra.mxu0 0.0
  %10231 = vmatprep.subr.mxu0 0.0
  %10232 = vmatpush2.msra.mxu0 0.0
  %10233 = vmatprep.mubr.f32.mxu0 0.0
  %v10234 = vand.u32 %v9880, 4294901760
  %v10235 = vsub.f32 %v9880, %v10234
  %v10236 = vand.u32 %v10235, 4294901760
  %10237 = vmatmul.mubr.f32.gmra.mxu0 %v10236
  %v10238 = vpop.f32.mrf.mxu0
  %v10239 = vadd.f32 %v10159, %v10238
  %v10240 = vpop.f32.mrf.mxu0
  %v10241 = vadd.f32 %v10161, %v10240
  %10242 = vdwg.mxu0
  %10243 = vmatprep.subr.mxu0 0.0
  %10244 = vmatpush1.msra.mxu0 0.0
  %10245 = vmatprep.subr.mxu0 0.0
  %10246 = vmatpush1.msra.mxu0 0.0
  %10247 = vmatprep.subr.mxu0 0.0
  %10248 = vmatpush1.msra.mxu0 0.0
  %10249 = vmatprep.subr.mxu0 0.0
  %10250 = vmatpush1.msra.mxu0 0.0
  %10251 = vmatprep.subr.mxu0 0.0
  %10252 = vmatpush1.msra.mxu0 0.0
  %10253 = vmatprep.subr.mxu0 0.0
  %10254 = vmatpush1.msra.mxu0 0.0
  %10255 = vmatprep.subr.mxu0 0.0
  %10256 = vmatpush1.msra.mxu0 0.0
  %10257 = vmatprep.subr.mxu0 0.0
  %10258 = vmatpush1.msra.mxu0 0.0
  %10259 = vmatprep.subr.mxu0 0.0
  %10260 = vmatpush1.msra.mxu0 0.0
  %10261 = vmatprep.subr.mxu0 0.0
  %10262 = vmatpush1.msra.mxu0 0.0
  %10263 = vmatprep.subr.mxu0 0.0
  %10264 = vmatpush1.msra.mxu0 0.0
  %10265 = vmatprep.subr.mxu0 0.0
  %10266 = vmatpush1.msra.mxu0 0.0
  %10267 = vmatprep.subr.mxu0 0.0
  %10268 = vmatpush1.msra.mxu0 0.0
  %v10269 = vand.u32 %v9886, 4294901760
  %v10270 = vsub.f32 %v9886, %v10269
  %v10271 = vand.u32 %v10270, 4294901760
  %10272 = vmatprep.subr.mxu0 %v10271
  %v10273 = vand.u32 %v9883, 4294901760
  %v10274 = vsub.f32 %v9883, %v10273
  %v10275 = vand.u32 %v10274, 4294901760
  %10276 = vmatpush1.msra.mxu0 %v10275
  %v10277 = vand.u32 %v9870, 4294901760
  %v10278 = vsub.f32 %v9870, %v10277
  %v10279 = vand.u32 %v10278, 4294901760
  %10280 = vmatprep.subr.mxu0 %v10279
  %v10281 = vand.u32 %v9869, 4294901760
  %v10282 = vsub.f32 %v9869, %v10281
  %v10283 = vand.u32 %v10282, 4294901760
  %10284 = vmatpush1.msra.mxu0 %v10283
  %v10285 = vand.u32 %v9858, 4294901760
  %v10286 = vsub.f32 %v9858, %v10285
  %v10287 = vand.u32 %v10286, 4294901760
  %10288 = vmatprep.subr.mxu0 %v10287
  %v10289 = vand.u32 %v9857, 4294901760
  %v10290 = vsub.f32 %v9857, %v10289
  %v10291 = vand.u32 %v10290, 4294901760
  %10292 = vmatpush1.msra.mxu0 %v10291
  %10293 = vmatprep.subr.mxu0 0.0
  %10294 = vmatpush2.msra.mxu0 0.0
  %10295 = vmatprep.subr.mxu0 0.0
  %10296 = vmatpush2.msra.mxu0 0.0
  %10297 = vmatprep.subr.mxu0 0.0
  %10298 = vmatpush2.msra.mxu0 0.0
  %10299 = vmatprep.subr.mxu0 0.0
  %10300 = vmatpush2.msra.mxu0 0.0
  %10301 = vmatprep.subr.mxu0 0.0
  %10302 = vmatpush2.msra.mxu0 0.0
  %10303 = vmatprep.subr.mxu0 0.0
  %10304 = vmatpush2.msra.mxu0 0.0
  %10305 = vmatprep.subr.mxu0 0.0
  %10306 = vmatpush2.msra.mxu0 0.0
  %10307 = vmatprep.subr.mxu0 0.0
  %10308 = vmatpush2.msra.mxu0 0.0
  %10309 = vmatprep.subr.mxu0 0.0
  %10310 = vmatpush2.msra.mxu0 0.0
  %10311 = vmatprep.subr.mxu0 0.0
  %10312 = vmatpush2.msra.mxu0 0.0
  %10313 = vmatprep.subr.mxu0 0.0
  %10314 = vmatpush2.msra.mxu0 0.0
  %10315 = vmatprep.subr.mxu0 0.0
  %10316 = vmatpush2.msra.mxu0 0.0
  %10317 = vmatprep.subr.mxu0 0.0
  %10318 = vmatpush2.msra.mxu0 0.0
  %10319 = vmatprep.subr.mxu0 0.0
  %10320 = vmatpush2.msra.mxu0 0.0
  %10321 = vmatprep.subr.mxu0 0.0
  %10322 = vmatpush2.msra.mxu0 0.0
  %10323 = vmatprep.subr.mxu0 0.0
  %10324 = vmatpush2.msra.mxu0 0.0
  %10325 = vmatprep.mubr.f32.mxu0 0.0
  %v10326 = vand.u32 %v9880, 4294901760
  %10327 = vmatmul.mubr.f32.gmra.mxu0 %v10326
  %v10328 = vpop.f32.mrf.mxu0
  %v10329 = vadd.f32 %v10239, %v10328
  %v10330 = vpop.f32.mrf.mxu0
  %v10331 = vadd.f32 %v10241, %v10330
  %10332 = vdwg.mxu0
  %10333 = vmatprep.subr.mxu0 0.0
  %10334 = vmatpush1.msra.mxu0 0.0
  %10335 = vmatprep.subr.mxu0 0.0
  %10336 = vmatpush1.msra.mxu0 0.0
  %10337 = vmatprep.subr.mxu0 0.0
  %10338 = vmatpush1.msra.mxu0 0.0
  %10339 = vmatprep.subr.mxu0 0.0
  %10340 = vmatpush1.msra.mxu0 0.0
  %10341 = vmatprep.subr.mxu0 0.0
  %10342 = vmatpush1.msra.mxu0 0.0
  %10343 = vmatprep.subr.mxu0 0.0
  %10344 = vmatpush1.msra.mxu0 0.0
  %10345 = vmatprep.subr.mxu0 0.0
  %10346 = vmatpush1.msra.mxu0 0.0
  %10347 = vmatprep.subr.mxu0 0.0
  %10348 = vmatpush1.msra.mxu0 0.0
  %10349 = vmatprep.subr.mxu0 0.0
  %10350 = vmatpush1.msra.mxu0 0.0
  %10351 = vmatprep.subr.mxu0 0.0
  %10352 = vmatpush1.msra.mxu0 0.0
  %10353 = vmatprep.subr.mxu0 0.0
  %10354 = vmatpush1.msra.mxu0 0.0
  %10355 = vmatprep.subr.mxu0 0.0
  %10356 = vmatpush1.msra.mxu0 0.0
  %10357 = vmatprep.subr.mxu0 0.0
  %10358 = vmatpush1.msra.mxu0 0.0
  %v10359 = vand.u32 %v9886, 4294901760
  %10360 = vmatprep.subr.mxu0 %v10359
  %v10361 = vand.u32 %v9883, 4294901760
  %10362 = vmatpush1.msra.mxu0 %v10361
  %v10363 = vand.u32 %v9870, 4294901760
  %10364 = vmatprep.subr.mxu0 %v10363
  %v10365 = vand.u32 %v9869, 4294901760
  %10366 = vmatpush1.msra.mxu0 %v10365
  %v10367 = vand.u32 %v9858, 4294901760
  %10368 = vmatprep.subr.mxu0 %v10367
  %v10369 = vand.u32 %v9857, 4294901760
  %10370 = vmatpush1.msra.mxu0 %v10369
  %10371 = vmatprep.subr.mxu0 0.0
  %10372 = vmatpush2.msra.mxu0 0.0
  %10373 = vmatprep.subr.mxu0 0.0
  %10374 = vmatpush2.msra.mxu0 0.0
  %10375 = vmatprep.subr.mxu0 0.0
  %10376 = vmatpush2.msra.mxu0 0.0
  %10377 = vmatprep.subr.mxu0 0.0
  %10378 = vmatpush2.msra.mxu0 0.0
  %10379 = vmatprep.subr.mxu0 0.0
  %10380 = vmatpush2.msra.mxu0 0.0
  %10381 = vmatprep.subr.mxu0 0.0
  %10382 = vmatpush2.msra.mxu0 0.0
  %10383 = vmatprep.subr.mxu0 0.0
  %10384 = vmatpush2.msra.mxu0 0.0
  %10385 = vmatprep.subr.mxu0 0.0
  %10386 = vmatpush2.msra.mxu0 0.0
  %10387 = vmatprep.subr.mxu0 0.0
  %10388 = vmatpush2.msra.mxu0 0.0
  %10389 = vmatprep.subr.mxu0 0.0
  %10390 = vmatpush2.msra.mxu0 0.0
  %10391 = vmatprep.subr.mxu0 0.0
  %10392 = vmatpush2.msra.mxu0 0.0
  %10393 = vmatprep.subr.mxu0 0.0
  %10394 = vmatpush2.msra.mxu0 0.0
  %10395 = vmatprep.subr.mxu0 0.0
  %10396 = vmatpush2.msra.mxu0 0.0
  %10397 = vmatprep.subr.mxu0 0.0
  %10398 = vmatpush2.msra.mxu0 0.0
  %10399 = vmatprep.subr.mxu0 0.0
  %10400 = vmatpush2.msra.mxu0 0.0
  %10401 = vmatprep.subr.mxu0 0.0
  %10402 = vmatpush2.msra.mxu0 0.0
  %10403 = vmatprep.mubr.f32.mxu0 0.0
  %v10404 = vand.u32 %v9880, 4294901760
  %10405 = vmatmul.mubr.f32.gmra.mxu0 %v10404
  %v10406 = vpop.f32.mrf.mxu0
  %v10407 = vadd.f32 %v10329, %v10406
  %v10408 = vpop.f32.mrf.mxu0
  %v10409 = vadd.f32 %v10331, %v10408
  %10410 = vdwg.mxu0
  %10411 = vmatprep.subr.mxu0 0.0
  %10412 = vmatpush1.msra.mxu0 0.0
  %10413 = vmatprep.subr.mxu0 0.0
  %10414 = vmatpush1.msra.mxu0 0.0
  %10415 = vmatprep.subr.mxu0 0.0
  %10416 = vmatpush1.msra.mxu0 0.0
  %10417 = vmatprep.subr.mxu0 0.0
  %10418 = vmatpush1.msra.mxu0 0.0
  %10419 = vmatprep.subr.mxu0 0.0
  %10420 = vmatpush1.msra.mxu0 0.0
  %10421 = vmatprep.subr.mxu0 0.0
  %10422 = vmatpush1.msra.mxu0 0.0
  %10423 = vmatprep.subr.mxu0 0.0
  %10424 = vmatpush1.msra.mxu0 0.0
  %10425 = vmatprep.subr.mxu0 0.0
  %10426 = vmatpush1.msra.mxu0 0.0
  %10427 = vmatprep.subr.mxu0 0.0
  %10428 = vmatpush1.msra.mxu0 0.0
  %10429 = vmatprep.subr.mxu0 0.0
  %10430 = vmatpush1.msra.mxu0 0.0
  %10431 = vmatprep.subr.mxu0 0.0
  %10432 = vmatpush1.msra.mxu0 0.0
  %10433 = vmatprep.subr.mxu0 0.0
  %10434 = vmatpush1.msra.mxu0 0.0
  %10435 = vmatprep.subr.mxu0 0.0
  %10436 = vmatpush1.msra.mxu0 0.0
  %v10437 = vand.u32 %v9892, 4294901760
  %10438 = vmatprep.subr.mxu0 %v10437
  %v10439 = vand.u32 %v9889, 4294901760
  %10440 = vmatpush1.msra.mxu0 %v10439
  %v10441 = vand.u32 %v9872, 4294901760
  %10442 = vmatprep.subr.mxu0 %v10441
  %v10443 = vand.u32 %v9871, 4294901760
  %10444 = vmatpush1.msra.mxu0 %v10443
  %v10445 = vand.u32 %v9860, 4294901760
  %10446 = vmatprep.subr.mxu0 %v10445
  %v10447 = vand.u32 %v9859, 4294901760
  %10448 = vmatpush1.msra.mxu0 %v10447
  %10449 = vmatprep.subr.mxu0 0.0
  %10450 = vmatpush2.msra.mxu0 0.0
  %10451 = vmatprep.subr.mxu0 0.0
  %10452 = vmatpush2.msra.mxu0 0.0
  %10453 = vmatprep.subr.mxu0 0.0
  %10454 = vmatpush2.msra.mxu0 0.0
  %10455 = vmatprep.subr.mxu0 0.0
  %10456 = vmatpush2.msra.mxu0 0.0
  %10457 = vmatprep.subr.mxu0 0.0
  %10458 = vmatpush2.msra.mxu0 0.0
  %10459 = vmatprep.subr.mxu0 0.0
  %10460 = vmatpush2.msra.mxu0 0.0
  %10461 = vmatprep.subr.mxu0 0.0
  %10462 = vmatpush2.msra.mxu0 0.0
  %10463 = vmatprep.subr.mxu0 0.0
  %10464 = vmatpush2.msra.mxu0 0.0
  %10465 = vmatprep.subr.mxu0 0.0
  %10466 = vmatpush2.msra.mxu0 0.0
  %10467 = vmatprep.subr.mxu0 0.0
  %10468 = vmatpush2.msra.mxu0 0.0
  %10469 = vmatprep.subr.mxu0 0.0
  %10470 = vmatpush2.msra.mxu0 0.0
  %10471 = vmatprep.subr.mxu0 0.0
  %10472 = vmatpush2.msra.mxu0 0.0
  %10473 = vmatprep.subr.mxu0 0.0
  %10474 = vmatpush2.msra.mxu0 0.0
  %10475 = vmatprep.subr.mxu0 0.0
  %10476 = vmatpush2.msra.mxu0 0.0
  %10477 = vmatprep.subr.mxu0 0.0
  %10478 = vmatpush2.msra.mxu0 0.0
  %10479 = vmatprep.subr.mxu0 0.0
  %10480 = vmatpush2.msra.mxu0 0.0
  %10481 = vmatprep.mubr.f32.mxu0 0.0
  %v10482 = vand.u32 %v9880, 4294901760
  %v10483 = vsub.f32 %v9880, %v10482
  %v10484 = vand.u32 %v10483, 4294901760
  %v10485 = vsub.f32 %v10483, %v10484
  %v10486 = vand.u32 %v10485, 4294901760
  %10487 = vmatmul.mubr.f32.gmra.mxu0 %v10486
  %v10488 = vpop.f32.mrf.mxu0
  %v10489 = vadd.f32 0.0, %v10488
  %v10490 = vpop.f32.mrf.mxu0
  %v10491 = vadd.f32 0.0, %v10490
  %10492 = vdwg.mxu0
  %10493 = vmatprep.subr.mxu0 0.0
  %10494 = vmatpush1.msra.mxu0 0.0
  %10495 = vmatprep.subr.mxu0 0.0
  %10496 = vmatpush1.msra.mxu0 0.0
  %10497 = vmatprep.subr.mxu0 0.0
  %10498 = vmatpush1.msra.mxu0 0.0
  %10499 = vmatprep.subr.mxu0 0.0
  %10500 = vmatpush1.msra.mxu0 0.0
  %10501 = vmatprep.subr.mxu0 0.0
  %10502 = vmatpush1.msra.mxu0 0.0
  %10503 = vmatprep.subr.mxu0 0.0
  %10504 = vmatpush1.msra.mxu0 0.0
  %10505 = vmatprep.subr.mxu0 0.0
  %10506 = vmatpush1.msra.mxu0 0.0
  %10507 = vmatprep.subr.mxu0 0.0
  %10508 = vmatpush1.msra.mxu0 0.0
  %10509 = vmatprep.subr.mxu0 0.0
  %10510 = vmatpush1.msra.mxu0 0.0
  %10511 = vmatprep.subr.mxu0 0.0
  %10512 = vmatpush1.msra.mxu0 0.0
  %10513 = vmatprep.subr.mxu0 0.0
  %10514 = vmatpush1.msra.mxu0 0.0
  %10515 = vmatprep.subr.mxu0 0.0
  %10516 = vmatpush1.msra.mxu0 0.0
  %10517 = vmatprep.subr.mxu0 0.0
  %10518 = vmatpush1.msra.mxu0 0.0
  %v10519 = vand.u32 %v9892, 4294901760
  %v10520 = vsub.f32 %v9892, %v10519
  %v10521 = vand.u32 %v10520, 4294901760
  %v10522 = vsub.f32 %v10520, %v10521
  %v10523 = vand.u32 %v10522, 4294901760
  %10524 = vmatprep.subr.mxu0 %v10523
  %v10525 = vand.u32 %v9889, 4294901760
  %v10526 = vsub.f32 %v9889, %v10525
  %v10527 = vand.u32 %v10526, 4294901760
  %v10528 = vsub.f32 %v10526, %v10527
  %v10529 = vand.u32 %v10528, 4294901760
  %10530 = vmatpush1.msra.mxu0 %v10529
  %v10531 = vand.u32 %v9872, 4294901760
  %v10532 = vsub.f32 %v9872, %v10531
  %v10533 = vand.u32 %v10532, 4294901760
  %v10534 = vsub.f32 %v10532, %v10533
  %v10535 = vand.u32 %v10534, 4294901760
  %10536 = vmatprep.subr.mxu0 %v10535
  %v10537 = vand.u32 %v9871, 4294901760
  %v10538 = vsub.f32 %v9871, %v10537
  %v10539 = vand.u32 %v10538, 4294901760
  %v10540 = vsub.f32 %v10538, %v10539
  %v10541 = vand.u32 %v10540, 4294901760
  %10542 = vmatpush1.msra.mxu0 %v10541
  %v10543 = vand.u32 %v9860, 4294901760
  %v10544 = vsub.f32 %v9860, %v10543
  %v10545 = vand.u32 %v10544, 4294901760
  %v10546 = vsub.f32 %v10544, %v10545
  %v10547 = vand.u32 %v10546, 4294901760
  %10548 = vmatprep.subr.mxu0 %v10547
  %v10549 = vand.u32 %v9859, 4294901760
  %v10550 = vsub.f32 %v9859, %v10549
  %v10551 = vand.u32 %v10550, 4294901760
  %v10552 = vsub.f32 %v10550, %v10551
  %v10553 = vand.u32 %v10552, 4294901760
  %10554 = vmatpush1.msra.mxu0 %v10553
  %10555 = vmatprep.subr.mxu0 0.0
  %10556 = vmatpush2.msra.mxu0 0.0
  %10557 = vmatprep.subr.mxu0 0.0
  %10558 = vmatpush2.msra.mxu0 0.0
  %10559 = vmatprep.subr.mxu0 0.0
  %10560 = vmatpush2.msra.mxu0 0.0
  %10561 = vmatprep.subr.mxu0 0.0
  %10562 = vmatpush2.msra.mxu0 0.0
  %10563 = vmatprep.subr.mxu0 0.0
  %10564 = vmatpush2.msra.mxu0 0.0
  %10565 = vmatprep.subr.mxu0 0.0
  %10566 = vmatpush2.msra.mxu0 0.0
  %10567 = vmatprep.subr.mxu0 0.0
  %10568 = vmatpush2.msra.mxu0 0.0
  %10569 = vmatprep.subr.mxu0 0.0
  %10570 = vmatpush2.msra.mxu0 0.0
  %10571 = vmatprep.subr.mxu0 0.0
  %10572 = vmatpush2.msra.mxu0 0.0
  %10573 = vmatprep.subr.mxu0 0.0
  %10574 = vmatpush2.msra.mxu0 0.0
  %10575 = vmatprep.subr.mxu0 0.0
  %10576 = vmatpush2.msra.mxu0 0.0
  %10577 = vmatprep.subr.mxu0 0.0
  %10578 = vmatpush2.msra.mxu0 0.0
  %10579 = vmatprep.subr.mxu0 0.0
  %10580 = vmatpush2.msra.mxu0 0.0
  %10581 = vmatprep.subr.mxu0 0.0
  %10582 = vmatpush2.msra.mxu0 0.0
  %10583 = vmatprep.subr.mxu0 0.0
  %10584 = vmatpush2.msra.mxu0 0.0
  %10585 = vmatprep.subr.mxu0 0.0
  %10586 = vmatpush2.msra.mxu0 0.0
  %10587 = vmatprep.mubr.f32.mxu0 0.0
  %v10588 = vand.u32 %v9880, 4294901760
  %10589 = vmatmul.mubr.f32.gmra.mxu0 %v10588
  %v10590 = vpop.f32.mrf.mxu0
  %v10591 = vadd.f32 %v10489, %v10590
  %v10592 = vpop.f32.mrf.mxu0
  %v10593 = vadd.f32 %v10491, %v10592
  %10594 = vdwg.mxu0
  %10595 = vmatprep.subr.mxu0 0.0
  %10596 = vmatpush1.msra.mxu0 0.0
  %10597 = vmatprep.subr.mxu0 0.0
  %10598 = vmatpush1.msra.mxu0 0.0
  %10599 = vmatprep.subr.mxu0 0.0
  %10600 = vmatpush1.msra.mxu0 0.0
  %10601 = vmatprep.subr.mxu0 0.0
  %10602 = vmatpush1.msra.mxu0 0.0
  %10603 = vmatprep.subr.mxu0 0.0
  %10604 = vmatpush1.msra.mxu0 0.0
  %10605 = vmatprep.subr.mxu0 0.0
  %10606 = vmatpush1.msra.mxu0 0.0
  %10607 = vmatprep.subr.mxu0 0.0
  %10608 = vmatpush1.msra.mxu0 0.0
  %10609 = vmatprep.subr.mxu0 0.0
  %10610 = vmatpush1.msra.mxu0 0.0
  %10611 = vmatprep.subr.mxu0 0.0
  %10612 = vmatpush1.msra.mxu0 0.0
  %10613 = vmatprep.subr.mxu0 0.0
  %10614 = vmatpush1.msra.mxu0 0.0
  %10615 = vmatprep.subr.mxu0 0.0
  %10616 = vmatpush1.msra.mxu0 0.0
  %10617 = vmatprep.subr.mxu0 0.0
  %10618 = vmatpush1.msra.mxu0 0.0
  %10619 = vmatprep.subr.mxu0 0.0
  %10620 = vmatpush1.msra.mxu0 0.0
  %v10621 = vand.u32 %v9892, 4294901760
  %v10622 = vsub.f32 %v9892, %v10621
  %10623 = vmatprep.subr.mxu0 %v10622
  %v10624 = vand.u32 %v9889, 4294901760
  %v10625 = vsub.f32 %v9889, %v10624
  %10626 = vmatpush1.msra.mxu0 %v10625
  %v10627 = vand.u32 %v9872, 4294901760
  %v10628 = vsub.f32 %v9872, %v10627
  %10629 = vmatprep.subr.mxu0 %v10628
  %v10630 = vand.u32 %v9871, 4294901760
  %v10631 = vsub.f32 %v9871, %v10630
  %10632 = vmatpush1.msra.mxu0 %v10631
  %v10633 = vand.u32 %v9860, 4294901760
  %v10634 = vsub.f32 %v9860, %v10633
  %10635 = vmatprep.subr.mxu0 %v10634
  %v10636 = vand.u32 %v9859, 4294901760
  %v10637 = vsub.f32 %v9859, %v10636
  %10638 = vmatpush1.msra.mxu0 %v10637
  %10639 = vmatprep.subr.mxu0 0.0
  %10640 = vmatpush2.msra.mxu0 0.0
  %10641 = vmatprep.subr.mxu0 0.0
  %10642 = vmatpush2.msra.mxu0 0.0
  %10643 = vmatprep.subr.mxu0 0.0
  %10644 = vmatpush2.msra.mxu0 0.0
  %10645 = vmatprep.subr.mxu0 0.0
  %10646 = vmatpush2.msra.mxu0 0.0
  %10647 = vmatprep.subr.mxu0 0.0
  %10648 = vmatpush2.msra.mxu0 0.0
  %10649 = vmatprep.subr.mxu0 0.0
  %10650 = vmatpush2.msra.mxu0 0.0
  %10651 = vmatprep.subr.mxu0 0.0
  %10652 = vmatpush2.msra.mxu0 0.0
  %10653 = vmatprep.subr.mxu0 0.0
  %10654 = vmatpush2.msra.mxu0 0.0
  %10655 = vmatprep.subr.mxu0 0.0
  %10656 = vmatpush2.msra.mxu0 0.0
  %10657 = vmatprep.subr.mxu0 0.0
  %10658 = vmatpush2.msra.mxu0 0.0
  %10659 = vmatprep.subr.mxu0 0.0
  %10660 = vmatpush2.msra.mxu0 0.0
  %10661 = vmatprep.subr.mxu0 0.0
  %10662 = vmatpush2.msra.mxu0 0.0
  %10663 = vmatprep.subr.mxu0 0.0
  %10664 = vmatpush2.msra.mxu0 0.0
  %10665 = vmatprep.subr.mxu0 0.0
  %10666 = vmatpush2.msra.mxu0 0.0
  %10667 = vmatprep.subr.mxu0 0.0
  %10668 = vmatpush2.msra.mxu0 0.0
  %10669 = vmatprep.subr.mxu0 0.0
  %10670 = vmatpush2.msra.mxu0 0.0
  %10671 = vmatprep.mubr.f32.mxu0 0.0
  %v10672 = vand.u32 %v9880, 4294901760
  %v10673 = vsub.f32 %v9880, %v10672
  %10674 = vmatmul.mubr.f32.gmra.mxu0 %v10673
  %v10675 = vpop.f32.mrf.mxu0
  %v10676 = vadd.f32 %v10591, %v10675
  %v10677 = vpop.f32.mrf.mxu0
  %v10678 = vadd.f32 %v10593, %v10677
  %10679 = vdwg.mxu0
  %10680 = vmatprep.subr.mxu0 0.0
  %10681 = vmatpush1.msra.mxu0 0.0
  %10682 = vmatprep.subr.mxu0 0.0
  %10683 = vmatpush1.msra.mxu0 0.0
  %10684 = vmatprep.subr.mxu0 0.0
  %10685 = vmatpush1.msra.mxu0 0.0
  %10686 = vmatprep.subr.mxu0 0.0
  %10687 = vmatpush1.msra.mxu0 0.0
  %10688 = vmatprep.subr.mxu0 0.0
  %10689 = vmatpush1.msra.mxu0 0.0
  %10690 = vmatprep.subr.mxu0 0.0
  %10691 = vmatpush1.msra.mxu0 0.0
  %10692 = vmatprep.subr.mxu0 0.0
  %10693 = vmatpush1.msra.mxu0 0.0
  %10694 = vmatprep.subr.mxu0 0.0
  %10695 = vmatpush1.msra.mxu0 0.0
  %10696 = vmatprep.subr.mxu0 0.0
  %10697 = vmatpush1.msra.mxu0 0.0
  %10698 = vmatprep.subr.mxu0 0.0
  %10699 = vmatpush1.msra.mxu0 0.0
  %10700 = vmatprep.subr.mxu0 0.0
  %10701 = vmatpush1.msra.mxu0 0.0
  %10702 = vmatprep.subr.mxu0 0.0
  %10703 = vmatpush1.msra.mxu0 0.0
  %10704 = vmatprep.subr.mxu0 0.0
  %10705 = vmatpush1.msra.mxu0 0.0
  %v10706 = vand.u32 %v9892, 4294901760
  %10707 = vmatprep.subr.mxu0 %v10706
  %v10708 = vand.u32 %v9889, 4294901760
  %10709 = vmatpush1.msra.mxu0 %v10708
  %v10710 = vand.u32 %v9872, 4294901760
  %10711 = vmatprep.subr.mxu0 %v10710
  %v10712 = vand.u32 %v9871, 4294901760
  %10713 = vmatpush1.msra.mxu0 %v10712
  %v10714 = vand.u32 %v9860, 4294901760
  %10715 = vmatprep.subr.mxu0 %v10714
  %v10716 = vand.u32 %v9859, 4294901760
  %10717 = vmatpush1.msra.mxu0 %v10716
  %10718 = vmatprep.subr.mxu0 0.0
  %10719 = vmatpush2.msra.mxu0 0.0
  %10720 = vmatprep.subr.mxu0 0.0
  %10721 = vmatpush2.msra.mxu0 0.0
  %10722 = vmatprep.subr.mxu0 0.0
  %10723 = vmatpush2.msra.mxu0 0.0
  %10724 = vmatprep.subr.mxu0 0.0
  %10725 = vmatpush2.msra.mxu0 0.0
  %10726 = vmatprep.subr.mxu0 0.0
  %10727 = vmatpush2.msra.mxu0 0.0
  %10728 = vmatprep.subr.mxu0 0.0
  %10729 = vmatpush2.msra.mxu0 0.0
  %10730 = vmatprep.subr.mxu0 0.0
  %10731 = vmatpush2.msra.mxu0 0.0
  %10732 = vmatprep.subr.mxu0 0.0
  %10733 = vmatpush2.msra.mxu0 0.0
  %10734 = vmatprep.subr.mxu0 0.0
  %10735 = vmatpush2.msra.mxu0 0.0
  %10736 = vmatprep.subr.mxu0 0.0
  %10737 = vmatpush2.msra.mxu0 0.0
  %10738 = vmatprep.subr.mxu0 0.0
  %10739 = vmatpush2.msra.mxu0 0.0
  %10740 = vmatprep.subr.mxu0 0.0
  %10741 = vmatpush2.msra.mxu0 0.0
  %10742 = vmatprep.subr.mxu0 0.0
  %10743 = vmatpush2.msra.mxu0 0.0
  %10744 = vmatprep.subr.mxu0 0.0
  %10745 = vmatpush2.msra.mxu0 0.0
  %10746 = vmatprep.subr.mxu0 0.0
  %10747 = vmatpush2.msra.mxu0 0.0
  %10748 = vmatprep.subr.mxu0 0.0
  %10749 = vmatpush2.msra.mxu0 0.0
  %10750 = vmatprep.mubr.f32.mxu0 0.0
  %v10751 = vand.u32 %v9880, 4294901760
  %v10752 = vsub.f32 %v9880, %v10751
  %v10753 = vand.u32 %v10752, 4294901760
  %10754 = vmatmul.mubr.f32.gmra.mxu0 %v10753
  %v10755 = vpop.f32.mrf.mxu0
  %v10756 = vadd.f32 %v10676, %v10755
  %v10757 = vpop.f32.mrf.mxu0
  %v10758 = vadd.f32 %v10678, %v10757
  %10759 = vdwg.mxu0
  %10760 = vmatprep.subr.mxu0 0.0
  %10761 = vmatpush1.msra.mxu0 0.0
  %10762 = vmatprep.subr.mxu0 0.0
  %10763 = vmatpush1.msra.mxu0 0.0
  %10764 = vmatprep.subr.mxu0 0.0
  %10765 = vmatpush1.msra.mxu0 0.0
  %10766 = vmatprep.subr.mxu0 0.0
  %10767 = vmatpush1.msra.mxu0 0.0
  %10768 = vmatprep.subr.mxu0 0.0
  %10769 = vmatpush1.msra.mxu0 0.0
  %10770 = vmatprep.subr.mxu0 0.0
  %10771 = vmatpush1.msra.mxu0 0.0
  %10772 = vmatprep.subr.mxu0 0.0
  %10773 = vmatpush1.msra.mxu0 0.0
  %10774 = vmatprep.subr.mxu0 0.0
  %10775 = vmatpush1.msra.mxu0 0.0
  %10776 = vmatprep.subr.mxu0 0.0
  %10777 = vmatpush1.msra.mxu0 0.0
  %10778 = vmatprep.subr.mxu0 0.0
  %10779 = vmatpush1.msra.mxu0 0.0
  %10780 = vmatprep.subr.mxu0 0.0
  %10781 = vmatpush1.msra.mxu0 0.0
  %10782 = vmatprep.subr.mxu0 0.0
  %10783 = vmatpush1.msra.mxu0 0.0
  %10784 = vmatprep.subr.mxu0 0.0
  %10785 = vmatpush1.msra.mxu0 0.0
  %v10786 = vand.u32 %v9892, 4294901760
  %v10787 = vsub.f32 %v9892, %v10786
  %v10788 = vand.u32 %v10787, 4294901760
  %10789 = vmatprep.subr.mxu0 %v10788
  %v10790 = vand.u32 %v9889, 4294901760
  %v10791 = vsub.f32 %v9889, %v10790
  %v10792 = vand.u32 %v10791, 4294901760
  %10793 = vmatpush1.msra.mxu0 %v10792
  %v10794 = vand.u32 %v9872, 4294901760
  %v10795 = vsub.f32 %v9872, %v10794
  %v10796 = vand.u32 %v10795, 4294901760
  %10797 = vmatprep.subr.mxu0 %v10796
  %v10798 = vand.u32 %v9871, 4294901760
  %v10799 = vsub.f32 %v9871, %v10798
  %v10800 = vand.u32 %v10799, 4294901760
  %10801 = vmatpush1.msra.mxu0 %v10800
  %v10802 = vand.u32 %v9860, 4294901760
  %v10803 = vsub.f32 %v9860, %v10802
  %v10804 = vand.u32 %v10803, 4294901760
  %10805 = vmatprep.subr.mxu0 %v10804
  %v10806 = vand.u32 %v9859, 4294901760
  %v10807 = vsub.f32 %v9859, %v10806
  %v10808 = vand.u32 %v10807, 4294901760
  %10809 = vmatpush1.msra.mxu0 %v10808
  %10810 = vmatprep.subr.mxu0 0.0
  %10811 = vmatpush2.msra.mxu0 0.0
  %10812 = vmatprep.subr.mxu0 0.0
  %10813 = vmatpush2.msra.mxu0 0.0
  %10814 = vmatprep.subr.mxu0 0.0
  %10815 = vmatpush2.msra.mxu0 0.0
  %10816 = vmatprep.subr.mxu0 0.0
  %10817 = vmatpush2.msra.mxu0 0.0
  %10818 = vmatprep.subr.mxu0 0.0
  %10819 = vmatpush2.msra.mxu0 0.0
  %10820 = vmatprep.subr.mxu0 0.0
  %10821 = vmatpush2.msra.mxu0 0.0
  %10822 = vmatprep.subr.mxu0 0.0
  %10823 = vmatpush2.msra.mxu0 0.0
  %10824 = vmatprep.subr.mxu0 0.0
  %10825 = vmatpush2.msra.mxu0 0.0
  %10826 = vmatprep.subr.mxu0 0.0
  %10827 = vmatpush2.msra.mxu0 0.0
  %10828 = vmatprep.subr.mxu0 0.0
  %10829 = vmatpush2.msra.mxu0 0.0
  %10830 = vmatprep.subr.mxu0 0.0
  %10831 = vmatpush2.msra.mxu0 0.0
  %10832 = vmatprep.subr.mxu0 0.0
  %10833 = vmatpush2.msra.mxu0 0.0
  %10834 = vmatprep.subr.mxu0 0.0
  %10835 = vmatpush2.msra.mxu0 0.0
  %10836 = vmatprep.subr.mxu0 0.0
  %10837 = vmatpush2.msra.mxu0 0.0
  %10838 = vmatprep.subr.mxu0 0.0
  %10839 = vmatpush2.msra.mxu0 0.0
  %10840 = vmatprep.subr.mxu0 0.0
  %10841 = vmatpush2.msra.mxu0 0.0
  %10842 = vmatprep.mubr.f32.mxu0 0.0
  %v10843 = vand.u32 %v9880, 4294901760
  %10844 = vmatmul.mubr.f32.gmra.mxu0 %v10843
  %v10845 = vpop.f32.mrf.mxu0
  %v10846 = vadd.f32 %v10756, %v10845
  %v10847 = vpop.f32.mrf.mxu0
  %v10848 = vadd.f32 %v10758, %v10847
  %10849 = vdwg.mxu0
  %10850 = vmatprep.subr.mxu0 0.0
  %10851 = vmatpush1.msra.mxu0 0.0
  %10852 = vmatprep.subr.mxu0 0.0
  %10853 = vmatpush1.msra.mxu0 0.0
  %10854 = vmatprep.subr.mxu0 0.0
  %10855 = vmatpush1.msra.mxu0 0.0
  %10856 = vmatprep.subr.mxu0 0.0
  %10857 = vmatpush1.msra.mxu0 0.0
  %10858 = vmatprep.subr.mxu0 0.0
  %10859 = vmatpush1.msra.mxu0 0.0
  %10860 = vmatprep.subr.mxu0 0.0
  %10861 = vmatpush1.msra.mxu0 0.0
  %10862 = vmatprep.subr.mxu0 0.0
  %10863 = vmatpush1.msra.mxu0 0.0
  %10864 = vmatprep.subr.mxu0 0.0
  %10865 = vmatpush1.msra.mxu0 0.0
  %10866 = vmatprep.subr.mxu0 0.0
  %10867 = vmatpush1.msra.mxu0 0.0
  %10868 = vmatprep.subr.mxu0 0.0
  %10869 = vmatpush1.msra.mxu0 0.0
  %10870 = vmatprep.subr.mxu0 0.0
  %10871 = vmatpush1.msra.mxu0 0.0
  %10872 = vmatprep.subr.mxu0 0.0
  %10873 = vmatpush1.msra.mxu0 0.0
  %10874 = vmatprep.subr.mxu0 0.0
  %10875 = vmatpush1.msra.mxu0 0.0
  %v10876 = vand.u32 %v9892, 4294901760
  %10877 = vmatprep.subr.mxu0 %v10876
  %v10878 = vand.u32 %v9889, 4294901760
  %10879 = vmatpush1.msra.mxu0 %v10878
  %v10880 = vand.u32 %v9872, 4294901760
  %10881 = vmatprep.subr.mxu0 %v10880
  %v10882 = vand.u32 %v9871, 4294901760
  %10883 = vmatpush1.msra.mxu0 %v10882
  %v10884 = vand.u32 %v9860, 4294901760
  %10885 = vmatprep.subr.mxu0 %v10884
  %v10886 = vand.u32 %v9859, 4294901760
  %10887 = vmatpush1.msra.mxu0 %v10886
  %10888 = vmatprep.subr.mxu0 0.0
  %10889 = vmatpush2.msra.mxu0 0.0
  %10890 = vmatprep.subr.mxu0 0.0
  %10891 = vmatpush2.msra.mxu0 0.0
  %10892 = vmatprep.subr.mxu0 0.0
  %10893 = vmatpush2.msra.mxu0 0.0
  %10894 = vmatprep.subr.mxu0 0.0
  %10895 = vmatpush2.msra.mxu0 0.0
  %10896 = vmatprep.subr.mxu0 0.0
  %10897 = vmatpush2.msra.mxu0 0.0
  %10898 = vmatprep.subr.mxu0 0.0
  %10899 = vmatpush2.msra.mxu0 0.0
  %10900 = vmatprep.subr.mxu0 0.0
  %10901 = vmatpush2.msra.mxu0 0.0
  %10902 = vmatprep.subr.mxu0 0.0
  %10903 = vmatpush2.msra.mxu0 0.0
  %10904 = vmatprep.subr.mxu0 0.0
  %10905 = vmatpush2.msra.mxu0 0.0
  %10906 = vmatprep.subr.mxu0 0.0
  %10907 = vmatpush2.msra.mxu0 0.0
  %10908 = vmatprep.subr.mxu0 0.0
  %10909 = vmatpush2.msra.mxu0 0.0
  %10910 = vmatprep.subr.mxu0 0.0
  %10911 = vmatpush2.msra.mxu0 0.0
  %10912 = vmatprep.subr.mxu0 0.0
  %10913 = vmatpush2.msra.mxu0 0.0
  %10914 = vmatprep.subr.mxu0 0.0
  %10915 = vmatpush2.msra.mxu0 0.0
  %10916 = vmatprep.subr.mxu0 0.0
  %10917 = vmatpush2.msra.mxu0 0.0
  %10918 = vmatprep.subr.mxu0 0.0
  %10919 = vmatpush2.msra.mxu0 0.0
  %10920 = vmatprep.mubr.f32.mxu0 0.0
  %v10921 = vand.u32 %v9880, 4294901760
  %10922 = vmatmul.mubr.f32.gmra.mxu0 %v10921
  %v10923 = vpop.f32.mrf.mxu0
  %v10924 = vadd.f32 %v10846, %v10923
  %v10925 = vpop.f32.mrf.mxu0
  %v10926 = vadd.f32 %v10848, %v10925
  %10927 = vdwg.mxu0
  %v10928 = vmax.f32 %v10407, 0.0
  %v10929 = vmax.f32 %v10409, 0.0
  %v10930 = vmax.f32 %v10924, 0.0
  %v10931 = vmax.f32 %v10926, 0.0
  %v10932 = vadd.f32 %v5788, %v10928
  %v10933 = vadd.f32 %v5789, %v10929
  %v10934 = vadd.f32 %v5790, %v10930
  %v10935 = vadd.f32 %v5791, %v10931
  %v10936 = vmul.f32 %v60, 2.0
  %v10937 = vmul.f32 %v61, 2.0
  %v10940 = vcombine.high %v10936, %v10936
  %v10941 = vcombine.high %v10937, %v10937
  %v10944 = vadd.f32 %v10932, %v10936
  %v10945 = vadd.f32 %v10933, %v10940
  %v10946 = vadd.f32 %v10934, %v10937
  %v10947 = vadd.f32 %v10935, %v10941
  %v10952 = vcombine.low %v10944, %v10945
  %v10953 = vcombine.low %v10946, %v10947
  %10956 = vst [vmem:[%s2] sm:$0xff] %v10952
  %10957 = vst [vmem:[%s2 + $0x8] sm:$0xff] %v10953
  %v10958 = vcombine.low %v8290, %v8292
  %v10959 = vcombine.low %v8294, %v8296
  %v10961 = vunpack.c.l.s4 1966171168
  %v10962 = vunpack.c.0.s8 %v10961
  %v10963 = vlaneseq
  %v10964 = vshrl.u32 %v10963, 7
  %v10965 = vsub.s32 %v10962, %v10964
  %v10966 = vrot.slane %v10958, %v10965
  %v10968 = vunpack.c.l.s4 1966171168
  %v10969 = vunpack.c.0.s8 %v10968
  %v10970 = vlaneseq
  %v10971 = vshrl.u32 %v10970, 7
  %v10972 = vsub.s32 %v10969, %v10971
  %v10973 = vrot.slane %v10959, %v10972
  %v10974 = vcombine.low %v10966, %v10973
  %v10976 = vunpack.c.l.s4 1966171168
  %v10977 = vunpack.c.0.s8 %v10976
  %v10978 = vlaneseq
  %v10979 = vshrl.u32 %v10978, 7
  %v10980 = vsub.s32 %v10977, %v10979
  %v10981 = vrot.slane %v10974, %v10980
  %v10983 = vlaneseq
  %vm10984 = vcmp.ge.s32.totalorder %v10983, 0
  %vm10985 = vcmp.lt.s32.totalorder %v10983, 512
  %vm10986 = vmand %vm10984, %vm10985
  %10987 = vst.msk [vmem:[%s4] sm:$0xf] %vm10986, %v10981
  %v10988 = vcombine.low %v2969, %v2971
  %v10989 = vcombine.low %v2973, %v2975
  %10992 = vst [vmem:[%s5] sm:$0x77] %v10988
  %10993 = vst [vmem:[%s5 + $0x8] sm:$0x77] %v10989
  %v10994 = vlaneseq
  %v10995 = vshrl.u32 %v10994, 7
  %v10996 = vsub.s32 0, %v10995
  %v10997 = vrot.slane %v8290, %v10996
  %v10998 = vlaneseq
  %v10999 = vshrl.u32 %v10998, 7
  %v11000 = vsub.s32 0, %v10999
  %v11001 = vrot.slane %v8292, %v11000
  %v11002 = vlaneseq
  %v11003 = vshrl.u32 %v11002, 7
  %v11004 = vsub.s32 0, %v11003
  %v11005 = vrot.slane %v8294, %v11004
  %v11006 = vlaneseq
  %v11007 = vshrl.u32 %v11006, 7
  %v11008 = vsub.s32 0, %v11007
  %v11009 = vrot.slane %v8296, %v11008
  %v11010 = vmul.f32 %v10997, %v2969
  %v11011 = vmul.f32 %v11001, %v2971
  %v11012 = vmul.f32 %v11005, %v2973
  %v11013 = vmul.f32 %v11009, %v2975
  %v11018 = vcombine.low %v11010, %v11011
  %v11019 = vcombine.low %v11012, %v11013
  %11022 = vst [vmem:[%s3] sm:$0x77] %v11018
  %11023 = vst [vmem:[%s3 + $0x8] sm:$0x77] %v11019
  // Predicated region
  $region10: #{dam_forward.1} parent=0 // pred_check
    _
  $region11: #{dam_forward.1} parent=0 // pred_check_branch
    %11025 = sbr.rel (0) target = $region13
  $region12: #{dam_forward.1} parent=0 // pred_region
    _
  $region13: #{dam_forward.1} parent=0 // pred_fallthru
    _
  // Predicated region
  $region14: #{dam_forward.1} parent=0 // pred_check
    _
  $region15: #{dam_forward.1} parent=0 // pred_check_branch
    %11027 = sbr.rel (0) target = $region17
  $region16: #{dam_forward.1} parent=0 // pred_region
    _
  $region17: #{dam_forward.1} parent=0 // pred_fallthru
    _
  // Predicated region
  $region18: #{dam_forward.1} parent=0 // pred_check
    _
  $region19: #{dam_forward.1} parent=0 // pred_check_branch
    %11029 = sbr.rel (0) target = $region21
  $region20: #{dam_forward.1} parent=0 // pred_region
    _
  $region21: #{dam_forward.1} parent=0 // pred_fallthru
    _
  // Predicated region
  $region22: #{dam_forward.1} parent=0 // pred_check
    _
  $region23: #{dam_forward.1} parent=0 // pred_check_branch
    %11031 = sbr.rel (0) target = $region25
  $region24: #{dam_forward.1} parent=0 // pred_region
    _
  $region25: #{dam_forward.1} parent=0 // pred_fallthru
    _
  // Predicated region
  $region26: #{dam_forward.1} parent=0 // pred_check
    _
  $region27: #{dam_forward.1} parent=0 // pred_check_branch
    %11033 = sbr.rel (0) target = $region29
  $region28: #{dam_forward.1} parent=0 // pred_region
    _
  $region29: #{dam_forward.1} parent=0 // pred_fallthru
    _
  // Predicated region
  $region30: #{dam_forward.1} parent=0 // pred_check
    _
  $region31: #{dam_forward.1} parent=0 // pred_check_branch
    %11035 = sbr.rel (0) target = $region33
  $region32: #{dam_forward.1} parent=0 // pred_region
    _
  $region33: #{dam_forward.1} parent=0 // pred_fallthru
    _
  // Predicated region
  $region34: #{dam_forward.1} parent=0 // pred_check
    _
  $region35: #{dam_forward.1} parent=0 // pred_check_branch
    %11037 = sbr.rel (0) target = $region37
  $region36: #{dam_forward.1} parent=0 // pred_region
    _
  $region37: #{dam_forward.1} parent=0 // pred_fallthru
    _
  // Predicated region
  $region38: #{dam_forward.1} parent=0 // pred_check
    _
  $region39: #{dam_forward.1} parent=0 // pred_check_branch
    %11039 = sbr.rel (0) target = $region41
  $region40: #{dam_forward.1} parent=0 // pred_region
    _
  $region41: #{dam_forward.1} parent=0 // pred_fallthru
    _

</llo_original>
